<compile_context>
chip_gen: v5e
topology: v5e:2x2
jax: 0.10.0
libtpu: 0.0.40
codegen_flags: <defaults>
</compile_context>

<pallas_src>
import functools

import jax
import jax.numpy as jnp
from jax.experimental import pallas as pl
from jax.experimental.pallas import tpu as pltpu


C_PAD = 128                       # lane-dense channel padding (TPU lane width)
TILE_M_CAP = 512                  # per-grid-step GEMM M tile (review: 256-512)
_VMEM_LIMIT = 32 * 1024 * 1024    # explicit scoped-VMEM budget (safe on v5e/v6e/v7x)

_VMEM = pl.BlockSpec(memory_space=pltpu.MemorySpace.VMEM)


def _round_up(v, m):
    return (v + m - 1) // m * m


# ----------------------------------------------------------------------------
# Pallas kernels
# ----------------------------------------------------------------------------
def conv_bn_act_kernel(x_ref, w_ref, scale_ref, shift_ref, o_ref, *,
                       taps, tile_m, grid_m, apply_relu):
    """Fused conv (k*k tap GEMMs) + folded BatchNorm + ReLU.

    x_ref:     (1, n_phase, Nf, C_in)  flattened stride-phase-split input (one image)
    w_ref:     (n_taps, C_in, C_out)   tap-major weights (bf16, channel-padded to 128)
    scale_ref: (1, C_out), shift_ref: (1, C_out)   folded BN scale/shift (f32)
    o_ref:     (1, tile_m, C_out)      lane-dense output tile
    """
    m0 = 0 if grid_m == 1 else pl.program_id(1) * tile_m
    acc = None
    for t, (phase, off) in enumerate(taps):
        xt = x_ref[0, phase, pl.ds(m0 + off, tile_m), :].astype(jnp.bfloat16)
        contrib = jnp.dot(xt, w_ref[t], preferred_element_type=jnp.float32)
        acc = contrib if acc is None else acc + contrib
    y = acc * scale_ref[...] + shift_ref[...]
    if apply_relu:
        y = jnp.maximum(y, 0.0)
    o_ref[0] = y.astype(o_ref.dtype)


def maxpool_kernel(x_ref, o_ref, *, taps, tile_m, grid_m):
    # Elementwise max over the k*k taps, taps built in-kernel from the flat phases.
    m0 = 0 if grid_m == 1 else pl.program_id(1) * tile_m
    acc = None
    for phase, off in taps:
        v = x_ref[0, phase, pl.ds(m0 + off, tile_m), :]
        acc = v if acc is None else jnp.maximum(acc, v)
    o_ref[0] = acc


def head_kernel(feat_ref, lw_ref, ls_ref, lt_ref,
                w1_ref, s1_ref, t1_ref, w2_ref, s2_ref, t2_ref,
                w3_ref, b3_ref, o_ref):
    """Fused avgpool_1a + last_linear + last_bn + classifier MLP (Dropout = identity)."""
    pooled = jnp.mean(feat_ref[...], axis=1)                          # (B, C)
    emb = jnp.dot(pooled.astype(jnp.bfloat16), lw_ref[...],
                  preferred_element_type=jnp.float32)
    emb = emb * ls_ref[...] + lt_ref[...]                             # (B, 512)
    h = jnp.dot(emb.astype(jnp.bfloat16), w1_ref[...],
                preferred_element_type=jnp.float32)
    h = jnp.maximum(h * s1_ref[...] + t1_ref[...], 0.0)               # (B, 128)
    h = jnp.dot(h, w2_ref[...], preferred_element_type=jnp.float32)
    h = jnp.maximum(h * s2_ref[...] + t2_ref[...], 0.0)               # (B, 10)
    o_ref[...] = jnp.dot(h, w3_ref[...],
                         preferred_element_type=jnp.float32) + b3_ref[...]


# ----------------------------------------------------------------------------
# Geometry helpers (stride phases + flattened tap offsets; all XLA-level, ~1x traffic)
# ----------------------------------------------------------------------------
def _phase_split_flat(x, k, s):
    """Split an (already conv-padded) NHWC tensor into stride phases and flatten spatial.

    Returns xf (B, s*s, Hh*Wph, C) and tap (phase, flat-offset) pairs: each conv/pool tap
    becomes a unit-stride row-slice of xf inside the kernel.  Valid outputs live at flat
    index h*Wph + w (w < Wo); garbage columns are sliced off by the caller.
    """
    B, Hp, Wp, C = x.shape
    Ho = (Hp - k) // s + 1
    Wo = (Wp - k) // s + 1
    Hh = -(-Hp // s)
    Wph = -(-Wp // s)
    phases = []
    for pi in range(s):
        for pj in range(s):
            ph = x[:, pi::s, pj::s, :]
            ph = jnp.pad(ph, ((0, 0), (0, Hh - ph.shape[1]),
                              (0, Wph - ph.shape[2]), (0, 0)))
            phases.append(ph.reshape(B, Hh * Wph, C))
    xf = jnp.stack(phases, axis=1)                        # (B, s*s, Hh*Wph, C)
    taps = [((i % s) * s + (j % s), (i // s) * Wph + (j // s))
            for i in range(k) for j in range(k)]
    return xf, taps, Ho, Wo, Wph


def _flat_tap_geometry(x, k, s):
    xf, taps, Ho, Wo, Wph = _phase_split_flat(x, k, s)
    M = Ho * Wph                                          # valid flat rows (pitch Wph)
    tile_m = min(TILE_M_CAP, _round_up(M, 8))             # sublane-aligned M tile
    n_m = -(-_round_up(M, 8) // tile_m)
    M_pad = n_m * tile_m
    max_off = max(off for _, off in taps)
    need = _round_up(max(xf.shape[2], max_off + M_pad), 8)
    if xf.shape[2] < need:
        xf = jnp.pad(xf, ((0, 0), (0, 0), (0, need - xf.shape[2]), (0, 0)))
    return xf, taps, Ho, Wo, Wph, M, tile_m, n_m, M_pad


# ----------------------------------------------------------------------------
# Pallas wrappers
# ----------------------------------------------------------------------------
def conv_bn_relu(x, cp, k, stride, pad):
    """BasicConv2d: Conv2d(bias=False) + BatchNorm2d(eps=1e-3) + ReLU, one fused kernel."""
    if pad:
        x = jnp.pad(x, ((0, 0), (pad, pad), (pad, pad), (0, 0)))
    xf, taps, Ho, Wo, Wph, M, tile_m, n_m, M_pad = _flat_tap_geometry(x, k, stride)
    B, n_phase, Nf, Cin = xf.shape
    n_taps, _, Cout = cp["w"].shape
    flops = int(2 * B * M_pad * Cin * Cout * n_taps)
    bytes_accessed = int(4 * xf.size + 2 * cp["w"].size + 4 * B * M_pad * Cout)

    out = pl.pallas_call(
        functools.partial(conv_bn_act_kernel, taps=tuple(taps), tile_m=tile_m,
                          grid_m=n_m, apply_relu=True),
        out_shape=jax.ShapeDtypeStruct((B, M_pad, Cout), jnp.float32),
        grid_spec=pltpu.PrefetchScalarGridSpec(
            num_scalar_prefetch=0,
            grid=(B, n_m),
            in_specs=[
                pl.BlockSpec((1, n_phase, Nf, Cin), lambda b, m: (b, 0, 0, 0)),
                pl.BlockSpec((n_taps, Cin, Cout), lambda b, m: (0, 0, 0)),
                pl.BlockSpec((1, Cout), lambda b, m: (0, 0)),
                pl.BlockSpec((1, Cout), lambda b, m: (0, 0)),
            ],
            out_specs=pl.BlockSpec((1, tile_m, Cout), lambda b, m: (b, m, 0)),
        ),
        compiler_params=pltpu.CompilerParams(
            dimension_semantics=("parallel", "parallel"),
            vmem_limit_bytes=_VMEM_LIMIT),
        cost_estimate=pl.CostEstimate(flops=flops, transcendentals=0,
                                      bytes_accessed=bytes_accessed),
    )(xf, cp["w"], cp["scale"], cp["shift"])

    out = out[:, :M, :].reshape(B, Ho, Wph, Cout)[:, :, :Wo, :]
    return out


def maxpool(x, k, stride):
    xf, taps, Ho, Wo, Wph, M, tile_m, n_m, M_pad = _flat_tap_geometry(x, k, stride)
    B, n_phase, Nf, C = xf.shape
    out = pl.pallas_call(
        functools.partial(maxpool_kernel, taps=tuple(taps), tile_m=tile_m, grid_m=n_m),
        out_shape=jax.ShapeDtypeStruct((B, M_pad, C), jnp.float32),
        grid_spec=pltpu.PrefetchScalarGridSpec(
            num_scalar_prefetch=0,
            grid=(B, n_m),
            in_specs=[pl.BlockSpec((1, n_phase, Nf, C), lambda b, m: (b, 0, 0, 0))],
            out_specs=pl.BlockSpec((1, tile_m, C), lambda b, m: (b, m, 0)),
        ),
        compiler_params=pltpu.CompilerParams(
            dimension_semantics=("parallel", "parallel"),
            vmem_limit_bytes=_VMEM_LIMIT),
    )(xf)
    return out[:, :M, :].reshape(B, Ho, Wph, C)[:, :, :Wo, :]


def head(feat, p):
    # Fused avgpool_1a + last_linear + last_bn + classifier (everything fits one VMEM block).
    B = feat.shape[0]
    return pl.pallas_call(
        head_kernel,
        out_shape=jax.ShapeDtypeStruct((B, 1), jnp.float32),
        in_specs=[_VMEM] * 12,
        out_specs=_VMEM,
        compiler_params=pltpu.CompilerParams(vmem_limit_bytes=_VMEM_LIMIT),
    )(feat, p["last_w"], p["last_scale"], p["last_shift"],
      p["cls_w1"], p["cls_s1"], p["cls_t1"],
      p["cls_w2"], p["cls_s2"], p["cls_t2"],
      p["cls_w3"], p["cls_b3"])


# ----------------------------------------------------------------------------
# Forward pass (FaceNet.forward, inference mode)
# ----------------------------------------------------------------------------
def facenet_forward(x_nchw, p):
    x = jnp.transpose(x_nchw, (0, 2, 3, 1))                           # NCHW -> NHWC
    x = jnp.pad(x, ((0, 0), (0, 0), (0, 0), (0, C_PAD - x.shape[-1])))  # lane-dense channels

    # --- self.features: InceptionResnetV1 stem (frozen) ---------------------
    x = conv_bn_relu(x, p["conv1"], k=3, stride=2, pad=0)   # conv2d_1a
    x = conv_bn_relu(x, p["conv2"], k=3, stride=1, pad=0)   # conv2d_2a
    x = conv_bn_relu(x, p["conv3"], k=3, stride=1, pad=1)   # conv2d_2b
    x = maxpool(x, k=3, stride=2)                           # maxpool_3a
    x = conv_bn_relu(x, p["conv4"], k=1, stride=1, pad=0)   # conv2d_3b
    x = conv_bn_relu(x, p["conv5"], k=3, stride=1, pad=0)   # conv2d_4a
    x = conv_bn_relu(x, p["conv6"], k=3, stride=2, pad=0)   # conv2d_4b
    # TODO(synk): repeat_1 / mixed_6a / repeat_2 / mixed_7a / repeat_3 / block8 Inception-ResNet
    # blocks of the pretrained backbone are not reproduced here (reduced synthetic stem).

    # --- fused head: avgpool_1a + flatten + last_linear + last_bn + classifier
    B, Hf, Wf, C = x.shape
    feat = x.reshape(B, Hf * Wf, C)
    out = head(feat, p)                                     # (B, 1)
    return out[:, 0]                                        # .squeeze() -> (B,)


# ----------------------------------------------------------------------------
# Deterministic synthetic parameters (channel dims padded to 128, weights bf16)
# ----------------------------------------------------------------------------
def _bn_fold(gamma, beta, mean, var, eps, bias=None):
    scale = gamma / jnp.sqrt(var + eps)
    shift = beta - mean * scale
    if bias is not None:
        shift = shift + bias * scale
    return scale[None, :], shift[None, :]


def init_params(key):
    p = {}
    conv_cfg = [("conv1", 3, 8, 3), ("conv2", 8, 8, 3), ("conv3", 8, 16, 3),
                ("conv4", 16, 24, 1), ("conv5", 24, 32, 3), ("conv6", 32, 48, 3)]
    keys = jax.random.split(key, len(conv_cfg) + 11)

    for idx, (name, cin, cout, k) in enumerate(conv_cfg):
        k1, k2, k3 = jax.random.split(keys[idx], 3)
        w = jax.random.normal(k1, (cout, cin, k, k), jnp.float32) / jnp.sqrt(cin * k * k)
        # tap-major (kh*kw, Cin, Cout), zero-padded to lane-dense 128x128 tiles
        wt = jnp.transpose(w, (2, 3, 1, 0)).reshape(k * k, cin, cout)
        wmat = jnp.zeros((k * k, C_PAD, C_PAD), jnp.float32).at[:, :cin, :cout].set(wt)
        gamma = 1.0 + 0.1 * jax.random.normal(k2, (cout,), jnp.float32)
        beta = 0.1 * jax.random.normal(k3, (cout,), jnp.float32)
        scale, shift = _bn_fold(gamma, beta, jnp.zeros((cout,)), jnp.ones((cout,)), 1e-3)
        # padded output channels get scale=0, shift=0 -> ReLU(0)=0 (inert downstream)
        scale_p = jnp.zeros((1, C_PAD), jnp.float32).at[:, :cout].set(scale)
        shift_p = jnp.zeros((1, C_PAD), jnp.float32).at[:, :cout].set(shift)
        p[name] = {"w": wmat.astype(jnp.bfloat16), "scale": scale_p, "shift": shift_p}

    c_feat = 48  # channels after the reduced stem (1792 in the full backbone)
    kk = keys[len(conv_cfg):]

    # last_linear (bias=False) + last_bn (BatchNorm1d, eps=1e-3)
    w_last = jax.random.normal(kk[0], (512, c_feat), jnp.float32) / jnp.sqrt(c_feat)
    g = 1.0 + 0.1 * jax.random.normal(kk[1], (512,), jnp.float32)
    b = 0.1 * jax.random.normal(kk[2], (512,), jnp.float32)
    lw = jnp.zeros((C_PAD, 512), jnp.float32).at[:c_feat, :].set(w_last.T)
    p["last_w"] = lw.astype(jnp.bfloat16)
    p["last_scale"], p["last_shift"] = _bn_fold(g, b, jnp.zeros((512,)), jnp.ones((512,)), 1e-3)

    # classifier: Linear(512,128)+BN+ReLU -> Linear(128,10)+BN+ReLU -> Linear(10,1)
    w1 = jax.random.normal(kk[3], (128, 512), jnp.float32) / jnp.sqrt(512.0)
    b1 = 0.01 * jax.random.normal(kk[4], (128,), jnp.float32)
    g1 = 1.0 + 0.1 * jax.random.normal(kk[5], (128,), jnp.float32)
    be1 = 0.05 * jnp.ones((128,), jnp.float32)
    p["cls_w1"] = w1.T.astype(jnp.bfloat16)
    p["cls_s1"], p["cls_t1"] = _bn_fold(g1, be1, jnp.zeros((128,)), jnp.ones((128,)), 1e-5, bias=b1)

    w2 = jax.random.normal(kk[6], (10, 128), jnp.float32) / jnp.sqrt(128.0)
    b2 = 0.01 * jax.random.normal(kk[7], (10,), jnp.float32)
    g2 = 1.0 + 0.1 * jax.random.normal(kk[8], (10,), jnp.float32)
    be2 = 0.05 * jnp.ones((10,), jnp.float32)
    p["cls_w2"] = w2.T
    p["cls_s2"], p["cls_t2"] = _bn_fold(g2, be2, jnp.zeros((10,)), jnp.ones((10,)), 1e-5, bias=b2)

    w3 = jax.random.normal(kk[9], (1, 10), jnp.float32) / jnp.sqrt(10.0)
    b3 = 0.01 * jax.random.normal(kk[10], (1,), jnp.float32)
    p["cls_w3"] = w3.T
    p["cls_b3"] = b3[None, :]
    return p


# ----------------------------------------------------------------------------
if __name__ == "__main__":
    key = jax.random.PRNGKey(0)
    k_x, k_p = jax.random.split(key)

    # Small input consistent with the module: NCHW image batch (B=2, 3 channels, 35x35).
    x = jax.random.normal(k_x, (2, 3, 35, 35), jnp.float32)
    params = init_params(k_p)

    fwd = jax.jit(facenet_forward)
    out = jax.block_until_ready(fwd(x, params))

    assert out.shape == (2,), out.shape
    assert out.dtype == jnp.float32
    assert bool(jnp.all(jnp.isfinite(out)))
    print("KERNEL_OK")
</pallas_src>

<mosaic_0001>
module attributes {stable_mosaic.version = 11 : i64} {
  func.func @conv_bn_act_kernel(%arg0: i32, %arg1: i32, %arg2: memref<1x4x336x128xf32, #tpu.memory_space<vmem>>, %arg3: memref<9x128x128xbf16, #tpu.memory_space<vmem>>, %arg4: memref<1x128xf32, #tpu.memory_space<vmem>>, %arg5: memref<1x128xf32, #tpu.memory_space<vmem>>, %arg6: memref<1x312x128xf32, #tpu.memory_space<vmem>>) attributes {dimension_semantics = [#tpu.dimension_semantics<parallel>, #tpu.dimension_semantics<parallel>], iteration_bounds = array<i64: 2, 1>, scalar_prefetch = 0 : i64, scratch_operands = 0 : i64, tpu.core_type = #tpu.core_type<tc>, window_params = [{transform_indices = @transform_0, window_bounds = array<i64: 1, 4, 336, 128>}, {pipeline_mode = #tpu.pipeline_mode<synchronous>, transform_indices = @transform_1, window_bounds = array<i64: 9, 128, 128>}, {pipeline_mode = #tpu.pipeline_mode<synchronous>, transform_indices = @transform_2, window_bounds = array<i64: 1, 128>}, {pipeline_mode = #tpu.pipeline_mode<synchronous>, transform_indices = @transform_3, window_bounds = array<i64: 1, 128>}, {transform_indices = @transform_4, window_bounds = array<i64: 1, 312, 128>}]} {
    %c0 = arith.constant 0 : index
    %c0_0 = arith.constant 0 : index
    %c0_1 = arith.constant 0 : index
    %c0_2 = arith.constant 0 : index
    %0 = vector.load %arg2[%c0, %c0_0, %c0_1, %c0_2] : memref<1x4x336x128xf32, #tpu.memory_space<vmem>>, vector<1x1x312x128xf32>
    %1 = vector.shape_cast %0 : vector<1x1x312x128xf32> to vector<312x128xf32>
    %2 = arith.truncf %1 : vector<312x128xf32> to vector<312x128xbf16>
    %c0_3 = arith.constant 0 : index
    %c0_4 = arith.constant 0 : index
    %c0_5 = arith.constant 0 : index
    %3 = vector.load %arg3[%c0_3, %c0_4, %c0_5] : memref<9x128x128xbf16, #tpu.memory_space<vmem>>, vector<1x128x128xbf16>
    %4 = vector.shape_cast %3 : vector<1x128x128xbf16> to vector<128x128xbf16>
    %cst = arith.constant dense<0.000000e+00> : vector<312x128xf32>
    %5 = tpu.matmul %2, %4, %cst {dimension_numbers = #tpu.dot_dimension_numbers<[1], [0], [0], [1], [0, 0, 1, 1], [], []>} : vector<312x128xbf16>, vector<128x128xbf16>, vector<312x128xf32> -> vector<312x128xf32>
    %c0_6 = arith.constant 0 : index
    %c1 = arith.constant 1 : index
    %c0_7 = arith.constant 0 : index
    %c0_8 = arith.constant 0 : index
    %6 = vector.load %arg2[%c0_6, %c1, %c0_7, %c0_8] : memref<1x4x336x128xf32, #tpu.memory_space<vmem>>, vector<1x1x312x128xf32>
    %7 = vector.shape_cast %6 : vector<1x1x312x128xf32> to vector<312x128xf32>
    %8 = arith.truncf %7 : vector<312x128xf32> to vector<312x128xbf16>
    %c1_9 = arith.constant 1 : index
    %c0_10 = arith.constant 0 : index
    %c0_11 = arith.constant 0 : index
    %9 = vector.load %arg3[%c1_9, %c0_10, %c0_11] : memref<9x128x128xbf16, #tpu.memory_space<vmem>>, vector<1x128x128xbf16>
    %10 = vector.shape_cast %9 : vector<1x128x128xbf16> to vector<128x128xbf16>
    %cst_12 = arith.constant dense<0.000000e+00> : vector<312x128xf32>
    %11 = tpu.matmul %8, %10, %cst_12 {dimension_numbers = #tpu.dot_dimension_numbers<[1], [0], [0], [1], [0, 0, 1, 1], [], []>} : vector<312x128xbf16>, vector<128x128xbf16>, vector<312x128xf32> -> vector<312x128xf32>
    %12 = arith.addf %5, %11 : vector<312x128xf32>
    %c0_13 = arith.constant 0 : index
    %c0_14 = arith.constant 0 : index
    %c1_15 = arith.constant 1 : index
    %c0_16 = arith.constant 0 : index
    %13 = vector.load %arg2[%c0_13, %c0_14, %c1_15, %c0_16] : memref<1x4x336x128xf32, #tpu.memory_space<vmem>>, vector<1x1x312x128xf32>
    %14 = vector.shape_cast %13 : vector<1x1x312x128xf32> to vector<312x128xf32>
    %15 = arith.truncf %14 : vector<312x128xf32> to vector<312x128xbf16>
    %c2 = arith.constant 2 : index
    %c0_17 = arith.constant 0 : index
    %c0_18 = arith.constant 0 : index
    %16 = vector.load %arg3[%c2, %c0_17, %c0_18] : memref<9x128x128xbf16, #tpu.memory_space<vmem>>, vector<1x128x128xbf16>
    %17 = vector.shape_cast %16 : vector<1x128x128xbf16> to vector<128x128xbf16>
    %cst_19 = arith.constant dense<0.000000e+00> : vector<312x128xf32>
    %18 = tpu.matmul %15, %17, %cst_19 {dimension_numbers = #tpu.dot_dimension_numbers<[1], [0], [0], [1], [0, 0, 1, 1], [], []>} : vector<312x128xbf16>, vector<128x128xbf16>, vector<312x128xf32> -> vector<312x128xf32>
    %19 = arith.addf %12, %18 : vector<312x128xf32>
    %c0_20 = arith.constant 0 : index
    %c2_21 = arith.constant 2 : index
    %c0_22 = arith.constant 0 : index
    %c0_23 = arith.constant 0 : index
    %20 = vector.load %arg2[%c0_20, %c2_21, %c0_22, %c0_23] : memref<1x4x336x128xf32, #tpu.memory_space<vmem>>, vector<1x1x312x128xf32>
    %21 = vector.shape_cast %20 : vector<1x1x312x128xf32> to vector<312x128xf32>
    %22 = arith.truncf %21 : vector<312x128xf32> to vector<312x128xbf16>
    %c3 = arith.constant 3 : index
    %c0_24 = arith.constant 0 : index
    %c0_25 = arith.constant 0 : index
    %23 = vector.load %arg3[%c3, %c0_24, %c0_25] : memref<9x128x128xbf16, #tpu.memory_space<vmem>>, vector<1x128x128xbf16>
    %24 = vector.shape_cast %23 : vector<1x128x128xbf16> to vector<128x128xbf16>
    %cst_26 = arith.constant dense<0.000000e+00> : vector<312x128xf32>
    %25 = tpu.matmul %22, %24, %cst_26 {dimension_numbers = #tpu.dot_dimension_numbers<[1], [0], [0], [1], [0, 0, 1, 1], [], []>} : vector<312x128xbf16>, vector<128x128xbf16>, vector<312x128xf32> -> vector<312x128xf32>
    %26 = arith.addf %19, %25 : vector<312x128xf32>
    %c0_27 = arith.constant 0 : index
    %c3_28 = arith.constant 3 : index
    %c0_29 = arith.constant 0 : index
    %c0_30 = arith.constant 0 : index
    %27 = vector.load %arg2[%c0_27, %c3_28, %c0_29, %c0_30] : memref<1x4x336x128xf32, #tpu.memory_space<vmem>>, vector<1x1x312x128xf32>
    %28 = vector.shape_cast %27 : vector<1x1x312x128xf32> to vector<312x128xf32>
    %29 = arith.truncf %28 : vector<312x128xf32> to vector<312x128xbf16>
    %c4 = arith.constant 4 : index
    %c0_31 = arith.constant 0 : index
    %c0_32 = arith.constant 0 : index
    %30 = vector.load %arg3[%c4, %c0_31, %c0_32] : memref<9x128x128xbf16, #tpu.memory_space<vmem>>, vector<1x128x128xbf16>
    %31 = vector.shape_cast %30 : vector<1x128x128xbf16> to vector<128x128xbf16>
    %cst_33 = arith.constant dense<0.000000e+00> : vector<312x128xf32>
    %32 = tpu.matmul %29, %31, %cst_33 {dimension_numbers = #tpu.dot_dimension_numbers<[1], [0], [0], [1], [0, 0, 1, 1], [], []>} : vector<312x128xbf16>, vector<128x128xbf16>, vector<312x128xf32> -> vector<312x128xf32>
    %33 = arith.addf %26, %32 : vector<312x128xf32>
    %c0_34 = arith.constant 0 : index
    %c2_35 = arith.constant 2 : index
    %c1_36 = arith.constant 1 : index
    %c0_37 = arith.constant 0 : index
    %34 = vector.load %arg2[%c0_34, %c2_35, %c1_36, %c0_37] : memref<1x4x336x128xf32, #tpu.memory_space<vmem>>, vector<1x1x312x128xf32>
    %35 = vector.shape_cast %34 : vector<1x1x312x128xf32> to vector<312x128xf32>
    %36 = arith.truncf %35 : vector<312x128xf32> to vector<312x128xbf16>
    %c5 = arith.constant 5 : index
    %c0_38 = arith.constant 0 : index
    %c0_39 = arith.constant 0 : index
    %37 = vector.load %arg3[%c5, %c0_38, %c0_39] : memref<9x128x128xbf16, #tpu.memory_space<vmem>>, vector<1x128x128xbf16>
    %38 = vector.shape_cast %37 : vector<1x128x128xbf16> to vector<128x128xbf16>
    %cst_40 = arith.constant dense<0.000000e+00> : vector<312x128xf32>
    %39 = tpu.matmul %36, %38, %cst_40 {dimension_numbers = #tpu.dot_dimension_numbers<[1], [0], [0], [1], [0, 0, 1, 1], [], []>} : vector<312x128xbf16>, vector<128x128xbf16>, vector<312x128xf32> -> vector<312x128xf32>
    %40 = arith.addf %33, %39 : vector<312x128xf32>
    %c0_41 = arith.constant 0 : index
    %c0_42 = arith.constant 0 : index
    %c18 = arith.constant 18 : index
    %c0_43 = arith.constant 0 : index
    %41 = vector.load %arg2[%c0_41, %c0_42, %c18, %c0_43] : memref<1x4x336x128xf32, #tpu.memory_space<vmem>>, vector<1x1x312x128xf32>
    %42 = vector.shape_cast %41 : vector<1x1x312x128xf32> to vector<312x128xf32>
    %43 = arith.truncf %42 : vector<312x128xf32> to vector<312x128xbf16>
    %c6 = arith.constant 6 : index
    %c0_44 = arith.constant 0 : index
    %c0_45 = arith.constant 0 : index
    %44 = vector.load %arg3[%c6, %c0_44, %c0_45] : memref<9x128x128xbf16, #tpu.memory_space<vmem>>, vector<1x128x128xbf16>
    %45 = vector.shape_cast %44 : vector<1x128x128xbf16> to vector<128x128xbf16>
    %cst_46 = arith.constant dense<0.000000e+00> : vector<312x128xf32>
    %46 = tpu.matmul %43, %45, %cst_46 {dimension_numbers = #tpu.dot_dimension_numbers<[1], [0], [0], [1], [0, 0, 1, 1], [], []>} : vector<312x128xbf16>, vector<128x128xbf16>, vector<312x128xf32> -> vector<312x128xf32>
    %47 = arith.addf %40, %46 : vector<312x128xf32>
    %c0_47 = arith.constant 0 : index
    %c1_48 = arith.constant 1 : index
    %c18_49 = arith.constant 18 : index
    %c0_50 = arith.constant 0 : index
    %48 = vector.load %arg2[%c0_47, %c1_48, %c18_49, %c0_50] : memref<1x4x336x128xf32, #tpu.memory_space<vmem>>, vector<1x1x312x128xf32>
    %49 = vector.shape_cast %48 : vector<1x1x312x128xf32> to vector<312x128xf32>
    %50 = arith.truncf %49 : vector<312x128xf32> to vector<312x128xbf16>
    %c7 = arith.constant 7 : index
    %c0_51 = arith.constant 0 : index
    %c0_52 = arith.constant 0 : index
    %51 = vector.load %arg3[%c7, %c0_51, %c0_52] : memref<9x128x128xbf16, #tpu.memory_space<vmem>>, vector<1x128x128xbf16>
    %52 = vector.shape_cast %51 : vector<1x128x128xbf16> to vector<128x128xbf16>
    %cst_53 = arith.constant dense<0.000000e+00> : vector<312x128xf32>
    %53 = tpu.matmul %50, %52, %cst_53 {dimension_numbers = #tpu.dot_dimension_numbers<[1], [0], [0], [1], [0, 0, 1, 1], [], []>} : vector<312x128xbf16>, vector<128x128xbf16>, vector<312x128xf32> -> vector<312x128xf32>
    %54 = arith.addf %47, %53 : vector<312x128xf32>
    %c0_54 = arith.constant 0 : index
    %c0_55 = arith.constant 0 : index
    %c19 = arith.constant 19 : index
    %c0_56 = arith.constant 0 : index
    %55 = vector.load %arg2[%c0_54, %c0_55, %c19, %c0_56] : memref<1x4x336x128xf32, #tpu.memory_space<vmem>>, vector<1x1x312x128xf32>
    %56 = vector.shape_cast %55 : vector<1x1x312x128xf32> to vector<312x128xf32>
    %57 = arith.truncf %56 : vector<312x128xf32> to vector<312x128xbf16>
    %c8 = arith.constant 8 : index
    %c0_57 = arith.constant 0 : index
    %c0_58 = arith.constant 0 : index
    %58 = vector.load %arg3[%c8, %c0_57, %c0_58] : memref<9x128x128xbf16, #tpu.memory_space<vmem>>, vector<1x128x128xbf16>
    %59 = vector.shape_cast %58 : vector<1x128x128xbf16> to vector<128x128xbf16>
    %cst_59 = arith.constant dense<0.000000e+00> : vector<312x128xf32>
    %60 = tpu.matmul %57, %59, %cst_59 {dimension_numbers = #tpu.dot_dimension_numbers<[1], [0], [0], [1], [0, 0, 1, 1], [], []>} : vector<312x128xbf16>, vector<128x128xbf16>, vector<312x128xf32> -> vector<312x128xf32>
    %61 = arith.addf %54, %60 : vector<312x128xf32>
    %c0_60 = arith.constant 0 : index
    %c0_61 = arith.constant 0 : index
    %62 = vector.load %arg4[%c0_60, %c0_61] : memref<1x128xf32, #tpu.memory_space<vmem>>, vector<1x128xf32>
    %63 = vector.broadcast %62 : vector<1x128xf32> to vector<312x128xf32>
    %64 = arith.mulf %61, %63 : vector<312x128xf32>
    %c0_62 = arith.constant 0 : index
    %c0_63 = arith.constant 0 : index
    %65 = vector.load %arg5[%c0_62, %c0_63] : memref<1x128xf32, #tpu.memory_space<vmem>>, vector<1x128xf32>
    %66 = vector.broadcast %65 : vector<1x128xf32> to vector<312x128xf32>
    %67 = arith.addf %64, %66 : vector<312x128xf32>
    %cst_64 = arith.constant 0.000000e+00 : f32
    %68 = vector.broadcast %cst_64 : f32 to vector<312x128xf32>
    %69 = arith.maximumf %67, %68 : vector<312x128xf32>
    %c0_65 = arith.constant 0 : index
    %c0_66 = arith.constant 0 : index
    %c0_67 = arith.constant 0 : index
    %70 = vector.load %arg6[%c0_65, %c0_66, %c0_67] : memref<1x312x128xf32, #tpu.memory_space<vmem>>, vector<1x312x128xf32>
    %71 = vector.shape_cast %70 : vector<1x312x128xf32> to vector<312x128xf32>
    %72 = vector.shape_cast %69 : vector<312x128xf32> to vector<1x312x128xf32>
    tpu.vector_store %arg6[%c0_65, %c0_66, %c0_67], %72 {strides = array<i32>} : memref<1x312x128xf32, #tpu.memory_space<vmem>>, vector<1x312x128xf32>,
    return
  }
  func.func @transform_0(%arg0: i32, %arg1: i32) -> (i32, i32, i32, i32) {
    %c0_i32 = arith.constant 0 : i32
    %c0_i32_0 = arith.constant 0 : i32
    %c0_i32_1 = arith.constant 0 : i32
    %c0_i32_2 = arith.constant 0 : i32
    return %arg0, %c0_i32, %c0_i32_0, %c0_i32_1 : i32, i32, i32, i32
  }
  func.func @transform_1(%arg0: i32, %arg1: i32) -> (i32, i32, i32) {
    %c0_i32 = arith.constant 0 : i32
    %c0_i32_0 = arith.constant 0 : i32
    %c0_i32_1 = arith.constant 0 : i32
    %c0_i32_2 = arith.constant 0 : i32
    return %c0_i32, %c0_i32_0, %c0_i32_1 : i32, i32, i32
  }
  func.func @transform_2(%arg0: i32, %arg1: i32) -> (i32, i32) {
    %c0_i32 = arith.constant 0 : i32
    %c0_i32_0 = arith.constant 0 : i32
    %c0_i32_1 = arith.constant 0 : i32
    return %c0_i32, %c0_i32_0 : i32, i32
  }
  func.func @transform_3(%arg0: i32, %arg1: i32) -> (i32, i32) {
    %c0_i32 = arith.constant 0 : i32
    %c0_i32_0 = arith.constant 0 : i32
    %c0_i32_1 = arith.constant 0 : i32
    return %c0_i32, %c0_i32_0 : i32, i32
  }
  func.func @transform_4(%arg0: i32, %arg1: i32) -> (i32, i32, i32) {
    %c0_i32 = arith.constant 0 : i32
    %c0_i32_0 = arith.constant 0 : i32
    return %arg0, %arg1, %c0_i32 : i32, i32, i32
  }
}

module attributes {stable_mosaic.version = 11 : i64} {
  func.func @conv_bn_act_kernel(%arg0: i32, %arg1: i32, %arg2: memref<1x1x296x128xf32, #tpu.memory_space<vmem>>, %arg3: memref<9x128x128xbf16, #tpu.memory_space<vmem>>, %arg4: memref<1x128xf32, #tpu.memory_space<vmem>>, %arg5: memref<1x128xf32, #tpu.memory_space<vmem>>, %arg6: memref<1x256x128xf32, #tpu.memory_space<vmem>>) attributes {dimension_semantics = [#tpu.dimension_semantics<parallel>, #tpu.dimension_semantics<parallel>], iteration_bounds = array<i64: 2, 1>, scalar_prefetch = 0 : i64, scratch_operands = 0 : i64, tpu.core_type = #tpu.core_type<tc>, window_params = [{transform_indices = @transform_0, window_bounds = array<i64: 1, 1, 296, 128>}, {pipeline_mode = #tpu.pipeline_mode<synchronous>, transform_indices = @transform_1, window_bounds = array<i64: 9, 128, 128>}, {pipeline_mode = #tpu.pipeline_mode<synchronous>, transform_indices = @transform_2, window_bounds = array<i64: 1, 128>}, {pipeline_mode = #tpu.pipeline_mode<synchronous>, transform_indices = @transform_3, window_bounds = array<i64: 1, 128>}, {transform_indices = @transform_4, window_bounds = array<i64: 1, 256, 128>}]} {
    %c0 = arith.constant 0 : index
    %c0_0 = arith.constant 0 : index
    %c0_1 = arith.constant 0 : index
    %c0_2 = arith.constant 0 : index
    %0 = vector.load %arg2[%c0, %c0_0, %c0_1, %c0_2] : memref<1x1x296x128xf32, #tpu.memory_space<vmem>>, vector<1x1x256x128xf32>
    %1 = vector.shape_cast %0 : vector<1x1x256x128xf32> to vector<256x128xf32>
    %2 = arith.truncf %1 : vector<256x128xf32> to vector<256x128xbf16>
    %c0_3 = arith.constant 0 : index
    %c0_4 = arith.constant 0 : index
    %c0_5 = arith.constant 0 : index
    %3 = vector.load %arg3[%c0_3, %c0_4, %c0_5] : memref<9x128x128xbf16, #tpu.memory_space<vmem>>, vector<1x128x128xbf16>
    %4 = vector.shape_cast %3 : vector<1x128x128xbf16> to vector<128x128xbf16>
    %cst = arith.constant dense<0.000000e+00> : vector<256x128xf32>
    %5 = tpu.matmul %2, %4, %cst {dimension_numbers = #tpu.dot_dimension_numbers<[1], [0], [0], [1], [0, 0, 1, 1], [], []>} : vector<256x128xbf16>, vector<128x128xbf16>, vector<256x128xf32> -> vector<256x128xf32>
    %c0_6 = arith.constant 0 : index
    %c0_7 = arith.constant 0 : index
    %c1 = arith.constant 1 : index
    %c0_8 = arith.constant 0 : index
    %6 = vector.load %arg2[%c0_6, %c0_7, %c1, %c0_8] : memref<1x1x296x128xf32, #tpu.memory_space<vmem>>, vector<1x1x256x128xf32>
    %7 = vector.shape_cast %6 : vector<1x1x256x128xf32> to vector<256x128xf32>
    %8 = arith.truncf %7 : vector<256x128xf32> to vector<256x128xbf16>
    %c1_9 = arith.constant 1 : index
    %c0_10 = arith.constant 0 : index
    %c0_11 = arith.constant 0 : index
    %9 = vector.load %arg3[%c1_9, %c0_10, %c0_11] : memref<9x128x128xbf16, #tpu.memory_space<vmem>>, vector<1x128x128xbf16>
    %10 = vector.shape_cast %9 : vector<1x128x128xbf16> to vector<128x128xbf16>
    %cst_12 = arith.constant dense<0.000000e+00> : vector<256x128xf32>
    %11 = tpu.matmul %8, %10, %cst_12 {dimension_numbers = #tpu.dot_dimension_numbers<[1], [0], [0], [1], [0, 0, 1, 1], [], []>} : vector<256x128xbf16>, vector<128x128xbf16>, vector<256x128xf32> -> vector<256x128xf32>
    %12 = arith.addf %5, %11 : vector<256x128xf32>
    %c0_13 = arith.constant 0 : index
    %c0_14 = arith.constant 0 : index
    %c2 = arith.constant 2 : index
    %c0_15 = arith.constant 0 : index
    %13 = vector.load %arg2[%c0_13, %c0_14, %c2, %c0_15] : memref<1x1x296x128xf32, #tpu.memory_space<vmem>>, vector<1x1x256x128xf32>
    %14 = vector.shape_cast %13 : vector<1x1x256x128xf32> to vector<256x128xf32>
    %15 = arith.truncf %14 : vector<256x128xf32> to vector<256x128xbf16>
    %c2_16 = arith.constant 2 : index
    %c0_17 = arith.constant 0 : index
    %c0_18 = arith.constant 0 : index
    %16 = vector.load %arg3[%c2_16, %c0_17, %c0_18] : memref<9x128x128xbf16, #tpu.memory_space<vmem>>, vector<1x128x128xbf16>
    %17 = vector.shape_cast %16 : vector<1x128x128xbf16> to vector<128x128xbf16>
    %cst_19 = arith.constant dense<0.000000e+00> : vector<256x128xf32>
    %18 = tpu.matmul %15, %17, %cst_19 {dimension_numbers = #tpu.dot_dimension_numbers<[1], [0], [0], [1], [0, 0, 1, 1], [], []>} : vector<256x128xbf16>, vector<128x128xbf16>, vector<256x128xf32> -> vector<256x128xf32>
    %19 = arith.addf %12, %18 : vector<256x128xf32>
    %c0_20 = arith.constant 0 : index
    %c0_21 = arith.constant 0 : index
    %c17 = arith.constant 17 : index
    %c0_22 = arith.constant 0 : index
    %20 = vector.load %arg2[%c0_20, %c0_21, %c17, %c0_22] : memref<1x1x296x128xf32, #tpu.memory_space<vmem>>, vector<1x1x256x128xf32>
    %21 = vector.shape_cast %20 : vector<1x1x256x128xf32> to vector<256x128xf32>
    %22 = arith.truncf %21 : vector<256x128xf32> to vector<256x128xbf16>
    %c3 = arith.constant 3 : index
    %c0_23 = arith.constant 0 : index
    %c0_24 = arith.constant 0 : index
    %23 = vector.load %arg3[%c3, %c0_23, %c0_24] : memref<9x128x128xbf16, #tpu.memory_space<vmem>>, vector<1x128x128xbf16>
    %24 = vector.shape_cast %23 : vector<1x128x128xbf16> to vector<128x128xbf16>
    %cst_25 = arith.constant dense<0.000000e+00> : vector<256x128xf32>
    %25 = tpu.matmul %22, %24, %cst_25 {dimension_numbers = #tpu.dot_dimension_numbers<[1], [0], [0], [1], [0, 0, 1, 1], [], []>} : vector<256x128xbf16>, vector<128x128xbf16>, vector<256x128xf32> -> vector<256x128xf32>
    %26 = arith.addf %19, %25 : vector<256x128xf32>
    %c0_26 = arith.constant 0 : index
    %c0_27 = arith.constant 0 : index
    %c18 = arith.constant 18 : index
    %c0_28 = arith.constant 0 : index
    %27 = vector.load %arg2[%c0_26, %c0_27, %c18, %c0_28] : memref<1x1x296x128xf32, #tpu.memory_space<vmem>>, vector<1x1x256x128xf32>
    %28 = vector.shape_cast %27 : vector<1x1x256x128xf32> to vector<256x128xf32>
    %29 = arith.truncf %28 : vector<256x128xf32> to vector<256x128xbf16>
    %c4 = arith.constant 4 : index
    %c0_29 = arith.constant 0 : index
    %c0_30 = arith.constant 0 : index
    %30 = vector.load %arg3[%c4, %c0_29, %c0_30] : memref<9x128x128xbf16, #tpu.memory_space<vmem>>, vector<1x128x128xbf16>
    %31 = vector.shape_cast %30 : vector<1x128x128xbf16> to vector<128x128xbf16>
    %cst_31 = arith.constant dense<0.000000e+00> : vector<256x128xf32>
    %32 = tpu.matmul %29, %31, %cst_31 {dimension_numbers = #tpu.dot_dimension_numbers<[1], [0], [0], [1], [0, 0, 1, 1], [], []>} : vector<256x128xbf16>, vector<128x128xbf16>, vector<256x128xf32> -> vector<256x128xf32>
    %33 = arith.addf %26, %32 : vector<256x128xf32>
    %c0_32 = arith.constant 0 : index
    %c0_33 = arith.constant 0 : index
    %c19 = arith.constant 19 : index
    %c0_34 = arith.constant 0 : index
    %34 = vector.load %arg2[%c0_32, %c0_33, %c19, %c0_34] : memref<1x1x296x128xf32, #tpu.memory_space<vmem>>, vector<1x1x256x128xf32>
    %35 = vector.shape_cast %34 : vector<1x1x256x128xf32> to vector<256x128xf32>
    %36 = arith.truncf %35 : vector<256x128xf32> to vector<256x128xbf16>
    %c5 = arith.constant 5 : index
    %c0_35 = arith.constant 0 : index
    %c0_36 = arith.constant 0 : index
    %37 = vector.load %arg3[%c5, %c0_35, %c0_36] : memref<9x128x128xbf16, #tpu.memory_space<vmem>>, vector<1x128x128xbf16>
    %38 = vector.shape_cast %37 : vector<1x128x128xbf16> to vector<128x128xbf16>
    %cst_37 = arith.constant dense<0.000000e+00> : vector<256x128xf32>
    %39 = tpu.matmul %36, %38, %cst_37 {dimension_numbers = #tpu.dot_dimension_numbers<[1], [0], [0], [1], [0, 0, 1, 1], [], []>} : vector<256x128xbf16>, vector<128x128xbf16>, vector<256x128xf32> -> vector<256x128xf32>
    %40 = arith.addf %33, %39 : vector<256x128xf32>
    %c0_38 = arith.constant 0 : index
    %c0_39 = arith.constant 0 : index
    %c34 = arith.constant 34 : index
    %c0_40 = arith.constant 0 : index
    %41 = vector.load %arg2[%c0_38, %c0_39, %c34, %c0_40] : memref<1x1x296x128xf32, #tpu.memory_space<vmem>>, vector<1x1x256x128xf32>
    %42 = vector.shape_cast %41 : vector<1x1x256x128xf32> to vector<256x128xf32>
    %43 = arith.truncf %42 : vector<256x128xf32> to vector<256x128xbf16>
    %c6 = arith.constant 6 : index
    %c0_41 = arith.constant 0 : index
    %c0_42 = arith.constant 0 : index
    %44 = vector.load %arg3[%c6, %c0_41, %c0_42] : memref<9x128x128xbf16, #tpu.memory_space<vmem>>, vector<1x128x128xbf16>
    %45 = vector.shape_cast %44 : vector<1x128x128xbf16> to vector<128x128xbf16>
    %cst_43 = arith.constant dense<0.000000e+00> : vector<256x128xf32>
    %46 = tpu.matmul %43, %45, %cst_43 {dimension_numbers = #tpu.dot_dimension_numbers<[1], [0], [0], [1], [0, 0, 1, 1], [], []>} : vector<256x128xbf16>, vector<128x128xbf16>, vector<256x128xf32> -> vector<256x128xf32>
    %47 = arith.addf %40, %46 : vector<256x128xf32>
    %c0_44 = arith.constant 0 : index
    %c0_45 = arith.constant 0 : index
    %c35 = arith.constant 35 : index
    %c0_46 = arith.constant 0 : index
    %48 = vector.load %arg2[%c0_44, %c0_45, %c35, %c0_46] : memref<1x1x296x128xf32, #tpu.memory_space<vmem>>, vector<1x1x256x128xf32>
    %49 = vector.shape_cast %48 : vector<1x1x256x128xf32> to vector<256x128xf32>
    %50 = arith.truncf %49 : vector<256x128xf32> to vector<256x128xbf16>
    %c7 = arith.constant 7 : index
    %c0_47 = arith.constant 0 : index
    %c0_48 = arith.constant 0 : index
    %51 = vector.load %arg3[%c7, %c0_47, %c0_48] : memref<9x128x128xbf16, #tpu.memory_space<vmem>>, vector<1x128x128xbf16>
    %52 = vector.shape_cast %51 : vector<1x128x128xbf16> to vector<128x128xbf16>
    %cst_49 = arith.constant dense<0.000000e+00> : vector<256x128xf32>
    %53 = tpu.matmul %50, %52, %cst_49 {dimension_numbers = #tpu.dot_dimension_numbers<[1], [0], [0], [1], [0, 0, 1, 1], [], []>} : vector<256x128xbf16>, vector<128x128xbf16>, vector<256x128xf32> -> vector<256x128xf32>
    %54 = arith.addf %47, %53 : vector<256x128xf32>
    %c0_50 = arith.constant 0 : index
    %c0_51 = arith.constant 0 : index
    %c36 = arith.constant 36 : index
    %c0_52 = arith.constant 0 : index
    %55 = vector.load %arg2[%c0_50, %c0_51, %c36, %c0_52] : memref<1x1x296x128xf32, #tpu.memory_space<vmem>>, vector<1x1x256x128xf32>
    %56 = vector.shape_cast %55 : vector<1x1x256x128xf32> to vector<256x128xf32>
    %57 = arith.truncf %56 : vector<256x128xf32> to vector<256x128xbf16>
    %c8 = arith.constant 8 : index
    %c0_53 = arith.constant 0 : index
    %c0_54 = arith.constant 0 : index
    %58 = vector.load %arg3[%c8, %c0_53, %c0_54] : memref<9x128x128xbf16, #tpu.memory_space<vmem>>, vector<1x128x128xbf16>
    %59 = vector.shape_cast %58 : vector<1x128x128xbf16> to vector<128x128xbf16>
    %cst_55 = arith.constant dense<0.000000e+00> : vector<256x128xf32>
    %60 = tpu.matmul %57, %59, %cst_55 {dimension_numbers = #tpu.dot_dimension_numbers<[1], [0], [0], [1], [0, 0, 1, 1], [], []>} : vector<256x128xbf16>, vector<128x128xbf16>, vector<256x128xf32> -> vector<256x128xf32>
    %61 = arith.addf %54, %60 : vector<256x128xf32>
    %c0_56 = arith.constant 0 : index
    %c0_57 = arith.constant 0 : index
    %62 = vector.load %arg4[%c0_56, %c0_57] : memref<1x128xf32, #tpu.memory_space<vmem>>, vector<1x128xf32>
    %63 = vector.broadcast %62 : vector<1x128xf32> to vector<256x128xf32>
    %64 = arith.mulf %61, %63 : vector<256x128xf32>
    %c0_58 = arith.constant 0 : index
    %c0_59 = arith.constant 0 : index
    %65 = vector.load %arg5[%c0_58, %c0_59] : memref<1x128xf32, #tpu.memory_space<vmem>>, vector<1x128xf32>
    %66 = vector.broadcast %65 : vector<1x128xf32> to vector<256x128xf32>
    %67 = arith.addf %64, %66 : vector<256x128xf32>
    %cst_60 = arith.constant 0.000000e+00 : f32
    %68 = vector.broadcast %cst_60 : f32 to vector<256x128xf32>
    %69 = arith.maximumf %67, %68 : vector<256x128xf32>
    %c0_61 = arith.constant 0 : index
    %c0_62 = arith.constant 0 : index
    %c0_63 = arith.constant 0 : index
    %70 = vector.load %arg6[%c0_61, %c0_62, %c0_63] : memref<1x256x128xf32, #tpu.memory_space<vmem>>, vector<1x256x128xf32>
    %71 = vector.shape_cast %70 : vector<1x256x128xf32> to vector<256x128xf32>
    %72 = vector.shape_cast %69 : vector<256x128xf32> to vector<1x256x128xf32>
    tpu.vector_store %arg6[%c0_61, %c0_62, %c0_63], %72 {strides = array<i32>} : memref<1x256x128xf32, #tpu.memory_space<vmem>>, vector<1x256x128xf32>,
    return
  }
  func.func @transform_0(%arg0: i32, %arg1: i32) -> (i32, i32, i32, i32) {
    %c0_i32 = arith.constant 0 : i32
    %c0_i32_0 = arith.constant 0 : i32
    %c0_i32_1 = arith.constant 0 : i32
    %c0_i32_2 = arith.constant 0 : i32
    return %arg0, %c0_i32, %c0_i32_0, %c0_i32_1 : i32, i32, i32, i32
  }
  func.func @transform_1(%arg0: i32, %arg1: i32) -> (i32, i32, i32) {
    %c0_i32 = arith.constant 0 : i32
    %c0_i32_0 = arith.constant 0 : i32
    %c0_i32_1 = arith.constant 0 : i32
    %c0_i32_2 = arith.constant 0 : i32
    return %c0_i32, %c0_i32_0, %c0_i32_1 : i32, i32, i32
  }
  func.func @transform_2(%arg0: i32, %arg1: i32) -> (i32, i32) {
    %c0_i32 = arith.constant 0 : i32
    %c0_i32_0 = arith.constant 0 : i32
    %c0_i32_1 = arith.constant 0 : i32
    return %c0_i32, %c0_i32_0 : i32, i32
  }
  func.func @transform_3(%arg0: i32, %arg1: i32) -> (i32, i32) {
    %c0_i32 = arith.constant 0 : i32
    %c0_i32_0 = arith.constant 0 : i32
    %c0_i32_1 = arith.constant 0 : i32
    return %c0_i32, %c0_i32_0 : i32, i32
  }
  func.func @transform_4(%arg0: i32, %arg1: i32) -> (i32, i32, i32) {
    %c0_i32 = arith.constant 0 : i32
    %c0_i32_0 = arith.constant 0 : i32
    return %arg0, %arg1, %c0_i32 : i32, i32, i32
  }
}

module attributes {stable_mosaic.version = 11 : i64} {
  func.func @maxpool_kernel(%arg0: i32, %arg1: i32, %arg2: memref<1x4x72x128xf32, #tpu.memory_space<vmem>>, %arg3: memref<1x56x128xf32, #tpu.memory_space<vmem>>) attributes {dimension_semantics = [#tpu.dimension_semantics<parallel>, #tpu.dimension_semantics<parallel>], iteration_bounds = array<i64: 2, 1>, scalar_prefetch = 0 : i64, scratch_operands = 0 : i64, tpu.core_type = #tpu.core_type<tc>, window_params = [{transform_indices = @transform_0, window_bounds = array<i64: 1, 4, 72, 128>}, {transform_indices = @transform_1, window_bounds = array<i64: 1, 56, 128>}]} {
    %c0 = arith.constant 0 : index
    %c0_0 = arith.constant 0 : index
    %c0_1 = arith.constant 0 : index
    %c0_2 = arith.constant 0 : index
    %0 = vector.load %arg2[%c0, %c0_0, %c0_1, %c0_2] : memref<1x4x72x128xf32, #tpu.memory_space<vmem>>, vector<1x1x56x128xf32>
    %1 = vector.shape_cast %0 : vector<1x1x56x128xf32> to vector<56x128xf32>
    %c0_3 = arith.constant 0 : index
    %c1 = arith.constant 1 : index
    %c0_4 = arith.constant 0 : index
    %c0_5 = arith.constant 0 : index
    %2 = vector.load %arg2[%c0_3, %c1, %c0_4, %c0_5] : memref<1x4x72x128xf32, #tpu.memory_space<vmem>>, vector<1x1x56x128xf32>
    %3 = vector.shape_cast %2 : vector<1x1x56x128xf32> to vector<56x128xf32>
    %4 = arith.maximumf %1, %3 : vector<56x128xf32>
    %c0_6 = arith.constant 0 : index
    %c0_7 = arith.constant 0 : index
    %c1_8 = arith.constant 1 : index
    %c0_9 = arith.constant 0 : index
    %5 = vector.load %arg2[%c0_6, %c0_7, %c1_8, %c0_9] : memref<1x4x72x128xf32, #tpu.memory_space<vmem>>, vector<1x1x56x128xf32>
    %6 = vector.shape_cast %5 : vector<1x1x56x128xf32> to vector<56x128xf32>
    %7 = arith.maximumf %4, %6 : vector<56x128xf32>
    %c0_10 = arith.constant 0 : index
    %c2 = arith.constant 2 : index
    %c0_11 = arith.constant 0 : index
    %c0_12 = arith.constant 0 : index
    %8 = vector.load %arg2[%c0_10, %c2, %c0_11, %c0_12] : memref<1x4x72x128xf32, #tpu.memory_space<vmem>>, vector<1x1x56x128xf32>
    %9 = vector.shape_cast %8 : vector<1x1x56x128xf32> to vector<56x128xf32>
    %10 = arith.maximumf %7, %9 : vector<56x128xf32>
    %c0_13 = arith.constant 0 : index
    %c3 = arith.constant 3 : index
    %c0_14 = arith.constant 0 : index
    %c0_15 = arith.constant 0 : index
    %11 = vector.load %arg2[%c0_13, %c3, %c0_14, %c0_15] : memref<1x4x72x128xf32, #tpu.memory_space<vmem>>, vector<1x1x56x128xf32>
    %12 = vector.shape_cast %11 : vector<1x1x56x128xf32> to vector<56x128xf32>
    %13 = arith.maximumf %10, %12 : vector<56x128xf32>
    %c0_16 = arith.constant 0 : index
    %c2_17 = arith.constant 2 : index
    %c1_18 = arith.constant 1 : index
    %c0_19 = arith.constant 0 : index
    %14 = vector.load %arg2[%c0_16, %c2_17, %c1_18, %c0_19] : memref<1x4x72x128xf32, #tpu.memory_space<vmem>>, vector<1x1x56x128xf32>
    %15 = vector.shape_cast %14 : vector<1x1x56x128xf32> to vector<56x128xf32>
    %16 = arith.maximumf %13, %15 : vector<56x128xf32>
    %c0_20 = arith.constant 0 : index
    %c0_21 = arith.constant 0 : index
    %c8 = arith.constant 8 : index
    %c0_22 = arith.constant 0 : index
    %17 = vector.load %arg2[%c0_20, %c0_21, %c8, %c0_22] : memref<1x4x72x128xf32, #tpu.memory_space<vmem>>, vector<1x1x56x128xf32>
    %18 = vector.shape_cast %17 : vector<1x1x56x128xf32> to vector<56x128xf32>
    %19 = arith.maximumf %16, %18 : vector<56x128xf32>
    %c0_23 = arith.constant 0 : index
    %c1_24 = arith.constant 1 : index
    %c8_25 = arith.constant 8 : index
    %c0_26 = arith.constant 0 : index
    %20 = vector.load %arg2[%c0_23, %c1_24, %c8_25, %c0_26] : memref<1x4x72x128xf32, #tpu.memory_space<vmem>>, vector<1x1x56x128xf32>
    %21 = vector.shape_cast %20 : vector<1x1x56x128xf32> to vector<56x128xf32>
    %22 = arith.maximumf %19, %21 : vector<56x128xf32>
    %c0_27 = arith.constant 0 : index
    %c0_28 = arith.constant 0 : index
    %c9 = arith.constant 9 : index
    %c0_29 = arith.constant 0 : index
    %23 = vector.load %arg2[%c0_27, %c0_28, %c9, %c0_29] : memref<1x4x72x128xf32, #tpu.memory_space<vmem>>, vector<1x1x56x128xf32>
    %24 = vector.shape_cast %23 : vector<1x1x56x128xf32> to vector<56x128xf32>
    %25 = arith.maximumf %22, %24 : vector<56x128xf32>
    %c0_30 = arith.constant 0 : index
    %c0_31 = arith.constant 0 : index
    %c0_32 = arith.constant 0 : index
    %26 = vector.load %arg3[%c0_30, %c0_31, %c0_32] : memref<1x56x128xf32, #tpu.memory_space<vmem>>, vector<1x56x128xf32>
    %27 = vector.shape_cast %26 : vector<1x56x128xf32> to vector<56x128xf32>
    %28 = vector.shape_cast %25 : vector<56x128xf32> to vector<1x56x128xf32>
    tpu.vector_store %arg3[%c0_30, %c0_31, %c0_32], %28 {strides = array<i32>} : memref<1x56x128xf32, #tpu.memory_space<vmem>>, vector<1x56x128xf32>,
    return
  }
  func.func @transform_0(%arg0: i32, %arg1: i32) -> (i32, i32, i32, i32) {
    %c0_i32 = arith.constant 0 : i32
    %c0_i32_0 = arith.constant 0 : i32
    %c0_i32_1 = arith.constant 0 : i32
    %c0_i32_2 = arith.constant 0 : i32
    return %arg0, %c0_i32, %c0_i32_0, %c0_i32_1 : i32, i32, i32, i32
  }
  func.func @transform_1(%arg0: i32, %arg1: i32) -> (i32, i32, i32) {
    %c0_i32 = arith.constant 0 : i32
    %c0_i32_0 = arith.constant 0 : i32
    return %arg0, %arg1, %c0_i32 : i32, i32, i32
  }
}

module attributes {stable_mosaic.version = 11 : i64} {
  func.func @conv_bn_act_kernel(%arg0: i32, %arg1: i32, %arg2: memref<1x1x56x128xf32, #tpu.memory_space<vmem>>, %arg3: memref<1x128x128xbf16, #tpu.memory_space<vmem>>, %arg4: memref<1x128xf32, #tpu.memory_space<vmem>>, %arg5: memref<1x128xf32, #tpu.memory_space<vmem>>, %arg6: memref<1x56x128xf32, #tpu.memory_space<vmem>>) attributes {dimension_semantics = [#tpu.dimension_semantics<parallel>, #tpu.dimension_semantics<parallel>], iteration_bounds = array<i64: 2, 1>, scalar_prefetch = 0 : i64, scratch_operands = 0 : i64, tpu.core_type = #tpu.core_type<tc>, window_params = [{transform_indices = @transform_0, window_bounds = array<i64: 1, 1, 56, 128>}, {pipeline_mode = #tpu.pipeline_mode<synchronous>, transform_indices = @transform_1, window_bounds = array<i64: 1, 128, 128>}, {pipeline_mode = #tpu.pipeline_mode<synchronous>, transform_indices = @transform_2, window_bounds = array<i64: 1, 128>}, {pipeline_mode = #tpu.pipeline_mode<synchronous>, transform_indices = @transform_3, window_bounds = array<i64: 1, 128>}, {transform_indices = @transform_4, window_bounds = array<i64: 1, 56, 128>}]} {
    %c0 = arith.constant 0 : index
    %c0_0 = arith.constant 0 : index
    %c0_1 = arith.constant 0 : index
    %c0_2 = arith.constant 0 : index
    %0 = vector.load %arg2[%c0, %c0_0, %c0_1, %c0_2] : memref<1x1x56x128xf32, #tpu.memory_space<vmem>>, vector<1x1x56x128xf32>
    %1 = vector.shape_cast %0 : vector<1x1x56x128xf32> to vector<56x128xf32>
    %2 = arith.truncf %1 : vector<56x128xf32> to vector<56x128xbf16>
    %c0_3 = arith.constant 0 : index
    %c0_4 = arith.constant 0 : index
    %c0_5 = arith.constant 0 : index
    %3 = vector.load %arg3[%c0_3, %c0_4, %c0_5] : memref<1x128x128xbf16, #tpu.memory_space<vmem>>, vector<1x128x128xbf16>
    %4 = vector.shape_cast %3 : vector<1x128x128xbf16> to vector<128x128xbf16>
    %cst = arith.constant dense<0.000000e+00> : vector<56x128xf32>
    %5 = tpu.matmul %2, %4, %cst {dimension_numbers = #tpu.dot_dimension_numbers<[1], [0], [0], [1], [0, 0, 1, 1], [], []>} : vector<56x128xbf16>, vector<128x128xbf16>, vector<56x128xf32> -> vector<56x128xf32>
    %c0_6 = arith.constant 0 : index
    %c0_7 = arith.constant 0 : index
    %6 = vector.load %arg4[%c0_6, %c0_7] : memref<1x128xf32, #tpu.memory_space<vmem>>, vector<1x128xf32>
    %7 = vector.broadcast %6 : vector<1x128xf32> to vector<56x128xf32>
    %8 = arith.mulf %5, %7 : vector<56x128xf32>
    %c0_8 = arith.constant 0 : index
    %c0_9 = arith.constant 0 : index
    %9 = vector.load %arg5[%c0_8, %c0_9] : memref<1x128xf32, #tpu.memory_space<vmem>>, vector<1x128xf32>
    %10 = vector.broadcast %9 : vector<1x128xf32> to vector<56x128xf32>
    %11 = arith.addf %8, %10 : vector<56x128xf32>
    %cst_10 = arith.constant 0.000000e+00 : f32
    %12 = vector.broadcast %cst_10 : f32 to vector<56x128xf32>
    %13 = arith.maximumf %11, %12 : vector<56x128xf32>
    %c0_11 = arith.constant 0 : index
    %c0_12 = arith.constant 0 : index
    %c0_13 = arith.constant 0 : index
    %14 = vector.load %arg6[%c0_11, %c0_12, %c0_13] : memref<1x56x128xf32, #tpu.memory_space<vmem>>, vector<1x56x128xf32>
    %15 = vector.shape_cast %14 : vector<1x56x128xf32> to vector<56x128xf32>
    %16 = vector.shape_cast %13 : vector<56x128xf32> to vector<1x56x128xf32>
    tpu.vector_store %arg6[%c0_11, %c0_12, %c0_13], %16 {strides = array<i32>} : memref<1x56x128xf32, #tpu.memory_space<vmem>>, vector<1x56x128xf32>,
    return
  }
  func.func @transform_0(%arg0: i32, %arg1: i32) -> (i32, i32, i32, i32) {
    %c0_i32 = arith.constant 0 : i32
    %c0_i32_0 = arith.constant 0 : i32
    %c0_i32_1 = arith.constant 0 : i32
    %c0_i32_2 = arith.constant 0 : i32
    return %arg0, %c0_i32, %c0_i32_0, %c0_i32_1 : i32, i32, i32, i32
  }
  func.func @transform_1(%arg0: i32, %arg1: i32) -> (i32, i32, i32) {
    %c0_i32 = arith.constant 0 : i32
    %c0_i32_0 = arith.constant 0 : i32
    %c0_i32_1 = arith.constant 0 : i32
    %c0_i32_2 = arith.constant 0 : i32
    return %c0_i32, %c0_i32_0, %c0_i32_1 : i32, i32, i32
  }
  func.func @transform_2(%arg0: i32, %arg1: i32) -> (i32, i32) {
    %c0_i32 = arith.constant 0 : i32
    %c0_i32_0 = arith.constant 0 : i32
    %c0_i32_1 = arith.constant 0 : i32
    return %c0_i32, %c0_i32_0 : i32, i32
  }
  func.func @transform_3(%arg0: i32, %arg1: i32) -> (i32, i32) {
    %c0_i32 = arith.constant 0 : i32
    %c0_i32_0 = arith.constant 0 : i32
    %c0_i32_1 = arith.constant 0 : i32
    return %c0_i32, %c0_i32_0 : i32, i32
  }
  func.func @transform_4(%arg0: i32, %arg1: i32) -> (i32, i32, i32) {
    %c0_i32 = arith.constant 0 : i32
    %c0_i32_0 = arith.constant 0 : i32
    return %arg0, %arg1, %c0_i32 : i32, i32, i32
  }
}

module attributes {stable_mosaic.version = 11 : i64} {
  func.func @conv_bn_act_kernel(%arg0: i32, %arg1: i32, %arg2: memref<1x1x56x128xf32, #tpu.memory_space<vmem>>, %arg3: memref<9x128x128xbf16, #tpu.memory_space<vmem>>, %arg4: memref<1x128xf32, #tpu.memory_space<vmem>>, %arg5: memref<1x128xf32, #tpu.memory_space<vmem>>, %arg6: memref<1x40x128xf32, #tpu.memory_space<vmem>>) attributes {dimension_semantics = [#tpu.dimension_semantics<parallel>, #tpu.dimension_semantics<parallel>], iteration_bounds = array<i64: 2, 1>, scalar_prefetch = 0 : i64, scratch_operands = 0 : i64, tpu.core_type = #tpu.core_type<tc>, window_params = [{transform_indices = @transform_0, window_bounds = array<i64: 1, 1, 56, 128>}, {pipeline_mode = #tpu.pipeline_mode<synchronous>, transform_indices = @transform_1, window_bounds = array<i64: 9, 128, 128>}, {pipeline_mode = #tpu.pipeline_mode<synchronous>, transform_indices = @transform_2, window_bounds = array<i64: 1, 128>}, {pipeline_mode = #tpu.pipeline_mode<synchronous>, transform_indices = @transform_3, window_bounds = array<i64: 1, 128>}, {transform_indices = @transform_4, window_bounds = array<i64: 1, 40, 128>}]} {
    %c0 = arith.constant 0 : index
    %c0_0 = arith.constant 0 : index
    %c0_1 = arith.constant 0 : index
    %c0_2 = arith.constant 0 : index
    %0 = vector.load %arg2[%c0, %c0_0, %c0_1, %c0_2] : memref<1x1x56x128xf32, #tpu.memory_space<vmem>>, vector<1x1x40x128xf32>
    %1 = vector.shape_cast %0 : vector<1x1x40x128xf32> to vector<40x128xf32>
    %2 = arith.truncf %1 : vector<40x128xf32> to vector<40x128xbf16>
    %c0_3 = arith.constant 0 : index
    %c0_4 = arith.constant 0 : index
    %c0_5 = arith.constant 0 : index
    %3 = vector.load %arg3[%c0_3, %c0_4, %c0_5] : memref<9x128x128xbf16, #tpu.memory_space<vmem>>, vector<1x128x128xbf16>
    %4 = vector.shape_cast %3 : vector<1x128x128xbf16> to vector<128x128xbf16>
    %cst = arith.constant dense<0.000000e+00> : vector<40x128xf32>
    %5 = tpu.matmul %2, %4, %cst {dimension_numbers = #tpu.dot_dimension_numbers<[1], [0], [0], [1], [0, 0, 1, 1], [], []>} : vector<40x128xbf16>, vector<128x128xbf16>, vector<40x128xf32> -> vector<40x128xf32>
    %c0_6 = arith.constant 0 : index
    %c0_7 = arith.constant 0 : index
    %c1 = arith.constant 1 : index
    %c0_8 = arith.constant 0 : index
    %6 = vector.load %arg2[%c0_6, %c0_7, %c1, %c0_8] : memref<1x1x56x128xf32, #tpu.memory_space<vmem>>, vector<1x1x40x128xf32>
    %7 = vector.shape_cast %6 : vector<1x1x40x128xf32> to vector<40x128xf32>
    %8 = arith.truncf %7 : vector<40x128xf32> to vector<40x128xbf16>
    %c1_9 = arith.constant 1 : index
    %c0_10 = arith.constant 0 : index
    %c0_11 = arith.constant 0 : index
    %9 = vector.load %arg3[%c1_9, %c0_10, %c0_11] : memref<9x128x128xbf16, #tpu.memory_space<vmem>>, vector<1x128x128xbf16>
    %10 = vector.shape_cast %9 : vector<1x128x128xbf16> to vector<128x128xbf16>
    %cst_12 = arith.constant dense<0.000000e+00> : vector<40x128xf32>
    %11 = tpu.matmul %8, %10, %cst_12 {dimension_numbers = #tpu.dot_dimension_numbers<[1], [0], [0], [1], [0, 0, 1, 1], [], []>} : vector<40x128xbf16>, vector<128x128xbf16>, vector<40x128xf32> -> vector<40x128xf32>
    %12 = arith.addf %5, %11 : vector<40x128xf32>
    %c0_13 = arith.constant 0 : index
    %c0_14 = arith.constant 0 : index
    %c2 = arith.constant 2 : index
    %c0_15 = arith.constant 0 : index
    %13 = vector.load %arg2[%c0_13, %c0_14, %c2, %c0_15] : memref<1x1x56x128xf32, #tpu.memory_space<vmem>>, vector<1x1x40x128xf32>
    %14 = vector.shape_cast %13 : vector<1x1x40x128xf32> to vector<40x128xf32>
    %15 = arith.truncf %14 : vector<40x128xf32> to vector<40x128xbf16>
    %c2_16 = arith.constant 2 : index
    %c0_17 = arith.constant 0 : index
    %c0_18 = arith.constant 0 : index
    %16 = vector.load %arg3[%c2_16, %c0_17, %c0_18] : memref<9x128x128xbf16, #tpu.memory_space<vmem>>, vector<1x128x128xbf16>
    %17 = vector.shape_cast %16 : vector<1x128x128xbf16> to vector<128x128xbf16>
    %cst_19 = arith.constant dense<0.000000e+00> : vector<40x128xf32>
    %18 = tpu.matmul %15, %17, %cst_19 {dimension_numbers = #tpu.dot_dimension_numbers<[1], [0], [0], [1], [0, 0, 1, 1], [], []>} : vector<40x128xbf16>, vector<128x128xbf16>, vector<40x128xf32> -> vector<40x128xf32>
    %19 = arith.addf %12, %18 : vector<40x128xf32>
    %c0_20 = arith.constant 0 : index
    %c0_21 = arith.constant 0 : index
    %c7 = arith.constant 7 : index
    %c0_22 = arith.constant 0 : index
    %20 = vector.load %arg2[%c0_20, %c0_21, %c7, %c0_22] : memref<1x1x56x128xf32, #tpu.memory_space<vmem>>, vector<1x1x40x128xf32>
    %21 = vector.shape_cast %20 : vector<1x1x40x128xf32> to vector<40x128xf32>
    %22 = arith.truncf %21 : vector<40x128xf32> to vector<40x128xbf16>
    %c3 = arith.constant 3 : index
    %c0_23 = arith.constant 0 : index
    %c0_24 = arith.constant 0 : index
    %23 = vector.load %arg3[%c3, %c0_23, %c0_24] : memref<9x128x128xbf16, #tpu.memory_space<vmem>>, vector<1x128x128xbf16>
    %24 = vector.shape_cast %23 : vector<1x128x128xbf16> to vector<128x128xbf16>
    %cst_25 = arith.constant dense<0.000000e+00> : vector<40x128xf32>
    %25 = tpu.matmul %22, %24, %cst_25 {dimension_numbers = #tpu.dot_dimension_numbers<[1], [0], [0], [1], [0, 0, 1, 1], [], []>} : vector<40x128xbf16>, vector<128x128xbf16>, vector<40x128xf32> -> vector<40x128xf32>
    %26 = arith.addf %19, %25 : vector<40x128xf32>
    %c0_26 = arith.constant 0 : index
    %c0_27 = arith.constant 0 : index
    %c8 = arith.constant 8 : index
    %c0_28 = arith.constant 0 : index
    %27 = vector.load %arg2[%c0_26, %c0_27, %c8, %c0_28] : memref<1x1x56x128xf32, #tpu.memory_space<vmem>>, vector<1x1x40x128xf32>
    %28 = vector.shape_cast %27 : vector<1x1x40x128xf32> to vector<40x128xf32>
    %29 = arith.truncf %28 : vector<40x128xf32> to vector<40x128xbf16>
    %c4 = arith.constant 4 : index
    %c0_29 = arith.constant 0 : index
    %c0_30 = arith.constant 0 : index
    %30 = vector.load %arg3[%c4, %c0_29, %c0_30] : memref<9x128x128xbf16, #tpu.memory_space<vmem>>, vector<1x128x128xbf16>
    %31 = vector.shape_cast %30 : vector<1x128x128xbf16> to vector<128x128xbf16>
    %cst_31 = arith.constant dense<0.000000e+00> : vector<40x128xf32>
    %32 = tpu.matmul %29, %31, %cst_31 {dimension_numbers = #tpu.dot_dimension_numbers<[1], [0], [0], [1], [0, 0, 1, 1], [], []>} : vector<40x128xbf16>, vector<128x128xbf16>, vector<40x128xf32> -> vector<40x128xf32>
    %33 = arith.addf %26, %32 : vector<40x128xf32>
    %c0_32 = arith.constant 0 : index
    %c0_33 = arith.constant 0 : index
    %c9 = arith.constant 9 : index
    %c0_34 = arith.constant 0 : index
    %34 = vector.load %arg2[%c0_32, %c0_33, %c9, %c0_34] : memref<1x1x56x128xf32, #tpu.memory_space<vmem>>, vector<1x1x40x128xf32>
    %35 = vector.shape_cast %34 : vector<1x1x40x128xf32> to vector<40x128xf32>
    %36 = arith.truncf %35 : vector<40x128xf32> to vector<40x128xbf16>
    %c5 = arith.constant 5 : index
    %c0_35 = arith.constant 0 : index
    %c0_36 = arith.constant 0 : index
    %37 = vector.load %arg3[%c5, %c0_35, %c0_36] : memref<9x128x128xbf16, #tpu.memory_space<vmem>>, vector<1x128x128xbf16>
    %38 = vector.shape_cast %37 : vector<1x128x128xbf16> to vector<128x128xbf16>
    %cst_37 = arith.constant dense<0.000000e+00> : vector<40x128xf32>
    %39 = tpu.matmul %36, %38, %cst_37 {dimension_numbers = #tpu.dot_dimension_numbers<[1], [0], [0], [1], [0, 0, 1, 1], [], []>} : vector<40x128xbf16>, vector<128x128xbf16>, vector<40x128xf32> -> vector<40x128xf32>
    %40 = arith.addf %33, %39 : vector<40x128xf32>
    %c0_38 = arith.constant 0 : index
    %c0_39 = arith.constant 0 : index
    %c14 = arith.constant 14 : index
    %c0_40 = arith.constant 0 : index
    %41 = vector.load %arg2[%c0_38, %c0_39, %c14, %c0_40] : memref<1x1x56x128xf32, #tpu.memory_space<vmem>>, vector<1x1x40x128xf32>
    %42 = vector.shape_cast %41 : vector<1x1x40x128xf32> to vector<40x128xf32>
    %43 = arith.truncf %42 : vector<40x128xf32> to vector<40x128xbf16>
    %c6 = arith.constant 6 : index
    %c0_41 = arith.constant 0 : index
    %c0_42 = arith.constant 0 : index
    %44 = vector.load %arg3[%c6, %c0_41, %c0_42] : memref<9x128x128xbf16, #tpu.memory_space<vmem>>, vector<1x128x128xbf16>
    %45 = vector.shape_cast %44 : vector<1x128x128xbf16> to vector<128x128xbf16>
    %cst_43 = arith.constant dense<0.000000e+00> : vector<40x128xf32>
    %46 = tpu.matmul %43, %45, %cst_43 {dimension_numbers = #tpu.dot_dimension_numbers<[1], [0], [0], [1], [0, 0, 1, 1], [], []>} : vector<40x128xbf16>, vector<128x128xbf16>, vector<40x128xf32> -> vector<40x128xf32>
    %47 = arith.addf %40, %46 : vector<40x128xf32>
    %c0_44 = arith.constant 0 : index
    %c0_45 = arith.constant 0 : index
    %c15 = arith.constant 15 : index
    %c0_46 = arith.constant 0 : index
    %48 = vector.load %arg2[%c0_44, %c0_45, %c15, %c0_46] : memref<1x1x56x128xf32, #tpu.memory_space<vmem>>, vector<1x1x40x128xf32>
    %49 = vector.shape_cast %48 : vector<1x1x40x128xf32> to vector<40x128xf32>
    %50 = arith.truncf %49 : vector<40x128xf32> to vector<40x128xbf16>
    %c7_47 = arith.constant 7 : index
    %c0_48 = arith.constant 0 : index
    %c0_49 = arith.constant 0 : index
    %51 = vector.load %arg3[%c7_47, %c0_48, %c0_49] : memref<9x128x128xbf16, #tpu.memory_space<vmem>>, vector<1x128x128xbf16>
    %52 = vector.shape_cast %51 : vector<1x128x128xbf16> to vector<128x128xbf16>
    %cst_50 = arith.constant dense<0.000000e+00> : vector<40x128xf32>
    %53 = tpu.matmul %50, %52, %cst_50 {dimension_numbers = #tpu.dot_dimension_numbers<[1], [0], [0], [1], [0, 0, 1, 1], [], []>} : vector<40x128xbf16>, vector<128x128xbf16>, vector<40x128xf32> -> vector<40x128xf32>
    %54 = arith.addf %47, %53 : vector<40x128xf32>
    %c0_51 = arith.constant 0 : index
    %c0_52 = arith.constant 0 : index
    %c16 = arith.constant 16 : index
    %c0_53 = arith.constant 0 : index
    %55 = vector.load %arg2[%c0_51, %c0_52, %c16, %c0_53] : memref<1x1x56x128xf32, #tpu.memory_space<vmem>>, vector<1x1x40x128xf32>
    %56 = vector.shape_cast %55 : vector<1x1x40x128xf32> to vector<40x128xf32>
    %57 = arith.truncf %56 : vector<40x128xf32> to vector<40x128xbf16>
    %c8_54 = arith.constant 8 : index
    %c0_55 = arith.constant 0 : index
    %c0_56 = arith.constant 0 : index
    %58 = vector.load %arg3[%c8_54, %c0_55, %c0_56] : memref<9x128x128xbf16, #tpu.memory_space<vmem>>, vector<1x128x128xbf16>
    %59 = vector.shape_cast %58 : vector<1x128x128xbf16> to vector<128x128xbf16>
    %cst_57 = arith.constant dense<0.000000e+00> : vector<40x128xf32>
    %60 = tpu.matmul %57, %59, %cst_57 {dimension_numbers = #tpu.dot_dimension_numbers<[1], [0], [0], [1], [0, 0, 1, 1], [], []>} : vector<40x128xbf16>, vector<128x128xbf16>, vector<40x128xf32> -> vector<40x128xf32>
    %61 = arith.addf %54, %60 : vector<40x128xf32>
    %c0_58 = arith.constant 0 : index
    %c0_59 = arith.constant 0 : index
    %62 = vector.load %arg4[%c0_58, %c0_59] : memref<1x128xf32, #tpu.memory_space<vmem>>, vector<1x128xf32>
    %63 = vector.broadcast %62 : vector<1x128xf32> to vector<40x128xf32>
    %64 = arith.mulf %61, %63 : vector<40x128xf32>
    %c0_60 = arith.constant 0 : index
    %c0_61 = arith.constant 0 : index
    %65 = vector.load %arg5[%c0_60, %c0_61] : memref<1x128xf32, #tpu.memory_space<vmem>>, vector<1x128xf32>
    %66 = vector.broadcast %65 : vector<1x128xf32> to vector<40x128xf32>
    %67 = arith.addf %64, %66 : vector<40x128xf32>
    %cst_62 = arith.constant 0.000000e+00 : f32
    %68 = vector.broadcast %cst_62 : f32 to vector<40x128xf32>
    %69 = arith.maximumf %67, %68 : vector<40x128xf32>
    %c0_63 = arith.constant 0 : index
    %c0_64 = arith.constant 0 : index
    %c0_65 = arith.constant 0 : index
    %70 = vector.load %arg6[%c0_63, %c0_64, %c0_65] : memref<1x40x128xf32, #tpu.memory_space<vmem>>, vector<1x40x128xf32>
    %71 = vector.shape_cast %70 : vector<1x40x128xf32> to vector<40x128xf32>
    %72 = vector.shape_cast %69 : vector<40x128xf32> to vector<1x40x128xf32>
    tpu.vector_store %arg6[%c0_63, %c0_64, %c0_65], %72 {strides = array<i32>} : memref<1x40x128xf32, #tpu.memory_space<vmem>>, vector<1x40x128xf32>,
    return
  }
  func.func @transform_0(%arg0: i32, %arg1: i32) -> (i32, i32, i32, i32) {
    %c0_i32 = arith.constant 0 : i32
    %c0_i32_0 = arith.constant 0 : i32
    %c0_i32_1 = arith.constant 0 : i32
    %c0_i32_2 = arith.constant 0 : i32
    return %arg0, %c0_i32, %c0_i32_0, %c0_i32_1 : i32, i32, i32, i32
  }
  func.func @transform_1(%arg0: i32, %arg1: i32) -> (i32, i32, i32) {
    %c0_i32 = arith.constant 0 : i32
    %c0_i32_0 = arith.constant 0 : i32
    %c0_i32_1 = arith.constant 0 : i32
    %c0_i32_2 = arith.constant 0 : i32
    return %c0_i32, %c0_i32_0, %c0_i32_1 : i32, i32, i32
  }
  func.func @transform_2(%arg0: i32, %arg1: i32) -> (i32, i32) {
    %c0_i32 = arith.constant 0 : i32
    %c0_i32_0 = arith.constant 0 : i32
    %c0_i32_1 = arith.constant 0 : i32
    return %c0_i32, %c0_i32_0 : i32, i32
  }
  func.func @transform_3(%arg0: i32, %arg1: i32) -> (i32, i32) {
    %c0_i32 = arith.constant 0 : i32
    %c0_i32_0 = arith.constant 0 : i32
    %c0_i32_1 = arith.constant 0 : i32
    return %c0_i32, %c0_i32_0 : i32, i32
  }
  func.func @transform_4(%arg0: i32, %arg1: i32) -> (i32, i32, i32) {
    %c0_i32 = arith.constant 0 : i32
    %c0_i32_0 = arith.constant 0 : i32
    return %arg0, %arg1, %c0_i32 : i32, i32, i32
  }
}

module attributes {stable_mosaic.version = 11 : i64} {
  func.func @conv_bn_act_kernel(%arg0: i32, %arg1: i32, %arg2: memref<1x4x16x128xf32, #tpu.memory_space<vmem>>, %arg3: memref<9x128x128xbf16, #tpu.memory_space<vmem>>, %arg4: memref<1x128xf32, #tpu.memory_space<vmem>>, %arg5: memref<1x128xf32, #tpu.memory_space<vmem>>, %arg6: memref<1x8x128xf32, #tpu.memory_space<vmem>>) attributes {dimension_semantics = [#tpu.dimension_semantics<parallel>, #tpu.dimension_semantics<parallel>], iteration_bounds = array<i64: 2, 1>, scalar_prefetch = 0 : i64, scratch_operands = 0 : i64, tpu.core_type = #tpu.core_type<tc>, window_params = [{transform_indices = @transform_0, window_bounds = array<i64: 1, 4, 16, 128>}, {pipeline_mode = #tpu.pipeline_mode<synchronous>, transform_indices = @transform_1, window_bounds = array<i64: 9, 128, 128>}, {pipeline_mode = #tpu.pipeline_mode<synchronous>, transform_indices = @transform_2, window_bounds = array<i64: 1, 128>}, {pipeline_mode = #tpu.pipeline_mode<synchronous>, transform_indices = @transform_3, window_bounds = array<i64: 1, 128>}, {transform_indices = @transform_4, window_bounds = array<i64: 1, 8, 128>}]} {
    %c0 = arith.constant 0 : index
    %c0_0 = arith.constant 0 : index
    %c0_1 = arith.constant 0 : index
    %c0_2 = arith.constant 0 : index
    %0 = vector.load %arg2[%c0, %c0_0, %c0_1, %c0_2] : memref<1x4x16x128xf32, #tpu.memory_space<vmem>>, vector<1x1x8x128xf32>
    %1 = vector.shape_cast %0 : vector<1x1x8x128xf32> to vector<8x128xf32>
    %2 = arith.truncf %1 : vector<8x128xf32> to vector<8x128xbf16>
    %c0_3 = arith.constant 0 : index
    %c0_4 = arith.constant 0 : index
    %c0_5 = arith.constant 0 : index
    %3 = vector.load %arg3[%c0_3, %c0_4, %c0_5] : memref<9x128x128xbf16, #tpu.memory_space<vmem>>, vector<1x128x128xbf16>
    %4 = vector.shape_cast %3 : vector<1x128x128xbf16> to vector<128x128xbf16>
    %cst = arith.constant dense<0.000000e+00> : vector<8x128xf32>
    %5 = tpu.matmul %2, %4, %cst {dimension_numbers = #tpu.dot_dimension_numbers<[1], [0], [0], [1], [0, 0, 1, 1], [], []>} : vector<8x128xbf16>, vector<128x128xbf16>, vector<8x128xf32> -> vector<8x128xf32>
    %c0_6 = arith.constant 0 : index
    %c1 = arith.constant 1 : index
    %c0_7 = arith.constant 0 : index
    %c0_8 = arith.constant 0 : index
    %6 = vector.load %arg2[%c0_6, %c1, %c0_7, %c0_8] : memref<1x4x16x128xf32, #tpu.memory_space<vmem>>, vector<1x1x8x128xf32>
    %7 = vector.shape_cast %6 : vector<1x1x8x128xf32> to vector<8x128xf32>
    %8 = arith.truncf %7 : vector<8x128xf32> to vector<8x128xbf16>
    %c1_9 = arith.constant 1 : index
    %c0_10 = arith.constant 0 : index
    %c0_11 = arith.constant 0 : index
    %9 = vector.load %arg3[%c1_9, %c0_10, %c0_11] : memref<9x128x128xbf16, #tpu.memory_space<vmem>>, vector<1x128x128xbf16>
    %10 = vector.shape_cast %9 : vector<1x128x128xbf16> to vector<128x128xbf16>
    %cst_12 = arith.constant dense<0.000000e+00> : vector<8x128xf32>
    %11 = tpu.matmul %8, %10, %cst_12 {dimension_numbers = #tpu.dot_dimension_numbers<[1], [0], [0], [1], [0, 0, 1, 1], [], []>} : vector<8x128xbf16>, vector<128x128xbf16>, vector<8x128xf32> -> vector<8x128xf32>
    %12 = arith.addf %5, %11 : vector<8x128xf32>
    %c0_13 = arith.constant 0 : index
    %c0_14 = arith.constant 0 : index
    %c1_15 = arith.constant 1 : index
    %c0_16 = arith.constant 0 : index
    %13 = vector.load %arg2[%c0_13, %c0_14, %c1_15, %c0_16] : memref<1x4x16x128xf32, #tpu.memory_space<vmem>>, vector<1x1x8x128xf32>
    %14 = vector.shape_cast %13 : vector<1x1x8x128xf32> to vector<8x128xf32>
    %15 = arith.truncf %14 : vector<8x128xf32> to vector<8x128xbf16>
    %c2 = arith.constant 2 : index
    %c0_17 = arith.constant 0 : index
    %c0_18 = arith.constant 0 : index
    %16 = vector.load %arg3[%c2, %c0_17, %c0_18] : memref<9x128x128xbf16, #tpu.memory_space<vmem>>, vector<1x128x128xbf16>
    %17 = vector.shape_cast %16 : vector<1x128x128xbf16> to vector<128x128xbf16>
    %cst_19 = arith.constant dense<0.000000e+00> : vector<8x128xf32>
    %18 = tpu.matmul %15, %17, %cst_19 {dimension_numbers = #tpu.dot_dimension_numbers<[1], [0], [0], [1], [0, 0, 1, 1], [], []>} : vector<8x128xbf16>, vector<128x128xbf16>, vector<8x128xf32> -> vector<8x128xf32>
    %19 = arith.addf %12, %18 : vector<8x128xf32>
    %c0_20 = arith.constant 0 : index
    %c2_21 = arith.constant 2 : index
    %c0_22 = arith.constant 0 : index
    %c0_23 = arith.constant 0 : index
    %20 = vector.load %arg2[%c0_20, %c2_21, %c0_22, %c0_23] : memref<1x4x16x128xf32, #tpu.memory_space<vmem>>, vector<1x1x8x128xf32>
    %21 = vector.shape_cast %20 : vector<1x1x8x128xf32> to vector<8x128xf32>
    %22 = arith.truncf %21 : vector<8x128xf32> to vector<8x128xbf16>
    %c3 = arith.constant 3 : index
    %c0_24 = arith.constant 0 : index
    %c0_25 = arith.constant 0 : index
    %23 = vector.load %arg3[%c3, %c0_24, %c0_25] : memref<9x128x128xbf16, #tpu.memory_space<vmem>>, vector<1x128x128xbf16>
    %24 = vector.shape_cast %23 : vector<1x128x128xbf16> to vector<128x128xbf16>
    %cst_26 = arith.constant dense<0.000000e+00> : vector<8x128xf32>
    %25 = tpu.matmul %22, %24, %cst_26 {dimension_numbers = #tpu.dot_dimension_numbers<[1], [0], [0], [1], [0, 0, 1, 1], [], []>} : vector<8x128xbf16>, vector<128x128xbf16>, vector<8x128xf32> -> vector<8x128xf32>
    %26 = arith.addf %19, %25 : vector<8x128xf32>
    %c0_27 = arith.constant 0 : index
    %c3_28 = arith.constant 3 : index
    %c0_29 = arith.constant 0 : index
    %c0_30 = arith.constant 0 : index
    %27 = vector.load %arg2[%c0_27, %c3_28, %c0_29, %c0_30] : memref<1x4x16x128xf32, #tpu.memory_space<vmem>>, vector<1x1x8x128xf32>
    %28 = vector.shape_cast %27 : vector<1x1x8x128xf32> to vector<8x128xf32>
    %29 = arith.truncf %28 : vector<8x128xf32> to vector<8x128xbf16>
    %c4 = arith.constant 4 : index
    %c0_31 = arith.constant 0 : index
    %c0_32 = arith.constant 0 : index
    %30 = vector.load %arg3[%c4, %c0_31, %c0_32] : memref<9x128x128xbf16, #tpu.memory_space<vmem>>, vector<1x128x128xbf16>
    %31 = vector.shape_cast %30 : vector<1x128x128xbf16> to vector<128x128xbf16>
    %cst_33 = arith.constant dense<0.000000e+00> : vector<8x128xf32>
    %32 = tpu.matmul %29, %31, %cst_33 {dimension_numbers = #tpu.dot_dimension_numbers<[1], [0], [0], [1], [0, 0, 1, 1], [], []>} : vector<8x128xbf16>, vector<128x128xbf16>, vector<8x128xf32> -> vector<8x128xf32>
    %33 = arith.addf %26, %32 : vector<8x128xf32>
    %c0_34 = arith.constant 0 : index
    %c2_35 = arith.constant 2 : index
    %c1_36 = arith.constant 1 : index
    %c0_37 = arith.constant 0 : index
    %34 = vector.load %arg2[%c0_34, %c2_35, %c1_36, %c0_37] : memref<1x4x16x128xf32, #tpu.memory_space<vmem>>, vector<1x1x8x128xf32>
    %35 = vector.shape_cast %34 : vector<1x1x8x128xf32> to vector<8x128xf32>
    %36 = arith.truncf %35 : vector<8x128xf32> to vector<8x128xbf16>
    %c5 = arith.constant 5 : index
    %c0_38 = arith.constant 0 : index
    %c0_39 = arith.constant 0 : index
    %37 = vector.load %arg3[%c5, %c0_38, %c0_39] : memref<9x128x128xbf16, #tpu.memory_space<vmem>>, vector<1x128x128xbf16>
    %38 = vector.shape_cast %37 : vector<1x128x128xbf16> to vector<128x128xbf16>
    %cst_40 = arith.constant dense<0.000000e+00> : vector<8x128xf32>
    %39 = tpu.matmul %36, %38, %cst_40 {dimension_numbers = #tpu.dot_dimension_numbers<[1], [0], [0], [1], [0, 0, 1, 1], [], []>} : vector<8x128xbf16>, vector<128x128xbf16>, vector<8x128xf32> -> vector<8x128xf32>
    %40 = arith.addf %33, %39 : vector<8x128xf32>
    %c0_41 = arith.constant 0 : index
    %c0_42 = arith.constant 0 : index
    %c3_43 = arith.constant 3 : index
    %c0_44 = arith.constant 0 : index
    %41 = vector.load %arg2[%c0_41, %c0_42, %c3_43, %c0_44] : memref<1x4x16x128xf32, #tpu.memory_space<vmem>>, vector<1x1x8x128xf32>
    %42 = vector.shape_cast %41 : vector<1x1x8x128xf32> to vector<8x128xf32>
    %43 = arith.truncf %42 : vector<8x128xf32> to vector<8x128xbf16>
    %c6 = arith.constant 6 : index
    %c0_45 = arith.constant 0 : index
    %c0_46 = arith.constant 0 : index
    %44 = vector.load %arg3[%c6, %c0_45, %c0_46] : memref<9x128x128xbf16, #tpu.memory_space<vmem>>, vector<1x128x128xbf16>
    %45 = vector.shape_cast %44 : vector<1x128x128xbf16> to vector<128x128xbf16>
    %cst_47 = arith.constant dense<0.000000e+00> : vector<8x128xf32>
    %46 = tpu.matmul %43, %45, %cst_47 {dimension_numbers = #tpu.dot_dimension_numbers<[1], [0], [0], [1], [0, 0, 1, 1], [], []>} : vector<8x128xbf16>, vector<128x128xbf16>, vector<8x128xf32> -> vector<8x128xf32>
    %47 = arith.addf %40, %46 : vector<8x128xf32>
    %c0_48 = arith.constant 0 : index
    %c1_49 = arith.constant 1 : index
    %c3_50 = arith.constant 3 : index
    %c0_51 = arith.constant 0 : index
    %48 = vector.load %arg2[%c0_48, %c1_49, %c3_50, %c0_51] : memref<1x4x16x128xf32, #tpu.memory_space<vmem>>, vector<1x1x8x128xf32>
    %49 = vector.shape_cast %48 : vector<1x1x8x128xf32> to vector<8x128xf32>
    %50 = arith.truncf %49 : vector<8x128xf32> to vector<8x128xbf16>
    %c7 = arith.constant 7 : index
    %c0_52 = arith.constant 0 : index
    %c0_53 = arith.constant 0 : index
    %51 = vector.load %arg3[%c7, %c0_52, %c0_53] : memref<9x128x128xbf16, #tpu.memory_space<vmem>>, vector<1x128x128xbf16>
    %52 = vector.shape_cast %51 : vector<1x128x128xbf16> to vector<128x128xbf16>
    %cst_54 = arith.constant dense<0.000000e+00> : vector<8x128xf32>
    %53 = tpu.matmul %50, %52, %cst_54 {dimension_numbers = #tpu.dot_dimension_numbers<[1], [0], [0], [1], [0, 0, 1, 1], [], []>} : vector<8x128xbf16>, vector<128x128xbf16>, vector<8x128xf32> -> vector<8x128xf32>
    %54 = arith.addf %47, %53 : vector<8x128xf32>
    %c0_55 = arith.constant 0 : index
    %c0_56 = arith.constant 0 : index
    %c4_57 = arith.constant 4 : index
    %c0_58 = arith.constant 0 : index
    %55 = vector.load %arg2[%c0_55, %c0_56, %c4_57, %c0_58] : memref<1x4x16x128xf32, #tpu.memory_space<vmem>>, vector<1x1x8x128xf32>
    %56 = vector.shape_cast %55 : vector<1x1x8x128xf32> to vector<8x128xf32>
    %57 = arith.truncf %56 : vector<8x128xf32> to vector<8x128xbf16>
    %c8 = arith.constant 8 : index
    %c0_59 = arith.constant 0 : index
    %c0_60 = arith.constant 0 : index
    %58 = vector.load %arg3[%c8, %c0_59, %c0_60] : memref<9x128x128xbf16, #tpu.memory_space<vmem>>, vector<1x128x128xbf16>
    %59 = vector.shape_cast %58 : vector<1x128x128xbf16> to vector<128x128xbf16>
    %cst_61 = arith.constant dense<0.000000e+00> : vector<8x128xf32>
    %60 = tpu.matmul %57, %59, %cst_61 {dimension_numbers = #tpu.dot_dimension_numbers<[1], [0], [0], [1], [0, 0, 1, 1], [], []>} : vector<8x128xbf16>, vector<128x128xbf16>, vector<8x128xf32> -> vector<8x128xf32>
    %61 = arith.addf %54, %60 : vector<8x128xf32>
    %c0_62 = arith.constant 0 : index
    %c0_63 = arith.constant 0 : index
    %62 = vector.load %arg4[%c0_62, %c0_63] : memref<1x128xf32, #tpu.memory_space<vmem>>, vector<1x128xf32>
    %63 = vector.broadcast %62 : vector<1x128xf32> to vector<8x128xf32>
    %64 = arith.mulf %61, %63 : vector<8x128xf32>
    %c0_64 = arith.constant 0 : index
    %c0_65 = arith.constant 0 : index
    %65 = vector.load %arg5[%c0_64, %c0_65] : memref<1x128xf32, #tpu.memory_space<vmem>>, vector<1x128xf32>
    %66 = vector.broadcast %65 : vector<1x128xf32> to vector<8x128xf32>
    %67 = arith.addf %64, %66 : vector<8x128xf32>
    %cst_66 = arith.constant 0.000000e+00 : f32
    %68 = vector.broadcast %cst_66 : f32 to vector<8x128xf32>
    %69 = arith.maximumf %67, %68 : vector<8x128xf32>
    %c0_67 = arith.constant 0 : index
    %c0_68 = arith.constant 0 : index
    %c0_69 = arith.constant 0 : index
    %70 = vector.load %arg6[%c0_67, %c0_68, %c0_69] : memref<1x8x128xf32, #tpu.memory_space<vmem>>, vector<1x8x128xf32>
    %71 = vector.shape_cast %70 : vector<1x8x128xf32> to vector<8x128xf32>
    %72 = vector.shape_cast %69 : vector<8x128xf32> to vector<1x8x128xf32>
    tpu.vector_store %arg6[%c0_67, %c0_68, %c0_69], %72 {strides = array<i32>} : memref<1x8x128xf32, #tpu.memory_space<vmem>>, vector<1x8x128xf32>,
    return
  }
  func.func @transform_0(%arg0: i32, %arg1: i32) -> (i32, i32, i32, i32) {
    %c0_i32 = arith.constant 0 : i32
    %c0_i32_0 = arith.constant 0 : i32
    %c0_i32_1 = arith.constant 0 : i32
    %c0_i32_2 = arith.constant 0 : i32
    return %arg0, %c0_i32, %c0_i32_0, %c0_i32_1 : i32, i32, i32, i32
  }
  func.func @transform_1(%arg0: i32, %arg1: i32) -> (i32, i32, i32) {
    %c0_i32 = arith.constant 0 : i32
    %c0_i32_0 = arith.constant 0 : i32
    %c0_i32_1 = arith.constant 0 : i32
    %c0_i32_2 = arith.constant 0 : i32
    return %c0_i32, %c0_i32_0, %c0_i32_1 : i32, i32, i32
  }
  func.func @transform_2(%arg0: i32, %arg1: i32) -> (i32, i32) {
    %c0_i32 = arith.constant 0 : i32
    %c0_i32_0 = arith.constant 0 : i32
    %c0_i32_1 = arith.constant 0 : i32
    return %c0_i32, %c0_i32_0 : i32, i32
  }
  func.func @transform_3(%arg0: i32, %arg1: i32) -> (i32, i32) {
    %c0_i32 = arith.constant 0 : i32
    %c0_i32_0 = arith.constant 0 : i32
    %c0_i32_1 = arith.constant 0 : i32
    return %c0_i32, %c0_i32_0 : i32, i32
  }
  func.func @transform_4(%arg0: i32, %arg1: i32) -> (i32, i32, i32) {
    %c0_i32 = arith.constant 0 : i32
    %c0_i32_0 = arith.constant 0 : i32
    return %arg0, %arg1, %c0_i32 : i32, i32, i32
  }
}

module attributes {stable_mosaic.version = 11 : i64} {
  func.func @head_kernel(%arg0: memref<2x4x128xf32, #tpu.memory_space<vmem>>, %arg1: memref<128x512xbf16, #tpu.memory_space<vmem>>, %arg2: memref<1x512xf32, #tpu.memory_space<vmem>>, %arg3: memref<1x512xf32, #tpu.memory_space<vmem>>, %arg4: memref<512x128xbf16, #tpu.memory_space<vmem>>, %arg5: memref<1x128xf32, #tpu.memory_space<vmem>>, %arg6: memref<1x128xf32, #tpu.memory_space<vmem>>, %arg7: memref<128x10xf32, #tpu.memory_space<vmem>>, %arg8: memref<1x10xf32, #tpu.memory_space<vmem>>, %arg9: memref<1x10xf32, #tpu.memory_space<vmem>>, %arg10: memref<10x1xf32, #tpu.memory_space<vmem>>, %arg11: memref<1x1xf32, #tpu.memory_space<vmem>>, %arg12: memref<2x1xf32, #tpu.memory_space<vmem>>) attributes {dimension_semantics = [], scalar_prefetch = 0 : i64, scratch_operands = 0 : i64, tpu.core_type = #tpu.core_type<tc>} {
    %c0 = arith.constant 0 : index
    %c0_0 = arith.constant 0 : index
    %c0_1 = arith.constant 0 : index
    %0 = vector.load %arg0[%c0, %c0_0, %c0_1] : memref<2x4x128xf32, #tpu.memory_space<vmem>>, vector<2x4x128xf32>
    %cst = arith.constant dense<0.000000e+00> : vector<2x128xf32>
    %1 = vector.multi_reduction <add>, %0, %cst [1] : vector<2x4x128xf32> to vector<2x128xf32>
    %cst_2 = arith.constant 4.000000e+00 : f32
    %2 = vector.broadcast %cst_2 : f32 to vector<2x128xf32>
    %3 = arith.divf %1, %2 : vector<2x128xf32>
    %4 = arith.truncf %3 : vector<2x128xf32> to vector<2x128xbf16>
    %c0_3 = arith.constant 0 : index
    %c0_4 = arith.constant 0 : index
    %5 = vector.load %arg1[%c0_3, %c0_4] : memref<128x512xbf16, #tpu.memory_space<vmem>>, vector<128x512xbf16>
    %cst_5 = arith.constant dense<0.000000e+00> : vector<2x512xf32>
    %6 = tpu.matmul %4, %5, %cst_5 {dimension_numbers = #tpu.dot_dimension_numbers<[1], [0], [0], [1], [0, 0, 1, 1], [], []>} : vector<2x128xbf16>, vector<128x512xbf16>, vector<2x512xf32> -> vector<2x512xf32>
    %c0_6 = arith.constant 0 : index
    %c0_7 = arith.constant 0 : index
    %7 = vector.load %arg2[%c0_6, %c0_7] : memref<1x512xf32, #tpu.memory_space<vmem>>, vector<1x512xf32>
    %8 = vector.broadcast %7 : vector<1x512xf32> to vector<2x512xf32>
    %9 = arith.mulf %6, %8 : vector<2x512xf32>
    %c0_8 = arith.constant 0 : index
    %c0_9 = arith.constant 0 : index
    %10 = vector.load %arg3[%c0_8, %c0_9] : memref<1x512xf32, #tpu.memory_space<vmem>>, vector<1x512xf32>
    %11 = vector.broadcast %10 : vector<1x512xf32> to vector<2x512xf32>
    %12 = arith.addf %9, %11 : vector<2x512xf32>
    %13 = arith.truncf %12 : vector<2x512xf32> to vector<2x512xbf16>
    %c0_10 = arith.constant 0 : index
    %c0_11 = arith.constant 0 : index
    %14 = vector.load %arg4[%c0_10, %c0_11] : memref<512x128xbf16, #tpu.memory_space<vmem>>, vector<512x128xbf16>
    %cst_12 = arith.constant dense<0.000000e+00> : vector<2x128xf32>
    %15 = tpu.matmul %13, %14, %cst_12 {dimension_numbers = #tpu.dot_dimension_numbers<[1], [0], [0], [1], [0, 0, 1, 1], [], []>} : vector<2x512xbf16>, vector<512x128xbf16>, vector<2x128xf32> -> vector<2x128xf32>
    %c0_13 = arith.constant 0 : index
    %c0_14 = arith.constant 0 : index
    %16 = vector.load %arg5[%c0_13, %c0_14] : memref<1x128xf32, #tpu.memory_space<vmem>>, vector<1x128xf32>
    %17 = vector.broadcast %16 : vector<1x128xf32> to vector<2x128xf32>
    %18 = arith.mulf %15, %17 : vector<2x128xf32>
    %c0_15 = arith.constant 0 : index
    %c0_16 = arith.constant 0 : index
    %19 = vector.load %arg6[%c0_15, %c0_16] : memref<1x128xf32, #tpu.memory_space<vmem>>, vector<1x128xf32>
    %20 = vector.broadcast %19 : vector<1x128xf32> to vector<2x128xf32>
    %21 = arith.addf %18, %20 : vector<2x128xf32>
    %cst_17 = arith.constant 0.000000e+00 : f32
    %22 = vector.broadcast %cst_17 : f32 to vector<2x128xf32>
    %23 = arith.maximumf %21, %22 : vector<2x128xf32>
    %c0_18 = arith.constant 0 : index
    %c0_19 = arith.constant 0 : index
    %24 = vector.load %arg7[%c0_18, %c0_19] : memref<128x10xf32, #tpu.memory_space<vmem>>, vector<128x10xf32>
    %cst_20 = arith.constant dense<0.000000e+00> : vector<2x10xf32>
    %25 = tpu.matmul %23, %24, %cst_20 {dimension_numbers = #tpu.dot_dimension_numbers<[1], [0], [0], [1], [0, 0, 1, 1], [], []>} : vector<2x128xf32>, vector<128x10xf32>, vector<2x10xf32> -> vector<2x10xf32>
    %c0_21 = arith.constant 0 : index
    %c0_22 = arith.constant 0 : index
    %26 = vector.load %arg8[%c0_21, %c0_22] : memref<1x10xf32, #tpu.memory_space<vmem>>, vector<1x10xf32>
    %27 = vector.broadcast %26 : vector<1x10xf32> to vector<2x10xf32>
    %28 = arith.mulf %25, %27 : vector<2x10xf32>
    %c0_23 = arith.constant 0 : index
    %c0_24 = arith.constant 0 : index
    %29 = vector.load %arg9[%c0_23, %c0_24] : memref<1x10xf32, #tpu.memory_space<vmem>>, vector<1x10xf32>
    %30 = vector.broadcast %29 : vector<1x10xf32> to vector<2x10xf32>
    %31 = arith.addf %28, %30 : vector<2x10xf32>
    %cst_25 = arith.constant 0.000000e+00 : f32
    %32 = vector.broadcast %cst_25 : f32 to vector<2x10xf32>
    %33 = arith.maximumf %31, %32 : vector<2x10xf32>
    %c0_26 = arith.constant 0 : index
    %c0_27 = arith.constant 0 : index
    %34 = vector.load %arg10[%c0_26, %c0_27] : memref<10x1xf32, #tpu.memory_space<vmem>>, vector<10x1xf32>
    %cst_28 = arith.constant dense<0.000000e+00> : vector<2x1xf32>
    %35 = tpu.matmul %33, %34, %cst_28 {dimension_numbers = #tpu.dot_dimension_numbers<[1], [0], [0], [1], [0, 0, 1, 1], [], []>} : vector<2x10xf32>, vector<10x1xf32>, vector<2x1xf32> -> vector<2x1xf32>
    %c0_29 = arith.constant 0 : index
    %c0_30 = arith.constant 0 : index
    %36 = vector.load %arg11[%c0_29, %c0_30] : memref<1x1xf32, #tpu.memory_space<vmem>>, vector<1x1xf32>
    %37 = vector.broadcast %36 : vector<1x1xf32> to vector<2x1xf32>
    %38 = arith.addf %35, %37 : vector<2x1xf32>
    %c0_31 = arith.constant 0 : index
    %c0_32 = arith.constant 0 : index
    %39 = vector.load %arg12[%c0_31, %c0_32] : memref<2x1xf32, #tpu.memory_space<vmem>>, vector<2x1xf32>
    tpu.vector_store %arg12[%c0_31, %c0_32], %38 {strides = array<i32>} : memref<2x1xf32, #tpu.memory_space<vmem>>, vector<2x1xf32>,
    return
  }
}

</mosaic_0001>

<llo_original>
// kernel: facenet_forward.8
$region0: #{facenet_forward.8}
  #allocation0 [shape = 'u32[]', space=smem, size = 0x4, offset = 0x4, fixed_abs, tag = 'smem constant byte address 0x4 - core index']
  #allocation1 [shape = 'u32[72,128]{1,0:T(1,128)}', space=vmem, size = 0x9000, scoped, tag = 'internal scratch']
  %s0 = inlined_call_operand.vmem [shape: f32[2,4,336,128], index: 0, kind: input, shape index: {}]
  %s1 = inlined_call_operand.vmem [shape: bf16[9,128,128], index: 1, kind: input, shape index: {}]
  %s2 = inlined_call_operand.vmem [shape: f32[1,128], index: 2, kind: input, shape index: {}]
  %s3 = inlined_call_operand.vmem [shape: f32[1,128], index: 3, kind: input, shape index: {}]
  %s4 = inlined_call_operand.vmem [shape: f32[2,312,128], index: 4, kind: output, shape index: {}]
  %s5 = sld [smem:[#allocation0]]
  $region49: #{facenet_forward.8} parent=0
    _
  %s7 = ssub.s32 1, %s5
  %s8 = scalar_select 0, %s7, %s5
  loop: start=0, step=1, limit=4
  $region2: #{facenet_forward.8} parent=0 // loop_pre_header
    _
  $region3: #{facenet_forward.8} parent=0 // loop_header
    %s10 = sphi 0, %s14
    %p11 = scmp.ge.s32.totalorder %s10, 4
    %s17 = sphi 0, %s29
    %s18 = sphi 0, %s25
    %s19 = sphi 0, %s17
    %s20 = sphi 0, %s18
    %s21 = sphi 0, %s19
    %s22 = sphi 0, %s20
    %s32 = sphi 0, %s34
    %s35 = sphi 0, %s32
    %s36 = sphi 0, %s35
    %s52 = sphi 0, %s36
    %s56 = sphi 0, %s56
    %s58 = sphi 0, %s56
    %s59 = sphi 0, %s58
    %s73 = sphi 0, %s59
    %s77 = sphi 0, %s77
    %s79 = sphi 0, %s77
    %s80 = sphi 0, %s79
    %s94 = sphi 0, %s80
    %s98 = sphi 0, %s98
    %s100 = sphi 0, %s98
    %s101 = sphi 0, %s100
    %s115 = sphi 0, %s101
    %s123 = sphi 0, %s125
    %s126 = sphi 0, %s123
    %s127 = sphi 0, %s126
    %s143 = sphi 0, %s127
  $region4: #{facenet_forward.8} parent=0 // loop_header_branch
    %13 = sbr.rel (%p11) target = $region8
  $region5: #{facenet_forward.8} parent=0 // loop_body
    %s15 = ssub.s32 %s10, 1
    %s16 = ssub.s32 %s10, 2
    %s23 = sadd.s32 1, %s18
    %p24 = scmp.ge.s32.totalorder %s23, 1
    %s25 = scalar_select %p24, 0, %s23
    %s26 = sadd.s32 1, %s17
    %s27 = scalar_select %p24, %s26, %s17
    %p28 = scmp.ge.s32.totalorder %s27, 2
    %s29 = scalar_select %p28, 0, %s27
    %s30 = ssub.s32 %s17, %s29
    %p31 = scmp.eq.s32.totalorder %s30, 0
    %s33 = sadd.s32 %s32, 1
    %s34 = scalar_select %p31, %s32, %s33
    %p37 = pneg %p31
    %p38 = scmp.eq.s32.totalorder %s10, 1
    %p39 = por %p37, %p38
    %p40 = scmp.ne.s32.totalorder %s32, %s35
    %p41 = scmp.eq.s32.totalorder %s10, 0
    %p42 = por %p40, %p41
    %p43 = scmp.ne.s32.totalorder %s32, %s35
    %p44 = scmp.eq.s32.totalorder %s15, 1
    %p45 = por %p43, %p44
    %p46 = scmp.ne.s32.totalorder %s35, %s36
    %p47 = scmp.eq.s32.totalorder %s15, 0
    %p48 = por %p46, %p47
    %p49 = scmp.ne.s32.totalorder %s35, %s36
    %p50 = scmp.eq.s32.totalorder %s16, 1
    %p51 = por %p49, %p50
    %p53 = scmp.ne.s32.totalorder %s36, %s52
    %p54 = scmp.eq.s32.totalorder %s16, 0
    %p55 = por %p53, %p54
    %s57 = sadd.s32 %s56, 1
    %p60 = scmp.eq.s32.totalorder %s10, 1
    %p61 = scmp.ne.s32.totalorder %s56, %s58
    %p62 = scmp.eq.s32.totalorder %s10, 0
    %p63 = por %p61, %p62
    %p64 = scmp.ne.s32.totalorder %s56, %s58
    %p65 = scmp.eq.s32.totalorder %s15, 1
    %p66 = por %p64, %p65
    %p67 = scmp.ne.s32.totalorder %s58, %s59
    %p68 = scmp.eq.s32.totalorder %s15, 0
    %p69 = por %p67, %p68
    %p70 = scmp.ne.s32.totalorder %s58, %s59
    %p71 = scmp.eq.s32.totalorder %s16, 1
    %p72 = por %p70, %p71
    %p74 = scmp.ne.s32.totalorder %s59, %s73
    %p75 = scmp.eq.s32.totalorder %s16, 0
    %p76 = por %p74, %p75
    %s78 = sadd.s32 %s77, 1
    %p81 = scmp.eq.s32.totalorder %s10, 1
    %p82 = scmp.ne.s32.totalorder %s77, %s79
    %p83 = scmp.eq.s32.totalorder %s10, 0
    %p84 = por %p82, %p83
    %p85 = scmp.ne.s32.totalorder %s77, %s79
    %p86 = scmp.eq.s32.totalorder %s15, 1
    %p87 = por %p85, %p86
    %p88 = scmp.ne.s32.totalorder %s79, %s80
    %p89 = scmp.eq.s32.totalorder %s15, 0
    %p90 = por %p88, %p89
    %p91 = scmp.ne.s32.totalorder %s79, %s80
    %p92 = scmp.eq.s32.totalorder %s16, 1
    %p93 = por %p91, %p92
    %p95 = scmp.ne.s32.totalorder %s80, %s94
    %p96 = scmp.eq.s32.totalorder %s16, 0
    %p97 = por %p95, %p96
    %s99 = sadd.s32 %s98, 1
    %p102 = scmp.eq.s32.totalorder %s10, 1
    %p103 = scmp.ne.s32.totalorder %s98, %s100
    %p104 = scmp.eq.s32.totalorder %s10, 0
    %p105 = por %p103, %p104
    %p106 = scmp.ne.s32.totalorder %s98, %s100
    %p107 = scmp.eq.s32.totalorder %s15, 1
    %p108 = por %p106, %p107
    %p109 = scmp.ne.s32.totalorder %s100, %s101
    %p110 = scmp.eq.s32.totalorder %s15, 0
    %p111 = por %p109, %p110
    %p112 = scmp.ne.s32.totalorder %s100, %s101
    %p113 = scmp.eq.s32.totalorder %s16, 1
    %p114 = por %p112, %p113
    %p116 = scmp.ne.s32.totalorder %s101, %s115
    %p117 = scmp.eq.s32.totalorder %s16, 0
    %p118 = por %p116, %p117
    %s119 = ssub.s32 %s17, %s29
    %s120 = ssub.s32 %s18, %s25
    %s121 = sor.u32 %s119, %s120
    %p122 = scmp.eq.s32.totalorder %s121, 0
    %s124 = sadd.s32 %s123, 1
    %s125 = scalar_select %p122, %s123, %s124
    %p128 = pneg %p122
    %p129 = scmp.eq.s32.totalorder %s10, 1
    %p130 = por %p128, %p129
    %p131 = scmp.ne.s32.totalorder %s123, %s126
    %p132 = scmp.eq.s32.totalorder %s10, 0
    %p133 = por %p131, %p132
    %p134 = scmp.ne.s32.totalorder %s123, %s126
    %p135 = scmp.eq.s32.totalorder %s15, 1
    %p136 = por %p134, %p135
    %p137 = scmp.ne.s32.totalorder %s126, %s127
    %p138 = scmp.eq.s32.totalorder %s15, 0
    %p139 = por %p137, %p138
    %p140 = scmp.ne.s32.totalorder %s126, %s127
    %p141 = scmp.eq.s32.totalorder %s16, 1
    %p142 = por %p140, %p141
    %p144 = scmp.ne.s32.totalorder %s127, %s143
    %p145 = scmp.eq.s32.totalorder %s16, 0
    %p146 = por %p144, %p145
    %p147 = scmp.le.s32.totalorder 1, %s10
    %p148 = scmp.lt.s32.totalorder %s10, 3
    %p149 = pnand %p147, %p148
    %p150 = pneg %p149
    // Predicated region
    $region9: #{facenet_forward.8} parent=5 // pred_check
      _
    $region10: #{facenet_forward.8} parent=5 // pred_check_branch
      %152 = sbr.rel (%p149) target = $region12
    $region11: #{facenet_forward.8} parent=5 // pred_region
      %s153 = ssub.s32 %s10, 1
      // Predicated region
      $region13: #{facenet_forward.8} parent=11 // pred_check
        %p154 = pneg %p69
      $region14: #{facenet_forward.8} parent=11 // pred_check_branch
        %156 = sbr.rel (%p154) target = $region16
      $region15: #{facenet_forward.8} parent=11 // pred_region
        _
      $region16: #{facenet_forward.8} parent=11 // pred_fallthru
        _
      // Predicated region
      $region17: #{facenet_forward.8} parent=11 // pred_check
        %p157 = pneg %p90
      $region18: #{facenet_forward.8} parent=11 // pred_check_branch
        %159 = sbr.rel (%p157) target = $region20
      $region19: #{facenet_forward.8} parent=11 // pred_region
        _
      $region20: #{facenet_forward.8} parent=11 // pred_fallthru
        _
      // Predicated region
      $region21: #{facenet_forward.8} parent=11 // pred_check
        %p160 = pneg %p111
      $region22: #{facenet_forward.8} parent=11 // pred_check_branch
        %162 = sbr.rel (%p160) target = $region24
      $region23: #{facenet_forward.8} parent=11 // pred_region
        _
      $region24: #{facenet_forward.8} parent=11 // pred_fallthru
        _
    $region12: #{facenet_forward.8} parent=5 // pred_fallthru
      _
    %p163 = scmp.lt.s32.totalorder %s10, 2
    // Predicated region
    $region25: #{facenet_forward.8} parent=5 // pred_check
      %p164 = pneg %p163
    $region26: #{facenet_forward.8} parent=5 // pred_check_branch
      %166 = sbr.rel (%p164) target = $region28
    $region27: #{facenet_forward.8} parent=5 // pred_region
      // Predicated region
      $region29: #{facenet_forward.8} parent=27 // pred_check
        %p167 = pneg %p42
      $region30: #{facenet_forward.8} parent=27 // pred_check_branch
        %169 = sbr.rel (%p167) target = $region32
      $region31: #{facenet_forward.8} parent=27 // pred_region
        %p170 = scmp.lt.s32.totalorder %s17, 1
        %s171 = scalar_select %p170, %s17, 1
        %s172 = smul.addr %s171, 168
        %s173 = smul.addr %s172, 8
        %s174 = scalar_lea.vmem %s0, %s173
      $region32: #{facenet_forward.8} parent=27 // pred_fallthru
        _
    $region28: #{facenet_forward.8} parent=5 // pred_fallthru
      _
    %p175 = scmp.le.s32.totalorder 1, %s10
    %p176 = scmp.lt.s32.totalorder %s10, 3
    %p177 = pnand %p175, %p176
    %p178 = pneg %p177
    // Predicated region
    $region33: #{facenet_forward.8} parent=5 // pred_check
      _
    $region34: #{facenet_forward.8} parent=5 // pred_check_branch
      %180 = sbr.rel (%p177) target = $region36
    $region35: #{facenet_forward.8} parent=5 // pred_region
      %s181 = ssub.s32 %s10, 1
      %p182 = scmp.lt.s32.totalorder %s19, 1
      %s183 = scalar_select %p182, %s19, 1
      %s184 = smul.addr %s183, 168
      %s185 = smul.addr %s184, 8
      %s186 = scalar_lea.vmem %s0, %s185
      %p187 = pneg %p48
      %p188 = pneg %p45
      %p189 = pneg %p69
      %p190 = pneg %p66
      %p191 = pneg %p90
      %p192 = pneg %p87
      %p193 = pneg %p111
      %p194 = pneg %p108
      %p195 = pneg %p139
      %p196 = pneg %p136
      %s197 = smul.u32 39, %s20
      %p198 = scmp.lt.s32.totalorder %s19, 1
      %s199 = scalar_select %p198, %s19, 1
      %p200 = scmp.lt.s32.totalorder %s197, 38
      %s201 = scalar_select %p200, %s197, 38
      %s202 = smul.addr %s199, 39
      %s203 = sadd.s32 %s201, %s202
      %s204 = smul.addr %s203, 8
      %s205 = scalar_lea.vmem %s4, %s204
      %p206 = scmp.lt.s32.totalorder %s19, 1
      %s207 = scalar_select %p206, %s19, 1
      %s208 = smul.addr %s207, 168
      %s209 = smul.addr %s208, 8
      %s210 = scalar_lea.vmem %s0, %s209
      %s211 = smul.u32 39, %s20
      %p212 = scmp.lt.s32.totalorder %s19, 1
      %s213 = scalar_select %p212, %s19, 1
      %p214 = scmp.lt.s32.totalorder %s211, 38
      %s215 = scalar_select %p214, %s211, 38
      %s216 = smul.addr %s213, 39
      %s217 = sadd.s32 %s215, %s216
      %s218 = smul.addr %s217, 8
      %s219 = scalar_lea.vmem %s4, %s218
      %s220 = smul.u32 39, %s20
      %v221 = vld [vmem:[%s210] sm:$0xff]
      %v222 = vld [vmem:[%s210 + $0x8] sm:$0xff]
      %v223 = vld [vmem:[%s210 + $0x10] sm:$0xff]
      %v224 = vld [vmem:[%s210 + $0x18] sm:$0xff]
      %v225 = vld [vmem:[%s210 + $0x20] sm:$0xff]
      %v226 = vld [vmem:[%s210 + $0x28] sm:$0xff]
      %v227 = vld [vmem:[%s210 + $0x30] sm:$0xff]
      %v228 = vld [vmem:[%s210 + $0x38] sm:$0xff]
      %v229 = vld [vmem:[%s210 + $0x40] sm:$0xff]
      %v230 = vld [vmem:[%s210 + $0x48] sm:$0xff]
      %v231 = vld [vmem:[%s210 + $0x50] sm:$0xff]
      %v232 = vld [vmem:[%s210 + $0x58] sm:$0xff]
      %v233 = vld [vmem:[%s210 + $0x60] sm:$0xff]
      %v234 = vld [vmem:[%s210 + $0x68] sm:$0xff]
      %v235 = vld [vmem:[%s210 + $0x70] sm:$0xff]
      %v236 = vld [vmem:[%s210 + $0x78] sm:$0xff]
      %v237 = vld [vmem:[%s210 + $0x80] sm:$0xff]
      %v238 = vld [vmem:[%s210 + $0x88] sm:$0xff]
      %v239 = vld [vmem:[%s210 + $0x90] sm:$0xff]
      %v240 = vld [vmem:[%s210 + $0x98] sm:$0xff]
      %v241 = vld [vmem:[%s210 + $0xa0] sm:$0xff]
      %v242 = vld [vmem:[%s210 + $0xa8] sm:$0xff]
      %v243 = vld [vmem:[%s210 + $0xb0] sm:$0xff]
      %v244 = vld [vmem:[%s210 + $0xb8] sm:$0xff]
      %v245 = vld [vmem:[%s210 + $0xc0] sm:$0xff]
      %v246 = vld [vmem:[%s210 + $0xc8] sm:$0xff]
      %v247 = vld [vmem:[%s210 + $0xd0] sm:$0xff]
      %v248 = vld [vmem:[%s210 + $0xd8] sm:$0xff]
      %v249 = vld [vmem:[%s210 + $0xe0] sm:$0xff]
      %v250 = vld [vmem:[%s210 + $0xe8] sm:$0xff]
      %v251 = vld [vmem:[%s210 + $0xf0] sm:$0xff]
      %v252 = vld [vmem:[%s210 + $0xf8] sm:$0xff]
      %v253 = vld [vmem:[%s210 + $0x100] sm:$0xff]
      %v254 = vld [vmem:[%s210 + $0x108] sm:$0xff]
      %v255 = vld [vmem:[%s210 + $0x110] sm:$0xff]
      %v256 = vld [vmem:[%s210 + $0x118] sm:$0xff]
      %v257 = vld [vmem:[%s210 + $0x120] sm:$0xff]
      %v258 = vld [vmem:[%s210 + $0x128] sm:$0xff]
      %v259 = vld [vmem:[%s210 + $0x130] sm:$0xff]
      %v260 = vpack.c.bf16 %v222, %v221
      %v261 = vpack.c.bf16 %v224, %v223
      %v262 = vpack.c.bf16 %v226, %v225
      %v263 = vpack.c.bf16 %v228, %v227
      %v264 = vpack.c.bf16 %v230, %v229
      %v265 = vpack.c.bf16 %v232, %v231
      %v266 = vpack.c.bf16 %v234, %v233
      %v267 = vpack.c.bf16 %v236, %v235
      %v268 = vpack.c.bf16 %v238, %v237
      %v269 = vpack.c.bf16 %v240, %v239
      %v270 = vpack.c.bf16 %v242, %v241
      %v271 = vpack.c.bf16 %v244, %v243
      %v272 = vpack.c.bf16 %v246, %v245
      %v273 = vpack.c.bf16 %v248, %v247
      %v274 = vpack.c.bf16 %v250, %v249
      %v275 = vpack.c.bf16 %v252, %v251
      %v276 = vpack.c.bf16 %v254, %v253
      %v277 = vpack.c.bf16 %v256, %v255
      %v278 = vpack.c.bf16 %v258, %v257
      %v279 = vpack.c.bf16 %v259, %v259
      %v280 = vld [vmem:[%s1] sm:$0xf]
      %v281 = vld [vmem:[%s1 + $0x4] sm:$0xf]
      %v282 = vld [vmem:[%s1 + $0x8] sm:$0xf]
      %v283 = vld [vmem:[%s1 + $0xc] sm:$0xf]
      %v284 = vld [vmem:[%s1 + $0x10] sm:$0xf]
      %v285 = vld [vmem:[%s1 + $0x14] sm:$0xf]
      %v286 = vld [vmem:[%s1 + $0x18] sm:$0xf]
      %v287 = vld [vmem:[%s1 + $0x1c] sm:$0xf]
      %v288 = vld [vmem:[%s1 + $0x20] sm:$0xf]
      %v289 = vld [vmem:[%s1 + $0x24] sm:$0xf]
      %v290 = vld [vmem:[%s1 + $0x28] sm:$0xf]
      %v291 = vld [vmem:[%s1 + $0x2c] sm:$0xf]
      %v292 = vld [vmem:[%s1 + $0x30] sm:$0xf]
      %v293 = vld [vmem:[%s1 + $0x34] sm:$0xf]
      %v294 = vld [vmem:[%s1 + $0x38] sm:$0xf]
      %v295 = vld [vmem:[%s1 + $0x3c] sm:$0xf]
      %s296 = scalar_lea.vmem %s210, 336
      %v297 = vld [vmem:[%s296] sm:$0xff]
      %v298 = vld [vmem:[%s296 + $0x8] sm:$0xff]
      %v299 = vld [vmem:[%s296 + $0x10] sm:$0xff]
      %v300 = vld [vmem:[%s296 + $0x18] sm:$0xff]
      %v301 = vld [vmem:[%s296 + $0x20] sm:$0xff]
      %v302 = vld [vmem:[%s296 + $0x28] sm:$0xff]
      %v303 = vld [vmem:[%s296 + $0x30] sm:$0xff]
      %v304 = vld [vmem:[%s296 + $0x38] sm:$0xff]
      %v305 = vld [vmem:[%s296 + $0x40] sm:$0xff]
      %v306 = vld [vmem:[%s296 + $0x48] sm:$0xff]
      %v307 = vld [vmem:[%s296 + $0x50] sm:$0xff]
      %v308 = vld [vmem:[%s296 + $0x58] sm:$0xff]
      %v309 = vld [vmem:[%s296 + $0x60] sm:$0xff]
      %v310 = vld [vmem:[%s296 + $0x68] sm:$0xff]
      %v311 = vld [vmem:[%s296 + $0x70] sm:$0xff]
      %v312 = vld [vmem:[%s296 + $0x78] sm:$0xff]
      %v313 = vld [vmem:[%s296 + $0x80] sm:$0xff]
      %v314 = vld [vmem:[%s296 + $0x88] sm:$0xff]
      %v315 = vld [vmem:[%s296 + $0x90] sm:$0xff]
      %v316 = vld [vmem:[%s296 + $0x98] sm:$0xff]
      %v317 = vld [vmem:[%s296 + $0xa0] sm:$0xff]
      %v318 = vld [vmem:[%s296 + $0xa8] sm:$0xff]
      %v319 = vld [vmem:[%s296 + $0xb0] sm:$0xff]
      %v320 = vld [vmem:[%s296 + $0xb8] sm:$0xff]
      %v321 = vld [vmem:[%s296 + $0xc0] sm:$0xff]
      %v322 = vld [vmem:[%s296 + $0xc8] sm:$0xff]
      %v323 = vld [vmem:[%s296 + $0xd0] sm:$0xff]
      %v324 = vld [vmem:[%s296 + $0xd8] sm:$0xff]
      %v325 = vld [vmem:[%s296 + $0xe0] sm:$0xff]
      %v326 = vld [vmem:[%s296 + $0xe8] sm:$0xff]
      %v327 = vld [vmem:[%s296 + $0xf0] sm:$0xff]
      %v328 = vld [vmem:[%s296 + $0xf8] sm:$0xff]
      %v329 = vld [vmem:[%s296 + $0x100] sm:$0xff]
      %v330 = vld [vmem:[%s296 + $0x108] sm:$0xff]
      %v331 = vld [vmem:[%s296 + $0x110] sm:$0xff]
      %v332 = vld [vmem:[%s296 + $0x118] sm:$0xff]
      %v333 = vld [vmem:[%s296 + $0x120] sm:$0xff]
      %v334 = vld [vmem:[%s296 + $0x128] sm:$0xff]
      %v335 = vld [vmem:[%s296 + $0x130] sm:$0xff]
      %v336 = vpack.c.bf16 %v298, %v297
      %v337 = vpack.c.bf16 %v300, %v299
      %v338 = vpack.c.bf16 %v302, %v301
      %v339 = vpack.c.bf16 %v304, %v303
      %v340 = vpack.c.bf16 %v306, %v305
      %v341 = vpack.c.bf16 %v308, %v307
      %v342 = vpack.c.bf16 %v310, %v309
      %v343 = vpack.c.bf16 %v312, %v311
      %v344 = vpack.c.bf16 %v314, %v313
      %v345 = vpack.c.bf16 %v316, %v315
      %v346 = vpack.c.bf16 %v318, %v317
      %v347 = vpack.c.bf16 %v320, %v319
      %v348 = vpack.c.bf16 %v322, %v321
      %v349 = vpack.c.bf16 %v324, %v323
      %v350 = vpack.c.bf16 %v326, %v325
      %v351 = vpack.c.bf16 %v328, %v327
      %v352 = vpack.c.bf16 %v330, %v329
      %v353 = vpack.c.bf16 %v332, %v331
      %v354 = vpack.c.bf16 %v334, %v333
      %v355 = vpack.c.bf16 %v335, %v335
      %s356 = scalar_lea.vmem %s1, 64
      %v357 = vld [vmem:[%s356] sm:$0xf]
      %v358 = vld [vmem:[%s356 + $0x4] sm:$0xf]
      %v359 = vld [vmem:[%s356 + $0x8] sm:$0xf]
      %v360 = vld [vmem:[%s356 + $0xc] sm:$0xf]
      %v361 = vld [vmem:[%s356 + $0x10] sm:$0xf]
      %v362 = vld [vmem:[%s356 + $0x14] sm:$0xf]
      %v363 = vld [vmem:[%s356 + $0x18] sm:$0xf]
      %v364 = vld [vmem:[%s356 + $0x1c] sm:$0xf]
      %v365 = vld [vmem:[%s356 + $0x20] sm:$0xf]
      %v366 = vld [vmem:[%s356 + $0x24] sm:$0xf]
      %v367 = vld [vmem:[%s356 + $0x28] sm:$0xf]
      %v368 = vld [vmem:[%s356 + $0x2c] sm:$0xf]
      %v369 = vld [vmem:[%s356 + $0x30] sm:$0xf]
      %v370 = vld [vmem:[%s356 + $0x34] sm:$0xf]
      %v371 = vld [vmem:[%s356 + $0x38] sm:$0xf]
      %v372 = vld [vmem:[%s356 + $0x3c] sm:$0xf]
      %v389 = vunpack.c.l.b16 %v357
      %v390 = vunpack.c.l.b16 %v358
      %v391 = vunpack.c.l.b16 %v359
      %v392 = vunpack.c.l.b16 %v360
      %v393 = vunpack.c.l.b16 %v361
      %v394 = vunpack.c.l.b16 %v362
      %v395 = vunpack.c.l.b16 %v363
      %v396 = vunpack.c.l.b16 %v364
      %v397 = vunpack.c.l.b16 %v365
      %v398 = vunpack.c.l.b16 %v366
      %v399 = vunpack.c.l.b16 %v367
      %v400 = vunpack.c.l.b16 %v368
      %v401 = vunpack.c.l.b16 %v369
      %v402 = vunpack.c.l.b16 %v370
      %v403 = vunpack.c.l.b16 %v371
      %v404 = vunpack.c.l.b16 %v372
      %v405 = vpack.c.b16 %v390, %v389
      %v406 = vpack.c.b16 %v392, %v391
      %v407 = vpack.c.b16 %v394, %v393
      %v408 = vpack.c.b16 %v396, %v395
      %v409 = vpack.c.b16 %v398, %v397
      %v410 = vpack.c.b16 %v400, %v399
      %v411 = vpack.c.b16 %v402, %v401
      %v412 = vpack.c.b16 %v404, %v403
      %421 = vmatpush.bf16.msra.mxu0 %v412
      %422 = vmatpush.bf16.msra.mxu0 %v411
      %423 = vmatpush.bf16.msra.mxu0 %v410
      %424 = vmatpush.bf16.msra.mxu0 %v409
      %425 = vmatpush.bf16.msra.mxu0 %v408
      %426 = vmatpush.bf16.msra.mxu0 %v407
      %427 = vmatpush.bf16.msra.mxu0 %v406
      %428 = vmatpush.bf16.msra.mxu0 %v405
      %429 = vmatmul.bf16.gmra.mxu0 %v336
      %v430 = vpop.f32.mrf.mxu0
      %v431 = vadd.f32 0.0, %v430
      %v432 = vpop.f32.mrf.mxu0
      %v433 = vadd.f32 0.0, %v432
      %434 = vmatmul.bf16.gmra.mxu0 %v337
      %v435 = vpop.f32.mrf.mxu0
      %v436 = vadd.f32 0.0, %v435
      %v437 = vpop.f32.mrf.mxu0
      %v438 = vadd.f32 0.0, %v437
      %439 = vmatmul.bf16.gmra.mxu0 %v338
      %v440 = vpop.f32.mrf.mxu0
      %v441 = vadd.f32 0.0, %v440
      %v442 = vpop.f32.mrf.mxu0
      %v443 = vadd.f32 0.0, %v442
      %444 = vmatmul.bf16.gmra.mxu0 %v339
      %v445 = vpop.f32.mrf.mxu0
      %v446 = vadd.f32 0.0, %v445
      %v447 = vpop.f32.mrf.mxu0
      %v448 = vadd.f32 0.0, %v447
      %449 = vmatmul.bf16.gmra.mxu0 %v340
      %v450 = vpop.f32.mrf.mxu0
      %v451 = vadd.f32 0.0, %v450
      %v452 = vpop.f32.mrf.mxu0
      %v453 = vadd.f32 0.0, %v452
      %454 = vmatmul.bf16.gmra.mxu0 %v341
      %v455 = vpop.f32.mrf.mxu0
      %v456 = vadd.f32 0.0, %v455
      %v457 = vpop.f32.mrf.mxu0
      %v458 = vadd.f32 0.0, %v457
      %459 = vmatmul.bf16.gmra.mxu0 %v342
      %v460 = vpop.f32.mrf.mxu0
      %v461 = vadd.f32 0.0, %v460
      %v462 = vpop.f32.mrf.mxu0
      %v463 = vadd.f32 0.0, %v462
      %464 = vmatmul.bf16.gmra.mxu0 %v343
      %v465 = vpop.f32.mrf.mxu0
      %v466 = vadd.f32 0.0, %v465
      %v467 = vpop.f32.mrf.mxu0
      %v468 = vadd.f32 0.0, %v467
      %469 = vmatmul.bf16.gmra.mxu0 %v344
      %v470 = vpop.f32.mrf.mxu0
      %v471 = vadd.f32 0.0, %v470
      %v472 = vpop.f32.mrf.mxu0
      %v473 = vadd.f32 0.0, %v472
      %474 = vmatmul.bf16.gmra.mxu0 %v345
      %v475 = vpop.f32.mrf.mxu0
      %v476 = vadd.f32 0.0, %v475
      %v477 = vpop.f32.mrf.mxu0
      %v478 = vadd.f32 0.0, %v477
      %479 = vmatmul.bf16.gmra.mxu0 %v346
      %v480 = vpop.f32.mrf.mxu0
      %v481 = vadd.f32 0.0, %v480
      %v482 = vpop.f32.mrf.mxu0
      %v483 = vadd.f32 0.0, %v482
      %484 = vmatmul.bf16.gmra.mxu0 %v347
      %v485 = vpop.f32.mrf.mxu0
      %v486 = vadd.f32 0.0, %v485
      %v487 = vpop.f32.mrf.mxu0
      %v488 = vadd.f32 0.0, %v487
      %489 = vmatmul.bf16.gmra.mxu0 %v348
      %v490 = vpop.f32.mrf.mxu0
      %v491 = vadd.f32 0.0, %v490
      %v492 = vpop.f32.mrf.mxu0
      %v493 = vadd.f32 0.0, %v492
      %494 = vmatmul.bf16.gmra.mxu0 %v349
      %v495 = vpop.f32.mrf.mxu0
      %v496 = vadd.f32 0.0, %v495
      %v497 = vpop.f32.mrf.mxu0
      %v498 = vadd.f32 0.0, %v497
      %499 = vmatmul.bf16.gmra.mxu0 %v350
      %v500 = vpop.f32.mrf.mxu0
      %v501 = vadd.f32 0.0, %v500
      %v502 = vpop.f32.mrf.mxu0
      %v503 = vadd.f32 0.0, %v502
      %504 = vmatmul.bf16.gmra.mxu0 %v351
      %v505 = vpop.f32.mrf.mxu0
      %v506 = vadd.f32 0.0, %v505
      %v507 = vpop.f32.mrf.mxu0
      %v508 = vadd.f32 0.0, %v507
      %509 = vmatmul.bf16.gmra.mxu0 %v352
      %v510 = vpop.f32.mrf.mxu0
      %v511 = vadd.f32 0.0, %v510
      %v512 = vpop.f32.mrf.mxu0
      %v513 = vadd.f32 0.0, %v512
      %514 = vmatmul.bf16.gmra.mxu0 %v353
      %v515 = vpop.f32.mrf.mxu0
      %v516 = vadd.f32 0.0, %v515
      %v517 = vpop.f32.mrf.mxu0
      %v518 = vadd.f32 0.0, %v517
      %519 = vmatmul.bf16.gmra.mxu0 %v354
      %v520 = vpop.f32.mrf.mxu0
      %v521 = vadd.f32 0.0, %v520
      %v522 = vpop.f32.mrf.mxu0
      %v523 = vadd.f32 0.0, %v522
      %524 = vmatmul.bf16.gmra.mxu0 %v355
      %v525 = vpop.f32.mrf.mxu0
      %v526 = vadd.f32 0.0, %v525
      %v527 = vpop.f32.mrf.mxu0
      %528 = vdwg.mxu0
      %v545 = vunpack.c.l.b16 %v280
      %v546 = vunpack.c.l.b16 %v281
      %v547 = vunpack.c.l.b16 %v282
      %v548 = vunpack.c.l.b16 %v283
      %v549 = vunpack.c.l.b16 %v284
      %v550 = vunpack.c.l.b16 %v285
      %v551 = vunpack.c.l.b16 %v286
      %v552 = vunpack.c.l.b16 %v287
      %v553 = vunpack.c.l.b16 %v288
      %v554 = vunpack.c.l.b16 %v289
      %v555 = vunpack.c.l.b16 %v290
      %v556 = vunpack.c.l.b16 %v291
      %v557 = vunpack.c.l.b16 %v292
      %v558 = vunpack.c.l.b16 %v293
      %v559 = vunpack.c.l.b16 %v294
      %v560 = vunpack.c.l.b16 %v295
      %v561 = vpack.c.b16 %v546, %v545
      %v562 = vpack.c.b16 %v548, %v547
      %v563 = vpack.c.b16 %v550, %v549
      %v564 = vpack.c.b16 %v552, %v551
      %v565 = vpack.c.b16 %v554, %v553
      %v566 = vpack.c.b16 %v556, %v555
      %v567 = vpack.c.b16 %v558, %v557
      %v568 = vpack.c.b16 %v560, %v559
      %577 = vmatpush.bf16.msra.mxu0 %v568
      %578 = vmatpush.bf16.msra.mxu0 %v567
      %579 = vmatpush.bf16.msra.mxu0 %v566
      %580 = vmatpush.bf16.msra.mxu0 %v565
      %581 = vmatpush.bf16.msra.mxu0 %v564
      %582 = vmatpush.bf16.msra.mxu0 %v563
      %583 = vmatpush.bf16.msra.mxu0 %v562
      %584 = vmatpush.bf16.msra.mxu0 %v561
      %585 = vmatmul.bf16.gmra.mxu0 %v260
      %v586 = vpop.f32.mrf.mxu0
      %v587 = vadd.f32 %v431, %v586
      %v588 = vpop.f32.mrf.mxu0
      %v589 = vadd.f32 %v433, %v588
      %590 = vmatmul.bf16.gmra.mxu0 %v261
      %v591 = vpop.f32.mrf.mxu0
      %v592 = vadd.f32 %v436, %v591
      %v593 = vpop.f32.mrf.mxu0
      %v594 = vadd.f32 %v438, %v593
      %595 = vmatmul.bf16.gmra.mxu0 %v262
      %v596 = vpop.f32.mrf.mxu0
      %v597 = vadd.f32 %v441, %v596
      %v598 = vpop.f32.mrf.mxu0
      %v599 = vadd.f32 %v443, %v598
      %600 = vmatmul.bf16.gmra.mxu0 %v263
      %v601 = vpop.f32.mrf.mxu0
      %v602 = vadd.f32 %v446, %v601
      %v603 = vpop.f32.mrf.mxu0
      %v604 = vadd.f32 %v448, %v603
      %605 = vmatmul.bf16.gmra.mxu0 %v264
      %v606 = vpop.f32.mrf.mxu0
      %v607 = vadd.f32 %v451, %v606
      %v608 = vpop.f32.mrf.mxu0
      %v609 = vadd.f32 %v453, %v608
      %610 = vmatmul.bf16.gmra.mxu0 %v265
      %v611 = vpop.f32.mrf.mxu0
      %v612 = vadd.f32 %v456, %v611
      %v613 = vpop.f32.mrf.mxu0
      %v614 = vadd.f32 %v458, %v613
      %615 = vmatmul.bf16.gmra.mxu0 %v266
      %v616 = vpop.f32.mrf.mxu0
      %v617 = vadd.f32 %v461, %v616
      %v618 = vpop.f32.mrf.mxu0
      %v619 = vadd.f32 %v463, %v618
      %620 = vmatmul.bf16.gmra.mxu0 %v267
      %v621 = vpop.f32.mrf.mxu0
      %v622 = vadd.f32 %v466, %v621
      %v623 = vpop.f32.mrf.mxu0
      %v624 = vadd.f32 %v468, %v623
      %625 = vmatmul.bf16.gmra.mxu0 %v268
      %v626 = vpop.f32.mrf.mxu0
      %v627 = vadd.f32 %v471, %v626
      %v628 = vpop.f32.mrf.mxu0
      %v629 = vadd.f32 %v473, %v628
      %630 = vmatmul.bf16.gmra.mxu0 %v269
      %v631 = vpop.f32.mrf.mxu0
      %v632 = vadd.f32 %v476, %v631
      %v633 = vpop.f32.mrf.mxu0
      %v634 = vadd.f32 %v478, %v633
      %635 = vmatmul.bf16.gmra.mxu0 %v270
      %v636 = vpop.f32.mrf.mxu0
      %v637 = vadd.f32 %v481, %v636
      %v638 = vpop.f32.mrf.mxu0
      %v639 = vadd.f32 %v483, %v638
      %640 = vmatmul.bf16.gmra.mxu0 %v271
      %v641 = vpop.f32.mrf.mxu0
      %v642 = vadd.f32 %v486, %v641
      %v643 = vpop.f32.mrf.mxu0
      %v644 = vadd.f32 %v488, %v643
      %645 = vmatmul.bf16.gmra.mxu0 %v272
      %v646 = vpop.f32.mrf.mxu0
      %v647 = vadd.f32 %v491, %v646
      %v648 = vpop.f32.mrf.mxu0
      %v649 = vadd.f32 %v493, %v648
      %650 = vmatmul.bf16.gmra.mxu0 %v273
      %v651 = vpop.f32.mrf.mxu0
      %v652 = vadd.f32 %v496, %v651
      %v653 = vpop.f32.mrf.mxu0
      %v654 = vadd.f32 %v498, %v653
      %655 = vmatmul.bf16.gmra.mxu0 %v274
      %v656 = vpop.f32.mrf.mxu0
      %v657 = vadd.f32 %v501, %v656
      %v658 = vpop.f32.mrf.mxu0
      %v659 = vadd.f32 %v503, %v658
      %660 = vmatmul.bf16.gmra.mxu0 %v275
      %v661 = vpop.f32.mrf.mxu0
      %v662 = vadd.f32 %v506, %v661
      %v663 = vpop.f32.mrf.mxu0
      %v664 = vadd.f32 %v508, %v663
      %665 = vmatmul.bf16.gmra.mxu0 %v276
      %v666 = vpop.f32.mrf.mxu0
      %v667 = vadd.f32 %v511, %v666
      %v668 = vpop.f32.mrf.mxu0
      %v669 = vadd.f32 %v513, %v668
      %670 = vmatmul.bf16.gmra.mxu0 %v277
      %v671 = vpop.f32.mrf.mxu0
      %v672 = vadd.f32 %v516, %v671
      %v673 = vpop.f32.mrf.mxu0
      %v674 = vadd.f32 %v518, %v673
      %675 = vmatmul.bf16.gmra.mxu0 %v278
      %v676 = vpop.f32.mrf.mxu0
      %v677 = vadd.f32 %v521, %v676
      %v678 = vpop.f32.mrf.mxu0
      %v679 = vadd.f32 %v523, %v678
      %680 = vmatmul.bf16.gmra.mxu0 %v279
      %v681 = vpop.f32.mrf.mxu0
      %v682 = vadd.f32 %v526, %v681
      %v683 = vpop.f32.mrf.mxu0
      %684 = vdwg.mxu0
      %v685 = vld [vmem:[%s210 + $0x1] sm:$0xff]
      %v686 = vld [vmem:[%s210 + $0x9] sm:$0xff]
      %v687 = vld [vmem:[%s210 + $0x11] sm:$0xff]
      %v688 = vld [vmem:[%s210 + $0x19] sm:$0xff]
      %v689 = vld [vmem:[%s210 + $0x21] sm:$0xff]
      %v690 = vld [vmem:[%s210 + $0x29] sm:$0xff]
      %v691 = vld [vmem:[%s210 + $0x31] sm:$0xff]
      %v692 = vld [vmem:[%s210 + $0x39] sm:$0xff]
      %v693 = vld [vmem:[%s210 + $0x41] sm:$0xff]
      %v694 = vld [vmem:[%s210 + $0x49] sm:$0xff]
      %v695 = vld [vmem:[%s210 + $0x51] sm:$0xff]
      %v696 = vld [vmem:[%s210 + $0x59] sm:$0xff]
      %v697 = vld [vmem:[%s210 + $0x61] sm:$0xff]
      %v698 = vld [vmem:[%s210 + $0x69] sm:$0xff]
      %v699 = vld [vmem:[%s210 + $0x71] sm:$0xff]
      %v700 = vld [vmem:[%s210 + $0x79] sm:$0xff]
      %v701 = vld [vmem:[%s210 + $0x81] sm:$0xff]
      %v702 = vld [vmem:[%s210 + $0x89] sm:$0xff]
      %v703 = vld [vmem:[%s210 + $0x91] sm:$0xff]
      %v704 = vld [vmem:[%s210 + $0x99] sm:$0xff]
      %v705 = vld [vmem:[%s210 + $0xa1] sm:$0xff]
      %v706 = vld [vmem:[%s210 + $0xa9] sm:$0xff]
      %v707 = vld [vmem:[%s210 + $0xb1] sm:$0xff]
      %v708 = vld [vmem:[%s210 + $0xb9] sm:$0xff]
      %v709 = vld [vmem:[%s210 + $0xc1] sm:$0xff]
      %v710 = vld [vmem:[%s210 + $0xc9] sm:$0xff]
      %v711 = vld [vmem:[%s210 + $0xd1] sm:$0xff]
      %v712 = vld [vmem:[%s210 + $0xd9] sm:$0xff]
      %v713 = vld [vmem:[%s210 + $0xe1] sm:$0xff]
      %v714 = vld [vmem:[%s210 + $0xe9] sm:$0xff]
      %v715 = vld [vmem:[%s210 + $0xf1] sm:$0xff]
      %v716 = vld [vmem:[%s210 + $0xf9] sm:$0xff]
      %v717 = vld [vmem:[%s210 + $0x101] sm:$0xff]
      %v718 = vld [vmem:[%s210 + $0x109] sm:$0xff]
      %v719 = vld [vmem:[%s210 + $0x111] sm:$0xff]
      %v720 = vld [vmem:[%s210 + $0x119] sm:$0xff]
      %v721 = vld [vmem:[%s210 + $0x121] sm:$0xff]
      %v722 = vld [vmem:[%s210 + $0x129] sm:$0xff]
      %v723 = vld [vmem:[%s210 + $0x131] sm:$0xff]
      %v724 = vpack.c.bf16 %v686, %v685
      %v725 = vpack.c.bf16 %v688, %v687
      %v726 = vpack.c.bf16 %v690, %v689
      %v727 = vpack.c.bf16 %v692, %v691
      %v728 = vpack.c.bf16 %v694, %v693
      %v729 = vpack.c.bf16 %v696, %v695
      %v730 = vpack.c.bf16 %v698, %v697
      %v731 = vpack.c.bf16 %v700, %v699
      %v732 = vpack.c.bf16 %v702, %v701
      %v733 = vpack.c.bf16 %v704, %v703
      %v734 = vpack.c.bf16 %v706, %v705
      %v735 = vpack.c.bf16 %v708, %v707
      %v736 = vpack.c.bf16 %v710, %v709
      %v737 = vpack.c.bf16 %v712, %v711
      %v738 = vpack.c.bf16 %v714, %v713
      %v739 = vpack.c.bf16 %v716, %v715
      %v740 = vpack.c.bf16 %v718, %v717
      %v741 = vpack.c.bf16 %v720, %v719
      %v742 = vpack.c.bf16 %v722, %v721
      %v743 = vpack.c.bf16 %v723, %v723
      %s744 = scalar_lea.vmem %s1, 128
      %v745 = vld [vmem:[%s744] sm:$0xf]
      %v746 = vld [vmem:[%s744 + $0x4] sm:$0xf]
      %v747 = vld [vmem:[%s744 + $0x8] sm:$0xf]
      %v748 = vld [vmem:[%s744 + $0xc] sm:$0xf]
      %v749 = vld [vmem:[%s744 + $0x10] sm:$0xf]
      %v750 = vld [vmem:[%s744 + $0x14] sm:$0xf]
      %v751 = vld [vmem:[%s744 + $0x18] sm:$0xf]
      %v752 = vld [vmem:[%s744 + $0x1c] sm:$0xf]
      %v753 = vld [vmem:[%s744 + $0x20] sm:$0xf]
      %v754 = vld [vmem:[%s744 + $0x24] sm:$0xf]
      %v755 = vld [vmem:[%s744 + $0x28] sm:$0xf]
      %v756 = vld [vmem:[%s744 + $0x2c] sm:$0xf]
      %v757 = vld [vmem:[%s744 + $0x30] sm:$0xf]
      %v758 = vld [vmem:[%s744 + $0x34] sm:$0xf]
      %v759 = vld [vmem:[%s744 + $0x38] sm:$0xf]
      %v760 = vld [vmem:[%s744 + $0x3c] sm:$0xf]
      %v777 = vunpack.c.l.b16 %v745
      %v778 = vunpack.c.l.b16 %v746
      %v779 = vunpack.c.l.b16 %v747
      %v780 = vunpack.c.l.b16 %v748
      %v781 = vunpack.c.l.b16 %v749
      %v782 = vunpack.c.l.b16 %v750
      %v783 = vunpack.c.l.b16 %v751
      %v784 = vunpack.c.l.b16 %v752
      %v785 = vunpack.c.l.b16 %v753
      %v786 = vunpack.c.l.b16 %v754
      %v787 = vunpack.c.l.b16 %v755
      %v788 = vunpack.c.l.b16 %v756
      %v789 = vunpack.c.l.b16 %v757
      %v790 = vunpack.c.l.b16 %v758
      %v791 = vunpack.c.l.b16 %v759
      %v792 = vunpack.c.l.b16 %v760
      %v793 = vpack.c.b16 %v778, %v777
      %v794 = vpack.c.b16 %v780, %v779
      %v795 = vpack.c.b16 %v782, %v781
      %v796 = vpack.c.b16 %v784, %v783
      %v797 = vpack.c.b16 %v786, %v785
      %v798 = vpack.c.b16 %v788, %v787
      %v799 = vpack.c.b16 %v790, %v789
      %v800 = vpack.c.b16 %v792, %v791
      %809 = vmatpush.bf16.msra.mxu0 %v800
      %810 = vmatpush.bf16.msra.mxu0 %v799
      %811 = vmatpush.bf16.msra.mxu0 %v798
      %812 = vmatpush.bf16.msra.mxu0 %v797
      %813 = vmatpush.bf16.msra.mxu0 %v796
      %814 = vmatpush.bf16.msra.mxu0 %v795
      %815 = vmatpush.bf16.msra.mxu0 %v794
      %816 = vmatpush.bf16.msra.mxu0 %v793
      %817 = vmatmul.bf16.gmra.mxu0 %v724
      %v818 = vpop.f32.mrf.mxu0
      %v819 = vadd.f32 0.0, %v818
      %v820 = vpop.f32.mrf.mxu0
      %v821 = vadd.f32 0.0, %v820
      %822 = vmatmul.bf16.gmra.mxu0 %v725
      %v823 = vpop.f32.mrf.mxu0
      %v824 = vadd.f32 0.0, %v823
      %v825 = vpop.f32.mrf.mxu0
      %v826 = vadd.f32 0.0, %v825
      %827 = vmatmul.bf16.gmra.mxu0 %v726
      %v828 = vpop.f32.mrf.mxu0
      %v829 = vadd.f32 0.0, %v828
      %v830 = vpop.f32.mrf.mxu0
      %v831 = vadd.f32 0.0, %v830
      %832 = vmatmul.bf16.gmra.mxu0 %v727
      %v833 = vpop.f32.mrf.mxu0
      %v834 = vadd.f32 0.0, %v833
      %v835 = vpop.f32.mrf.mxu0
      %v836 = vadd.f32 0.0, %v835
      %837 = vmatmul.bf16.gmra.mxu0 %v728
      %v838 = vpop.f32.mrf.mxu0
      %v839 = vadd.f32 0.0, %v838
      %v840 = vpop.f32.mrf.mxu0
      %v841 = vadd.f32 0.0, %v840
      %842 = vmatmul.bf16.gmra.mxu0 %v729
      %v843 = vpop.f32.mrf.mxu0
      %v844 = vadd.f32 0.0, %v843
      %v845 = vpop.f32.mrf.mxu0
      %v846 = vadd.f32 0.0, %v845
      %847 = vmatmul.bf16.gmra.mxu0 %v730
      %v848 = vpop.f32.mrf.mxu0
      %v849 = vadd.f32 0.0, %v848
      %v850 = vpop.f32.mrf.mxu0
      %v851 = vadd.f32 0.0, %v850
      %852 = vmatmul.bf16.gmra.mxu0 %v731
      %v853 = vpop.f32.mrf.mxu0
      %v854 = vadd.f32 0.0, %v853
      %v855 = vpop.f32.mrf.mxu0
      %v856 = vadd.f32 0.0, %v855
      %857 = vmatmul.bf16.gmra.mxu0 %v732
      %v858 = vpop.f32.mrf.mxu0
      %v859 = vadd.f32 0.0, %v858
      %v860 = vpop.f32.mrf.mxu0
      %v861 = vadd.f32 0.0, %v860
      %862 = vmatmul.bf16.gmra.mxu0 %v733
      %v863 = vpop.f32.mrf.mxu0
      %v864 = vadd.f32 0.0, %v863
      %v865 = vpop.f32.mrf.mxu0
      %v866 = vadd.f32 0.0, %v865
      %867 = vmatmul.bf16.gmra.mxu0 %v734
      %v868 = vpop.f32.mrf.mxu0
      %v869 = vadd.f32 0.0, %v868
      %v870 = vpop.f32.mrf.mxu0
      %v871 = vadd.f32 0.0, %v870
      %872 = vmatmul.bf16.gmra.mxu0 %v735
      %v873 = vpop.f32.mrf.mxu0
      %v874 = vadd.f32 0.0, %v873
      %v875 = vpop.f32.mrf.mxu0
      %v876 = vadd.f32 0.0, %v875
      %877 = vmatmul.bf16.gmra.mxu0 %v736
      %v878 = vpop.f32.mrf.mxu0
      %v879 = vadd.f32 0.0, %v878
      %v880 = vpop.f32.mrf.mxu0
      %v881 = vadd.f32 0.0, %v880
      %882 = vmatmul.bf16.gmra.mxu0 %v737
      %v883 = vpop.f32.mrf.mxu0
      %v884 = vadd.f32 0.0, %v883
      %v885 = vpop.f32.mrf.mxu0
      %v886 = vadd.f32 0.0, %v885
      %887 = vmatmul.bf16.gmra.mxu0 %v738
      %v888 = vpop.f32.mrf.mxu0
      %v889 = vadd.f32 0.0, %v888
      %v890 = vpop.f32.mrf.mxu0
      %v891 = vadd.f32 0.0, %v890
      %892 = vmatmul.bf16.gmra.mxu0 %v739
      %v893 = vpop.f32.mrf.mxu0
      %v894 = vadd.f32 0.0, %v893
      %v895 = vpop.f32.mrf.mxu0
      %v896 = vadd.f32 0.0, %v895
      %897 = vmatmul.bf16.gmra.mxu0 %v740
      %v898 = vpop.f32.mrf.mxu0
      %v899 = vadd.f32 0.0, %v898
      %v900 = vpop.f32.mrf.mxu0
      %v901 = vadd.f32 0.0, %v900
      %902 = vmatmul.bf16.gmra.mxu0 %v741
      %v903 = vpop.f32.mrf.mxu0
      %v904 = vadd.f32 0.0, %v903
      %v905 = vpop.f32.mrf.mxu0
      %v906 = vadd.f32 0.0, %v905
      %907 = vmatmul.bf16.gmra.mxu0 %v742
      %v908 = vpop.f32.mrf.mxu0
      %v909 = vadd.f32 0.0, %v908
      %v910 = vpop.f32.mrf.mxu0
      %v911 = vadd.f32 0.0, %v910
      %912 = vmatmul.bf16.gmra.mxu0 %v743
      %v913 = vpop.f32.mrf.mxu0
      %v914 = vadd.f32 0.0, %v913
      %v915 = vpop.f32.mrf.mxu0
      %916 = vdwg.mxu0
      %v917 = vadd.f32 %v587, %v819
      %v918 = vadd.f32 %v589, %v821
      %v919 = vadd.f32 %v592, %v824
      %v920 = vadd.f32 %v594, %v826
      %v921 = vadd.f32 %v597, %v829
      %v922 = vadd.f32 %v599, %v831
      %v923 = vadd.f32 %v602, %v834
      %v924 = vadd.f32 %v604, %v836
      %v925 = vadd.f32 %v607, %v839
      %v926 = vadd.f32 %v609, %v841
      %v927 = vadd.f32 %v612, %v844
      %v928 = vadd.f32 %v614, %v846
      %v929 = vadd.f32 %v617, %v849
      %v930 = vadd.f32 %v619, %v851
      %v931 = vadd.f32 %v622, %v854
      %v932 = vadd.f32 %v624, %v856
      %v933 = vadd.f32 %v627, %v859
      %v934 = vadd.f32 %v629, %v861
      %v935 = vadd.f32 %v632, %v864
      %v936 = vadd.f32 %v634, %v866
      %v937 = vadd.f32 %v637, %v869
      %v938 = vadd.f32 %v639, %v871
      %v939 = vadd.f32 %v642, %v874
      %v940 = vadd.f32 %v644, %v876
      %v941 = vadd.f32 %v647, %v879
      %v942 = vadd.f32 %v649, %v881
      %v943 = vadd.f32 %v652, %v884
      %v944 = vadd.f32 %v654, %v886
      %v945 = vadd.f32 %v657, %v889
      %v946 = vadd.f32 %v659, %v891
      %v947 = vadd.f32 %v662, %v894
      %v948 = vadd.f32 %v664, %v896
      %v949 = vadd.f32 %v667, %v899
      %v950 = vadd.f32 %v669, %v901
      %v951 = vadd.f32 %v672, %v904
      %v952 = vadd.f32 %v674, %v906
      %v953 = vadd.f32 %v677, %v909
      %v954 = vadd.f32 %v679, %v911
      %v955 = vadd.f32 %v682, %v914
      %s956 = scalar_lea.vmem %s210, 672
      %v957 = vld [vmem:[%s956] sm:$0xff]
      %v958 = vld [vmem:[%s956 + $0x8] sm:$0xff]
      %v959 = vld [vmem:[%s956 + $0x10] sm:$0xff]
      %v960 = vld [vmem:[%s956 + $0x18] sm:$0xff]
      %v961 = vld [vmem:[%s956 + $0x20] sm:$0xff]
      %v962 = vld [vmem:[%s956 + $0x28] sm:$0xff]
      %v963 = vld [vmem:[%s956 + $0x30] sm:$0xff]
      %v964 = vld [vmem:[%s956 + $0x38] sm:$0xff]
      %v965 = vld [vmem:[%s956 + $0x40] sm:$0xff]
      %v966 = vld [vmem:[%s956 + $0x48] sm:$0xff]
      %v967 = vld [vmem:[%s956 + $0x50] sm:$0xff]
      %v968 = vld [vmem:[%s956 + $0x58] sm:$0xff]
      %v969 = vld [vmem:[%s956 + $0x60] sm:$0xff]
      %v970 = vld [vmem:[%s956 + $0x68] sm:$0xff]
      %v971 = vld [vmem:[%s956 + $0x70] sm:$0xff]
      %v972 = vld [vmem:[%s956 + $0x78] sm:$0xff]
      %v973 = vld [vmem:[%s956 + $0x80] sm:$0xff]
      %v974 = vld [vmem:[%s956 + $0x88] sm:$0xff]
      %v975 = vld [vmem:[%s956 + $0x90] sm:$0xff]
      %v976 = vld [vmem:[%s956 + $0x98] sm:$0xff]
      %v977 = vld [vmem:[%s956 + $0xa0] sm:$0xff]
      %v978 = vld [vmem:[%s956 + $0xa8] sm:$0xff]
      %v979 = vld [vmem:[%s956 + $0xb0] sm:$0xff]
      %v980 = vld [vmem:[%s956 + $0xb8] sm:$0xff]
      %v981 = vld [vmem:[%s956 + $0xc0] sm:$0xff]
      %v982 = vld [vmem:[%s956 + $0xc8] sm:$0xff]
      %v983 = vld [vmem:[%s956 + $0xd0] sm:$0xff]
      %v984 = vld [vmem:[%s956 + $0xd8] sm:$0xff]
      %v985 = vld [vmem:[%s956 + $0xe0] sm:$0xff]
      %v986 = vld [vmem:[%s956 + $0xe8] sm:$0xff]
      %v987 = vld [vmem:[%s956 + $0xf0] sm:$0xff]
      %v988 = vld [vmem:[%s956 + $0xf8] sm:$0xff]
      %v989 = vld [vmem:[%s956 + $0x100] sm:$0xff]
      %v990 = vld [vmem:[%s956 + $0x108] sm:$0xff]
      %v991 = vld [vmem:[%s956 + $0x110] sm:$0xff]
      %v992 = vld [vmem:[%s956 + $0x118] sm:$0xff]
      %v993 = vld [vmem:[%s956 + $0x120] sm:$0xff]
      %v994 = vld [vmem:[%s956 + $0x128] sm:$0xff]
      %v995 = vld [vmem:[%s956 + $0x130] sm:$0xff]
      %v996 = vpack.c.bf16 %v958, %v957
      %v997 = vpack.c.bf16 %v960, %v959
      %v998 = vpack.c.bf16 %v962, %v961
      %v999 = vpack.c.bf16 %v964, %v963
      %v1000 = vpack.c.bf16 %v966, %v965
      %v1001 = vpack.c.bf16 %v968, %v967
      %v1002 = vpack.c.bf16 %v970, %v969
      %v1003 = vpack.c.bf16 %v972, %v971
      %v1004 = vpack.c.bf16 %v974, %v973
      %v1005 = vpack.c.bf16 %v976, %v975
      %v1006 = vpack.c.bf16 %v978, %v977
      %v1007 = vpack.c.bf16 %v980, %v979
      %v1008 = vpack.c.bf16 %v982, %v981
      %v1009 = vpack.c.bf16 %v984, %v983
      %v1010 = vpack.c.bf16 %v986, %v985
      %v1011 = vpack.c.bf16 %v988, %v987
      %v1012 = vpack.c.bf16 %v990, %v989
      %v1013 = vpack.c.bf16 %v992, %v991
      %v1014 = vpack.c.bf16 %v994, %v993
      %v1015 = vpack.c.bf16 %v995, %v995
      %s1016 = scalar_lea.vmem %s1, 192
      %v1017 = vld [vmem:[%s1016] sm:$0xf]
      %v1018 = vld [vmem:[%s1016 + $0x4] sm:$0xf]
      %v1019 = vld [vmem:[%s1016 + $0x8] sm:$0xf]
      %v1020 = vld [vmem:[%s1016 + $0xc] sm:$0xf]
      %v1021 = vld [vmem:[%s1016 + $0x10] sm:$0xf]
      %v1022 = vld [vmem:[%s1016 + $0x14] sm:$0xf]
      %v1023 = vld [vmem:[%s1016 + $0x18] sm:$0xf]
      %v1024 = vld [vmem:[%s1016 + $0x1c] sm:$0xf]
      %v1025 = vld [vmem:[%s1016 + $0x20] sm:$0xf]
      %v1026 = vld [vmem:[%s1016 + $0x24] sm:$0xf]
      %v1027 = vld [vmem:[%s1016 + $0x28] sm:$0xf]
      %v1028 = vld [vmem:[%s1016 + $0x2c] sm:$0xf]
      %v1029 = vld [vmem:[%s1016 + $0x30] sm:$0xf]
      %v1030 = vld [vmem:[%s1016 + $0x34] sm:$0xf]
      %v1031 = vld [vmem:[%s1016 + $0x38] sm:$0xf]
      %v1032 = vld [vmem:[%s1016 + $0x3c] sm:$0xf]
      %v1049 = vunpack.c.l.b16 %v1017
      %v1050 = vunpack.c.l.b16 %v1018
      %v1051 = vunpack.c.l.b16 %v1019
      %v1052 = vunpack.c.l.b16 %v1020
      %v1053 = vunpack.c.l.b16 %v1021
      %v1054 = vunpack.c.l.b16 %v1022
      %v1055 = vunpack.c.l.b16 %v1023
      %v1056 = vunpack.c.l.b16 %v1024
      %v1057 = vunpack.c.l.b16 %v1025
      %v1058 = vunpack.c.l.b16 %v1026
      %v1059 = vunpack.c.l.b16 %v1027
      %v1060 = vunpack.c.l.b16 %v1028
      %v1061 = vunpack.c.l.b16 %v1029
      %v1062 = vunpack.c.l.b16 %v1030
      %v1063 = vunpack.c.l.b16 %v1031
      %v1064 = vunpack.c.l.b16 %v1032
      %v1065 = vpack.c.b16 %v1050, %v1049
      %v1066 = vpack.c.b16 %v1052, %v1051
      %v1067 = vpack.c.b16 %v1054, %v1053
      %v1068 = vpack.c.b16 %v1056, %v1055
      %v1069 = vpack.c.b16 %v1058, %v1057
      %v1070 = vpack.c.b16 %v1060, %v1059
      %v1071 = vpack.c.b16 %v1062, %v1061
      %v1072 = vpack.c.b16 %v1064, %v1063
      %1081 = vmatpush.bf16.msra.mxu0 %v1072
      %1082 = vmatpush.bf16.msra.mxu0 %v1071
      %1083 = vmatpush.bf16.msra.mxu0 %v1070
      %1084 = vmatpush.bf16.msra.mxu0 %v1069
      %1085 = vmatpush.bf16.msra.mxu0 %v1068
      %1086 = vmatpush.bf16.msra.mxu0 %v1067
      %1087 = vmatpush.bf16.msra.mxu0 %v1066
      %1088 = vmatpush.bf16.msra.mxu0 %v1065
      %1089 = vmatmul.bf16.gmra.mxu0 %v996
      %v1090 = vpop.f32.mrf.mxu0
      %v1091 = vadd.f32 0.0, %v1090
      %v1092 = vpop.f32.mrf.mxu0
      %v1093 = vadd.f32 0.0, %v1092
      %1094 = vmatmul.bf16.gmra.mxu0 %v997
      %v1095 = vpop.f32.mrf.mxu0
      %v1096 = vadd.f32 0.0, %v1095
      %v1097 = vpop.f32.mrf.mxu0
      %v1098 = vadd.f32 0.0, %v1097
      %1099 = vmatmul.bf16.gmra.mxu0 %v998
      %v1100 = vpop.f32.mrf.mxu0
      %v1101 = vadd.f32 0.0, %v1100
      %v1102 = vpop.f32.mrf.mxu0
      %v1103 = vadd.f32 0.0, %v1102
      %1104 = vmatmul.bf16.gmra.mxu0 %v999
      %v1105 = vpop.f32.mrf.mxu0
      %v1106 = vadd.f32 0.0, %v1105
      %v1107 = vpop.f32.mrf.mxu0
      %v1108 = vadd.f32 0.0, %v1107
      %1109 = vmatmul.bf16.gmra.mxu0 %v1000
      %v1110 = vpop.f32.mrf.mxu0
      %v1111 = vadd.f32 0.0, %v1110
      %v1112 = vpop.f32.mrf.mxu0
      %v1113 = vadd.f32 0.0, %v1112
      %1114 = vmatmul.bf16.gmra.mxu0 %v1001
      %v1115 = vpop.f32.mrf.mxu0
      %v1116 = vadd.f32 0.0, %v1115
      %v1117 = vpop.f32.mrf.mxu0
      %v1118 = vadd.f32 0.0, %v1117
      %1119 = vmatmul.bf16.gmra.mxu0 %v1002
      %v1120 = vpop.f32.mrf.mxu0
      %v1121 = vadd.f32 0.0, %v1120
      %v1122 = vpop.f32.mrf.mxu0
      %v1123 = vadd.f32 0.0, %v1122
      %1124 = vmatmul.bf16.gmra.mxu0 %v1003
      %v1125 = vpop.f32.mrf.mxu0
      %v1126 = vadd.f32 0.0, %v1125
      %v1127 = vpop.f32.mrf.mxu0
      %v1128 = vadd.f32 0.0, %v1127
      %1129 = vmatmul.bf16.gmra.mxu0 %v1004
      %v1130 = vpop.f32.mrf.mxu0
      %v1131 = vadd.f32 0.0, %v1130
      %v1132 = vpop.f32.mrf.mxu0
      %v1133 = vadd.f32 0.0, %v1132
      %1134 = vmatmul.bf16.gmra.mxu0 %v1005
      %v1135 = vpop.f32.mrf.mxu0
      %v1136 = vadd.f32 0.0, %v1135
      %v1137 = vpop.f32.mrf.mxu0
      %v1138 = vadd.f32 0.0, %v1137
      %1139 = vmatmul.bf16.gmra.mxu0 %v1006
      %v1140 = vpop.f32.mrf.mxu0
      %v1141 = vadd.f32 0.0, %v1140
      %v1142 = vpop.f32.mrf.mxu0
      %v1143 = vadd.f32 0.0, %v1142
      %1144 = vmatmul.bf16.gmra.mxu0 %v1007
      %v1145 = vpop.f32.mrf.mxu0
      %v1146 = vadd.f32 0.0, %v1145
      %v1147 = vpop.f32.mrf.mxu0
      %v1148 = vadd.f32 0.0, %v1147
      %1149 = vmatmul.bf16.gmra.mxu0 %v1008
      %v1150 = vpop.f32.mrf.mxu0
      %v1151 = vadd.f32 0.0, %v1150
      %v1152 = vpop.f32.mrf.mxu0
      %v1153 = vadd.f32 0.0, %v1152
      %1154 = vmatmul.bf16.gmra.mxu0 %v1009
      %v1155 = vpop.f32.mrf.mxu0
      %v1156 = vadd.f32 0.0, %v1155
      %v1157 = vpop.f32.mrf.mxu0
      %v1158 = vadd.f32 0.0, %v1157
      %1159 = vmatmul.bf16.gmra.mxu0 %v1010
      %v1160 = vpop.f32.mrf.mxu0
      %v1161 = vadd.f32 0.0, %v1160
      %v1162 = vpop.f32.mrf.mxu0
      %v1163 = vadd.f32 0.0, %v1162
      %1164 = vmatmul.bf16.gmra.mxu0 %v1011
      %v1165 = vpop.f32.mrf.mxu0
      %v1166 = vadd.f32 0.0, %v1165
      %v1167 = vpop.f32.mrf.mxu0
      %v1168 = vadd.f32 0.0, %v1167
      %1169 = vmatmul.bf16.gmra.mxu0 %v1012
      %v1170 = vpop.f32.mrf.mxu0
      %v1171 = vadd.f32 0.0, %v1170
      %v1172 = vpop.f32.mrf.mxu0
      %v1173 = vadd.f32 0.0, %v1172
      %1174 = vmatmul.bf16.gmra.mxu0 %v1013
      %v1175 = vpop.f32.mrf.mxu0
      %v1176 = vadd.f32 0.0, %v1175
      %v1177 = vpop.f32.mrf.mxu0
      %v1178 = vadd.f32 0.0, %v1177
      %1179 = vmatmul.bf16.gmra.mxu0 %v1014
      %v1180 = vpop.f32.mrf.mxu0
      %v1181 = vadd.f32 0.0, %v1180
      %v1182 = vpop.f32.mrf.mxu0
      %v1183 = vadd.f32 0.0, %v1182
      %1184 = vmatmul.bf16.gmra.mxu0 %v1015
      %v1185 = vpop.f32.mrf.mxu0
      %v1186 = vadd.f32 0.0, %v1185
      %v1187 = vpop.f32.mrf.mxu0
      %1188 = vdwg.mxu0
      %v1189 = vadd.f32 %v917, %v1091
      %v1190 = vadd.f32 %v918, %v1093
      %v1191 = vadd.f32 %v919, %v1096
      %v1192 = vadd.f32 %v920, %v1098
      %v1193 = vadd.f32 %v921, %v1101
      %v1194 = vadd.f32 %v922, %v1103
      %v1195 = vadd.f32 %v923, %v1106
      %v1196 = vadd.f32 %v924, %v1108
      %v1197 = vadd.f32 %v925, %v1111
      %v1198 = vadd.f32 %v926, %v1113
      %v1199 = vadd.f32 %v927, %v1116
      %v1200 = vadd.f32 %v928, %v1118
      %v1201 = vadd.f32 %v929, %v1121
      %v1202 = vadd.f32 %v930, %v1123
      %v1203 = vadd.f32 %v931, %v1126
      %v1204 = vadd.f32 %v932, %v1128
      %v1205 = vadd.f32 %v933, %v1131
      %v1206 = vadd.f32 %v934, %v1133
      %v1207 = vadd.f32 %v935, %v1136
      %v1208 = vadd.f32 %v936, %v1138
      %v1209 = vadd.f32 %v937, %v1141
      %v1210 = vadd.f32 %v938, %v1143
      %v1211 = vadd.f32 %v939, %v1146
      %v1212 = vadd.f32 %v940, %v1148
      %v1213 = vadd.f32 %v941, %v1151
      %v1214 = vadd.f32 %v942, %v1153
      %v1215 = vadd.f32 %v943, %v1156
      %v1216 = vadd.f32 %v944, %v1158
      %v1217 = vadd.f32 %v945, %v1161
      %v1218 = vadd.f32 %v946, %v1163
      %v1219 = vadd.f32 %v947, %v1166
      %v1220 = vadd.f32 %v948, %v1168
      %v1221 = vadd.f32 %v949, %v1171
      %v1222 = vadd.f32 %v950, %v1173
      %v1223 = vadd.f32 %v951, %v1176
      %v1224 = vadd.f32 %v952, %v1178
      %v1225 = vadd.f32 %v953, %v1181
      %v1226 = vadd.f32 %v954, %v1183
      %v1227 = vadd.f32 %v955, %v1186
      %s1228 = scalar_lea.vmem %s210, 1008
      %v1229 = vld [vmem:[%s1228] sm:$0xff]
      %v1230 = vld [vmem:[%s1228 + $0x8] sm:$0xff]
      %v1231 = vld [vmem:[%s1228 + $0x10] sm:$0xff]
      %v1232 = vld [vmem:[%s1228 + $0x18] sm:$0xff]
      %v1233 = vld [vmem:[%s1228 + $0x20] sm:$0xff]
      %v1234 = vld [vmem:[%s1228 + $0x28] sm:$0xff]
      %v1235 = vld [vmem:[%s1228 + $0x30] sm:$0xff]
      %v1236 = vld [vmem:[%s1228 + $0x38] sm:$0xff]
      %v1237 = vld [vmem:[%s1228 + $0x40] sm:$0xff]
      %v1238 = vld [vmem:[%s1228 + $0x48] sm:$0xff]
      %v1239 = vld [vmem:[%s1228 + $0x50] sm:$0xff]
      %v1240 = vld [vmem:[%s1228 + $0x58] sm:$0xff]
      %v1241 = vld [vmem:[%s1228 + $0x60] sm:$0xff]
      %v1242 = vld [vmem:[%s1228 + $0x68] sm:$0xff]
      %v1243 = vld [vmem:[%s1228 + $0x70] sm:$0xff]
      %v1244 = vld [vmem:[%s1228 + $0x78] sm:$0xff]
      %v1245 = vld [vmem:[%s1228 + $0x80] sm:$0xff]
      %v1246 = vld [vmem:[%s1228 + $0x88] sm:$0xff]
      %v1247 = vld [vmem:[%s1228 + $0x90] sm:$0xff]
      %v1248 = vld [vmem:[%s1228 + $0x98] sm:$0xff]
      %v1249 = vld [vmem:[%s1228 + $0xa0] sm:$0xff]
      %v1250 = vld [vmem:[%s1228 + $0xa8] sm:$0xff]
      %v1251 = vld [vmem:[%s1228 + $0xb0] sm:$0xff]
      %v1252 = vld [vmem:[%s1228 + $0xb8] sm:$0xff]
      %v1253 = vld [vmem:[%s1228 + $0xc0] sm:$0xff]
      %v1254 = vld [vmem:[%s1228 + $0xc8] sm:$0xff]
      %v1255 = vld [vmem:[%s1228 + $0xd0] sm:$0xff]
      %v1256 = vld [vmem:[%s1228 + $0xd8] sm:$0xff]
      %v1257 = vld [vmem:[%s1228 + $0xe0] sm:$0xff]
      %v1258 = vld [vmem:[%s1228 + $0xe8] sm:$0xff]
      %v1259 = vld [vmem:[%s1228 + $0xf0] sm:$0xff]
      %v1260 = vld [vmem:[%s1228 + $0xf8] sm:$0xff]
      %v1261 = vld [vmem:[%s1228 + $0x100] sm:$0xff]
      %v1262 = vld [vmem:[%s1228 + $0x108] sm:$0xff]
      %v1263 = vld [vmem:[%s1228 + $0x110] sm:$0xff]
      %v1264 = vld [vmem:[%s1228 + $0x118] sm:$0xff]
      %v1265 = vld [vmem:[%s1228 + $0x120] sm:$0xff]
      %v1266 = vld [vmem:[%s1228 + $0x128] sm:$0xff]
      %v1267 = vld [vmem:[%s1228 + $0x130] sm:$0xff]
      %v1268 = vpack.c.bf16 %v1230, %v1229
      %v1269 = vpack.c.bf16 %v1232, %v1231
      %v1270 = vpack.c.bf16 %v1234, %v1233
      %v1271 = vpack.c.bf16 %v1236, %v1235
      %v1272 = vpack.c.bf16 %v1238, %v1237
      %v1273 = vpack.c.bf16 %v1240, %v1239
      %v1274 = vpack.c.bf16 %v1242, %v1241
      %v1275 = vpack.c.bf16 %v1244, %v1243
      %v1276 = vpack.c.bf16 %v1246, %v1245
      %v1277 = vpack.c.bf16 %v1248, %v1247
      %v1278 = vpack.c.bf16 %v1250, %v1249
      %v1279 = vpack.c.bf16 %v1252, %v1251
      %v1280 = vpack.c.bf16 %v1254, %v1253
      %v1281 = vpack.c.bf16 %v1256, %v1255
      %v1282 = vpack.c.bf16 %v1258, %v1257
      %v1283 = vpack.c.bf16 %v1260, %v1259
      %v1284 = vpack.c.bf16 %v1262, %v1261
      %v1285 = vpack.c.bf16 %v1264, %v1263
      %v1286 = vpack.c.bf16 %v1266, %v1265
      %v1287 = vpack.c.bf16 %v1267, %v1267
      %s1288 = scalar_lea.vmem %s1, 256
      %v1289 = vld [vmem:[%s1288] sm:$0xf]
      %v1290 = vld [vmem:[%s1288 + $0x4] sm:$0xf]
      %v1291 = vld [vmem:[%s1288 + $0x8] sm:$0xf]
      %v1292 = vld [vmem:[%s1288 + $0xc] sm:$0xf]
      %v1293 = vld [vmem:[%s1288 + $0x10] sm:$0xf]
      %v1294 = vld [vmem:[%s1288 + $0x14] sm:$0xf]
      %v1295 = vld [vmem:[%s1288 + $0x18] sm:$0xf]
      %v1296 = vld [vmem:[%s1288 + $0x1c] sm:$0xf]
      %v1297 = vld [vmem:[%s1288 + $0x20] sm:$0xf]
      %v1298 = vld [vmem:[%s1288 + $0x24] sm:$0xf]
      %v1299 = vld [vmem:[%s1288 + $0x28] sm:$0xf]
      %v1300 = vld [vmem:[%s1288 + $0x2c] sm:$0xf]
      %v1301 = vld [vmem:[%s1288 + $0x30] sm:$0xf]
      %v1302 = vld [vmem:[%s1288 + $0x34] sm:$0xf]
      %v1303 = vld [vmem:[%s1288 + $0x38] sm:$0xf]
      %v1304 = vld [vmem:[%s1288 + $0x3c] sm:$0xf]
      %v1321 = vunpack.c.l.b16 %v1289
      %v1322 = vunpack.c.l.b16 %v1290
      %v1323 = vunpack.c.l.b16 %v1291
      %v1324 = vunpack.c.l.b16 %v1292
      %v1325 = vunpack.c.l.b16 %v1293
      %v1326 = vunpack.c.l.b16 %v1294
      %v1327 = vunpack.c.l.b16 %v1295
      %v1328 = vunpack.c.l.b16 %v1296
      %v1329 = vunpack.c.l.b16 %v1297
      %v1330 = vunpack.c.l.b16 %v1298
      %v1331 = vunpack.c.l.b16 %v1299
      %v1332 = vunpack.c.l.b16 %v1300
      %v1333 = vunpack.c.l.b16 %v1301
      %v1334 = vunpack.c.l.b16 %v1302
      %v1335 = vunpack.c.l.b16 %v1303
      %v1336 = vunpack.c.l.b16 %v1304
      %v1337 = vpack.c.b16 %v1322, %v1321
      %v1338 = vpack.c.b16 %v1324, %v1323
      %v1339 = vpack.c.b16 %v1326, %v1325
      %v1340 = vpack.c.b16 %v1328, %v1327
      %v1341 = vpack.c.b16 %v1330, %v1329
      %v1342 = vpack.c.b16 %v1332, %v1331
      %v1343 = vpack.c.b16 %v1334, %v1333
      %v1344 = vpack.c.b16 %v1336, %v1335
      %1353 = vmatpush.bf16.msra.mxu0 %v1344
      %1354 = vmatpush.bf16.msra.mxu0 %v1343
      %1355 = vmatpush.bf16.msra.mxu0 %v1342
      %1356 = vmatpush.bf16.msra.mxu0 %v1341
      %1357 = vmatpush.bf16.msra.mxu0 %v1340
      %1358 = vmatpush.bf16.msra.mxu0 %v1339
      %1359 = vmatpush.bf16.msra.mxu0 %v1338
      %1360 = vmatpush.bf16.msra.mxu0 %v1337
      %1361 = vmatmul.bf16.gmra.mxu0 %v1268
      %v1362 = vpop.f32.mrf.mxu0
      %v1363 = vadd.f32 0.0, %v1362
      %v1364 = vpop.f32.mrf.mxu0
      %v1365 = vadd.f32 0.0, %v1364
      %1366 = vmatmul.bf16.gmra.mxu0 %v1269
      %v1367 = vpop.f32.mrf.mxu0
      %v1368 = vadd.f32 0.0, %v1367
      %v1369 = vpop.f32.mrf.mxu0
      %v1370 = vadd.f32 0.0, %v1369
      %1371 = vmatmul.bf16.gmra.mxu0 %v1270
      %v1372 = vpop.f32.mrf.mxu0
      %v1373 = vadd.f32 0.0, %v1372
      %v1374 = vpop.f32.mrf.mxu0
      %v1375 = vadd.f32 0.0, %v1374
      %1376 = vmatmul.bf16.gmra.mxu0 %v1271
      %v1377 = vpop.f32.mrf.mxu0
      %v1378 = vadd.f32 0.0, %v1377
      %v1379 = vpop.f32.mrf.mxu0
      %v1380 = vadd.f32 0.0, %v1379
      %1381 = vmatmul.bf16.gmra.mxu0 %v1272
      %v1382 = vpop.f32.mrf.mxu0
      %v1383 = vadd.f32 0.0, %v1382
      %v1384 = vpop.f32.mrf.mxu0
      %v1385 = vadd.f32 0.0, %v1384
      %1386 = vmatmul.bf16.gmra.mxu0 %v1273
      %v1387 = vpop.f32.mrf.mxu0
      %v1388 = vadd.f32 0.0, %v1387
      %v1389 = vpop.f32.mrf.mxu0
      %v1390 = vadd.f32 0.0, %v1389
      %1391 = vmatmul.bf16.gmra.mxu0 %v1274
      %v1392 = vpop.f32.mrf.mxu0
      %v1393 = vadd.f32 0.0, %v1392
      %v1394 = vpop.f32.mrf.mxu0
      %v1395 = vadd.f32 0.0, %v1394
      %1396 = vmatmul.bf16.gmra.mxu0 %v1275
      %v1397 = vpop.f32.mrf.mxu0
      %v1398 = vadd.f32 0.0, %v1397
      %v1399 = vpop.f32.mrf.mxu0
      %v1400 = vadd.f32 0.0, %v1399
      %1401 = vmatmul.bf16.gmra.mxu0 %v1276
      %v1402 = vpop.f32.mrf.mxu0
      %v1403 = vadd.f32 0.0, %v1402
      %v1404 = vpop.f32.mrf.mxu0
      %v1405 = vadd.f32 0.0, %v1404
      %1406 = vmatmul.bf16.gmra.mxu0 %v1277
      %v1407 = vpop.f32.mrf.mxu0
      %v1408 = vadd.f32 0.0, %v1407
      %v1409 = vpop.f32.mrf.mxu0
      %v1410 = vadd.f32 0.0, %v1409
      %1411 = vmatmul.bf16.gmra.mxu0 %v1278
      %v1412 = vpop.f32.mrf.mxu0
      %v1413 = vadd.f32 0.0, %v1412
      %v1414 = vpop.f32.mrf.mxu0
      %v1415 = vadd.f32 0.0, %v1414
      %1416 = vmatmul.bf16.gmra.mxu0 %v1279
      %v1417 = vpop.f32.mrf.mxu0
      %v1418 = vadd.f32 0.0, %v1417
      %v1419 = vpop.f32.mrf.mxu0
      %v1420 = vadd.f32 0.0, %v1419
      %1421 = vmatmul.bf16.gmra.mxu0 %v1280
      %v1422 = vpop.f32.mrf.mxu0
      %v1423 = vadd.f32 0.0, %v1422
      %v1424 = vpop.f32.mrf.mxu0
      %v1425 = vadd.f32 0.0, %v1424
      %1426 = vmatmul.bf16.gmra.mxu0 %v1281
      %v1427 = vpop.f32.mrf.mxu0
      %v1428 = vadd.f32 0.0, %v1427
      %v1429 = vpop.f32.mrf.mxu0
      %v1430 = vadd.f32 0.0, %v1429
      %1431 = vmatmul.bf16.gmra.mxu0 %v1282
      %v1432 = vpop.f32.mrf.mxu0
      %v1433 = vadd.f32 0.0, %v1432
      %v1434 = vpop.f32.mrf.mxu0
      %v1435 = vadd.f32 0.0, %v1434
      %1436 = vmatmul.bf16.gmra.mxu0 %v1283
      %v1437 = vpop.f32.mrf.mxu0
      %v1438 = vadd.f32 0.0, %v1437
      %v1439 = vpop.f32.mrf.mxu0
      %v1440 = vadd.f32 0.0, %v1439
      %1441 = vmatmul.bf16.gmra.mxu0 %v1284
      %v1442 = vpop.f32.mrf.mxu0
      %v1443 = vadd.f32 0.0, %v1442
      %v1444 = vpop.f32.mrf.mxu0
      %v1445 = vadd.f32 0.0, %v1444
      %1446 = vmatmul.bf16.gmra.mxu0 %v1285
      %v1447 = vpop.f32.mrf.mxu0
      %v1448 = vadd.f32 0.0, %v1447
      %v1449 = vpop.f32.mrf.mxu0
      %v1450 = vadd.f32 0.0, %v1449
      %1451 = vmatmul.bf16.gmra.mxu0 %v1286
      %v1452 = vpop.f32.mrf.mxu0
      %v1453 = vadd.f32 0.0, %v1452
      %v1454 = vpop.f32.mrf.mxu0
      %v1455 = vadd.f32 0.0, %v1454
      %1456 = vmatmul.bf16.gmra.mxu0 %v1287
      %v1457 = vpop.f32.mrf.mxu0
      %v1458 = vadd.f32 0.0, %v1457
      %v1459 = vpop.f32.mrf.mxu0
      %1460 = vdwg.mxu0
      %v1461 = vadd.f32 %v1189, %v1363
      %v1462 = vadd.f32 %v1190, %v1365
      %v1463 = vadd.f32 %v1191, %v1368
      %v1464 = vadd.f32 %v1192, %v1370
      %v1465 = vadd.f32 %v1193, %v1373
      %v1466 = vadd.f32 %v1194, %v1375
      %v1467 = vadd.f32 %v1195, %v1378
      %v1468 = vadd.f32 %v1196, %v1380
      %v1469 = vadd.f32 %v1197, %v1383
      %v1470 = vadd.f32 %v1198, %v1385
      %v1471 = vadd.f32 %v1199, %v1388
      %v1472 = vadd.f32 %v1200, %v1390
      %v1473 = vadd.f32 %v1201, %v1393
      %v1474 = vadd.f32 %v1202, %v1395
      %v1475 = vadd.f32 %v1203, %v1398
      %v1476 = vadd.f32 %v1204, %v1400
      %v1477 = vadd.f32 %v1205, %v1403
      %v1478 = vadd.f32 %v1206, %v1405
      %v1479 = vadd.f32 %v1207, %v1408
      %v1480 = vadd.f32 %v1208, %v1410
      %v1481 = vadd.f32 %v1209, %v1413
      %v1482 = vadd.f32 %v1210, %v1415
      %v1483 = vadd.f32 %v1211, %v1418
      %v1484 = vadd.f32 %v1212, %v1420
      %v1485 = vadd.f32 %v1213, %v1423
      %v1486 = vadd.f32 %v1214, %v1425
      %v1487 = vadd.f32 %v1215, %v1428
      %v1488 = vadd.f32 %v1216, %v1430
      %v1489 = vadd.f32 %v1217, %v1433
      %v1490 = vadd.f32 %v1218, %v1435
      %v1491 = vadd.f32 %v1219, %v1438
      %v1492 = vadd.f32 %v1220, %v1440
      %v1493 = vadd.f32 %v1221, %v1443
      %v1494 = vadd.f32 %v1222, %v1445
      %v1495 = vadd.f32 %v1223, %v1448
      %v1496 = vadd.f32 %v1224, %v1450
      %v1497 = vadd.f32 %v1225, %v1453
      %v1498 = vadd.f32 %v1226, %v1455
      %v1499 = vadd.f32 %v1227, %v1458
      %v1500 = vld [vmem:[%s956 + $0x1] sm:$0xff]
      %v1501 = vld [vmem:[%s956 + $0x9] sm:$0xff]
      %v1502 = vld [vmem:[%s956 + $0x11] sm:$0xff]
      %v1503 = vld [vmem:[%s956 + $0x19] sm:$0xff]
      %v1504 = vld [vmem:[%s956 + $0x21] sm:$0xff]
      %v1505 = vld [vmem:[%s956 + $0x29] sm:$0xff]
      %v1506 = vld [vmem:[%s956 + $0x31] sm:$0xff]
      %v1507 = vld [vmem:[%s956 + $0x39] sm:$0xff]
      %v1508 = vld [vmem:[%s956 + $0x41] sm:$0xff]
      %v1509 = vld [vmem:[%s956 + $0x49] sm:$0xff]
      %v1510 = vld [vmem:[%s956 + $0x51] sm:$0xff]
      %v1511 = vld [vmem:[%s956 + $0x59] sm:$0xff]
      %v1512 = vld [vmem:[%s956 + $0x61] sm:$0xff]
      %v1513 = vld [vmem:[%s956 + $0x69] sm:$0xff]
      %v1514 = vld [vmem:[%s956 + $0x71] sm:$0xff]
      %v1515 = vld [vmem:[%s956 + $0x79] sm:$0xff]
      %v1516 = vld [vmem:[%s956 + $0x81] sm:$0xff]
      %v1517 = vld [vmem:[%s956 + $0x89] sm:$0xff]
      %v1518 = vld [vmem:[%s956 + $0x91] sm:$0xff]
      %v1519 = vld [vmem:[%s956 + $0x99] sm:$0xff]
      %v1520 = vld [vmem:[%s956 + $0xa1] sm:$0xff]
      %v1521 = vld [vmem:[%s956 + $0xa9] sm:$0xff]
      %v1522 = vld [vmem:[%s956 + $0xb1] sm:$0xff]
      %v1523 = vld [vmem:[%s956 + $0xb9] sm:$0xff]
      %v1524 = vld [vmem:[%s956 + $0xc1] sm:$0xff]
      %v1525 = vld [vmem:[%s956 + $0xc9] sm:$0xff]
      %v1526 = vld [vmem:[%s956 + $0xd1] sm:$0xff]
      %v1527 = vld [vmem:[%s956 + $0xd9] sm:$0xff]
      %v1528 = vld [vmem:[%s956 + $0xe1] sm:$0xff]
      %v1529 = vld [vmem:[%s956 + $0xe9] sm:$0xff]
      %v1530 = vld [vmem:[%s956 + $0xf1] sm:$0xff]
      %v1531 = vld [vmem:[%s956 + $0xf9] sm:$0xff]
      %v1532 = vld [vmem:[%s956 + $0x101] sm:$0xff]
      %v1533 = vld [vmem:[%s956 + $0x109] sm:$0xff]
      %v1534 = vld [vmem:[%s956 + $0x111] sm:$0xff]
      %v1535 = vld [vmem:[%s956 + $0x119] sm:$0xff]
      %v1536 = vld [vmem:[%s956 + $0x121] sm:$0xff]
      %v1537 = vld [vmem:[%s956 + $0x129] sm:$0xff]
      %v1538 = vld [vmem:[%s956 + $0x131] sm:$0xff]
      %v1539 = vpack.c.bf16 %v1501, %v1500
      %v1540 = vpack.c.bf16 %v1503, %v1502
      %v1541 = vpack.c.bf16 %v1505, %v1504
      %v1542 = vpack.c.bf16 %v1507, %v1506
      %v1543 = vpack.c.bf16 %v1509, %v1508
      %v1544 = vpack.c.bf16 %v1511, %v1510
      %v1545 = vpack.c.bf16 %v1513, %v1512
      %v1546 = vpack.c.bf16 %v1515, %v1514
      %v1547 = vpack.c.bf16 %v1517, %v1516
      %v1548 = vpack.c.bf16 %v1519, %v1518
      %v1549 = vpack.c.bf16 %v1521, %v1520
      %v1550 = vpack.c.bf16 %v1523, %v1522
      %v1551 = vpack.c.bf16 %v1525, %v1524
      %v1552 = vpack.c.bf16 %v1527, %v1526
      %v1553 = vpack.c.bf16 %v1529, %v1528
      %v1554 = vpack.c.bf16 %v1531, %v1530
      %v1555 = vpack.c.bf16 %v1533, %v1532
      %v1556 = vpack.c.bf16 %v1535, %v1534
      %v1557 = vpack.c.bf16 %v1537, %v1536
      %v1558 = vpack.c.bf16 %v1538, %v1538
      %s1559 = scalar_lea.vmem %s1, 320
      %v1560 = vld [vmem:[%s1559] sm:$0xf]
      %v1561 = vld [vmem:[%s1559 + $0x4] sm:$0xf]
      %v1562 = vld [vmem:[%s1559 + $0x8] sm:$0xf]
      %v1563 = vld [vmem:[%s1559 + $0xc] sm:$0xf]
      %v1564 = vld [vmem:[%s1559 + $0x10] sm:$0xf]
      %v1565 = vld [vmem:[%s1559 + $0x14] sm:$0xf]
      %v1566 = vld [vmem:[%s1559 + $0x18] sm:$0xf]
      %v1567 = vld [vmem:[%s1559 + $0x1c] sm:$0xf]
      %v1568 = vld [vmem:[%s1559 + $0x20] sm:$0xf]
      %v1569 = vld [vmem:[%s1559 + $0x24] sm:$0xf]
      %v1570 = vld [vmem:[%s1559 + $0x28] sm:$0xf]
      %v1571 = vld [vmem:[%s1559 + $0x2c] sm:$0xf]
      %v1572 = vld [vmem:[%s1559 + $0x30] sm:$0xf]
      %v1573 = vld [vmem:[%s1559 + $0x34] sm:$0xf]
      %v1574 = vld [vmem:[%s1559 + $0x38] sm:$0xf]
      %v1575 = vld [vmem:[%s1559 + $0x3c] sm:$0xf]
      %v1592 = vunpack.c.l.b16 %v1560
      %v1593 = vunpack.c.l.b16 %v1561
      %v1594 = vunpack.c.l.b16 %v1562
      %v1595 = vunpack.c.l.b16 %v1563
      %v1596 = vunpack.c.l.b16 %v1564
      %v1597 = vunpack.c.l.b16 %v1565
      %v1598 = vunpack.c.l.b16 %v1566
      %v1599 = vunpack.c.l.b16 %v1567
      %v1600 = vunpack.c.l.b16 %v1568
      %v1601 = vunpack.c.l.b16 %v1569
      %v1602 = vunpack.c.l.b16 %v1570
      %v1603 = vunpack.c.l.b16 %v1571
      %v1604 = vunpack.c.l.b16 %v1572
      %v1605 = vunpack.c.l.b16 %v1573
      %v1606 = vunpack.c.l.b16 %v1574
      %v1607 = vunpack.c.l.b16 %v1575
      %v1608 = vpack.c.b16 %v1593, %v1592
      %v1609 = vpack.c.b16 %v1595, %v1594
      %v1610 = vpack.c.b16 %v1597, %v1596
      %v1611 = vpack.c.b16 %v1599, %v1598
      %v1612 = vpack.c.b16 %v1601, %v1600
      %v1613 = vpack.c.b16 %v1603, %v1602
      %v1614 = vpack.c.b16 %v1605, %v1604
      %v1615 = vpack.c.b16 %v1607, %v1606
      %1624 = vmatpush.bf16.msra.mxu0 %v1615
      %1625 = vmatpush.bf16.msra.mxu0 %v1614
      %1626 = vmatpush.bf16.msra.mxu0 %v1613
      %1627 = vmatpush.bf16.msra.mxu0 %v1612
      %1628 = vmatpush.bf16.msra.mxu0 %v1611
      %1629 = vmatpush.bf16.msra.mxu0 %v1610
      %1630 = vmatpush.bf16.msra.mxu0 %v1609
      %1631 = vmatpush.bf16.msra.mxu0 %v1608
      %1632 = vmatmul.bf16.gmra.mxu0 %v1539
      %v1633 = vpop.f32.mrf.mxu0
      %v1634 = vadd.f32 0.0, %v1633
      %v1635 = vpop.f32.mrf.mxu0
      %v1636 = vadd.f32 0.0, %v1635
      %1637 = vmatmul.bf16.gmra.mxu0 %v1540
      %v1638 = vpop.f32.mrf.mxu0
      %v1639 = vadd.f32 0.0, %v1638
      %v1640 = vpop.f32.mrf.mxu0
      %v1641 = vadd.f32 0.0, %v1640
      %1642 = vmatmul.bf16.gmra.mxu0 %v1541
      %v1643 = vpop.f32.mrf.mxu0
      %v1644 = vadd.f32 0.0, %v1643
      %v1645 = vpop.f32.mrf.mxu0
      %v1646 = vadd.f32 0.0, %v1645
      %1647 = vmatmul.bf16.gmra.mxu0 %v1542
      %v1648 = vpop.f32.mrf.mxu0
      %v1649 = vadd.f32 0.0, %v1648
      %v1650 = vpop.f32.mrf.mxu0
      %v1651 = vadd.f32 0.0, %v1650
      %1652 = vmatmul.bf16.gmra.mxu0 %v1543
      %v1653 = vpop.f32.mrf.mxu0
      %v1654 = vadd.f32 0.0, %v1653
      %v1655 = vpop.f32.mrf.mxu0
      %v1656 = vadd.f32 0.0, %v1655
      %1657 = vmatmul.bf16.gmra.mxu0 %v1544
      %v1658 = vpop.f32.mrf.mxu0
      %v1659 = vadd.f32 0.0, %v1658
      %v1660 = vpop.f32.mrf.mxu0
      %v1661 = vadd.f32 0.0, %v1660
      %1662 = vmatmul.bf16.gmra.mxu0 %v1545
      %v1663 = vpop.f32.mrf.mxu0
      %v1664 = vadd.f32 0.0, %v1663
      %v1665 = vpop.f32.mrf.mxu0
      %v1666 = vadd.f32 0.0, %v1665
      %1667 = vmatmul.bf16.gmra.mxu0 %v1546
      %v1668 = vpop.f32.mrf.mxu0
      %v1669 = vadd.f32 0.0, %v1668
      %v1670 = vpop.f32.mrf.mxu0
      %v1671 = vadd.f32 0.0, %v1670
      %1672 = vmatmul.bf16.gmra.mxu0 %v1547
      %v1673 = vpop.f32.mrf.mxu0
      %v1674 = vadd.f32 0.0, %v1673
      %v1675 = vpop.f32.mrf.mxu0
      %v1676 = vadd.f32 0.0, %v1675
      %1677 = vmatmul.bf16.gmra.mxu0 %v1548
      %v1678 = vpop.f32.mrf.mxu0
      %v1679 = vadd.f32 0.0, %v1678
      %v1680 = vpop.f32.mrf.mxu0
      %v1681 = vadd.f32 0.0, %v1680
      %1682 = vmatmul.bf16.gmra.mxu0 %v1549
      %v1683 = vpop.f32.mrf.mxu0
      %v1684 = vadd.f32 0.0, %v1683
      %v1685 = vpop.f32.mrf.mxu0
      %v1686 = vadd.f32 0.0, %v1685
      %1687 = vmatmul.bf16.gmra.mxu0 %v1550
      %v1688 = vpop.f32.mrf.mxu0
      %v1689 = vadd.f32 0.0, %v1688
      %v1690 = vpop.f32.mrf.mxu0
      %v1691 = vadd.f32 0.0, %v1690
      %1692 = vmatmul.bf16.gmra.mxu0 %v1551
      %v1693 = vpop.f32.mrf.mxu0
      %v1694 = vadd.f32 0.0, %v1693
      %v1695 = vpop.f32.mrf.mxu0
      %v1696 = vadd.f32 0.0, %v1695
      %1697 = vmatmul.bf16.gmra.mxu0 %v1552
      %v1698 = vpop.f32.mrf.mxu0
      %v1699 = vadd.f32 0.0, %v1698
      %v1700 = vpop.f32.mrf.mxu0
      %v1701 = vadd.f32 0.0, %v1700
      %1702 = vmatmul.bf16.gmra.mxu0 %v1553
      %v1703 = vpop.f32.mrf.mxu0
      %v1704 = vadd.f32 0.0, %v1703
      %v1705 = vpop.f32.mrf.mxu0
      %v1706 = vadd.f32 0.0, %v1705
      %1707 = vmatmul.bf16.gmra.mxu0 %v1554
      %v1708 = vpop.f32.mrf.mxu0
      %v1709 = vadd.f32 0.0, %v1708
      %v1710 = vpop.f32.mrf.mxu0
      %v1711 = vadd.f32 0.0, %v1710
      %1712 = vmatmul.bf16.gmra.mxu0 %v1555
      %v1713 = vpop.f32.mrf.mxu0
      %v1714 = vadd.f32 0.0, %v1713
      %v1715 = vpop.f32.mrf.mxu0
      %v1716 = vadd.f32 0.0, %v1715
      %1717 = vmatmul.bf16.gmra.mxu0 %v1556
      %v1718 = vpop.f32.mrf.mxu0
      %v1719 = vadd.f32 0.0, %v1718
      %v1720 = vpop.f32.mrf.mxu0
      %v1721 = vadd.f32 0.0, %v1720
      %1722 = vmatmul.bf16.gmra.mxu0 %v1557
      %v1723 = vpop.f32.mrf.mxu0
      %v1724 = vadd.f32 0.0, %v1723
      %v1725 = vpop.f32.mrf.mxu0
      %v1726 = vadd.f32 0.0, %v1725
      %1727 = vmatmul.bf16.gmra.mxu0 %v1558
      %v1728 = vpop.f32.mrf.mxu0
      %v1729 = vadd.f32 0.0, %v1728
      %v1730 = vpop.f32.mrf.mxu0
      %1731 = vdwg.mxu0
      %v1732 = vadd.f32 %v1461, %v1634
      %v1733 = vadd.f32 %v1462, %v1636
      %v1734 = vadd.f32 %v1463, %v1639
      %v1735 = vadd.f32 %v1464, %v1641
      %v1736 = vadd.f32 %v1465, %v1644
      %v1737 = vadd.f32 %v1466, %v1646
      %v1738 = vadd.f32 %v1467, %v1649
      %v1739 = vadd.f32 %v1468, %v1651
      %v1740 = vadd.f32 %v1469, %v1654
      %v1741 = vadd.f32 %v1470, %v1656
      %v1742 = vadd.f32 %v1471, %v1659
      %v1743 = vadd.f32 %v1472, %v1661
      %v1744 = vadd.f32 %v1473, %v1664
      %v1745 = vadd.f32 %v1474, %v1666
      %v1746 = vadd.f32 %v1475, %v1669
      %v1747 = vadd.f32 %v1476, %v1671
      %v1748 = vadd.f32 %v1477, %v1674
      %v1749 = vadd.f32 %v1478, %v1676
      %v1750 = vadd.f32 %v1479, %v1679
      %v1751 = vadd.f32 %v1480, %v1681
      %v1752 = vadd.f32 %v1481, %v1684
      %v1753 = vadd.f32 %v1482, %v1686
      %v1754 = vadd.f32 %v1483, %v1689
      %v1755 = vadd.f32 %v1484, %v1691
      %v1756 = vadd.f32 %v1485, %v1694
      %v1757 = vadd.f32 %v1486, %v1696
      %v1758 = vadd.f32 %v1487, %v1699
      %v1759 = vadd.f32 %v1488, %v1701
      %v1760 = vadd.f32 %v1489, %v1704
      %v1761 = vadd.f32 %v1490, %v1706
      %v1762 = vadd.f32 %v1491, %v1709
      %v1763 = vadd.f32 %v1492, %v1711
      %v1764 = vadd.f32 %v1493, %v1714
      %v1765 = vadd.f32 %v1494, %v1716
      %v1766 = vadd.f32 %v1495, %v1719
      %v1767 = vadd.f32 %v1496, %v1721
      %v1768 = vadd.f32 %v1497, %v1724
      %v1769 = vadd.f32 %v1498, %v1726
      %v1770 = vadd.f32 %v1499, %v1729
      %v1771 = vld [vmem:[%s210 + $0x12] sm:$0xff]
      %v1772 = vld [vmem:[%s210 + $0x1a] sm:$0xff]
      %v1773 = vld [vmem:[%s210 + $0x22] sm:$0xff]
      %v1774 = vld [vmem:[%s210 + $0x2a] sm:$0xff]
      %v1775 = vld [vmem:[%s210 + $0x32] sm:$0xff]
      %v1776 = vld [vmem:[%s210 + $0x3a] sm:$0xff]
      %v1777 = vld [vmem:[%s210 + $0x42] sm:$0xff]
      %v1778 = vld [vmem:[%s210 + $0x4a] sm:$0xff]
      %v1779 = vld [vmem:[%s210 + $0x52] sm:$0xff]
      %v1780 = vld [vmem:[%s210 + $0x5a] sm:$0xff]
      %v1781 = vld [vmem:[%s210 + $0x62] sm:$0xff]
      %v1782 = vld [vmem:[%s210 + $0x6a] sm:$0xff]
      %v1783 = vld [vmem:[%s210 + $0x72] sm:$0xff]
      %v1784 = vld [vmem:[%s210 + $0x7a] sm:$0xff]
      %v1785 = vld [vmem:[%s210 + $0x82] sm:$0xff]
      %v1786 = vld [vmem:[%s210 + $0x8a] sm:$0xff]
      %v1787 = vld [vmem:[%s210 + $0x92] sm:$0xff]
      %v1788 = vld [vmem:[%s210 + $0x9a] sm:$0xff]
      %v1789 = vld [vmem:[%s210 + $0xa2] sm:$0xff]
      %v1790 = vld [vmem:[%s210 + $0xaa] sm:$0xff]
      %v1791 = vld [vmem:[%s210 + $0xb2] sm:$0xff]
      %v1792 = vld [vmem:[%s210 + $0xba] sm:$0xff]
      %v1793 = vld [vmem:[%s210 + $0xc2] sm:$0xff]
      %v1794 = vld [vmem:[%s210 + $0xca] sm:$0xff]
      %v1795 = vld [vmem:[%s210 + $0xd2] sm:$0xff]
      %v1796 = vld [vmem:[%s210 + $0xda] sm:$0xff]
      %v1797 = vld [vmem:[%s210 + $0xe2] sm:$0xff]
      %v1798 = vld [vmem:[%s210 + $0xea] sm:$0xff]
      %v1799 = vld [vmem:[%s210 + $0xf2] sm:$0xff]
      %v1800 = vld [vmem:[%s210 + $0xfa] sm:$0xff]
      %v1801 = vld [vmem:[%s210 + $0x102] sm:$0xff]
      %v1802 = vld [vmem:[%s210 + $0x10a] sm:$0xff]
      %v1803 = vld [vmem:[%s210 + $0x112] sm:$0xff]
      %v1804 = vld [vmem:[%s210 + $0x11a] sm:$0xff]
      %v1805 = vld [vmem:[%s210 + $0x122] sm:$0xff]
      %v1806 = vld [vmem:[%s210 + $0x12a] sm:$0xff]
      %v1807 = vld [vmem:[%s210 + $0x132] sm:$0xff]
      %v1808 = vld [vmem:[%s210 + $0x13a] sm:$0xff]
      %v1809 = vld [vmem:[%s210 + $0x142] sm:$0xff]
      %v1810 = vpack.c.bf16 %v1772, %v1771
      %v1811 = vpack.c.bf16 %v1774, %v1773
      %v1812 = vpack.c.bf16 %v1776, %v1775
      %v1813 = vpack.c.bf16 %v1778, %v1777
      %v1814 = vpack.c.bf16 %v1780, %v1779
      %v1815 = vpack.c.bf16 %v1782, %v1781
      %v1816 = vpack.c.bf16 %v1784, %v1783
      %v1817 = vpack.c.bf16 %v1786, %v1785
      %v1818 = vpack.c.bf16 %v1788, %v1787
      %v1819 = vpack.c.bf16 %v1790, %v1789
      %v1820 = vpack.c.bf16 %v1792, %v1791
      %v1821 = vpack.c.bf16 %v1794, %v1793
      %v1822 = vpack.c.bf16 %v1796, %v1795
      %v1823 = vpack.c.bf16 %v1798, %v1797
      %v1824 = vpack.c.bf16 %v1800, %v1799
      %v1825 = vpack.c.bf16 %v1802, %v1801
      %v1826 = vpack.c.bf16 %v1804, %v1803
      %v1827 = vpack.c.bf16 %v1806, %v1805
      %v1828 = vpack.c.bf16 %v1808, %v1807
      %v1829 = vpack.c.bf16 %v1809, %v1809
      %s1830 = scalar_lea.vmem %s1, 384
      %v1831 = vld [vmem:[%s1830] sm:$0xf]
      %v1832 = vld [vmem:[%s1830 + $0x4] sm:$0xf]
      %v1833 = vld [vmem:[%s1830 + $0x8] sm:$0xf]
      %v1834 = vld [vmem:[%s1830 + $0xc] sm:$0xf]
      %v1835 = vld [vmem:[%s1830 + $0x10] sm:$0xf]
      %v1836 = vld [vmem:[%s1830 + $0x14] sm:$0xf]
      %v1837 = vld [vmem:[%s1830 + $0x18] sm:$0xf]
      %v1838 = vld [vmem:[%s1830 + $0x1c] sm:$0xf]
      %v1839 = vld [vmem:[%s1830 + $0x20] sm:$0xf]
      %v1840 = vld [vmem:[%s1830 + $0x24] sm:$0xf]
      %v1841 = vld [vmem:[%s1830 + $0x28] sm:$0xf]
      %v1842 = vld [vmem:[%s1830 + $0x2c] sm:$0xf]
      %v1843 = vld [vmem:[%s1830 + $0x30] sm:$0xf]
      %v1844 = vld [vmem:[%s1830 + $0x34] sm:$0xf]
      %v1845 = vld [vmem:[%s1830 + $0x38] sm:$0xf]
      %v1846 = vld [vmem:[%s1830 + $0x3c] sm:$0xf]
      %v1863 = vunpack.c.l.b16 %v1831
      %v1864 = vunpack.c.l.b16 %v1832
      %v1865 = vunpack.c.l.b16 %v1833
      %v1866 = vunpack.c.l.b16 %v1834
      %v1867 = vunpack.c.l.b16 %v1835
      %v1868 = vunpack.c.l.b16 %v1836
      %v1869 = vunpack.c.l.b16 %v1837
      %v1870 = vunpack.c.l.b16 %v1838
      %v1871 = vunpack.c.l.b16 %v1839
      %v1872 = vunpack.c.l.b16 %v1840
      %v1873 = vunpack.c.l.b16 %v1841
      %v1874 = vunpack.c.l.b16 %v1842
      %v1875 = vunpack.c.l.b16 %v1843
      %v1876 = vunpack.c.l.b16 %v1844
      %v1877 = vunpack.c.l.b16 %v1845
      %v1878 = vunpack.c.l.b16 %v1846
      %v1879 = vpack.c.b16 %v1864, %v1863
      %v1880 = vpack.c.b16 %v1866, %v1865
      %v1881 = vpack.c.b16 %v1868, %v1867
      %v1882 = vpack.c.b16 %v1870, %v1869
      %v1883 = vpack.c.b16 %v1872, %v1871
      %v1884 = vpack.c.b16 %v1874, %v1873
      %v1885 = vpack.c.b16 %v1876, %v1875
      %v1886 = vpack.c.b16 %v1878, %v1877
      %1895 = vmatpush.bf16.msra.mxu0 %v1886
      %1896 = vmatpush.bf16.msra.mxu0 %v1885
      %1897 = vmatpush.bf16.msra.mxu0 %v1884
      %1898 = vmatpush.bf16.msra.mxu0 %v1883
      %1899 = vmatpush.bf16.msra.mxu0 %v1882
      %1900 = vmatpush.bf16.msra.mxu0 %v1881
      %1901 = vmatpush.bf16.msra.mxu0 %v1880
      %1902 = vmatpush.bf16.msra.mxu0 %v1879
      %1903 = vmatmul.bf16.gmra.mxu0 %v1810
      %v1904 = vpop.f32.mrf.mxu0
      %v1905 = vadd.f32 0.0, %v1904
      %v1906 = vpop.f32.mrf.mxu0
      %v1907 = vadd.f32 0.0, %v1906
      %1908 = vmatmul.bf16.gmra.mxu0 %v1811
      %v1909 = vpop.f32.mrf.mxu0
      %v1910 = vadd.f32 0.0, %v1909
      %v1911 = vpop.f32.mrf.mxu0
      %v1912 = vadd.f32 0.0, %v1911
      %1913 = vmatmul.bf16.gmra.mxu0 %v1812
      %v1914 = vpop.f32.mrf.mxu0
      %v1915 = vadd.f32 0.0, %v1914
      %v1916 = vpop.f32.mrf.mxu0
      %v1917 = vadd.f32 0.0, %v1916
      %1918 = vmatmul.bf16.gmra.mxu0 %v1813
      %v1919 = vpop.f32.mrf.mxu0
      %v1920 = vadd.f32 0.0, %v1919
      %v1921 = vpop.f32.mrf.mxu0
      %v1922 = vadd.f32 0.0, %v1921
      %1923 = vmatmul.bf16.gmra.mxu0 %v1814
      %v1924 = vpop.f32.mrf.mxu0
      %v1925 = vadd.f32 0.0, %v1924
      %v1926 = vpop.f32.mrf.mxu0
      %v1927 = vadd.f32 0.0, %v1926
      %1928 = vmatmul.bf16.gmra.mxu0 %v1815
      %v1929 = vpop.f32.mrf.mxu0
      %v1930 = vadd.f32 0.0, %v1929
      %v1931 = vpop.f32.mrf.mxu0
      %v1932 = vadd.f32 0.0, %v1931
      %1933 = vmatmul.bf16.gmra.mxu0 %v1816
      %v1934 = vpop.f32.mrf.mxu0
      %v1935 = vadd.f32 0.0, %v1934
      %v1936 = vpop.f32.mrf.mxu0
      %v1937 = vadd.f32 0.0, %v1936
      %1938 = vmatmul.bf16.gmra.mxu0 %v1817
      %v1939 = vpop.f32.mrf.mxu0
      %v1940 = vadd.f32 0.0, %v1939
      %v1941 = vpop.f32.mrf.mxu0
      %v1942 = vadd.f32 0.0, %v1941
      %1943 = vmatmul.bf16.gmra.mxu0 %v1818
      %v1944 = vpop.f32.mrf.mxu0
      %v1945 = vadd.f32 0.0, %v1944
      %v1946 = vpop.f32.mrf.mxu0
      %v1947 = vadd.f32 0.0, %v1946
      %1948 = vmatmul.bf16.gmra.mxu0 %v1819
      %v1949 = vpop.f32.mrf.mxu0
      %v1950 = vadd.f32 0.0, %v1949
      %v1951 = vpop.f32.mrf.mxu0
      %v1952 = vadd.f32 0.0, %v1951
      %1953 = vmatmul.bf16.gmra.mxu0 %v1820
      %v1954 = vpop.f32.mrf.mxu0
      %v1955 = vadd.f32 0.0, %v1954
      %v1956 = vpop.f32.mrf.mxu0
      %v1957 = vadd.f32 0.0, %v1956
      %1958 = vmatmul.bf16.gmra.mxu0 %v1821
      %v1959 = vpop.f32.mrf.mxu0
      %v1960 = vadd.f32 0.0, %v1959
      %v1961 = vpop.f32.mrf.mxu0
      %v1962 = vadd.f32 0.0, %v1961
      %1963 = vmatmul.bf16.gmra.mxu0 %v1822
      %v1964 = vpop.f32.mrf.mxu0
      %v1965 = vadd.f32 0.0, %v1964
      %v1966 = vpop.f32.mrf.mxu0
      %v1967 = vadd.f32 0.0, %v1966
      %1968 = vmatmul.bf16.gmra.mxu0 %v1823
      %v1969 = vpop.f32.mrf.mxu0
      %v1970 = vadd.f32 0.0, %v1969
      %v1971 = vpop.f32.mrf.mxu0
      %v1972 = vadd.f32 0.0, %v1971
      %1973 = vmatmul.bf16.gmra.mxu0 %v1824
      %v1974 = vpop.f32.mrf.mxu0
      %v1975 = vadd.f32 0.0, %v1974
      %v1976 = vpop.f32.mrf.mxu0
      %v1977 = vadd.f32 0.0, %v1976
      %1978 = vmatmul.bf16.gmra.mxu0 %v1825
      %v1979 = vpop.f32.mrf.mxu0
      %v1980 = vadd.f32 0.0, %v1979
      %v1981 = vpop.f32.mrf.mxu0
      %v1982 = vadd.f32 0.0, %v1981
      %1983 = vmatmul.bf16.gmra.mxu0 %v1826
      %v1984 = vpop.f32.mrf.mxu0
      %v1985 = vadd.f32 0.0, %v1984
      %v1986 = vpop.f32.mrf.mxu0
      %v1987 = vadd.f32 0.0, %v1986
      %1988 = vmatmul.bf16.gmra.mxu0 %v1827
      %v1989 = vpop.f32.mrf.mxu0
      %v1990 = vadd.f32 0.0, %v1989
      %v1991 = vpop.f32.mrf.mxu0
      %v1992 = vadd.f32 0.0, %v1991
      %1993 = vmatmul.bf16.gmra.mxu0 %v1828
      %v1994 = vpop.f32.mrf.mxu0
      %v1995 = vadd.f32 0.0, %v1994
      %v1996 = vpop.f32.mrf.mxu0
      %v1997 = vadd.f32 0.0, %v1996
      %1998 = vmatmul.bf16.gmra.mxu0 %v1829
      %v1999 = vpop.f32.mrf.mxu0
      %v2000 = vadd.f32 0.0, %v1999
      %v2001 = vpop.f32.mrf.mxu0
      %2002 = vdwg.mxu0
      %v2003 = vadd.f32 %v1732, %v1905
      %v2004 = vadd.f32 %v1733, %v1907
      %v2005 = vadd.f32 %v1734, %v1910
      %v2006 = vadd.f32 %v1735, %v1912
      %v2007 = vadd.f32 %v1736, %v1915
      %v2008 = vadd.f32 %v1737, %v1917
      %v2009 = vadd.f32 %v1738, %v1920
      %v2010 = vadd.f32 %v1739, %v1922
      %v2011 = vadd.f32 %v1740, %v1925
      %v2012 = vadd.f32 %v1741, %v1927
      %v2013 = vadd.f32 %v1742, %v1930
      %v2014 = vadd.f32 %v1743, %v1932
      %v2015 = vadd.f32 %v1744, %v1935
      %v2016 = vadd.f32 %v1745, %v1937
      %v2017 = vadd.f32 %v1746, %v1940
      %v2018 = vadd.f32 %v1747, %v1942
      %v2019 = vadd.f32 %v1748, %v1945
      %v2020 = vadd.f32 %v1749, %v1947
      %v2021 = vadd.f32 %v1750, %v1950
      %v2022 = vadd.f32 %v1751, %v1952
      %v2023 = vadd.f32 %v1752, %v1955
      %v2024 = vadd.f32 %v1753, %v1957
      %v2025 = vadd.f32 %v1754, %v1960
      %v2026 = vadd.f32 %v1755, %v1962
      %v2027 = vadd.f32 %v1756, %v1965
      %v2028 = vadd.f32 %v1757, %v1967
      %v2029 = vadd.f32 %v1758, %v1970
      %v2030 = vadd.f32 %v1759, %v1972
      %v2031 = vadd.f32 %v1760, %v1975
      %v2032 = vadd.f32 %v1761, %v1977
      %v2033 = vadd.f32 %v1762, %v1980
      %v2034 = vadd.f32 %v1763, %v1982
      %v2035 = vadd.f32 %v1764, %v1985
      %v2036 = vadd.f32 %v1765, %v1987
      %v2037 = vadd.f32 %v1766, %v1990
      %v2038 = vadd.f32 %v1767, %v1992
      %v2039 = vadd.f32 %v1768, %v1995
      %v2040 = vadd.f32 %v1769, %v1997
      %v2041 = vadd.f32 %v1770, %v2000
      %v2042 = vld [vmem:[%s296 + $0x12] sm:$0xff]
      %v2043 = vld [vmem:[%s296 + $0x1a] sm:$0xff]
      %v2044 = vld [vmem:[%s296 + $0x22] sm:$0xff]
      %v2045 = vld [vmem:[%s296 + $0x2a] sm:$0xff]
      %v2046 = vld [vmem:[%s296 + $0x32] sm:$0xff]
      %v2047 = vld [vmem:[%s296 + $0x3a] sm:$0xff]
      %v2048 = vld [vmem:[%s296 + $0x42] sm:$0xff]
      %v2049 = vld [vmem:[%s296 + $0x4a] sm:$0xff]
      %v2050 = vld [vmem:[%s296 + $0x52] sm:$0xff]
      %v2051 = vld [vmem:[%s296 + $0x5a] sm:$0xff]
      %v2052 = vld [vmem:[%s296 + $0x62] sm:$0xff]
      %v2053 = vld [vmem:[%s296 + $0x6a] sm:$0xff]
      %v2054 = vld [vmem:[%s296 + $0x72] sm:$0xff]
      %v2055 = vld [vmem:[%s296 + $0x7a] sm:$0xff]
      %v2056 = vld [vmem:[%s296 + $0x82] sm:$0xff]
      %v2057 = vld [vmem:[%s296 + $0x8a] sm:$0xff]
      %v2058 = vld [vmem:[%s296 + $0x92] sm:$0xff]
      %v2059 = vld [vmem:[%s296 + $0x9a] sm:$0xff]
      %v2060 = vld [vmem:[%s296 + $0xa2] sm:$0xff]
      %v2061 = vld [vmem:[%s296 + $0xaa] sm:$0xff]
      %v2062 = vld [vmem:[%s296 + $0xb2] sm:$0xff]
      %v2063 = vld [vmem:[%s296 + $0xba] sm:$0xff]
      %v2064 = vld [vmem:[%s296 + $0xc2] sm:$0xff]
      %v2065 = vld [vmem:[%s296 + $0xca] sm:$0xff]
      %v2066 = vld [vmem:[%s296 + $0xd2] sm:$0xff]
      %v2067 = vld [vmem:[%s296 + $0xda] sm:$0xff]
      %v2068 = vld [vmem:[%s296 + $0xe2] sm:$0xff]
      %v2069 = vld [vmem:[%s296 + $0xea] sm:$0xff]
      %v2070 = vld [vmem:[%s296 + $0xf2] sm:$0xff]
      %v2071 = vld [vmem:[%s296 + $0xfa] sm:$0xff]
      %v2072 = vld [vmem:[%s296 + $0x102] sm:$0xff]
      %v2073 = vld [vmem:[%s296 + $0x10a] sm:$0xff]
      %v2074 = vld [vmem:[%s296 + $0x112] sm:$0xff]
      %v2075 = vld [vmem:[%s296 + $0x11a] sm:$0xff]
      %v2076 = vld [vmem:[%s296 + $0x122] sm:$0xff]
      %v2077 = vld [vmem:[%s296 + $0x12a] sm:$0xff]
      %v2078 = vld [vmem:[%s296 + $0x132] sm:$0xff]
      %v2079 = vld [vmem:[%s296 + $0x13a] sm:$0xff]
      %v2080 = vld [vmem:[%s296 + $0x142] sm:$0xff]
      %v2081 = vpack.c.bf16 %v2043, %v2042
      %v2082 = vpack.c.bf16 %v2045, %v2044
      %v2083 = vpack.c.bf16 %v2047, %v2046
      %v2084 = vpack.c.bf16 %v2049, %v2048
      %v2085 = vpack.c.bf16 %v2051, %v2050
      %v2086 = vpack.c.bf16 %v2053, %v2052
      %v2087 = vpack.c.bf16 %v2055, %v2054
      %v2088 = vpack.c.bf16 %v2057, %v2056
      %v2089 = vpack.c.bf16 %v2059, %v2058
      %v2090 = vpack.c.bf16 %v2061, %v2060
      %v2091 = vpack.c.bf16 %v2063, %v2062
      %v2092 = vpack.c.bf16 %v2065, %v2064
      %v2093 = vpack.c.bf16 %v2067, %v2066
      %v2094 = vpack.c.bf16 %v2069, %v2068
      %v2095 = vpack.c.bf16 %v2071, %v2070
      %v2096 = vpack.c.bf16 %v2073, %v2072
      %v2097 = vpack.c.bf16 %v2075, %v2074
      %v2098 = vpack.c.bf16 %v2077, %v2076
      %v2099 = vpack.c.bf16 %v2079, %v2078
      %v2100 = vpack.c.bf16 %v2080, %v2080
      %s2101 = scalar_lea.vmem %s1, 448
      %v2102 = vld [vmem:[%s2101] sm:$0xf]
      %v2103 = vld [vmem:[%s2101 + $0x4] sm:$0xf]
      %v2104 = vld [vmem:[%s2101 + $0x8] sm:$0xf]
      %v2105 = vld [vmem:[%s2101 + $0xc] sm:$0xf]
      %v2106 = vld [vmem:[%s2101 + $0x10] sm:$0xf]
      %v2107 = vld [vmem:[%s2101 + $0x14] sm:$0xf]
      %v2108 = vld [vmem:[%s2101 + $0x18] sm:$0xf]
      %v2109 = vld [vmem:[%s2101 + $0x1c] sm:$0xf]
      %v2110 = vld [vmem:[%s2101 + $0x20] sm:$0xf]
      %v2111 = vld [vmem:[%s2101 + $0x24] sm:$0xf]
      %v2112 = vld [vmem:[%s2101 + $0x28] sm:$0xf]
      %v2113 = vld [vmem:[%s2101 + $0x2c] sm:$0xf]
      %v2114 = vld [vmem:[%s2101 + $0x30] sm:$0xf]
      %v2115 = vld [vmem:[%s2101 + $0x34] sm:$0xf]
      %v2116 = vld [vmem:[%s2101 + $0x38] sm:$0xf]
      %v2117 = vld [vmem:[%s2101 + $0x3c] sm:$0xf]
      %v2134 = vunpack.c.l.b16 %v2102
      %v2135 = vunpack.c.l.b16 %v2103
      %v2136 = vunpack.c.l.b16 %v2104
      %v2137 = vunpack.c.l.b16 %v2105
      %v2138 = vunpack.c.l.b16 %v2106
      %v2139 = vunpack.c.l.b16 %v2107
      %v2140 = vunpack.c.l.b16 %v2108
      %v2141 = vunpack.c.l.b16 %v2109
      %v2142 = vunpack.c.l.b16 %v2110
      %v2143 = vunpack.c.l.b16 %v2111
      %v2144 = vunpack.c.l.b16 %v2112
      %v2145 = vunpack.c.l.b16 %v2113
      %v2146 = vunpack.c.l.b16 %v2114
      %v2147 = vunpack.c.l.b16 %v2115
      %v2148 = vunpack.c.l.b16 %v2116
      %v2149 = vunpack.c.l.b16 %v2117
      %v2150 = vpack.c.b16 %v2135, %v2134
      %v2151 = vpack.c.b16 %v2137, %v2136
      %v2152 = vpack.c.b16 %v2139, %v2138
      %v2153 = vpack.c.b16 %v2141, %v2140
      %v2154 = vpack.c.b16 %v2143, %v2142
      %v2155 = vpack.c.b16 %v2145, %v2144
      %v2156 = vpack.c.b16 %v2147, %v2146
      %v2157 = vpack.c.b16 %v2149, %v2148
      %2166 = vmatpush.bf16.msra.mxu0 %v2157
      %2167 = vmatpush.bf16.msra.mxu0 %v2156
      %2168 = vmatpush.bf16.msra.mxu0 %v2155
      %2169 = vmatpush.bf16.msra.mxu0 %v2154
      %2170 = vmatpush.bf16.msra.mxu0 %v2153
      %2171 = vmatpush.bf16.msra.mxu0 %v2152
      %2172 = vmatpush.bf16.msra.mxu0 %v2151
      %2173 = vmatpush.bf16.msra.mxu0 %v2150
      %2174 = vmatmul.bf16.gmra.mxu0 %v2081
      %v2175 = vpop.f32.mrf.mxu0
      %v2176 = vadd.f32 0.0, %v2175
      %v2177 = vpop.f32.mrf.mxu0
      %v2178 = vadd.f32 0.0, %v2177
      %2179 = vmatmul.bf16.gmra.mxu0 %v2082
      %v2180 = vpop.f32.mrf.mxu0
      %v2181 = vadd.f32 0.0, %v2180
      %v2182 = vpop.f32.mrf.mxu0
      %v2183 = vadd.f32 0.0, %v2182
      %2184 = vmatmul.bf16.gmra.mxu0 %v2083
      %v2185 = vpop.f32.mrf.mxu0
      %v2186 = vadd.f32 0.0, %v2185
      %v2187 = vpop.f32.mrf.mxu0
      %v2188 = vadd.f32 0.0, %v2187
      %2189 = vmatmul.bf16.gmra.mxu0 %v2084
      %v2190 = vpop.f32.mrf.mxu0
      %v2191 = vadd.f32 0.0, %v2190
      %v2192 = vpop.f32.mrf.mxu0
      %v2193 = vadd.f32 0.0, %v2192
      %2194 = vmatmul.bf16.gmra.mxu0 %v2085
      %v2195 = vpop.f32.mrf.mxu0
      %v2196 = vadd.f32 0.0, %v2195
      %v2197 = vpop.f32.mrf.mxu0
      %v2198 = vadd.f32 0.0, %v2197
      %2199 = vmatmul.bf16.gmra.mxu0 %v2086
      %v2200 = vpop.f32.mrf.mxu0
      %v2201 = vadd.f32 0.0, %v2200
      %v2202 = vpop.f32.mrf.mxu0
      %v2203 = vadd.f32 0.0, %v2202
      %2204 = vmatmul.bf16.gmra.mxu0 %v2087
      %v2205 = vpop.f32.mrf.mxu0
      %v2206 = vadd.f32 0.0, %v2205
      %v2207 = vpop.f32.mrf.mxu0
      %v2208 = vadd.f32 0.0, %v2207
      %2209 = vmatmul.bf16.gmra.mxu0 %v2088
      %v2210 = vpop.f32.mrf.mxu0
      %v2211 = vadd.f32 0.0, %v2210
      %v2212 = vpop.f32.mrf.mxu0
      %v2213 = vadd.f32 0.0, %v2212
      %2214 = vmatmul.bf16.gmra.mxu0 %v2089
      %v2215 = vpop.f32.mrf.mxu0
      %v2216 = vadd.f32 0.0, %v2215
      %v2217 = vpop.f32.mrf.mxu0
      %v2218 = vadd.f32 0.0, %v2217
      %2219 = vmatmul.bf16.gmra.mxu0 %v2090
      %v2220 = vpop.f32.mrf.mxu0
      %v2221 = vadd.f32 0.0, %v2220
      %v2222 = vpop.f32.mrf.mxu0
      %v2223 = vadd.f32 0.0, %v2222
      %2224 = vmatmul.bf16.gmra.mxu0 %v2091
      %v2225 = vpop.f32.mrf.mxu0
      %v2226 = vadd.f32 0.0, %v2225
      %v2227 = vpop.f32.mrf.mxu0
      %v2228 = vadd.f32 0.0, %v2227
      %2229 = vmatmul.bf16.gmra.mxu0 %v2092
      %v2230 = vpop.f32.mrf.mxu0
      %v2231 = vadd.f32 0.0, %v2230
      %v2232 = vpop.f32.mrf.mxu0
      %v2233 = vadd.f32 0.0, %v2232
      %2234 = vmatmul.bf16.gmra.mxu0 %v2093
      %v2235 = vpop.f32.mrf.mxu0
      %v2236 = vadd.f32 0.0, %v2235
      %v2237 = vpop.f32.mrf.mxu0
      %v2238 = vadd.f32 0.0, %v2237
      %2239 = vmatmul.bf16.gmra.mxu0 %v2094
      %v2240 = vpop.f32.mrf.mxu0
      %v2241 = vadd.f32 0.0, %v2240
      %v2242 = vpop.f32.mrf.mxu0
      %v2243 = vadd.f32 0.0, %v2242
      %2244 = vmatmul.bf16.gmra.mxu0 %v2095
      %v2245 = vpop.f32.mrf.mxu0
      %v2246 = vadd.f32 0.0, %v2245
      %v2247 = vpop.f32.mrf.mxu0
      %v2248 = vadd.f32 0.0, %v2247
      %2249 = vmatmul.bf16.gmra.mxu0 %v2096
      %v2250 = vpop.f32.mrf.mxu0
      %v2251 = vadd.f32 0.0, %v2250
      %v2252 = vpop.f32.mrf.mxu0
      %v2253 = vadd.f32 0.0, %v2252
      %2254 = vmatmul.bf16.gmra.mxu0 %v2097
      %v2255 = vpop.f32.mrf.mxu0
      %v2256 = vadd.f32 0.0, %v2255
      %v2257 = vpop.f32.mrf.mxu0
      %v2258 = vadd.f32 0.0, %v2257
      %2259 = vmatmul.bf16.gmra.mxu0 %v2098
      %v2260 = vpop.f32.mrf.mxu0
      %v2261 = vadd.f32 0.0, %v2260
      %v2262 = vpop.f32.mrf.mxu0
      %v2263 = vadd.f32 0.0, %v2262
      %2264 = vmatmul.bf16.gmra.mxu0 %v2099
      %v2265 = vpop.f32.mrf.mxu0
      %v2266 = vadd.f32 0.0, %v2265
      %v2267 = vpop.f32.mrf.mxu0
      %v2268 = vadd.f32 0.0, %v2267
      %2269 = vmatmul.bf16.gmra.mxu0 %v2100
      %v2270 = vpop.f32.mrf.mxu0
      %v2271 = vadd.f32 0.0, %v2270
      %v2272 = vpop.f32.mrf.mxu0
      %2273 = vdwg.mxu0
      %v2274 = vadd.f32 %v2003, %v2176
      %v2275 = vadd.f32 %v2004, %v2178
      %v2276 = vadd.f32 %v2005, %v2181
      %v2277 = vadd.f32 %v2006, %v2183
      %v2278 = vadd.f32 %v2007, %v2186
      %v2279 = vadd.f32 %v2008, %v2188
      %v2280 = vadd.f32 %v2009, %v2191
      %v2281 = vadd.f32 %v2010, %v2193
      %v2282 = vadd.f32 %v2011, %v2196
      %v2283 = vadd.f32 %v2012, %v2198
      %v2284 = vadd.f32 %v2013, %v2201
      %v2285 = vadd.f32 %v2014, %v2203
      %v2286 = vadd.f32 %v2015, %v2206
      %v2287 = vadd.f32 %v2016, %v2208
      %v2288 = vadd.f32 %v2017, %v2211
      %v2289 = vadd.f32 %v2018, %v2213
      %v2290 = vadd.f32 %v2019, %v2216
      %v2291 = vadd.f32 %v2020, %v2218
      %v2292 = vadd.f32 %v2021, %v2221
      %v2293 = vadd.f32 %v2022, %v2223
      %v2294 = vadd.f32 %v2023, %v2226
      %v2295 = vadd.f32 %v2024, %v2228
      %v2296 = vadd.f32 %v2025, %v2231
      %v2297 = vadd.f32 %v2026, %v2233
      %v2298 = vadd.f32 %v2027, %v2236
      %v2299 = vadd.f32 %v2028, %v2238
      %v2300 = vadd.f32 %v2029, %v2241
      %v2301 = vadd.f32 %v2030, %v2243
      %v2302 = vadd.f32 %v2031, %v2246
      %v2303 = vadd.f32 %v2032, %v2248
      %v2304 = vadd.f32 %v2033, %v2251
      %v2305 = vadd.f32 %v2034, %v2253
      %v2306 = vadd.f32 %v2035, %v2256
      %v2307 = vadd.f32 %v2036, %v2258
      %v2308 = vadd.f32 %v2037, %v2261
      %v2309 = vadd.f32 %v2038, %v2263
      %v2310 = vadd.f32 %v2039, %v2266
      %v2311 = vadd.f32 %v2040, %v2268
      %v2312 = vadd.f32 %v2041, %v2271
      %v2313 = vld [vmem:[%s210 + $0x13] sm:$0xff]
      %v2314 = vld [vmem:[%s210 + $0x1b] sm:$0xff]
      %v2315 = vld [vmem:[%s210 + $0x23] sm:$0xff]
      %v2316 = vld [vmem:[%s210 + $0x2b] sm:$0xff]
      %v2317 = vld [vmem:[%s210 + $0x33] sm:$0xff]
      %v2318 = vld [vmem:[%s210 + $0x3b] sm:$0xff]
      %v2319 = vld [vmem:[%s210 + $0x43] sm:$0xff]
      %v2320 = vld [vmem:[%s210 + $0x4b] sm:$0xff]
      %v2321 = vld [vmem:[%s210 + $0x53] sm:$0xff]
      %v2322 = vld [vmem:[%s210 + $0x5b] sm:$0xff]
      %v2323 = vld [vmem:[%s210 + $0x63] sm:$0xff]
      %v2324 = vld [vmem:[%s210 + $0x6b] sm:$0xff]
      %v2325 = vld [vmem:[%s210 + $0x73] sm:$0xff]
      %v2326 = vld [vmem:[%s210 + $0x7b] sm:$0xff]
      %v2327 = vld [vmem:[%s210 + $0x83] sm:$0xff]
      %v2328 = vld [vmem:[%s210 + $0x8b] sm:$0xff]
      %v2329 = vld [vmem:[%s210 + $0x93] sm:$0xff]
      %v2330 = vld [vmem:[%s210 + $0x9b] sm:$0xff]
      %v2331 = vld [vmem:[%s210 + $0xa3] sm:$0xff]
      %v2332 = vld [vmem:[%s210 + $0xab] sm:$0xff]
      %v2333 = vld [vmem:[%s210 + $0xb3] sm:$0xff]
      %v2334 = vld [vmem:[%s210 + $0xbb] sm:$0xff]
      %v2335 = vld [vmem:[%s210 + $0xc3] sm:$0xff]
      %v2336 = vld [vmem:[%s210 + $0xcb] sm:$0xff]
      %v2337 = vld [vmem:[%s210 + $0xd3] sm:$0xff]
      %v2338 = vld [vmem:[%s210 + $0xdb] sm:$0xff]
      %v2339 = vld [vmem:[%s210 + $0xe3] sm:$0xff]
      %v2340 = vld [vmem:[%s210 + $0xeb] sm:$0xff]
      %v2341 = vld [vmem:[%s210 + $0xf3] sm:$0xff]
      %v2342 = vld [vmem:[%s210 + $0xfb] sm:$0xff]
      %v2343 = vld [vmem:[%s210 + $0x103] sm:$0xff]
      %v2344 = vld [vmem:[%s210 + $0x10b] sm:$0xff]
      %v2345 = vld [vmem:[%s210 + $0x113] sm:$0xff]
      %v2346 = vld [vmem:[%s210 + $0x11b] sm:$0xff]
      %v2347 = vld [vmem:[%s210 + $0x123] sm:$0xff]
      %v2348 = vld [vmem:[%s210 + $0x12b] sm:$0xff]
      %v2349 = vld [vmem:[%s210 + $0x133] sm:$0xff]
      %v2350 = vld [vmem:[%s210 + $0x13b] sm:$0xff]
      %v2351 = vld [vmem:[%s210 + $0x143] sm:$0xff]
      %v2352 = vpack.c.bf16 %v2314, %v2313
      %v2353 = vpack.c.bf16 %v2316, %v2315
      %v2354 = vpack.c.bf16 %v2318, %v2317
      %v2355 = vpack.c.bf16 %v2320, %v2319
      %v2356 = vpack.c.bf16 %v2322, %v2321
      %v2357 = vpack.c.bf16 %v2324, %v2323
      %v2358 = vpack.c.bf16 %v2326, %v2325
      %v2359 = vpack.c.bf16 %v2328, %v2327
      %v2360 = vpack.c.bf16 %v2330, %v2329
      %v2361 = vpack.c.bf16 %v2332, %v2331
      %v2362 = vpack.c.bf16 %v2334, %v2333
      %v2363 = vpack.c.bf16 %v2336, %v2335
      %v2364 = vpack.c.bf16 %v2338, %v2337
      %v2365 = vpack.c.bf16 %v2340, %v2339
      %v2366 = vpack.c.bf16 %v2342, %v2341
      %v2367 = vpack.c.bf16 %v2344, %v2343
      %v2368 = vpack.c.bf16 %v2346, %v2345
      %v2369 = vpack.c.bf16 %v2348, %v2347
      %v2370 = vpack.c.bf16 %v2350, %v2349
      %v2371 = vpack.c.bf16 %v2351, %v2351
      %s2372 = scalar_lea.vmem %s1, 512
      %v2373 = vld [vmem:[%s2372] sm:$0xf]
      %v2374 = vld [vmem:[%s2372 + $0x4] sm:$0xf]
      %v2375 = vld [vmem:[%s2372 + $0x8] sm:$0xf]
      %v2376 = vld [vmem:[%s2372 + $0xc] sm:$0xf]
      %v2377 = vld [vmem:[%s2372 + $0x10] sm:$0xf]
      %v2378 = vld [vmem:[%s2372 + $0x14] sm:$0xf]
      %v2379 = vld [vmem:[%s2372 + $0x18] sm:$0xf]
      %v2380 = vld [vmem:[%s2372 + $0x1c] sm:$0xf]
      %v2381 = vld [vmem:[%s2372 + $0x20] sm:$0xf]
      %v2382 = vld [vmem:[%s2372 + $0x24] sm:$0xf]
      %v2383 = vld [vmem:[%s2372 + $0x28] sm:$0xf]
      %v2384 = vld [vmem:[%s2372 + $0x2c] sm:$0xf]
      %v2385 = vld [vmem:[%s2372 + $0x30] sm:$0xf]
      %v2386 = vld [vmem:[%s2372 + $0x34] sm:$0xf]
      %v2387 = vld [vmem:[%s2372 + $0x38] sm:$0xf]
      %v2388 = vld [vmem:[%s2372 + $0x3c] sm:$0xf]
      %v2405 = vunpack.c.l.b16 %v2373
      %v2406 = vunpack.c.l.b16 %v2374
      %v2407 = vunpack.c.l.b16 %v2375
      %v2408 = vunpack.c.l.b16 %v2376
      %v2409 = vunpack.c.l.b16 %v2377
      %v2410 = vunpack.c.l.b16 %v2378
      %v2411 = vunpack.c.l.b16 %v2379
      %v2412 = vunpack.c.l.b16 %v2380
      %v2413 = vunpack.c.l.b16 %v2381
      %v2414 = vunpack.c.l.b16 %v2382
      %v2415 = vunpack.c.l.b16 %v2383
      %v2416 = vunpack.c.l.b16 %v2384
      %v2417 = vunpack.c.l.b16 %v2385
      %v2418 = vunpack.c.l.b16 %v2386
      %v2419 = vunpack.c.l.b16 %v2387
      %v2420 = vunpack.c.l.b16 %v2388
      %v2421 = vpack.c.b16 %v2406, %v2405
      %v2422 = vpack.c.b16 %v2408, %v2407
      %v2423 = vpack.c.b16 %v2410, %v2409
      %v2424 = vpack.c.b16 %v2412, %v2411
      %v2425 = vpack.c.b16 %v2414, %v2413
      %v2426 = vpack.c.b16 %v2416, %v2415
      %v2427 = vpack.c.b16 %v2418, %v2417
      %v2428 = vpack.c.b16 %v2420, %v2419
      %2437 = vmatpush.bf16.msra.mxu0 %v2428
      %2438 = vmatpush.bf16.msra.mxu0 %v2427
      %2439 = vmatpush.bf16.msra.mxu0 %v2426
      %2440 = vmatpush.bf16.msra.mxu0 %v2425
      %2441 = vmatpush.bf16.msra.mxu0 %v2424
      %2442 = vmatpush.bf16.msra.mxu0 %v2423
      %2443 = vmatpush.bf16.msra.mxu0 %v2422
      %2444 = vmatpush.bf16.msra.mxu0 %v2421
      %2445 = vmatmul.bf16.gmra.mxu0 %v2352
      %v2446 = vpop.f32.mrf.mxu0
      %v2447 = vadd.f32 0.0, %v2446
      %v2448 = vpop.f32.mrf.mxu0
      %v2449 = vadd.f32 0.0, %v2448
      %2450 = vmatmul.bf16.gmra.mxu0 %v2353
      %v2451 = vpop.f32.mrf.mxu0
      %v2452 = vadd.f32 0.0, %v2451
      %v2453 = vpop.f32.mrf.mxu0
      %v2454 = vadd.f32 0.0, %v2453
      %2455 = vmatmul.bf16.gmra.mxu0 %v2354
      %v2456 = vpop.f32.mrf.mxu0
      %v2457 = vadd.f32 0.0, %v2456
      %v2458 = vpop.f32.mrf.mxu0
      %v2459 = vadd.f32 0.0, %v2458
      %2460 = vmatmul.bf16.gmra.mxu0 %v2355
      %v2461 = vpop.f32.mrf.mxu0
      %v2462 = vadd.f32 0.0, %v2461
      %v2463 = vpop.f32.mrf.mxu0
      %v2464 = vadd.f32 0.0, %v2463
      %2465 = vmatmul.bf16.gmra.mxu0 %v2356
      %v2466 = vpop.f32.mrf.mxu0
      %v2467 = vadd.f32 0.0, %v2466
      %v2468 = vpop.f32.mrf.mxu0
      %v2469 = vadd.f32 0.0, %v2468
      %2470 = vmatmul.bf16.gmra.mxu0 %v2357
      %v2471 = vpop.f32.mrf.mxu0
      %v2472 = vadd.f32 0.0, %v2471
      %v2473 = vpop.f32.mrf.mxu0
      %v2474 = vadd.f32 0.0, %v2473
      %2475 = vmatmul.bf16.gmra.mxu0 %v2358
      %v2476 = vpop.f32.mrf.mxu0
      %v2477 = vadd.f32 0.0, %v2476
      %v2478 = vpop.f32.mrf.mxu0
      %v2479 = vadd.f32 0.0, %v2478
      %2480 = vmatmul.bf16.gmra.mxu0 %v2359
      %v2481 = vpop.f32.mrf.mxu0
      %v2482 = vadd.f32 0.0, %v2481
      %v2483 = vpop.f32.mrf.mxu0
      %v2484 = vadd.f32 0.0, %v2483
      %2485 = vmatmul.bf16.gmra.mxu0 %v2360
      %v2486 = vpop.f32.mrf.mxu0
      %v2487 = vadd.f32 0.0, %v2486
      %v2488 = vpop.f32.mrf.mxu0
      %v2489 = vadd.f32 0.0, %v2488
      %2490 = vmatmul.bf16.gmra.mxu0 %v2361
      %v2491 = vpop.f32.mrf.mxu0
      %v2492 = vadd.f32 0.0, %v2491
      %v2493 = vpop.f32.mrf.mxu0
      %v2494 = vadd.f32 0.0, %v2493
      %2495 = vmatmul.bf16.gmra.mxu0 %v2362
      %v2496 = vpop.f32.mrf.mxu0
      %v2497 = vadd.f32 0.0, %v2496
      %v2498 = vpop.f32.mrf.mxu0
      %v2499 = vadd.f32 0.0, %v2498
      %2500 = vmatmul.bf16.gmra.mxu0 %v2363
      %v2501 = vpop.f32.mrf.mxu0
      %v2502 = vadd.f32 0.0, %v2501
      %v2503 = vpop.f32.mrf.mxu0
      %v2504 = vadd.f32 0.0, %v2503
      %2505 = vmatmul.bf16.gmra.mxu0 %v2364
      %v2506 = vpop.f32.mrf.mxu0
      %v2507 = vadd.f32 0.0, %v2506
      %v2508 = vpop.f32.mrf.mxu0
      %v2509 = vadd.f32 0.0, %v2508
      %2510 = vmatmul.bf16.gmra.mxu0 %v2365
      %v2511 = vpop.f32.mrf.mxu0
      %v2512 = vadd.f32 0.0, %v2511
      %v2513 = vpop.f32.mrf.mxu0
      %v2514 = vadd.f32 0.0, %v2513
      %2515 = vmatmul.bf16.gmra.mxu0 %v2366
      %v2516 = vpop.f32.mrf.mxu0
      %v2517 = vadd.f32 0.0, %v2516
      %v2518 = vpop.f32.mrf.mxu0
      %v2519 = vadd.f32 0.0, %v2518
      %2520 = vmatmul.bf16.gmra.mxu0 %v2367
      %v2521 = vpop.f32.mrf.mxu0
      %v2522 = vadd.f32 0.0, %v2521
      %v2523 = vpop.f32.mrf.mxu0
      %v2524 = vadd.f32 0.0, %v2523
      %2525 = vmatmul.bf16.gmra.mxu0 %v2368
      %v2526 = vpop.f32.mrf.mxu0
      %v2527 = vadd.f32 0.0, %v2526
      %v2528 = vpop.f32.mrf.mxu0
      %v2529 = vadd.f32 0.0, %v2528
      %2530 = vmatmul.bf16.gmra.mxu0 %v2369
      %v2531 = vpop.f32.mrf.mxu0
      %v2532 = vadd.f32 0.0, %v2531
      %v2533 = vpop.f32.mrf.mxu0
      %v2534 = vadd.f32 0.0, %v2533
      %2535 = vmatmul.bf16.gmra.mxu0 %v2370
      %v2536 = vpop.f32.mrf.mxu0
      %v2537 = vadd.f32 0.0, %v2536
      %v2538 = vpop.f32.mrf.mxu0
      %v2539 = vadd.f32 0.0, %v2538
      %2540 = vmatmul.bf16.gmra.mxu0 %v2371
      %v2541 = vpop.f32.mrf.mxu0
      %v2542 = vadd.f32 0.0, %v2541
      %v2543 = vpop.f32.mrf.mxu0
      %2544 = vdwg.mxu0
      %v2545 = vadd.f32 %v2274, %v2447
      %v2546 = vadd.f32 %v2275, %v2449
      %v2547 = vadd.f32 %v2276, %v2452
      %v2548 = vadd.f32 %v2277, %v2454
      %v2549 = vadd.f32 %v2278, %v2457
      %v2550 = vadd.f32 %v2279, %v2459
      %v2551 = vadd.f32 %v2280, %v2462
      %v2552 = vadd.f32 %v2281, %v2464
      %v2553 = vadd.f32 %v2282, %v2467
      %v2554 = vadd.f32 %v2283, %v2469
      %v2555 = vadd.f32 %v2284, %v2472
      %v2556 = vadd.f32 %v2285, %v2474
      %v2557 = vadd.f32 %v2286, %v2477
      %v2558 = vadd.f32 %v2287, %v2479
      %v2559 = vadd.f32 %v2288, %v2482
      %v2560 = vadd.f32 %v2289, %v2484
      %v2561 = vadd.f32 %v2290, %v2487
      %v2562 = vadd.f32 %v2291, %v2489
      %v2563 = vadd.f32 %v2292, %v2492
      %v2564 = vadd.f32 %v2293, %v2494
      %v2565 = vadd.f32 %v2294, %v2497
      %v2566 = vadd.f32 %v2295, %v2499
      %v2567 = vadd.f32 %v2296, %v2502
      %v2568 = vadd.f32 %v2297, %v2504
      %v2569 = vadd.f32 %v2298, %v2507
      %v2570 = vadd.f32 %v2299, %v2509
      %v2571 = vadd.f32 %v2300, %v2512
      %v2572 = vadd.f32 %v2301, %v2514
      %v2573 = vadd.f32 %v2302, %v2517
      %v2574 = vadd.f32 %v2303, %v2519
      %v2575 = vadd.f32 %v2304, %v2522
      %v2576 = vadd.f32 %v2305, %v2524
      %v2577 = vadd.f32 %v2306, %v2527
      %v2578 = vadd.f32 %v2307, %v2529
      %v2579 = vadd.f32 %v2308, %v2532
      %v2580 = vadd.f32 %v2309, %v2534
      %v2581 = vadd.f32 %v2310, %v2537
      %v2582 = vadd.f32 %v2311, %v2539
      %v2583 = vadd.f32 %v2312, %v2542
      %v2584 = vld [vmem:[%s2] sm:$0x1]
      %v2586 = vperm.slane %v2584, 0
      %v2588 = vmul.f32 %v2545, %v2586
      %v2589 = vmul.f32 %v2546, %v2586
      %v2590 = vmul.f32 %v2547, %v2586
      %v2591 = vmul.f32 %v2548, %v2586
      %v2592 = vmul.f32 %v2549, %v2586
      %v2593 = vmul.f32 %v2550, %v2586
      %v2594 = vmul.f32 %v2551, %v2586
      %v2595 = vmul.f32 %v2552, %v2586
      %v2596 = vmul.f32 %v2553, %v2586
      %v2597 = vmul.f32 %v2554, %v2586
      %v2598 = vmul.f32 %v2555, %v2586
      %v2599 = vmul.f32 %v2556, %v2586
      %v2600 = vmul.f32 %v2557, %v2586
      %v2601 = vmul.f32 %v2558, %v2586
      %v2602 = vmul.f32 %v2559, %v2586
      %v2603 = vmul.f32 %v2560, %v2586
      %v2604 = vmul.f32 %v2561, %v2586
      %v2605 = vmul.f32 %v2562, %v2586
      %v2606 = vmul.f32 %v2563, %v2586
      %v2607 = vmul.f32 %v2564, %v2586
      %v2608 = vmul.f32 %v2565, %v2586
      %v2609 = vmul.f32 %v2566, %v2586
      %v2610 = vmul.f32 %v2567, %v2586
      %v2611 = vmul.f32 %v2568, %v2586
      %v2612 = vmul.f32 %v2569, %v2586
      %v2613 = vmul.f32 %v2570, %v2586
      %v2614 = vmul.f32 %v2571, %v2586
      %v2615 = vmul.f32 %v2572, %v2586
      %v2616 = vmul.f32 %v2573, %v2586
      %v2617 = vmul.f32 %v2574, %v2586
      %v2618 = vmul.f32 %v2575, %v2586
      %v2619 = vmul.f32 %v2576, %v2586
      %v2620 = vmul.f32 %v2577, %v2586
      %v2621 = vmul.f32 %v2578, %v2586
      %v2622 = vmul.f32 %v2579, %v2586
      %v2623 = vmul.f32 %v2580, %v2586
      %v2624 = vmul.f32 %v2581, %v2586
      %v2625 = vmul.f32 %v2582, %v2586
      %v2626 = vmul.f32 %v2583, %v2586
      %v2627 = vld [vmem:[%s3] sm:$0x1]
      %v2629 = vperm.slane %v2627, 0
      %v2631 = vadd.f32 %v2588, %v2629
      %v2632 = vadd.f32 %v2589, %v2629
      %v2633 = vadd.f32 %v2590, %v2629
      %v2634 = vadd.f32 %v2591, %v2629
      %v2635 = vadd.f32 %v2592, %v2629
      %v2636 = vadd.f32 %v2593, %v2629
      %v2637 = vadd.f32 %v2594, %v2629
      %v2638 = vadd.f32 %v2595, %v2629
      %v2639 = vadd.f32 %v2596, %v2629
      %v2640 = vadd.f32 %v2597, %v2629
      %v2641 = vadd.f32 %v2598, %v2629
      %v2642 = vadd.f32 %v2599, %v2629
      %v2643 = vadd.f32 %v2600, %v2629
      %v2644 = vadd.f32 %v2601, %v2629
      %v2645 = vadd.f32 %v2602, %v2629
      %v2646 = vadd.f32 %v2603, %v2629
      %v2647 = vadd.f32 %v2604, %v2629
      %v2648 = vadd.f32 %v2605, %v2629
      %v2649 = vadd.f32 %v2606, %v2629
      %v2650 = vadd.f32 %v2607, %v2629
      %v2651 = vadd.f32 %v2608, %v2629
      %v2652 = vadd.f32 %v2609, %v2629
      %v2653 = vadd.f32 %v2610, %v2629
      %v2654 = vadd.f32 %v2611, %v2629
      %v2655 = vadd.f32 %v2612, %v2629
      %v2656 = vadd.f32 %v2613, %v2629
      %v2657 = vadd.f32 %v2614, %v2629
      %v2658 = vadd.f32 %v2615, %v2629
      %v2659 = vadd.f32 %v2616, %v2629
      %v2660 = vadd.f32 %v2617, %v2629
      %v2661 = vadd.f32 %v2618, %v2629
      %v2662 = vadd.f32 %v2619, %v2629
      %v2663 = vadd.f32 %v2620, %v2629
      %v2664 = vadd.f32 %v2621, %v2629
      %v2665 = vadd.f32 %v2622, %v2629
      %v2666 = vadd.f32 %v2623, %v2629
      %v2667 = vadd.f32 %v2624, %v2629
      %v2668 = vadd.f32 %v2625, %v2629
      %v2669 = vadd.f32 %v2626, %v2629
      %v2670 = vmax.f32 %v2631, 0.0
      %v2671 = vmax.f32 %v2632, 0.0
      %v2672 = vmax.f32 %v2633, 0.0
      %v2673 = vmax.f32 %v2634, 0.0
      %v2674 = vmax.f32 %v2635, 0.0
      %v2675 = vmax.f32 %v2636, 0.0
      %v2676 = vmax.f32 %v2637, 0.0
      %v2677 = vmax.f32 %v2638, 0.0
      %v2678 = vmax.f32 %v2639, 0.0
      %v2679 = vmax.f32 %v2640, 0.0
      %v2680 = vmax.f32 %v2641, 0.0
      %v2681 = vmax.f32 %v2642, 0.0
      %v2682 = vmax.f32 %v2643, 0.0
      %v2683 = vmax.f32 %v2644, 0.0
      %v2684 = vmax.f32 %v2645, 0.0
      %v2685 = vmax.f32 %v2646, 0.0
      %v2686 = vmax.f32 %v2647, 0.0
      %v2687 = vmax.f32 %v2648, 0.0
      %v2688 = vmax.f32 %v2649, 0.0
      %v2689 = vmax.f32 %v2650, 0.0
      %v2690 = vmax.f32 %v2651, 0.0
      %v2691 = vmax.f32 %v2652, 0.0
      %v2692 = vmax.f32 %v2653, 0.0
      %v2693 = vmax.f32 %v2654, 0.0
      %v2694 = vmax.f32 %v2655, 0.0
      %v2695 = vmax.f32 %v2656, 0.0
      %v2696 = vmax.f32 %v2657, 0.0
      %v2697 = vmax.f32 %v2658, 0.0
      %v2698 = vmax.f32 %v2659, 0.0
      %v2699 = vmax.f32 %v2660, 0.0
      %v2700 = vmax.f32 %v2661, 0.0
      %v2701 = vmax.f32 %v2662, 0.0
      %v2702 = vmax.f32 %v2663, 0.0
      %v2703 = vmax.f32 %v2664, 0.0
      %v2704 = vmax.f32 %v2665, 0.0
      %v2705 = vmax.f32 %v2666, 0.0
      %v2706 = vmax.f32 %v2667, 0.0
      %v2707 = vmax.f32 %v2668, 0.0
      %v2708 = vmax.f32 %v2669, 0.0
      %2709 = vst [vmem:[%s219] sm:$0xff] %v2670
      %2710 = vst [vmem:[%s219 + $0x8] sm:$0xff] %v2671
      %2711 = vst [vmem:[%s219 + $0x10] sm:$0xff] %v2672
      %2712 = vst [vmem:[%s219 + $0x18] sm:$0xff] %v2673
      %2713 = vst [vmem:[%s219 + $0x20] sm:$0xff] %v2674
      %2714 = vst [vmem:[%s219 + $0x28] sm:$0xff] %v2675
      %2715 = vst [vmem:[%s219 + $0x30] sm:$0xff] %v2676
      %2716 = vst [vmem:[%s219 + $0x38] sm:$0xff] %v2677
      %2717 = vst [vmem:[%s219 + $0x40] sm:$0xff] %v2678
      %2718 = vst [vmem:[%s219 + $0x48] sm:$0xff] %v2679
      %2719 = vst [vmem:[%s219 + $0x50] sm:$0xff] %v2680
      %2720 = vst [vmem:[%s219 + $0x58] sm:$0xff] %v2681
      %2721 = vst [vmem:[%s219 + $0x60] sm:$0xff] %v2682
      %2722 = vst [vmem:[%s219 + $0x68] sm:$0xff] %v2683
      %2723 = vst [vmem:[%s219 + $0x70] sm:$0xff] %v2684
      %2724 = vst [vmem:[%s219 + $0x78] sm:$0xff] %v2685
      %2725 = vst [vmem:[%s219 + $0x80] sm:$0xff] %v2686
      %2726 = vst [vmem:[%s219 + $0x88] sm:$0xff] %v2687
      %2727 = vst [vmem:[%s219 + $0x90] sm:$0xff] %v2688
      %2728 = vst [vmem:[%s219 + $0x98] sm:$0xff] %v2689
      %2729 = vst [vmem:[%s219 + $0xa0] sm:$0xff] %v2690
      %2730 = vst [vmem:[%s219 + $0xa8] sm:$0xff] %v2691
      %2731 = vst [vmem:[%s219 + $0xb0] sm:$0xff] %v2692
      %2732 = vst [vmem:[%s219 + $0xb8] sm:$0xff] %v2693
      %2733 = vst [vmem:[%s219 + $0xc0] sm:$0xff] %v2694
      %2734 = vst [vmem:[%s219 + $0xc8] sm:$0xff] %v2695
      %2735 = vst [vmem:[%s219 + $0xd0] sm:$0xff] %v2696
      %2736 = vst [vmem:[%s219 + $0xd8] sm:$0xff] %v2697
      %2737 = vst [vmem:[%s219 + $0xe0] sm:$0xff] %v2698
      %2738 = vst [vmem:[%s219 + $0xe8] sm:$0xff] %v2699
      %2739 = vst [vmem:[%s219 + $0xf0] sm:$0xff] %v2700
      %2740 = vst [vmem:[%s219 + $0xf8] sm:$0xff] %v2701
      %2741 = vst [vmem:[%s219 + $0x100] sm:$0xff] %v2702
      %2742 = vst [vmem:[%s219 + $0x108] sm:$0xff] %v2703
      %2743 = vst [vmem:[%s219 + $0x110] sm:$0xff] %v2704
      %2744 = vst [vmem:[%s219 + $0x118] sm:$0xff] %v2705
      %2745 = vst [vmem:[%s219 + $0x120] sm:$0xff] %v2706
      %2746 = vst [vmem:[%s219 + $0x128] sm:$0xff] %v2707
      %2747 = vst [vmem:[%s219 + $0x130] sm:$0xff] %v2708
      %s2748 = smul.u32 39, %s20
      %p2749 = scmp.lt.s32.totalorder %s19, 1
      %s2750 = scalar_select %p2749, %s19, 1
      %p2751 = scmp.lt.s32.totalorder %s2748, 38
      %s2752 = scalar_select %p2751, %s2748, 38
      %s2753 = smul.addr %s2750, 39
      %s2754 = sadd.s32 %s2752, %s2753
      %s2755 = smul.addr %s2754, 8
      %s2756 = scalar_lea.vmem %s4, %s2755
      // Predicated region
      $region37: #{facenet_forward.8} parent=35 // pred_check
        %p2757 = pneg %p136
      $region38: #{facenet_forward.8} parent=35 // pred_check_branch
        %2759 = sbr.rel (%p2757) target = $region40
      $region39: #{facenet_forward.8} parent=35 // pred_region
        %s2760 = smul.u32 39, %s20
      $region40: #{facenet_forward.8} parent=35 // pred_fallthru
        _
    $region36: #{facenet_forward.8} parent=5 // pred_fallthru
      _
    %p2761 = scmp.le.s32.totalorder 2, %s10
    // Predicated region
    $region41: #{facenet_forward.8} parent=5 // pred_check
      %p2762 = pneg %p2761
    $region42: #{facenet_forward.8} parent=5 // pred_check_branch
      %2764 = sbr.rel (%p2762) target = $region44
    $region43: #{facenet_forward.8} parent=5 // pred_region
      %s2765 = ssub.s32 %s10, 2
      // Predicated region
      $region45: #{facenet_forward.8} parent=43 // pred_check
        %p2766 = pneg %p142
      $region46: #{facenet_forward.8} parent=43 // pred_check_branch
        %2768 = sbr.rel (%p2766) target = $region48
      $region47: #{facenet_forward.8} parent=43 // pred_region
        %s2769 = smul.u32 39, %s22
        %p2770 = scmp.lt.s32.totalorder %s21, 1
        %s2771 = scalar_select %p2770, %s21, 1
        %p2772 = scmp.lt.s32.totalorder %s2769, 38
        %s2773 = scalar_select %p2772, %s2769, 38
        %s2774 = smul.addr %s2771, 39
        %s2775 = sadd.s32 %s2773, %s2774
        %s2776 = smul.addr %s2775, 8
        %s2777 = scalar_lea.vmem %s4, %s2776
      $region48: #{facenet_forward.8} parent=43 // pred_fallthru
        _
    $region44: #{facenet_forward.8} parent=5 // pred_fallthru
      _
  $region6: #{facenet_forward.8} parent=0 // loop_footer
    %s14 = sadd.s32 1, %s10
  $region7: #{facenet_forward.8} parent=0 // loop_footer_branch
    %9 = sbr.rel target = $region3
  $region8: #{facenet_forward.8} parent=0 // loop_exit
    _

// kernel: facenet_forward.9
$region0: #{facenet_forward.9}
  #allocation0 [shape = 'u32[]', space=smem, size = 0x4, offset = 0x4, fixed_abs, tag = 'smem constant byte address 0x4 - core index']
  #allocation1 [shape = 'u32[72,128]{1,0:T(1,128)}', space=vmem, size = 0x9000, scoped, tag = 'internal scratch']
  %s0 = inlined_call_operand.vmem [shape: f32[2,1,296,128], index: 0, kind: input, shape index: {}]
  %s1 = inlined_call_operand.vmem [shape: bf16[9,128,128], index: 1, kind: input, shape index: {}]
  %s2 = inlined_call_operand.vmem [shape: f32[1,128], index: 2, kind: input, shape index: {}]
  %s3 = inlined_call_operand.vmem [shape: f32[1,128], index: 3, kind: input, shape index: {}]
  %s4 = inlined_call_operand.vmem [shape: f32[2,256,128], index: 4, kind: output, shape index: {}]
  %s5 = sld [smem:[#allocation0]]
  $region49: #{facenet_forward.9} parent=0
    _
  %s7 = ssub.s32 1, %s5
  %s8 = scalar_select 0, %s7, %s5
  loop: start=0, step=1, limit=4
  $region2: #{facenet_forward.9} parent=0 // loop_pre_header
    _
  $region3: #{facenet_forward.9} parent=0 // loop_header
    %s10 = sphi 0, %s14
    %p11 = scmp.ge.s32.totalorder %s10, 4
    %s17 = sphi 0, %s29
    %s18 = sphi 0, %s25
    %s19 = sphi 0, %s17
    %s20 = sphi 0, %s18
    %s21 = sphi 0, %s19
    %s22 = sphi 0, %s20
    %s32 = sphi 0, %s34
    %s35 = sphi 0, %s32
    %s36 = sphi 0, %s35
    %s52 = sphi 0, %s36
    %s56 = sphi 0, %s56
    %s58 = sphi 0, %s56
    %s59 = sphi 0, %s58
    %s73 = sphi 0, %s59
    %s77 = sphi 0, %s77
    %s79 = sphi 0, %s77
    %s80 = sphi 0, %s79
    %s94 = sphi 0, %s80
    %s98 = sphi 0, %s98
    %s100 = sphi 0, %s98
    %s101 = sphi 0, %s100
    %s115 = sphi 0, %s101
    %s123 = sphi 0, %s125
    %s126 = sphi 0, %s123
    %s127 = sphi 0, %s126
    %s143 = sphi 0, %s127
  $region4: #{facenet_forward.9} parent=0 // loop_header_branch
    %13 = sbr.rel (%p11) target = $region8
  $region5: #{facenet_forward.9} parent=0 // loop_body
    %s15 = ssub.s32 %s10, 1
    %s16 = ssub.s32 %s10, 2
    %s23 = sadd.s32 1, %s18
    %p24 = scmp.ge.s32.totalorder %s23, 1
    %s25 = scalar_select %p24, 0, %s23
    %s26 = sadd.s32 1, %s17
    %s27 = scalar_select %p24, %s26, %s17
    %p28 = scmp.ge.s32.totalorder %s27, 2
    %s29 = scalar_select %p28, 0, %s27
    %s30 = ssub.s32 %s17, %s29
    %p31 = scmp.eq.s32.totalorder %s30, 0
    %s33 = sadd.s32 %s32, 1
    %s34 = scalar_select %p31, %s32, %s33
    %p37 = pneg %p31
    %p38 = scmp.eq.s32.totalorder %s10, 1
    %p39 = por %p37, %p38
    %p40 = scmp.ne.s32.totalorder %s32, %s35
    %p41 = scmp.eq.s32.totalorder %s10, 0
    %p42 = por %p40, %p41
    %p43 = scmp.ne.s32.totalorder %s32, %s35
    %p44 = scmp.eq.s32.totalorder %s15, 1
    %p45 = por %p43, %p44
    %p46 = scmp.ne.s32.totalorder %s35, %s36
    %p47 = scmp.eq.s32.totalorder %s15, 0
    %p48 = por %p46, %p47
    %p49 = scmp.ne.s32.totalorder %s35, %s36
    %p50 = scmp.eq.s32.totalorder %s16, 1
    %p51 = por %p49, %p50
    %p53 = scmp.ne.s32.totalorder %s36, %s52
    %p54 = scmp.eq.s32.totalorder %s16, 0
    %p55 = por %p53, %p54
    %s57 = sadd.s32 %s56, 1
    %p60 = scmp.eq.s32.totalorder %s10, 1
    %p61 = scmp.ne.s32.totalorder %s56, %s58
    %p62 = scmp.eq.s32.totalorder %s10, 0
    %p63 = por %p61, %p62
    %p64 = scmp.ne.s32.totalorder %s56, %s58
    %p65 = scmp.eq.s32.totalorder %s15, 1
    %p66 = por %p64, %p65
    %p67 = scmp.ne.s32.totalorder %s58, %s59
    %p68 = scmp.eq.s32.totalorder %s15, 0
    %p69 = por %p67, %p68
    %p70 = scmp.ne.s32.totalorder %s58, %s59
    %p71 = scmp.eq.s32.totalorder %s16, 1
    %p72 = por %p70, %p71
    %p74 = scmp.ne.s32.totalorder %s59, %s73
    %p75 = scmp.eq.s32.totalorder %s16, 0
    %p76 = por %p74, %p75
    %s78 = sadd.s32 %s77, 1
    %p81 = scmp.eq.s32.totalorder %s10, 1
    %p82 = scmp.ne.s32.totalorder %s77, %s79
    %p83 = scmp.eq.s32.totalorder %s10, 0
    %p84 = por %p82, %p83
    %p85 = scmp.ne.s32.totalorder %s77, %s79
    %p86 = scmp.eq.s32.totalorder %s15, 1
    %p87 = por %p85, %p86
    %p88 = scmp.ne.s32.totalorder %s79, %s80
    %p89 = scmp.eq.s32.totalorder %s15, 0
    %p90 = por %p88, %p89
    %p91 = scmp.ne.s32.totalorder %s79, %s80
    %p92 = scmp.eq.s32.totalorder %s16, 1
    %p93 = por %p91, %p92
    %p95 = scmp.ne.s32.totalorder %s80, %s94
    %p96 = scmp.eq.s32.totalorder %s16, 0
    %p97 = por %p95, %p96
    %s99 = sadd.s32 %s98, 1
    %p102 = scmp.eq.s32.totalorder %s10, 1
    %p103 = scmp.ne.s32.totalorder %s98, %s100
    %p104 = scmp.eq.s32.totalorder %s10, 0
    %p105 = por %p103, %p104
    %p106 = scmp.ne.s32.totalorder %s98, %s100
    %p107 = scmp.eq.s32.totalorder %s15, 1
    %p108 = por %p106, %p107
    %p109 = scmp.ne.s32.totalorder %s100, %s101
    %p110 = scmp.eq.s32.totalorder %s15, 0
    %p111 = por %p109, %p110
    %p112 = scmp.ne.s32.totalorder %s100, %s101
    %p113 = scmp.eq.s32.totalorder %s16, 1
    %p114 = por %p112, %p113
    %p116 = scmp.ne.s32.totalorder %s101, %s115
    %p117 = scmp.eq.s32.totalorder %s16, 0
    %p118 = por %p116, %p117
    %s119 = ssub.s32 %s17, %s29
    %s120 = ssub.s32 %s18, %s25
    %s121 = sor.u32 %s119, %s120
    %p122 = scmp.eq.s32.totalorder %s121, 0
    %s124 = sadd.s32 %s123, 1
    %s125 = scalar_select %p122, %s123, %s124
    %p128 = pneg %p122
    %p129 = scmp.eq.s32.totalorder %s10, 1
    %p130 = por %p128, %p129
    %p131 = scmp.ne.s32.totalorder %s123, %s126
    %p132 = scmp.eq.s32.totalorder %s10, 0
    %p133 = por %p131, %p132
    %p134 = scmp.ne.s32.totalorder %s123, %s126
    %p135 = scmp.eq.s32.totalorder %s15, 1
    %p136 = por %p134, %p135
    %p137 = scmp.ne.s32.totalorder %s126, %s127
    %p138 = scmp.eq.s32.totalorder %s15, 0
    %p139 = por %p137, %p138
    %p140 = scmp.ne.s32.totalorder %s126, %s127
    %p141 = scmp.eq.s32.totalorder %s16, 1
    %p142 = por %p140, %p141
    %p144 = scmp.ne.s32.totalorder %s127, %s143
    %p145 = scmp.eq.s32.totalorder %s16, 0
    %p146 = por %p144, %p145
    %p147 = scmp.le.s32.totalorder 1, %s10
    %p148 = scmp.lt.s32.totalorder %s10, 3
    %p149 = pnand %p147, %p148
    %p150 = pneg %p149
    // Predicated region
    $region9: #{facenet_forward.9} parent=5 // pred_check
      _
    $region10: #{facenet_forward.9} parent=5 // pred_check_branch
      %152 = sbr.rel (%p149) target = $region12
    $region11: #{facenet_forward.9} parent=5 // pred_region
      %s153 = ssub.s32 %s10, 1
      // Predicated region
      $region13: #{facenet_forward.9} parent=11 // pred_check
        %p154 = pneg %p69
      $region14: #{facenet_forward.9} parent=11 // pred_check_branch
        %156 = sbr.rel (%p154) target = $region16
      $region15: #{facenet_forward.9} parent=11 // pred_region
        _
      $region16: #{facenet_forward.9} parent=11 // pred_fallthru
        _
      // Predicated region
      $region17: #{facenet_forward.9} parent=11 // pred_check
        %p157 = pneg %p90
      $region18: #{facenet_forward.9} parent=11 // pred_check_branch
        %159 = sbr.rel (%p157) target = $region20
      $region19: #{facenet_forward.9} parent=11 // pred_region
        _
      $region20: #{facenet_forward.9} parent=11 // pred_fallthru
        _
      // Predicated region
      $region21: #{facenet_forward.9} parent=11 // pred_check
        %p160 = pneg %p111
      $region22: #{facenet_forward.9} parent=11 // pred_check_branch
        %162 = sbr.rel (%p160) target = $region24
      $region23: #{facenet_forward.9} parent=11 // pred_region
        _
      $region24: #{facenet_forward.9} parent=11 // pred_fallthru
        _
    $region12: #{facenet_forward.9} parent=5 // pred_fallthru
      _
    %p163 = scmp.lt.s32.totalorder %s10, 2
    // Predicated region
    $region25: #{facenet_forward.9} parent=5 // pred_check
      %p164 = pneg %p163
    $region26: #{facenet_forward.9} parent=5 // pred_check_branch
      %166 = sbr.rel (%p164) target = $region28
    $region27: #{facenet_forward.9} parent=5 // pred_region
      // Predicated region
      $region29: #{facenet_forward.9} parent=27 // pred_check
        %p167 = pneg %p42
      $region30: #{facenet_forward.9} parent=27 // pred_check_branch
        %169 = sbr.rel (%p167) target = $region32
      $region31: #{facenet_forward.9} parent=27 // pred_region
        %p170 = scmp.lt.s32.totalorder %s17, 1
        %s171 = scalar_select %p170, %s17, 1
        %s172 = smul.addr %s171, 37
        %s173 = smul.addr %s172, 8
        %s174 = scalar_lea.vmem %s0, %s173
      $region32: #{facenet_forward.9} parent=27 // pred_fallthru
        _
    $region28: #{facenet_forward.9} parent=5 // pred_fallthru
      _
    %p175 = scmp.le.s32.totalorder 1, %s10
    %p176 = scmp.lt.s32.totalorder %s10, 3
    %p177 = pnand %p175, %p176
    %p178 = pneg %p177
    // Predicated region
    $region33: #{facenet_forward.9} parent=5 // pred_check
      _
    $region34: #{facenet_forward.9} parent=5 // pred_check_branch
      %180 = sbr.rel (%p177) target = $region36
    $region35: #{facenet_forward.9} parent=5 // pred_region
      %s181 = ssub.s32 %s10, 1
      %p182 = scmp.lt.s32.totalorder %s19, 1
      %s183 = scalar_select %p182, %s19, 1
      %s184 = smul.addr %s183, 37
      %s185 = smul.addr %s184, 8
      %s186 = scalar_lea.vmem %s0, %s185
      %p187 = pneg %p48
      %p188 = pneg %p45
      %p189 = pneg %p69
      %p190 = pneg %p66
      %p191 = pneg %p90
      %p192 = pneg %p87
      %p193 = pneg %p111
      %p194 = pneg %p108
      %p195 = pneg %p139
      %p196 = pneg %p136
      %s197 = smul.u32 32, %s20
      %p198 = scmp.lt.s32.totalorder %s19, 1
      %s199 = scalar_select %p198, %s19, 1
      %p200 = scmp.lt.s32.totalorder %s197, 31
      %s201 = scalar_select %p200, %s197, 31
      %s202 = smul.addr %s199, 32
      %s203 = sadd.s32 %s201, %s202
      %s204 = smul.addr %s203, 8
      %s205 = scalar_lea.vmem %s4, %s204
      %p206 = scmp.lt.s32.totalorder %s19, 1
      %s207 = scalar_select %p206, %s19, 1
      %s208 = smul.addr %s207, 37
      %s209 = smul.addr %s208, 8
      %s210 = scalar_lea.vmem %s0, %s209
      %s211 = smul.u32 32, %s20
      %p212 = scmp.lt.s32.totalorder %s19, 1
      %s213 = scalar_select %p212, %s19, 1
      %p214 = scmp.lt.s32.totalorder %s211, 31
      %s215 = scalar_select %p214, %s211, 31
      %s216 = smul.addr %s213, 32
      %s217 = sadd.s32 %s215, %s216
      %s218 = smul.addr %s217, 8
      %s219 = scalar_lea.vmem %s4, %s218
      %s220 = smul.u32 32, %s20
      %v221 = vld [vmem:[%s210] sm:$0xff]
      %v222 = vld [vmem:[%s210 + $0x8] sm:$0xff]
      %v223 = vld [vmem:[%s210 + $0x10] sm:$0xff]
      %v224 = vld [vmem:[%s210 + $0x18] sm:$0xff]
      %v225 = vld [vmem:[%s210 + $0x20] sm:$0xff]
      %v226 = vld [vmem:[%s210 + $0x28] sm:$0xff]
      %v227 = vld [vmem:[%s210 + $0x30] sm:$0xff]
      %v228 = vld [vmem:[%s210 + $0x38] sm:$0xff]
      %v229 = vld [vmem:[%s210 + $0x40] sm:$0xff]
      %v230 = vld [vmem:[%s210 + $0x48] sm:$0xff]
      %v231 = vld [vmem:[%s210 + $0x50] sm:$0xff]
      %v232 = vld [vmem:[%s210 + $0x58] sm:$0xff]
      %v233 = vld [vmem:[%s210 + $0x60] sm:$0xff]
      %v234 = vld [vmem:[%s210 + $0x68] sm:$0xff]
      %v235 = vld [vmem:[%s210 + $0x70] sm:$0xff]
      %v236 = vld [vmem:[%s210 + $0x78] sm:$0xff]
      %v237 = vld [vmem:[%s210 + $0x80] sm:$0xff]
      %v238 = vld [vmem:[%s210 + $0x88] sm:$0xff]
      %v239 = vld [vmem:[%s210 + $0x90] sm:$0xff]
      %v240 = vld [vmem:[%s210 + $0x98] sm:$0xff]
      %v241 = vld [vmem:[%s210 + $0xa0] sm:$0xff]
      %v242 = vld [vmem:[%s210 + $0xa8] sm:$0xff]
      %v243 = vld [vmem:[%s210 + $0xb0] sm:$0xff]
      %v244 = vld [vmem:[%s210 + $0xb8] sm:$0xff]
      %v245 = vld [vmem:[%s210 + $0xc0] sm:$0xff]
      %v246 = vld [vmem:[%s210 + $0xc8] sm:$0xff]
      %v247 = vld [vmem:[%s210 + $0xd0] sm:$0xff]
      %v248 = vld [vmem:[%s210 + $0xd8] sm:$0xff]
      %v249 = vld [vmem:[%s210 + $0xe0] sm:$0xff]
      %v250 = vld [vmem:[%s210 + $0xe8] sm:$0xff]
      %v251 = vld [vmem:[%s210 + $0xf0] sm:$0xff]
      %v252 = vld [vmem:[%s210 + $0xf8] sm:$0xff]
      %v253 = vpack.c.bf16 %v222, %v221
      %v254 = vpack.c.bf16 %v224, %v223
      %v255 = vpack.c.bf16 %v226, %v225
      %v256 = vpack.c.bf16 %v228, %v227
      %v257 = vpack.c.bf16 %v230, %v229
      %v258 = vpack.c.bf16 %v232, %v231
      %v259 = vpack.c.bf16 %v234, %v233
      %v260 = vpack.c.bf16 %v236, %v235
      %v261 = vpack.c.bf16 %v238, %v237
      %v262 = vpack.c.bf16 %v240, %v239
      %v263 = vpack.c.bf16 %v242, %v241
      %v264 = vpack.c.bf16 %v244, %v243
      %v265 = vpack.c.bf16 %v246, %v245
      %v266 = vpack.c.bf16 %v248, %v247
      %v267 = vpack.c.bf16 %v250, %v249
      %v268 = vpack.c.bf16 %v252, %v251
      %v269 = vld [vmem:[%s1] sm:$0xf]
      %v270 = vld [vmem:[%s1 + $0x4] sm:$0xf]
      %v271 = vld [vmem:[%s1 + $0x8] sm:$0xf]
      %v272 = vld [vmem:[%s1 + $0xc] sm:$0xf]
      %v273 = vld [vmem:[%s1 + $0x10] sm:$0xf]
      %v274 = vld [vmem:[%s1 + $0x14] sm:$0xf]
      %v275 = vld [vmem:[%s1 + $0x18] sm:$0xf]
      %v276 = vld [vmem:[%s1 + $0x1c] sm:$0xf]
      %v277 = vld [vmem:[%s1 + $0x20] sm:$0xf]
      %v278 = vld [vmem:[%s1 + $0x24] sm:$0xf]
      %v279 = vld [vmem:[%s1 + $0x28] sm:$0xf]
      %v280 = vld [vmem:[%s1 + $0x2c] sm:$0xf]
      %v281 = vld [vmem:[%s1 + $0x30] sm:$0xf]
      %v282 = vld [vmem:[%s1 + $0x34] sm:$0xf]
      %v283 = vld [vmem:[%s1 + $0x38] sm:$0xf]
      %v284 = vld [vmem:[%s1 + $0x3c] sm:$0xf]
      %v285 = vld [vmem:[%s210 + $0x1] sm:$0xff]
      %v286 = vld [vmem:[%s210 + $0x9] sm:$0xff]
      %v287 = vld [vmem:[%s210 + $0x11] sm:$0xff]
      %v288 = vld [vmem:[%s210 + $0x19] sm:$0xff]
      %v289 = vld [vmem:[%s210 + $0x21] sm:$0xff]
      %v290 = vld [vmem:[%s210 + $0x29] sm:$0xff]
      %v291 = vld [vmem:[%s210 + $0x31] sm:$0xff]
      %v292 = vld [vmem:[%s210 + $0x39] sm:$0xff]
      %v293 = vld [vmem:[%s210 + $0x41] sm:$0xff]
      %v294 = vld [vmem:[%s210 + $0x49] sm:$0xff]
      %v295 = vld [vmem:[%s210 + $0x51] sm:$0xff]
      %v296 = vld [vmem:[%s210 + $0x59] sm:$0xff]
      %v297 = vld [vmem:[%s210 + $0x61] sm:$0xff]
      %v298 = vld [vmem:[%s210 + $0x69] sm:$0xff]
      %v299 = vld [vmem:[%s210 + $0x71] sm:$0xff]
      %v300 = vld [vmem:[%s210 + $0x79] sm:$0xff]
      %v301 = vld [vmem:[%s210 + $0x81] sm:$0xff]
      %v302 = vld [vmem:[%s210 + $0x89] sm:$0xff]
      %v303 = vld [vmem:[%s210 + $0x91] sm:$0xff]
      %v304 = vld [vmem:[%s210 + $0x99] sm:$0xff]
      %v305 = vld [vmem:[%s210 + $0xa1] sm:$0xff]
      %v306 = vld [vmem:[%s210 + $0xa9] sm:$0xff]
      %v307 = vld [vmem:[%s210 + $0xb1] sm:$0xff]
      %v308 = vld [vmem:[%s210 + $0xb9] sm:$0xff]
      %v309 = vld [vmem:[%s210 + $0xc1] sm:$0xff]
      %v310 = vld [vmem:[%s210 + $0xc9] sm:$0xff]
      %v311 = vld [vmem:[%s210 + $0xd1] sm:$0xff]
      %v312 = vld [vmem:[%s210 + $0xd9] sm:$0xff]
      %v313 = vld [vmem:[%s210 + $0xe1] sm:$0xff]
      %v314 = vld [vmem:[%s210 + $0xe9] sm:$0xff]
      %v315 = vld [vmem:[%s210 + $0xf1] sm:$0xff]
      %v316 = vld [vmem:[%s210 + $0xf9] sm:$0xff]
      %v317 = vpack.c.bf16 %v286, %v285
      %v318 = vpack.c.bf16 %v288, %v287
      %v319 = vpack.c.bf16 %v290, %v289
      %v320 = vpack.c.bf16 %v292, %v291
      %v321 = vpack.c.bf16 %v294, %v293
      %v322 = vpack.c.bf16 %v296, %v295
      %v323 = vpack.c.bf16 %v298, %v297
      %v324 = vpack.c.bf16 %v300, %v299
      %v325 = vpack.c.bf16 %v302, %v301
      %v326 = vpack.c.bf16 %v304, %v303
      %v327 = vpack.c.bf16 %v306, %v305
      %v328 = vpack.c.bf16 %v308, %v307
      %v329 = vpack.c.bf16 %v310, %v309
      %v330 = vpack.c.bf16 %v312, %v311
      %v331 = vpack.c.bf16 %v314, %v313
      %v332 = vpack.c.bf16 %v316, %v315
      %s333 = scalar_lea.vmem %s1, 64
      %v334 = vld [vmem:[%s333] sm:$0xf]
      %v335 = vld [vmem:[%s333 + $0x4] sm:$0xf]
      %v336 = vld [vmem:[%s333 + $0x8] sm:$0xf]
      %v337 = vld [vmem:[%s333 + $0xc] sm:$0xf]
      %v338 = vld [vmem:[%s333 + $0x10] sm:$0xf]
      %v339 = vld [vmem:[%s333 + $0x14] sm:$0xf]
      %v340 = vld [vmem:[%s333 + $0x18] sm:$0xf]
      %v341 = vld [vmem:[%s333 + $0x1c] sm:$0xf]
      %v342 = vld [vmem:[%s333 + $0x20] sm:$0xf]
      %v343 = vld [vmem:[%s333 + $0x24] sm:$0xf]
      %v344 = vld [vmem:[%s333 + $0x28] sm:$0xf]
      %v345 = vld [vmem:[%s333 + $0x2c] sm:$0xf]
      %v346 = vld [vmem:[%s333 + $0x30] sm:$0xf]
      %v347 = vld [vmem:[%s333 + $0x34] sm:$0xf]
      %v348 = vld [vmem:[%s333 + $0x38] sm:$0xf]
      %v349 = vld [vmem:[%s333 + $0x3c] sm:$0xf]
      %v366 = vunpack.c.l.b16 %v334
      %v367 = vunpack.c.l.b16 %v335
      %v368 = vunpack.c.l.b16 %v336
      %v369 = vunpack.c.l.b16 %v337
      %v370 = vunpack.c.l.b16 %v338
      %v371 = vunpack.c.l.b16 %v339
      %v372 = vunpack.c.l.b16 %v340
      %v373 = vunpack.c.l.b16 %v341
      %v374 = vunpack.c.l.b16 %v342
      %v375 = vunpack.c.l.b16 %v343
      %v376 = vunpack.c.l.b16 %v344
      %v377 = vunpack.c.l.b16 %v345
      %v378 = vunpack.c.l.b16 %v346
      %v379 = vunpack.c.l.b16 %v347
      %v380 = vunpack.c.l.b16 %v348
      %v381 = vunpack.c.l.b16 %v349
      %v382 = vpack.c.b16 %v367, %v366
      %v383 = vpack.c.b16 %v369, %v368
      %v384 = vpack.c.b16 %v371, %v370
      %v385 = vpack.c.b16 %v373, %v372
      %v386 = vpack.c.b16 %v375, %v374
      %v387 = vpack.c.b16 %v377, %v376
      %v388 = vpack.c.b16 %v379, %v378
      %v389 = vpack.c.b16 %v381, %v380
      %398 = vmatpush.bf16.msra.mxu0 %v389
      %399 = vmatpush.bf16.msra.mxu0 %v388
      %400 = vmatpush.bf16.msra.mxu0 %v387
      %401 = vmatpush.bf16.msra.mxu0 %v386
      %402 = vmatpush.bf16.msra.mxu0 %v385
      %403 = vmatpush.bf16.msra.mxu0 %v384
      %404 = vmatpush.bf16.msra.mxu0 %v383
      %405 = vmatpush.bf16.msra.mxu0 %v382
      %406 = vmatmul.bf16.gmra.mxu0 %v317
      %v407 = vpop.f32.mrf.mxu0
      %v408 = vadd.f32 0.0, %v407
      %v409 = vpop.f32.mrf.mxu0
      %v410 = vadd.f32 0.0, %v409
      %411 = vmatmul.bf16.gmra.mxu0 %v318
      %v412 = vpop.f32.mrf.mxu0
      %v413 = vadd.f32 0.0, %v412
      %v414 = vpop.f32.mrf.mxu0
      %v415 = vadd.f32 0.0, %v414
      %416 = vmatmul.bf16.gmra.mxu0 %v319
      %v417 = vpop.f32.mrf.mxu0
      %v418 = vadd.f32 0.0, %v417
      %v419 = vpop.f32.mrf.mxu0
      %v420 = vadd.f32 0.0, %v419
      %421 = vmatmul.bf16.gmra.mxu0 %v320
      %v422 = vpop.f32.mrf.mxu0
      %v423 = vadd.f32 0.0, %v422
      %v424 = vpop.f32.mrf.mxu0
      %v425 = vadd.f32 0.0, %v424
      %426 = vmatmul.bf16.gmra.mxu0 %v321
      %v427 = vpop.f32.mrf.mxu0
      %v428 = vadd.f32 0.0, %v427
      %v429 = vpop.f32.mrf.mxu0
      %v430 = vadd.f32 0.0, %v429
      %431 = vmatmul.bf16.gmra.mxu0 %v322
      %v432 = vpop.f32.mrf.mxu0
      %v433 = vadd.f32 0.0, %v432
      %v434 = vpop.f32.mrf.mxu0
      %v435 = vadd.f32 0.0, %v434
      %436 = vmatmul.bf16.gmra.mxu0 %v323
      %v437 = vpop.f32.mrf.mxu0
      %v438 = vadd.f32 0.0, %v437
      %v439 = vpop.f32.mrf.mxu0
      %v440 = vadd.f32 0.0, %v439
      %441 = vmatmul.bf16.gmra.mxu0 %v324
      %v442 = vpop.f32.mrf.mxu0
      %v443 = vadd.f32 0.0, %v442
      %v444 = vpop.f32.mrf.mxu0
      %v445 = vadd.f32 0.0, %v444
      %446 = vmatmul.bf16.gmra.mxu0 %v325
      %v447 = vpop.f32.mrf.mxu0
      %v448 = vadd.f32 0.0, %v447
      %v449 = vpop.f32.mrf.mxu0
      %v450 = vadd.f32 0.0, %v449
      %451 = vmatmul.bf16.gmra.mxu0 %v326
      %v452 = vpop.f32.mrf.mxu0
      %v453 = vadd.f32 0.0, %v452
      %v454 = vpop.f32.mrf.mxu0
      %v455 = vadd.f32 0.0, %v454
      %456 = vmatmul.bf16.gmra.mxu0 %v327
      %v457 = vpop.f32.mrf.mxu0
      %v458 = vadd.f32 0.0, %v457
      %v459 = vpop.f32.mrf.mxu0
      %v460 = vadd.f32 0.0, %v459
      %461 = vmatmul.bf16.gmra.mxu0 %v328
      %v462 = vpop.f32.mrf.mxu0
      %v463 = vadd.f32 0.0, %v462
      %v464 = vpop.f32.mrf.mxu0
      %v465 = vadd.f32 0.0, %v464
      %466 = vmatmul.bf16.gmra.mxu0 %v329
      %v467 = vpop.f32.mrf.mxu0
      %v468 = vadd.f32 0.0, %v467
      %v469 = vpop.f32.mrf.mxu0
      %v470 = vadd.f32 0.0, %v469
      %471 = vmatmul.bf16.gmra.mxu0 %v330
      %v472 = vpop.f32.mrf.mxu0
      %v473 = vadd.f32 0.0, %v472
      %v474 = vpop.f32.mrf.mxu0
      %v475 = vadd.f32 0.0, %v474
      %476 = vmatmul.bf16.gmra.mxu0 %v331
      %v477 = vpop.f32.mrf.mxu0
      %v478 = vadd.f32 0.0, %v477
      %v479 = vpop.f32.mrf.mxu0
      %v480 = vadd.f32 0.0, %v479
      %481 = vmatmul.bf16.gmra.mxu0 %v332
      %v482 = vpop.f32.mrf.mxu0
      %v483 = vadd.f32 0.0, %v482
      %v484 = vpop.f32.mrf.mxu0
      %v485 = vadd.f32 0.0, %v484
      %486 = vdwg.mxu0
      %v503 = vunpack.c.l.b16 %v269
      %v504 = vunpack.c.l.b16 %v270
      %v505 = vunpack.c.l.b16 %v271
      %v506 = vunpack.c.l.b16 %v272
      %v507 = vunpack.c.l.b16 %v273
      %v508 = vunpack.c.l.b16 %v274
      %v509 = vunpack.c.l.b16 %v275
      %v510 = vunpack.c.l.b16 %v276
      %v511 = vunpack.c.l.b16 %v277
      %v512 = vunpack.c.l.b16 %v278
      %v513 = vunpack.c.l.b16 %v279
      %v514 = vunpack.c.l.b16 %v280
      %v515 = vunpack.c.l.b16 %v281
      %v516 = vunpack.c.l.b16 %v282
      %v517 = vunpack.c.l.b16 %v283
      %v518 = vunpack.c.l.b16 %v284
      %v519 = vpack.c.b16 %v504, %v503
      %v520 = vpack.c.b16 %v506, %v505
      %v521 = vpack.c.b16 %v508, %v507
      %v522 = vpack.c.b16 %v510, %v509
      %v523 = vpack.c.b16 %v512, %v511
      %v524 = vpack.c.b16 %v514, %v513
      %v525 = vpack.c.b16 %v516, %v515
      %v526 = vpack.c.b16 %v518, %v517
      %535 = vmatpush.bf16.msra.mxu0 %v526
      %536 = vmatpush.bf16.msra.mxu0 %v525
      %537 = vmatpush.bf16.msra.mxu0 %v524
      %538 = vmatpush.bf16.msra.mxu0 %v523
      %539 = vmatpush.bf16.msra.mxu0 %v522
      %540 = vmatpush.bf16.msra.mxu0 %v521
      %541 = vmatpush.bf16.msra.mxu0 %v520
      %542 = vmatpush.bf16.msra.mxu0 %v519
      %543 = vmatmul.bf16.gmra.mxu0 %v253
      %v544 = vpop.f32.mrf.mxu0
      %v545 = vadd.f32 %v408, %v544
      %v546 = vpop.f32.mrf.mxu0
      %v547 = vadd.f32 %v410, %v546
      %548 = vmatmul.bf16.gmra.mxu0 %v254
      %v549 = vpop.f32.mrf.mxu0
      %v550 = vadd.f32 %v413, %v549
      %v551 = vpop.f32.mrf.mxu0
      %v552 = vadd.f32 %v415, %v551
      %553 = vmatmul.bf16.gmra.mxu0 %v255
      %v554 = vpop.f32.mrf.mxu0
      %v555 = vadd.f32 %v418, %v554
      %v556 = vpop.f32.mrf.mxu0
      %v557 = vadd.f32 %v420, %v556
      %558 = vmatmul.bf16.gmra.mxu0 %v256
      %v559 = vpop.f32.mrf.mxu0
      %v560 = vadd.f32 %v423, %v559
      %v561 = vpop.f32.mrf.mxu0
      %v562 = vadd.f32 %v425, %v561
      %563 = vmatmul.bf16.gmra.mxu0 %v257
      %v564 = vpop.f32.mrf.mxu0
      %v565 = vadd.f32 %v428, %v564
      %v566 = vpop.f32.mrf.mxu0
      %v567 = vadd.f32 %v430, %v566
      %568 = vmatmul.bf16.gmra.mxu0 %v258
      %v569 = vpop.f32.mrf.mxu0
      %v570 = vadd.f32 %v433, %v569
      %v571 = vpop.f32.mrf.mxu0
      %v572 = vadd.f32 %v435, %v571
      %573 = vmatmul.bf16.gmra.mxu0 %v259
      %v574 = vpop.f32.mrf.mxu0
      %v575 = vadd.f32 %v438, %v574
      %v576 = vpop.f32.mrf.mxu0
      %v577 = vadd.f32 %v440, %v576
      %578 = vmatmul.bf16.gmra.mxu0 %v260
      %v579 = vpop.f32.mrf.mxu0
      %v580 = vadd.f32 %v443, %v579
      %v581 = vpop.f32.mrf.mxu0
      %v582 = vadd.f32 %v445, %v581
      %583 = vmatmul.bf16.gmra.mxu0 %v261
      %v584 = vpop.f32.mrf.mxu0
      %v585 = vadd.f32 %v448, %v584
      %v586 = vpop.f32.mrf.mxu0
      %v587 = vadd.f32 %v450, %v586
      %588 = vmatmul.bf16.gmra.mxu0 %v262
      %v589 = vpop.f32.mrf.mxu0
      %v590 = vadd.f32 %v453, %v589
      %v591 = vpop.f32.mrf.mxu0
      %v592 = vadd.f32 %v455, %v591
      %593 = vmatmul.bf16.gmra.mxu0 %v263
      %v594 = vpop.f32.mrf.mxu0
      %v595 = vadd.f32 %v458, %v594
      %v596 = vpop.f32.mrf.mxu0
      %v597 = vadd.f32 %v460, %v596
      %598 = vmatmul.bf16.gmra.mxu0 %v264
      %v599 = vpop.f32.mrf.mxu0
      %v600 = vadd.f32 %v463, %v599
      %v601 = vpop.f32.mrf.mxu0
      %v602 = vadd.f32 %v465, %v601
      %603 = vmatmul.bf16.gmra.mxu0 %v265
      %v604 = vpop.f32.mrf.mxu0
      %v605 = vadd.f32 %v468, %v604
      %v606 = vpop.f32.mrf.mxu0
      %v607 = vadd.f32 %v470, %v606
      %608 = vmatmul.bf16.gmra.mxu0 %v266
      %v609 = vpop.f32.mrf.mxu0
      %v610 = vadd.f32 %v473, %v609
      %v611 = vpop.f32.mrf.mxu0
      %v612 = vadd.f32 %v475, %v611
      %613 = vmatmul.bf16.gmra.mxu0 %v267
      %v614 = vpop.f32.mrf.mxu0
      %v615 = vadd.f32 %v478, %v614
      %v616 = vpop.f32.mrf.mxu0
      %v617 = vadd.f32 %v480, %v616
      %618 = vmatmul.bf16.gmra.mxu0 %v268
      %v619 = vpop.f32.mrf.mxu0
      %v620 = vadd.f32 %v483, %v619
      %v621 = vpop.f32.mrf.mxu0
      %v622 = vadd.f32 %v485, %v621
      %623 = vdwg.mxu0
      %v624 = vld [vmem:[%s210 + $0x2] sm:$0xff]
      %v625 = vld [vmem:[%s210 + $0xa] sm:$0xff]
      %v626 = vld [vmem:[%s210 + $0x12] sm:$0xff]
      %v627 = vld [vmem:[%s210 + $0x1a] sm:$0xff]
      %v628 = vld [vmem:[%s210 + $0x22] sm:$0xff]
      %v629 = vld [vmem:[%s210 + $0x2a] sm:$0xff]
      %v630 = vld [vmem:[%s210 + $0x32] sm:$0xff]
      %v631 = vld [vmem:[%s210 + $0x3a] sm:$0xff]
      %v632 = vld [vmem:[%s210 + $0x42] sm:$0xff]
      %v633 = vld [vmem:[%s210 + $0x4a] sm:$0xff]
      %v634 = vld [vmem:[%s210 + $0x52] sm:$0xff]
      %v635 = vld [vmem:[%s210 + $0x5a] sm:$0xff]
      %v636 = vld [vmem:[%s210 + $0x62] sm:$0xff]
      %v637 = vld [vmem:[%s210 + $0x6a] sm:$0xff]
      %v638 = vld [vmem:[%s210 + $0x72] sm:$0xff]
      %v639 = vld [vmem:[%s210 + $0x7a] sm:$0xff]
      %v640 = vld [vmem:[%s210 + $0x82] sm:$0xff]
      %v641 = vld [vmem:[%s210 + $0x8a] sm:$0xff]
      %v642 = vld [vmem:[%s210 + $0x92] sm:$0xff]
      %v643 = vld [vmem:[%s210 + $0x9a] sm:$0xff]
      %v644 = vld [vmem:[%s210 + $0xa2] sm:$0xff]
      %v645 = vld [vmem:[%s210 + $0xaa] sm:$0xff]
      %v646 = vld [vmem:[%s210 + $0xb2] sm:$0xff]
      %v647 = vld [vmem:[%s210 + $0xba] sm:$0xff]
      %v648 = vld [vmem:[%s210 + $0xc2] sm:$0xff]
      %v649 = vld [vmem:[%s210 + $0xca] sm:$0xff]
      %v650 = vld [vmem:[%s210 + $0xd2] sm:$0xff]
      %v651 = vld [vmem:[%s210 + $0xda] sm:$0xff]
      %v652 = vld [vmem:[%s210 + $0xe2] sm:$0xff]
      %v653 = vld [vmem:[%s210 + $0xea] sm:$0xff]
      %v654 = vld [vmem:[%s210 + $0xf2] sm:$0xff]
      %v655 = vld [vmem:[%s210 + $0xfa] sm:$0xff]
      %v656 = vpack.c.bf16 %v625, %v624
      %v657 = vpack.c.bf16 %v627, %v626
      %v658 = vpack.c.bf16 %v629, %v628
      %v659 = vpack.c.bf16 %v631, %v630
      %v660 = vpack.c.bf16 %v633, %v632
      %v661 = vpack.c.bf16 %v635, %v634
      %v662 = vpack.c.bf16 %v637, %v636
      %v663 = vpack.c.bf16 %v639, %v638
      %v664 = vpack.c.bf16 %v641, %v640
      %v665 = vpack.c.bf16 %v643, %v642
      %v666 = vpack.c.bf16 %v645, %v644
      %v667 = vpack.c.bf16 %v647, %v646
      %v668 = vpack.c.bf16 %v649, %v648
      %v669 = vpack.c.bf16 %v651, %v650
      %v670 = vpack.c.bf16 %v653, %v652
      %v671 = vpack.c.bf16 %v655, %v654
      %s672 = scalar_lea.vmem %s1, 128
      %v673 = vld [vmem:[%s672] sm:$0xf]
      %v674 = vld [vmem:[%s672 + $0x4] sm:$0xf]
      %v675 = vld [vmem:[%s672 + $0x8] sm:$0xf]
      %v676 = vld [vmem:[%s672 + $0xc] sm:$0xf]
      %v677 = vld [vmem:[%s672 + $0x10] sm:$0xf]
      %v678 = vld [vmem:[%s672 + $0x14] sm:$0xf]
      %v679 = vld [vmem:[%s672 + $0x18] sm:$0xf]
      %v680 = vld [vmem:[%s672 + $0x1c] sm:$0xf]
      %v681 = vld [vmem:[%s672 + $0x20] sm:$0xf]
      %v682 = vld [vmem:[%s672 + $0x24] sm:$0xf]
      %v683 = vld [vmem:[%s672 + $0x28] sm:$0xf]
      %v684 = vld [vmem:[%s672 + $0x2c] sm:$0xf]
      %v685 = vld [vmem:[%s672 + $0x30] sm:$0xf]
      %v686 = vld [vmem:[%s672 + $0x34] sm:$0xf]
      %v687 = vld [vmem:[%s672 + $0x38] sm:$0xf]
      %v688 = vld [vmem:[%s672 + $0x3c] sm:$0xf]
      %v705 = vunpack.c.l.b16 %v673
      %v706 = vunpack.c.l.b16 %v674
      %v707 = vunpack.c.l.b16 %v675
      %v708 = vunpack.c.l.b16 %v676
      %v709 = vunpack.c.l.b16 %v677
      %v710 = vunpack.c.l.b16 %v678
      %v711 = vunpack.c.l.b16 %v679
      %v712 = vunpack.c.l.b16 %v680
      %v713 = vunpack.c.l.b16 %v681
      %v714 = vunpack.c.l.b16 %v682
      %v715 = vunpack.c.l.b16 %v683
      %v716 = vunpack.c.l.b16 %v684
      %v717 = vunpack.c.l.b16 %v685
      %v718 = vunpack.c.l.b16 %v686
      %v719 = vunpack.c.l.b16 %v687
      %v720 = vunpack.c.l.b16 %v688
      %v721 = vpack.c.b16 %v706, %v705
      %v722 = vpack.c.b16 %v708, %v707
      %v723 = vpack.c.b16 %v710, %v709
      %v724 = vpack.c.b16 %v712, %v711
      %v725 = vpack.c.b16 %v714, %v713
      %v726 = vpack.c.b16 %v716, %v715
      %v727 = vpack.c.b16 %v718, %v717
      %v728 = vpack.c.b16 %v720, %v719
      %737 = vmatpush.bf16.msra.mxu0 %v728
      %738 = vmatpush.bf16.msra.mxu0 %v727
      %739 = vmatpush.bf16.msra.mxu0 %v726
      %740 = vmatpush.bf16.msra.mxu0 %v725
      %741 = vmatpush.bf16.msra.mxu0 %v724
      %742 = vmatpush.bf16.msra.mxu0 %v723
      %743 = vmatpush.bf16.msra.mxu0 %v722
      %744 = vmatpush.bf16.msra.mxu0 %v721
      %745 = vmatmul.bf16.gmra.mxu0 %v656
      %v746 = vpop.f32.mrf.mxu0
      %v747 = vadd.f32 0.0, %v746
      %v748 = vpop.f32.mrf.mxu0
      %v749 = vadd.f32 0.0, %v748
      %750 = vmatmul.bf16.gmra.mxu0 %v657
      %v751 = vpop.f32.mrf.mxu0
      %v752 = vadd.f32 0.0, %v751
      %v753 = vpop.f32.mrf.mxu0
      %v754 = vadd.f32 0.0, %v753
      %755 = vmatmul.bf16.gmra.mxu0 %v658
      %v756 = vpop.f32.mrf.mxu0
      %v757 = vadd.f32 0.0, %v756
      %v758 = vpop.f32.mrf.mxu0
      %v759 = vadd.f32 0.0, %v758
      %760 = vmatmul.bf16.gmra.mxu0 %v659
      %v761 = vpop.f32.mrf.mxu0
      %v762 = vadd.f32 0.0, %v761
      %v763 = vpop.f32.mrf.mxu0
      %v764 = vadd.f32 0.0, %v763
      %765 = vmatmul.bf16.gmra.mxu0 %v660
      %v766 = vpop.f32.mrf.mxu0
      %v767 = vadd.f32 0.0, %v766
      %v768 = vpop.f32.mrf.mxu0
      %v769 = vadd.f32 0.0, %v768
      %770 = vmatmul.bf16.gmra.mxu0 %v661
      %v771 = vpop.f32.mrf.mxu0
      %v772 = vadd.f32 0.0, %v771
      %v773 = vpop.f32.mrf.mxu0
      %v774 = vadd.f32 0.0, %v773
      %775 = vmatmul.bf16.gmra.mxu0 %v662
      %v776 = vpop.f32.mrf.mxu0
      %v777 = vadd.f32 0.0, %v776
      %v778 = vpop.f32.mrf.mxu0
      %v779 = vadd.f32 0.0, %v778
      %780 = vmatmul.bf16.gmra.mxu0 %v663
      %v781 = vpop.f32.mrf.mxu0
      %v782 = vadd.f32 0.0, %v781
      %v783 = vpop.f32.mrf.mxu0
      %v784 = vadd.f32 0.0, %v783
      %785 = vmatmul.bf16.gmra.mxu0 %v664
      %v786 = vpop.f32.mrf.mxu0
      %v787 = vadd.f32 0.0, %v786
      %v788 = vpop.f32.mrf.mxu0
      %v789 = vadd.f32 0.0, %v788
      %790 = vmatmul.bf16.gmra.mxu0 %v665
      %v791 = vpop.f32.mrf.mxu0
      %v792 = vadd.f32 0.0, %v791
      %v793 = vpop.f32.mrf.mxu0
      %v794 = vadd.f32 0.0, %v793
      %795 = vmatmul.bf16.gmra.mxu0 %v666
      %v796 = vpop.f32.mrf.mxu0
      %v797 = vadd.f32 0.0, %v796
      %v798 = vpop.f32.mrf.mxu0
      %v799 = vadd.f32 0.0, %v798
      %800 = vmatmul.bf16.gmra.mxu0 %v667
      %v801 = vpop.f32.mrf.mxu0
      %v802 = vadd.f32 0.0, %v801
      %v803 = vpop.f32.mrf.mxu0
      %v804 = vadd.f32 0.0, %v803
      %805 = vmatmul.bf16.gmra.mxu0 %v668
      %v806 = vpop.f32.mrf.mxu0
      %v807 = vadd.f32 0.0, %v806
      %v808 = vpop.f32.mrf.mxu0
      %v809 = vadd.f32 0.0, %v808
      %810 = vmatmul.bf16.gmra.mxu0 %v669
      %v811 = vpop.f32.mrf.mxu0
      %v812 = vadd.f32 0.0, %v811
      %v813 = vpop.f32.mrf.mxu0
      %v814 = vadd.f32 0.0, %v813
      %815 = vmatmul.bf16.gmra.mxu0 %v670
      %v816 = vpop.f32.mrf.mxu0
      %v817 = vadd.f32 0.0, %v816
      %v818 = vpop.f32.mrf.mxu0
      %v819 = vadd.f32 0.0, %v818
      %820 = vmatmul.bf16.gmra.mxu0 %v671
      %v821 = vpop.f32.mrf.mxu0
      %v822 = vadd.f32 0.0, %v821
      %v823 = vpop.f32.mrf.mxu0
      %v824 = vadd.f32 0.0, %v823
      %825 = vdwg.mxu0
      %v826 = vadd.f32 %v545, %v747
      %v827 = vadd.f32 %v547, %v749
      %v828 = vadd.f32 %v550, %v752
      %v829 = vadd.f32 %v552, %v754
      %v830 = vadd.f32 %v555, %v757
      %v831 = vadd.f32 %v557, %v759
      %v832 = vadd.f32 %v560, %v762
      %v833 = vadd.f32 %v562, %v764
      %v834 = vadd.f32 %v565, %v767
      %v835 = vadd.f32 %v567, %v769
      %v836 = vadd.f32 %v570, %v772
      %v837 = vadd.f32 %v572, %v774
      %v838 = vadd.f32 %v575, %v777
      %v839 = vadd.f32 %v577, %v779
      %v840 = vadd.f32 %v580, %v782
      %v841 = vadd.f32 %v582, %v784
      %v842 = vadd.f32 %v585, %v787
      %v843 = vadd.f32 %v587, %v789
      %v844 = vadd.f32 %v590, %v792
      %v845 = vadd.f32 %v592, %v794
      %v846 = vadd.f32 %v595, %v797
      %v847 = vadd.f32 %v597, %v799
      %v848 = vadd.f32 %v600, %v802
      %v849 = vadd.f32 %v602, %v804
      %v850 = vadd.f32 %v605, %v807
      %v851 = vadd.f32 %v607, %v809
      %v852 = vadd.f32 %v610, %v812
      %v853 = vadd.f32 %v612, %v814
      %v854 = vadd.f32 %v615, %v817
      %v855 = vadd.f32 %v617, %v819
      %v856 = vadd.f32 %v620, %v822
      %v857 = vadd.f32 %v622, %v824
      %v858 = vld [vmem:[%s210 + $0x11] sm:$0xff]
      %v859 = vld [vmem:[%s210 + $0x19] sm:$0xff]
      %v860 = vld [vmem:[%s210 + $0x21] sm:$0xff]
      %v861 = vld [vmem:[%s210 + $0x29] sm:$0xff]
      %v862 = vld [vmem:[%s210 + $0x31] sm:$0xff]
      %v863 = vld [vmem:[%s210 + $0x39] sm:$0xff]
      %v864 = vld [vmem:[%s210 + $0x41] sm:$0xff]
      %v865 = vld [vmem:[%s210 + $0x49] sm:$0xff]
      %v866 = vld [vmem:[%s210 + $0x51] sm:$0xff]
      %v867 = vld [vmem:[%s210 + $0x59] sm:$0xff]
      %v868 = vld [vmem:[%s210 + $0x61] sm:$0xff]
      %v869 = vld [vmem:[%s210 + $0x69] sm:$0xff]
      %v870 = vld [vmem:[%s210 + $0x71] sm:$0xff]
      %v871 = vld [vmem:[%s210 + $0x79] sm:$0xff]
      %v872 = vld [vmem:[%s210 + $0x81] sm:$0xff]
      %v873 = vld [vmem:[%s210 + $0x89] sm:$0xff]
      %v874 = vld [vmem:[%s210 + $0x91] sm:$0xff]
      %v875 = vld [vmem:[%s210 + $0x99] sm:$0xff]
      %v876 = vld [vmem:[%s210 + $0xa1] sm:$0xff]
      %v877 = vld [vmem:[%s210 + $0xa9] sm:$0xff]
      %v878 = vld [vmem:[%s210 + $0xb1] sm:$0xff]
      %v879 = vld [vmem:[%s210 + $0xb9] sm:$0xff]
      %v880 = vld [vmem:[%s210 + $0xc1] sm:$0xff]
      %v881 = vld [vmem:[%s210 + $0xc9] sm:$0xff]
      %v882 = vld [vmem:[%s210 + $0xd1] sm:$0xff]
      %v883 = vld [vmem:[%s210 + $0xd9] sm:$0xff]
      %v884 = vld [vmem:[%s210 + $0xe1] sm:$0xff]
      %v885 = vld [vmem:[%s210 + $0xe9] sm:$0xff]
      %v886 = vld [vmem:[%s210 + $0xf1] sm:$0xff]
      %v887 = vld [vmem:[%s210 + $0xf9] sm:$0xff]
      %v888 = vld [vmem:[%s210 + $0x101] sm:$0xff]
      %v889 = vld [vmem:[%s210 + $0x109] sm:$0xff]
      %v890 = vpack.c.bf16 %v859, %v858
      %v891 = vpack.c.bf16 %v861, %v860
      %v892 = vpack.c.bf16 %v863, %v862
      %v893 = vpack.c.bf16 %v865, %v864
      %v894 = vpack.c.bf16 %v867, %v866
      %v895 = vpack.c.bf16 %v869, %v868
      %v896 = vpack.c.bf16 %v871, %v870
      %v897 = vpack.c.bf16 %v873, %v872
      %v898 = vpack.c.bf16 %v875, %v874
      %v899 = vpack.c.bf16 %v877, %v876
      %v900 = vpack.c.bf16 %v879, %v878
      %v901 = vpack.c.bf16 %v881, %v880
      %v902 = vpack.c.bf16 %v883, %v882
      %v903 = vpack.c.bf16 %v885, %v884
      %v904 = vpack.c.bf16 %v887, %v886
      %v905 = vpack.c.bf16 %v889, %v888
      %s906 = scalar_lea.vmem %s1, 192
      %v907 = vld [vmem:[%s906] sm:$0xf]
      %v908 = vld [vmem:[%s906 + $0x4] sm:$0xf]
      %v909 = vld [vmem:[%s906 + $0x8] sm:$0xf]
      %v910 = vld [vmem:[%s906 + $0xc] sm:$0xf]
      %v911 = vld [vmem:[%s906 + $0x10] sm:$0xf]
      %v912 = vld [vmem:[%s906 + $0x14] sm:$0xf]
      %v913 = vld [vmem:[%s906 + $0x18] sm:$0xf]
      %v914 = vld [vmem:[%s906 + $0x1c] sm:$0xf]
      %v915 = vld [vmem:[%s906 + $0x20] sm:$0xf]
      %v916 = vld [vmem:[%s906 + $0x24] sm:$0xf]
      %v917 = vld [vmem:[%s906 + $0x28] sm:$0xf]
      %v918 = vld [vmem:[%s906 + $0x2c] sm:$0xf]
      %v919 = vld [vmem:[%s906 + $0x30] sm:$0xf]
      %v920 = vld [vmem:[%s906 + $0x34] sm:$0xf]
      %v921 = vld [vmem:[%s906 + $0x38] sm:$0xf]
      %v922 = vld [vmem:[%s906 + $0x3c] sm:$0xf]
      %v939 = vunpack.c.l.b16 %v907
      %v940 = vunpack.c.l.b16 %v908
      %v941 = vunpack.c.l.b16 %v909
      %v942 = vunpack.c.l.b16 %v910
      %v943 = vunpack.c.l.b16 %v911
      %v944 = vunpack.c.l.b16 %v912
      %v945 = vunpack.c.l.b16 %v913
      %v946 = vunpack.c.l.b16 %v914
      %v947 = vunpack.c.l.b16 %v915
      %v948 = vunpack.c.l.b16 %v916
      %v949 = vunpack.c.l.b16 %v917
      %v950 = vunpack.c.l.b16 %v918
      %v951 = vunpack.c.l.b16 %v919
      %v952 = vunpack.c.l.b16 %v920
      %v953 = vunpack.c.l.b16 %v921
      %v954 = vunpack.c.l.b16 %v922
      %v955 = vpack.c.b16 %v940, %v939
      %v956 = vpack.c.b16 %v942, %v941
      %v957 = vpack.c.b16 %v944, %v943
      %v958 = vpack.c.b16 %v946, %v945
      %v959 = vpack.c.b16 %v948, %v947
      %v960 = vpack.c.b16 %v950, %v949
      %v961 = vpack.c.b16 %v952, %v951
      %v962 = vpack.c.b16 %v954, %v953
      %971 = vmatpush.bf16.msra.mxu0 %v962
      %972 = vmatpush.bf16.msra.mxu0 %v961
      %973 = vmatpush.bf16.msra.mxu0 %v960
      %974 = vmatpush.bf16.msra.mxu0 %v959
      %975 = vmatpush.bf16.msra.mxu0 %v958
      %976 = vmatpush.bf16.msra.mxu0 %v957
      %977 = vmatpush.bf16.msra.mxu0 %v956
      %978 = vmatpush.bf16.msra.mxu0 %v955
      %979 = vmatmul.bf16.gmra.mxu0 %v890
      %v980 = vpop.f32.mrf.mxu0
      %v981 = vadd.f32 0.0, %v980
      %v982 = vpop.f32.mrf.mxu0
      %v983 = vadd.f32 0.0, %v982
      %984 = vmatmul.bf16.gmra.mxu0 %v891
      %v985 = vpop.f32.mrf.mxu0
      %v986 = vadd.f32 0.0, %v985
      %v987 = vpop.f32.mrf.mxu0
      %v988 = vadd.f32 0.0, %v987
      %989 = vmatmul.bf16.gmra.mxu0 %v892
      %v990 = vpop.f32.mrf.mxu0
      %v991 = vadd.f32 0.0, %v990
      %v992 = vpop.f32.mrf.mxu0
      %v993 = vadd.f32 0.0, %v992
      %994 = vmatmul.bf16.gmra.mxu0 %v893
      %v995 = vpop.f32.mrf.mxu0
      %v996 = vadd.f32 0.0, %v995
      %v997 = vpop.f32.mrf.mxu0
      %v998 = vadd.f32 0.0, %v997
      %999 = vmatmul.bf16.gmra.mxu0 %v894
      %v1000 = vpop.f32.mrf.mxu0
      %v1001 = vadd.f32 0.0, %v1000
      %v1002 = vpop.f32.mrf.mxu0
      %v1003 = vadd.f32 0.0, %v1002
      %1004 = vmatmul.bf16.gmra.mxu0 %v895
      %v1005 = vpop.f32.mrf.mxu0
      %v1006 = vadd.f32 0.0, %v1005
      %v1007 = vpop.f32.mrf.mxu0
      %v1008 = vadd.f32 0.0, %v1007
      %1009 = vmatmul.bf16.gmra.mxu0 %v896
      %v1010 = vpop.f32.mrf.mxu0
      %v1011 = vadd.f32 0.0, %v1010
      %v1012 = vpop.f32.mrf.mxu0
      %v1013 = vadd.f32 0.0, %v1012
      %1014 = vmatmul.bf16.gmra.mxu0 %v897
      %v1015 = vpop.f32.mrf.mxu0
      %v1016 = vadd.f32 0.0, %v1015
      %v1017 = vpop.f32.mrf.mxu0
      %v1018 = vadd.f32 0.0, %v1017
      %1019 = vmatmul.bf16.gmra.mxu0 %v898
      %v1020 = vpop.f32.mrf.mxu0
      %v1021 = vadd.f32 0.0, %v1020
      %v1022 = vpop.f32.mrf.mxu0
      %v1023 = vadd.f32 0.0, %v1022
      %1024 = vmatmul.bf16.gmra.mxu0 %v899
      %v1025 = vpop.f32.mrf.mxu0
      %v1026 = vadd.f32 0.0, %v1025
      %v1027 = vpop.f32.mrf.mxu0
      %v1028 = vadd.f32 0.0, %v1027
      %1029 = vmatmul.bf16.gmra.mxu0 %v900
      %v1030 = vpop.f32.mrf.mxu0
      %v1031 = vadd.f32 0.0, %v1030
      %v1032 = vpop.f32.mrf.mxu0
      %v1033 = vadd.f32 0.0, %v1032
      %1034 = vmatmul.bf16.gmra.mxu0 %v901
      %v1035 = vpop.f32.mrf.mxu0
      %v1036 = vadd.f32 0.0, %v1035
      %v1037 = vpop.f32.mrf.mxu0
      %v1038 = vadd.f32 0.0, %v1037
      %1039 = vmatmul.bf16.gmra.mxu0 %v902
      %v1040 = vpop.f32.mrf.mxu0
      %v1041 = vadd.f32 0.0, %v1040
      %v1042 = vpop.f32.mrf.mxu0
      %v1043 = vadd.f32 0.0, %v1042
      %1044 = vmatmul.bf16.gmra.mxu0 %v903
      %v1045 = vpop.f32.mrf.mxu0
      %v1046 = vadd.f32 0.0, %v1045
      %v1047 = vpop.f32.mrf.mxu0
      %v1048 = vadd.f32 0.0, %v1047
      %1049 = vmatmul.bf16.gmra.mxu0 %v904
      %v1050 = vpop.f32.mrf.mxu0
      %v1051 = vadd.f32 0.0, %v1050
      %v1052 = vpop.f32.mrf.mxu0
      %v1053 = vadd.f32 0.0, %v1052
      %1054 = vmatmul.bf16.gmra.mxu0 %v905
      %v1055 = vpop.f32.mrf.mxu0
      %v1056 = vadd.f32 0.0, %v1055
      %v1057 = vpop.f32.mrf.mxu0
      %v1058 = vadd.f32 0.0, %v1057
      %1059 = vdwg.mxu0
      %v1060 = vadd.f32 %v826, %v981
      %v1061 = vadd.f32 %v827, %v983
      %v1062 = vadd.f32 %v828, %v986
      %v1063 = vadd.f32 %v829, %v988
      %v1064 = vadd.f32 %v830, %v991
      %v1065 = vadd.f32 %v831, %v993
      %v1066 = vadd.f32 %v832, %v996
      %v1067 = vadd.f32 %v833, %v998
      %v1068 = vadd.f32 %v834, %v1001
      %v1069 = vadd.f32 %v835, %v1003
      %v1070 = vadd.f32 %v836, %v1006
      %v1071 = vadd.f32 %v837, %v1008
      %v1072 = vadd.f32 %v838, %v1011
      %v1073 = vadd.f32 %v839, %v1013
      %v1074 = vadd.f32 %v840, %v1016
      %v1075 = vadd.f32 %v841, %v1018
      %v1076 = vadd.f32 %v842, %v1021
      %v1077 = vadd.f32 %v843, %v1023
      %v1078 = vadd.f32 %v844, %v1026
      %v1079 = vadd.f32 %v845, %v1028
      %v1080 = vadd.f32 %v846, %v1031
      %v1081 = vadd.f32 %v847, %v1033
      %v1082 = vadd.f32 %v848, %v1036
      %v1083 = vadd.f32 %v849, %v1038
      %v1084 = vadd.f32 %v850, %v1041
      %v1085 = vadd.f32 %v851, %v1043
      %v1086 = vadd.f32 %v852, %v1046
      %v1087 = vadd.f32 %v853, %v1048
      %v1088 = vadd.f32 %v854, %v1051
      %v1089 = vadd.f32 %v855, %v1053
      %v1090 = vadd.f32 %v856, %v1056
      %v1091 = vadd.f32 %v857, %v1058
      %v1092 = vld [vmem:[%s210 + $0x12] sm:$0xff]
      %v1093 = vld [vmem:[%s210 + $0x1a] sm:$0xff]
      %v1094 = vld [vmem:[%s210 + $0x22] sm:$0xff]
      %v1095 = vld [vmem:[%s210 + $0x2a] sm:$0xff]
      %v1096 = vld [vmem:[%s210 + $0x32] sm:$0xff]
      %v1097 = vld [vmem:[%s210 + $0x3a] sm:$0xff]
      %v1098 = vld [vmem:[%s210 + $0x42] sm:$0xff]
      %v1099 = vld [vmem:[%s210 + $0x4a] sm:$0xff]
      %v1100 = vld [vmem:[%s210 + $0x52] sm:$0xff]
      %v1101 = vld [vmem:[%s210 + $0x5a] sm:$0xff]
      %v1102 = vld [vmem:[%s210 + $0x62] sm:$0xff]
      %v1103 = vld [vmem:[%s210 + $0x6a] sm:$0xff]
      %v1104 = vld [vmem:[%s210 + $0x72] sm:$0xff]
      %v1105 = vld [vmem:[%s210 + $0x7a] sm:$0xff]
      %v1106 = vld [vmem:[%s210 + $0x82] sm:$0xff]
      %v1107 = vld [vmem:[%s210 + $0x8a] sm:$0xff]
      %v1108 = vld [vmem:[%s210 + $0x92] sm:$0xff]
      %v1109 = vld [vmem:[%s210 + $0x9a] sm:$0xff]
      %v1110 = vld [vmem:[%s210 + $0xa2] sm:$0xff]
      %v1111 = vld [vmem:[%s210 + $0xaa] sm:$0xff]
      %v1112 = vld [vmem:[%s210 + $0xb2] sm:$0xff]
      %v1113 = vld [vmem:[%s210 + $0xba] sm:$0xff]
      %v1114 = vld [vmem:[%s210 + $0xc2] sm:$0xff]
      %v1115 = vld [vmem:[%s210 + $0xca] sm:$0xff]
      %v1116 = vld [vmem:[%s210 + $0xd2] sm:$0xff]
      %v1117 = vld [vmem:[%s210 + $0xda] sm:$0xff]
      %v1118 = vld [vmem:[%s210 + $0xe2] sm:$0xff]
      %v1119 = vld [vmem:[%s210 + $0xea] sm:$0xff]
      %v1120 = vld [vmem:[%s210 + $0xf2] sm:$0xff]
      %v1121 = vld [vmem:[%s210 + $0xfa] sm:$0xff]
      %v1122 = vld [vmem:[%s210 + $0x102] sm:$0xff]
      %v1123 = vld [vmem:[%s210 + $0x10a] sm:$0xff]
      %v1124 = vpack.c.bf16 %v1093, %v1092
      %v1125 = vpack.c.bf16 %v1095, %v1094
      %v1126 = vpack.c.bf16 %v1097, %v1096
      %v1127 = vpack.c.bf16 %v1099, %v1098
      %v1128 = vpack.c.bf16 %v1101, %v1100
      %v1129 = vpack.c.bf16 %v1103, %v1102
      %v1130 = vpack.c.bf16 %v1105, %v1104
      %v1131 = vpack.c.bf16 %v1107, %v1106
      %v1132 = vpack.c.bf16 %v1109, %v1108
      %v1133 = vpack.c.bf16 %v1111, %v1110
      %v1134 = vpack.c.bf16 %v1113, %v1112
      %v1135 = vpack.c.bf16 %v1115, %v1114
      %v1136 = vpack.c.bf16 %v1117, %v1116
      %v1137 = vpack.c.bf16 %v1119, %v1118
      %v1138 = vpack.c.bf16 %v1121, %v1120
      %v1139 = vpack.c.bf16 %v1123, %v1122
      %s1140 = scalar_lea.vmem %s1, 256
      %v1141 = vld [vmem:[%s1140] sm:$0xf]
      %v1142 = vld [vmem:[%s1140 + $0x4] sm:$0xf]
      %v1143 = vld [vmem:[%s1140 + $0x8] sm:$0xf]
      %v1144 = vld [vmem:[%s1140 + $0xc] sm:$0xf]
      %v1145 = vld [vmem:[%s1140 + $0x10] sm:$0xf]
      %v1146 = vld [vmem:[%s1140 + $0x14] sm:$0xf]
      %v1147 = vld [vmem:[%s1140 + $0x18] sm:$0xf]
      %v1148 = vld [vmem:[%s1140 + $0x1c] sm:$0xf]
      %v1149 = vld [vmem:[%s1140 + $0x20] sm:$0xf]
      %v1150 = vld [vmem:[%s1140 + $0x24] sm:$0xf]
      %v1151 = vld [vmem:[%s1140 + $0x28] sm:$0xf]
      %v1152 = vld [vmem:[%s1140 + $0x2c] sm:$0xf]
      %v1153 = vld [vmem:[%s1140 + $0x30] sm:$0xf]
      %v1154 = vld [vmem:[%s1140 + $0x34] sm:$0xf]
      %v1155 = vld [vmem:[%s1140 + $0x38] sm:$0xf]
      %v1156 = vld [vmem:[%s1140 + $0x3c] sm:$0xf]
      %v1173 = vunpack.c.l.b16 %v1141
      %v1174 = vunpack.c.l.b16 %v1142
      %v1175 = vunpack.c.l.b16 %v1143
      %v1176 = vunpack.c.l.b16 %v1144
      %v1177 = vunpack.c.l.b16 %v1145
      %v1178 = vunpack.c.l.b16 %v1146
      %v1179 = vunpack.c.l.b16 %v1147
      %v1180 = vunpack.c.l.b16 %v1148
      %v1181 = vunpack.c.l.b16 %v1149
      %v1182 = vunpack.c.l.b16 %v1150
      %v1183 = vunpack.c.l.b16 %v1151
      %v1184 = vunpack.c.l.b16 %v1152
      %v1185 = vunpack.c.l.b16 %v1153
      %v1186 = vunpack.c.l.b16 %v1154
      %v1187 = vunpack.c.l.b16 %v1155
      %v1188 = vunpack.c.l.b16 %v1156
      %v1189 = vpack.c.b16 %v1174, %v1173
      %v1190 = vpack.c.b16 %v1176, %v1175
      %v1191 = vpack.c.b16 %v1178, %v1177
      %v1192 = vpack.c.b16 %v1180, %v1179
      %v1193 = vpack.c.b16 %v1182, %v1181
      %v1194 = vpack.c.b16 %v1184, %v1183
      %v1195 = vpack.c.b16 %v1186, %v1185
      %v1196 = vpack.c.b16 %v1188, %v1187
      %1205 = vmatpush.bf16.msra.mxu0 %v1196
      %1206 = vmatpush.bf16.msra.mxu0 %v1195
      %1207 = vmatpush.bf16.msra.mxu0 %v1194
      %1208 = vmatpush.bf16.msra.mxu0 %v1193
      %1209 = vmatpush.bf16.msra.mxu0 %v1192
      %1210 = vmatpush.bf16.msra.mxu0 %v1191
      %1211 = vmatpush.bf16.msra.mxu0 %v1190
      %1212 = vmatpush.bf16.msra.mxu0 %v1189
      %1213 = vmatmul.bf16.gmra.mxu0 %v1124
      %v1214 = vpop.f32.mrf.mxu0
      %v1215 = vadd.f32 0.0, %v1214
      %v1216 = vpop.f32.mrf.mxu0
      %v1217 = vadd.f32 0.0, %v1216
      %1218 = vmatmul.bf16.gmra.mxu0 %v1125
      %v1219 = vpop.f32.mrf.mxu0
      %v1220 = vadd.f32 0.0, %v1219
      %v1221 = vpop.f32.mrf.mxu0
      %v1222 = vadd.f32 0.0, %v1221
      %1223 = vmatmul.bf16.gmra.mxu0 %v1126
      %v1224 = vpop.f32.mrf.mxu0
      %v1225 = vadd.f32 0.0, %v1224
      %v1226 = vpop.f32.mrf.mxu0
      %v1227 = vadd.f32 0.0, %v1226
      %1228 = vmatmul.bf16.gmra.mxu0 %v1127
      %v1229 = vpop.f32.mrf.mxu0
      %v1230 = vadd.f32 0.0, %v1229
      %v1231 = vpop.f32.mrf.mxu0
      %v1232 = vadd.f32 0.0, %v1231
      %1233 = vmatmul.bf16.gmra.mxu0 %v1128
      %v1234 = vpop.f32.mrf.mxu0
      %v1235 = vadd.f32 0.0, %v1234
      %v1236 = vpop.f32.mrf.mxu0
      %v1237 = vadd.f32 0.0, %v1236
      %1238 = vmatmul.bf16.gmra.mxu0 %v1129
      %v1239 = vpop.f32.mrf.mxu0
      %v1240 = vadd.f32 0.0, %v1239
      %v1241 = vpop.f32.mrf.mxu0
      %v1242 = vadd.f32 0.0, %v1241
      %1243 = vmatmul.bf16.gmra.mxu0 %v1130
      %v1244 = vpop.f32.mrf.mxu0
      %v1245 = vadd.f32 0.0, %v1244
      %v1246 = vpop.f32.mrf.mxu0
      %v1247 = vadd.f32 0.0, %v1246
      %1248 = vmatmul.bf16.gmra.mxu0 %v1131
      %v1249 = vpop.f32.mrf.mxu0
      %v1250 = vadd.f32 0.0, %v1249
      %v1251 = vpop.f32.mrf.mxu0
      %v1252 = vadd.f32 0.0, %v1251
      %1253 = vmatmul.bf16.gmra.mxu0 %v1132
      %v1254 = vpop.f32.mrf.mxu0
      %v1255 = vadd.f32 0.0, %v1254
      %v1256 = vpop.f32.mrf.mxu0
      %v1257 = vadd.f32 0.0, %v1256
      %1258 = vmatmul.bf16.gmra.mxu0 %v1133
      %v1259 = vpop.f32.mrf.mxu0
      %v1260 = vadd.f32 0.0, %v1259
      %v1261 = vpop.f32.mrf.mxu0
      %v1262 = vadd.f32 0.0, %v1261
      %1263 = vmatmul.bf16.gmra.mxu0 %v1134
      %v1264 = vpop.f32.mrf.mxu0
      %v1265 = vadd.f32 0.0, %v1264
      %v1266 = vpop.f32.mrf.mxu0
      %v1267 = vadd.f32 0.0, %v1266
      %1268 = vmatmul.bf16.gmra.mxu0 %v1135
      %v1269 = vpop.f32.mrf.mxu0
      %v1270 = vadd.f32 0.0, %v1269
      %v1271 = vpop.f32.mrf.mxu0
      %v1272 = vadd.f32 0.0, %v1271
      %1273 = vmatmul.bf16.gmra.mxu0 %v1136
      %v1274 = vpop.f32.mrf.mxu0
      %v1275 = vadd.f32 0.0, %v1274
      %v1276 = vpop.f32.mrf.mxu0
      %v1277 = vadd.f32 0.0, %v1276
      %1278 = vmatmul.bf16.gmra.mxu0 %v1137
      %v1279 = vpop.f32.mrf.mxu0
      %v1280 = vadd.f32 0.0, %v1279
      %v1281 = vpop.f32.mrf.mxu0
      %v1282 = vadd.f32 0.0, %v1281
      %1283 = vmatmul.bf16.gmra.mxu0 %v1138
      %v1284 = vpop.f32.mrf.mxu0
      %v1285 = vadd.f32 0.0, %v1284
      %v1286 = vpop.f32.mrf.mxu0
      %v1287 = vadd.f32 0.0, %v1286
      %1288 = vmatmul.bf16.gmra.mxu0 %v1139
      %v1289 = vpop.f32.mrf.mxu0
      %v1290 = vadd.f32 0.0, %v1289
      %v1291 = vpop.f32.mrf.mxu0
      %v1292 = vadd.f32 0.0, %v1291
      %1293 = vdwg.mxu0
      %v1294 = vadd.f32 %v1060, %v1215
      %v1295 = vadd.f32 %v1061, %v1217
      %v1296 = vadd.f32 %v1062, %v1220
      %v1297 = vadd.f32 %v1063, %v1222
      %v1298 = vadd.f32 %v1064, %v1225
      %v1299 = vadd.f32 %v1065, %v1227
      %v1300 = vadd.f32 %v1066, %v1230
      %v1301 = vadd.f32 %v1067, %v1232
      %v1302 = vadd.f32 %v1068, %v1235
      %v1303 = vadd.f32 %v1069, %v1237
      %v1304 = vadd.f32 %v1070, %v1240
      %v1305 = vadd.f32 %v1071, %v1242
      %v1306 = vadd.f32 %v1072, %v1245
      %v1307 = vadd.f32 %v1073, %v1247
      %v1308 = vadd.f32 %v1074, %v1250
      %v1309 = vadd.f32 %v1075, %v1252
      %v1310 = vadd.f32 %v1076, %v1255
      %v1311 = vadd.f32 %v1077, %v1257
      %v1312 = vadd.f32 %v1078, %v1260
      %v1313 = vadd.f32 %v1079, %v1262
      %v1314 = vadd.f32 %v1080, %v1265
      %v1315 = vadd.f32 %v1081, %v1267
      %v1316 = vadd.f32 %v1082, %v1270
      %v1317 = vadd.f32 %v1083, %v1272
      %v1318 = vadd.f32 %v1084, %v1275
      %v1319 = vadd.f32 %v1085, %v1277
      %v1320 = vadd.f32 %v1086, %v1280
      %v1321 = vadd.f32 %v1087, %v1282
      %v1322 = vadd.f32 %v1088, %v1285
      %v1323 = vadd.f32 %v1089, %v1287
      %v1324 = vadd.f32 %v1090, %v1290
      %v1325 = vadd.f32 %v1091, %v1292
      %v1326 = vld [vmem:[%s210 + $0x13] sm:$0xff]
      %v1327 = vld [vmem:[%s210 + $0x1b] sm:$0xff]
      %v1328 = vld [vmem:[%s210 + $0x23] sm:$0xff]
      %v1329 = vld [vmem:[%s210 + $0x2b] sm:$0xff]
      %v1330 = vld [vmem:[%s210 + $0x33] sm:$0xff]
      %v1331 = vld [vmem:[%s210 + $0x3b] sm:$0xff]
      %v1332 = vld [vmem:[%s210 + $0x43] sm:$0xff]
      %v1333 = vld [vmem:[%s210 + $0x4b] sm:$0xff]
      %v1334 = vld [vmem:[%s210 + $0x53] sm:$0xff]
      %v1335 = vld [vmem:[%s210 + $0x5b] sm:$0xff]
      %v1336 = vld [vmem:[%s210 + $0x63] sm:$0xff]
      %v1337 = vld [vmem:[%s210 + $0x6b] sm:$0xff]
      %v1338 = vld [vmem:[%s210 + $0x73] sm:$0xff]
      %v1339 = vld [vmem:[%s210 + $0x7b] sm:$0xff]
      %v1340 = vld [vmem:[%s210 + $0x83] sm:$0xff]
      %v1341 = vld [vmem:[%s210 + $0x8b] sm:$0xff]
      %v1342 = vld [vmem:[%s210 + $0x93] sm:$0xff]
      %v1343 = vld [vmem:[%s210 + $0x9b] sm:$0xff]
      %v1344 = vld [vmem:[%s210 + $0xa3] sm:$0xff]
      %v1345 = vld [vmem:[%s210 + $0xab] sm:$0xff]
      %v1346 = vld [vmem:[%s210 + $0xb3] sm:$0xff]
      %v1347 = vld [vmem:[%s210 + $0xbb] sm:$0xff]
      %v1348 = vld [vmem:[%s210 + $0xc3] sm:$0xff]
      %v1349 = vld [vmem:[%s210 + $0xcb] sm:$0xff]
      %v1350 = vld [vmem:[%s210 + $0xd3] sm:$0xff]
      %v1351 = vld [vmem:[%s210 + $0xdb] sm:$0xff]
      %v1352 = vld [vmem:[%s210 + $0xe3] sm:$0xff]
      %v1353 = vld [vmem:[%s210 + $0xeb] sm:$0xff]
      %v1354 = vld [vmem:[%s210 + $0xf3] sm:$0xff]
      %v1355 = vld [vmem:[%s210 + $0xfb] sm:$0xff]
      %v1356 = vld [vmem:[%s210 + $0x103] sm:$0xff]
      %v1357 = vld [vmem:[%s210 + $0x10b] sm:$0xff]
      %v1358 = vpack.c.bf16 %v1327, %v1326
      %v1359 = vpack.c.bf16 %v1329, %v1328
      %v1360 = vpack.c.bf16 %v1331, %v1330
      %v1361 = vpack.c.bf16 %v1333, %v1332
      %v1362 = vpack.c.bf16 %v1335, %v1334
      %v1363 = vpack.c.bf16 %v1337, %v1336
      %v1364 = vpack.c.bf16 %v1339, %v1338
      %v1365 = vpack.c.bf16 %v1341, %v1340
      %v1366 = vpack.c.bf16 %v1343, %v1342
      %v1367 = vpack.c.bf16 %v1345, %v1344
      %v1368 = vpack.c.bf16 %v1347, %v1346
      %v1369 = vpack.c.bf16 %v1349, %v1348
      %v1370 = vpack.c.bf16 %v1351, %v1350
      %v1371 = vpack.c.bf16 %v1353, %v1352
      %v1372 = vpack.c.bf16 %v1355, %v1354
      %v1373 = vpack.c.bf16 %v1357, %v1356
      %s1374 = scalar_lea.vmem %s1, 320
      %v1375 = vld [vmem:[%s1374] sm:$0xf]
      %v1376 = vld [vmem:[%s1374 + $0x4] sm:$0xf]
      %v1377 = vld [vmem:[%s1374 + $0x8] sm:$0xf]
      %v1378 = vld [vmem:[%s1374 + $0xc] sm:$0xf]
      %v1379 = vld [vmem:[%s1374 + $0x10] sm:$0xf]
      %v1380 = vld [vmem:[%s1374 + $0x14] sm:$0xf]
      %v1381 = vld [vmem:[%s1374 + $0x18] sm:$0xf]
      %v1382 = vld [vmem:[%s1374 + $0x1c] sm:$0xf]
      %v1383 = vld [vmem:[%s1374 + $0x20] sm:$0xf]
      %v1384 = vld [vmem:[%s1374 + $0x24] sm:$0xf]
      %v1385 = vld [vmem:[%s1374 + $0x28] sm:$0xf]
      %v1386 = vld [vmem:[%s1374 + $0x2c] sm:$0xf]
      %v1387 = vld [vmem:[%s1374 + $0x30] sm:$0xf]
      %v1388 = vld [vmem:[%s1374 + $0x34] sm:$0xf]
      %v1389 = vld [vmem:[%s1374 + $0x38] sm:$0xf]
      %v1390 = vld [vmem:[%s1374 + $0x3c] sm:$0xf]
      %v1407 = vunpack.c.l.b16 %v1375
      %v1408 = vunpack.c.l.b16 %v1376
      %v1409 = vunpack.c.l.b16 %v1377
      %v1410 = vunpack.c.l.b16 %v1378
      %v1411 = vunpack.c.l.b16 %v1379
      %v1412 = vunpack.c.l.b16 %v1380
      %v1413 = vunpack.c.l.b16 %v1381
      %v1414 = vunpack.c.l.b16 %v1382
      %v1415 = vunpack.c.l.b16 %v1383
      %v1416 = vunpack.c.l.b16 %v1384
      %v1417 = vunpack.c.l.b16 %v1385
      %v1418 = vunpack.c.l.b16 %v1386
      %v1419 = vunpack.c.l.b16 %v1387
      %v1420 = vunpack.c.l.b16 %v1388
      %v1421 = vunpack.c.l.b16 %v1389
      %v1422 = vunpack.c.l.b16 %v1390
      %v1423 = vpack.c.b16 %v1408, %v1407
      %v1424 = vpack.c.b16 %v1410, %v1409
      %v1425 = vpack.c.b16 %v1412, %v1411
      %v1426 = vpack.c.b16 %v1414, %v1413
      %v1427 = vpack.c.b16 %v1416, %v1415
      %v1428 = vpack.c.b16 %v1418, %v1417
      %v1429 = vpack.c.b16 %v1420, %v1419
      %v1430 = vpack.c.b16 %v1422, %v1421
      %1439 = vmatpush.bf16.msra.mxu0 %v1430
      %1440 = vmatpush.bf16.msra.mxu0 %v1429
      %1441 = vmatpush.bf16.msra.mxu0 %v1428
      %1442 = vmatpush.bf16.msra.mxu0 %v1427
      %1443 = vmatpush.bf16.msra.mxu0 %v1426
      %1444 = vmatpush.bf16.msra.mxu0 %v1425
      %1445 = vmatpush.bf16.msra.mxu0 %v1424
      %1446 = vmatpush.bf16.msra.mxu0 %v1423
      %1447 = vmatmul.bf16.gmra.mxu0 %v1358
      %v1448 = vpop.f32.mrf.mxu0
      %v1449 = vadd.f32 0.0, %v1448
      %v1450 = vpop.f32.mrf.mxu0
      %v1451 = vadd.f32 0.0, %v1450
      %1452 = vmatmul.bf16.gmra.mxu0 %v1359
      %v1453 = vpop.f32.mrf.mxu0
      %v1454 = vadd.f32 0.0, %v1453
      %v1455 = vpop.f32.mrf.mxu0
      %v1456 = vadd.f32 0.0, %v1455
      %1457 = vmatmul.bf16.gmra.mxu0 %v1360
      %v1458 = vpop.f32.mrf.mxu0
      %v1459 = vadd.f32 0.0, %v1458
      %v1460 = vpop.f32.mrf.mxu0
      %v1461 = vadd.f32 0.0, %v1460
      %1462 = vmatmul.bf16.gmra.mxu0 %v1361
      %v1463 = vpop.f32.mrf.mxu0
      %v1464 = vadd.f32 0.0, %v1463
      %v1465 = vpop.f32.mrf.mxu0
      %v1466 = vadd.f32 0.0, %v1465
      %1467 = vmatmul.bf16.gmra.mxu0 %v1362
      %v1468 = vpop.f32.mrf.mxu0
      %v1469 = vadd.f32 0.0, %v1468
      %v1470 = vpop.f32.mrf.mxu0
      %v1471 = vadd.f32 0.0, %v1470
      %1472 = vmatmul.bf16.gmra.mxu0 %v1363
      %v1473 = vpop.f32.mrf.mxu0
      %v1474 = vadd.f32 0.0, %v1473
      %v1475 = vpop.f32.mrf.mxu0
      %v1476 = vadd.f32 0.0, %v1475
      %1477 = vmatmul.bf16.gmra.mxu0 %v1364
      %v1478 = vpop.f32.mrf.mxu0
      %v1479 = vadd.f32 0.0, %v1478
      %v1480 = vpop.f32.mrf.mxu0
      %v1481 = vadd.f32 0.0, %v1480
      %1482 = vmatmul.bf16.gmra.mxu0 %v1365
      %v1483 = vpop.f32.mrf.mxu0
      %v1484 = vadd.f32 0.0, %v1483
      %v1485 = vpop.f32.mrf.mxu0
      %v1486 = vadd.f32 0.0, %v1485
      %1487 = vmatmul.bf16.gmra.mxu0 %v1366
      %v1488 = vpop.f32.mrf.mxu0
      %v1489 = vadd.f32 0.0, %v1488
      %v1490 = vpop.f32.mrf.mxu0
      %v1491 = vadd.f32 0.0, %v1490
      %1492 = vmatmul.bf16.gmra.mxu0 %v1367
      %v1493 = vpop.f32.mrf.mxu0
      %v1494 = vadd.f32 0.0, %v1493
      %v1495 = vpop.f32.mrf.mxu0
      %v1496 = vadd.f32 0.0, %v1495
      %1497 = vmatmul.bf16.gmra.mxu0 %v1368
      %v1498 = vpop.f32.mrf.mxu0
      %v1499 = vadd.f32 0.0, %v1498
      %v1500 = vpop.f32.mrf.mxu0
      %v1501 = vadd.f32 0.0, %v1500
      %1502 = vmatmul.bf16.gmra.mxu0 %v1369
      %v1503 = vpop.f32.mrf.mxu0
      %v1504 = vadd.f32 0.0, %v1503
      %v1505 = vpop.f32.mrf.mxu0
      %v1506 = vadd.f32 0.0, %v1505
      %1507 = vmatmul.bf16.gmra.mxu0 %v1370
      %v1508 = vpop.f32.mrf.mxu0
      %v1509 = vadd.f32 0.0, %v1508
      %v1510 = vpop.f32.mrf.mxu0
      %v1511 = vadd.f32 0.0, %v1510
      %1512 = vmatmul.bf16.gmra.mxu0 %v1371
      %v1513 = vpop.f32.mrf.mxu0
      %v1514 = vadd.f32 0.0, %v1513
      %v1515 = vpop.f32.mrf.mxu0
      %v1516 = vadd.f32 0.0, %v1515
      %1517 = vmatmul.bf16.gmra.mxu0 %v1372
      %v1518 = vpop.f32.mrf.mxu0
      %v1519 = vadd.f32 0.0, %v1518
      %v1520 = vpop.f32.mrf.mxu0
      %v1521 = vadd.f32 0.0, %v1520
      %1522 = vmatmul.bf16.gmra.mxu0 %v1373
      %v1523 = vpop.f32.mrf.mxu0
      %v1524 = vadd.f32 0.0, %v1523
      %v1525 = vpop.f32.mrf.mxu0
      %v1526 = vadd.f32 0.0, %v1525
      %1527 = vdwg.mxu0
      %v1528 = vadd.f32 %v1294, %v1449
      %v1529 = vadd.f32 %v1295, %v1451
      %v1530 = vadd.f32 %v1296, %v1454
      %v1531 = vadd.f32 %v1297, %v1456
      %v1532 = vadd.f32 %v1298, %v1459
      %v1533 = vadd.f32 %v1299, %v1461
      %v1534 = vadd.f32 %v1300, %v1464
      %v1535 = vadd.f32 %v1301, %v1466
      %v1536 = vadd.f32 %v1302, %v1469
      %v1537 = vadd.f32 %v1303, %v1471
      %v1538 = vadd.f32 %v1304, %v1474
      %v1539 = vadd.f32 %v1305, %v1476
      %v1540 = vadd.f32 %v1306, %v1479
      %v1541 = vadd.f32 %v1307, %v1481
      %v1542 = vadd.f32 %v1308, %v1484
      %v1543 = vadd.f32 %v1309, %v1486
      %v1544 = vadd.f32 %v1310, %v1489
      %v1545 = vadd.f32 %v1311, %v1491
      %v1546 = vadd.f32 %v1312, %v1494
      %v1547 = vadd.f32 %v1313, %v1496
      %v1548 = vadd.f32 %v1314, %v1499
      %v1549 = vadd.f32 %v1315, %v1501
      %v1550 = vadd.f32 %v1316, %v1504
      %v1551 = vadd.f32 %v1317, %v1506
      %v1552 = vadd.f32 %v1318, %v1509
      %v1553 = vadd.f32 %v1319, %v1511
      %v1554 = vadd.f32 %v1320, %v1514
      %v1555 = vadd.f32 %v1321, %v1516
      %v1556 = vadd.f32 %v1322, %v1519
      %v1557 = vadd.f32 %v1323, %v1521
      %v1558 = vadd.f32 %v1324, %v1524
      %v1559 = vadd.f32 %v1325, %v1526
      %v1560 = vld [vmem:[%s210 + $0x22] sm:$0xff]
      %v1561 = vld [vmem:[%s210 + $0x2a] sm:$0xff]
      %v1562 = vld [vmem:[%s210 + $0x32] sm:$0xff]
      %v1563 = vld [vmem:[%s210 + $0x3a] sm:$0xff]
      %v1564 = vld [vmem:[%s210 + $0x42] sm:$0xff]
      %v1565 = vld [vmem:[%s210 + $0x4a] sm:$0xff]
      %v1566 = vld [vmem:[%s210 + $0x52] sm:$0xff]
      %v1567 = vld [vmem:[%s210 + $0x5a] sm:$0xff]
      %v1568 = vld [vmem:[%s210 + $0x62] sm:$0xff]
      %v1569 = vld [vmem:[%s210 + $0x6a] sm:$0xff]
      %v1570 = vld [vmem:[%s210 + $0x72] sm:$0xff]
      %v1571 = vld [vmem:[%s210 + $0x7a] sm:$0xff]
      %v1572 = vld [vmem:[%s210 + $0x82] sm:$0xff]
      %v1573 = vld [vmem:[%s210 + $0x8a] sm:$0xff]
      %v1574 = vld [vmem:[%s210 + $0x92] sm:$0xff]
      %v1575 = vld [vmem:[%s210 + $0x9a] sm:$0xff]
      %v1576 = vld [vmem:[%s210 + $0xa2] sm:$0xff]
      %v1577 = vld [vmem:[%s210 + $0xaa] sm:$0xff]
      %v1578 = vld [vmem:[%s210 + $0xb2] sm:$0xff]
      %v1579 = vld [vmem:[%s210 + $0xba] sm:$0xff]
      %v1580 = vld [vmem:[%s210 + $0xc2] sm:$0xff]
      %v1581 = vld [vmem:[%s210 + $0xca] sm:$0xff]
      %v1582 = vld [vmem:[%s210 + $0xd2] sm:$0xff]
      %v1583 = vld [vmem:[%s210 + $0xda] sm:$0xff]
      %v1584 = vld [vmem:[%s210 + $0xe2] sm:$0xff]
      %v1585 = vld [vmem:[%s210 + $0xea] sm:$0xff]
      %v1586 = vld [vmem:[%s210 + $0xf2] sm:$0xff]
      %v1587 = vld [vmem:[%s210 + $0xfa] sm:$0xff]
      %v1588 = vld [vmem:[%s210 + $0x102] sm:$0xff]
      %v1589 = vld [vmem:[%s210 + $0x10a] sm:$0xff]
      %v1590 = vld [vmem:[%s210 + $0x112] sm:$0xff]
      %v1591 = vld [vmem:[%s210 + $0x11a] sm:$0xff]
      %v1592 = vpack.c.bf16 %v1561, %v1560
      %v1593 = vpack.c.bf16 %v1563, %v1562
      %v1594 = vpack.c.bf16 %v1565, %v1564
      %v1595 = vpack.c.bf16 %v1567, %v1566
      %v1596 = vpack.c.bf16 %v1569, %v1568
      %v1597 = vpack.c.bf16 %v1571, %v1570
      %v1598 = vpack.c.bf16 %v1573, %v1572
      %v1599 = vpack.c.bf16 %v1575, %v1574
      %v1600 = vpack.c.bf16 %v1577, %v1576
      %v1601 = vpack.c.bf16 %v1579, %v1578
      %v1602 = vpack.c.bf16 %v1581, %v1580
      %v1603 = vpack.c.bf16 %v1583, %v1582
      %v1604 = vpack.c.bf16 %v1585, %v1584
      %v1605 = vpack.c.bf16 %v1587, %v1586
      %v1606 = vpack.c.bf16 %v1589, %v1588
      %v1607 = vpack.c.bf16 %v1591, %v1590
      %s1608 = scalar_lea.vmem %s1, 384
      %v1609 = vld [vmem:[%s1608] sm:$0xf]
      %v1610 = vld [vmem:[%s1608 + $0x4] sm:$0xf]
      %v1611 = vld [vmem:[%s1608 + $0x8] sm:$0xf]
      %v1612 = vld [vmem:[%s1608 + $0xc] sm:$0xf]
      %v1613 = vld [vmem:[%s1608 + $0x10] sm:$0xf]
      %v1614 = vld [vmem:[%s1608 + $0x14] sm:$0xf]
      %v1615 = vld [vmem:[%s1608 + $0x18] sm:$0xf]
      %v1616 = vld [vmem:[%s1608 + $0x1c] sm:$0xf]
      %v1617 = vld [vmem:[%s1608 + $0x20] sm:$0xf]
      %v1618 = vld [vmem:[%s1608 + $0x24] sm:$0xf]
      %v1619 = vld [vmem:[%s1608 + $0x28] sm:$0xf]
      %v1620 = vld [vmem:[%s1608 + $0x2c] sm:$0xf]
      %v1621 = vld [vmem:[%s1608 + $0x30] sm:$0xf]
      %v1622 = vld [vmem:[%s1608 + $0x34] sm:$0xf]
      %v1623 = vld [vmem:[%s1608 + $0x38] sm:$0xf]
      %v1624 = vld [vmem:[%s1608 + $0x3c] sm:$0xf]
      %v1641 = vunpack.c.l.b16 %v1609
      %v1642 = vunpack.c.l.b16 %v1610
      %v1643 = vunpack.c.l.b16 %v1611
      %v1644 = vunpack.c.l.b16 %v1612
      %v1645 = vunpack.c.l.b16 %v1613
      %v1646 = vunpack.c.l.b16 %v1614
      %v1647 = vunpack.c.l.b16 %v1615
      %v1648 = vunpack.c.l.b16 %v1616
      %v1649 = vunpack.c.l.b16 %v1617
      %v1650 = vunpack.c.l.b16 %v1618
      %v1651 = vunpack.c.l.b16 %v1619
      %v1652 = vunpack.c.l.b16 %v1620
      %v1653 = vunpack.c.l.b16 %v1621
      %v1654 = vunpack.c.l.b16 %v1622
      %v1655 = vunpack.c.l.b16 %v1623
      %v1656 = vunpack.c.l.b16 %v1624
      %v1657 = vpack.c.b16 %v1642, %v1641
      %v1658 = vpack.c.b16 %v1644, %v1643
      %v1659 = vpack.c.b16 %v1646, %v1645
      %v1660 = vpack.c.b16 %v1648, %v1647
      %v1661 = vpack.c.b16 %v1650, %v1649
      %v1662 = vpack.c.b16 %v1652, %v1651
      %v1663 = vpack.c.b16 %v1654, %v1653
      %v1664 = vpack.c.b16 %v1656, %v1655
      %1673 = vmatpush.bf16.msra.mxu0 %v1664
      %1674 = vmatpush.bf16.msra.mxu0 %v1663
      %1675 = vmatpush.bf16.msra.mxu0 %v1662
      %1676 = vmatpush.bf16.msra.mxu0 %v1661
      %1677 = vmatpush.bf16.msra.mxu0 %v1660
      %1678 = vmatpush.bf16.msra.mxu0 %v1659
      %1679 = vmatpush.bf16.msra.mxu0 %v1658
      %1680 = vmatpush.bf16.msra.mxu0 %v1657
      %1681 = vmatmul.bf16.gmra.mxu0 %v1592
      %v1682 = vpop.f32.mrf.mxu0
      %v1683 = vadd.f32 0.0, %v1682
      %v1684 = vpop.f32.mrf.mxu0
      %v1685 = vadd.f32 0.0, %v1684
      %1686 = vmatmul.bf16.gmra.mxu0 %v1593
      %v1687 = vpop.f32.mrf.mxu0
      %v1688 = vadd.f32 0.0, %v1687
      %v1689 = vpop.f32.mrf.mxu0
      %v1690 = vadd.f32 0.0, %v1689
      %1691 = vmatmul.bf16.gmra.mxu0 %v1594
      %v1692 = vpop.f32.mrf.mxu0
      %v1693 = vadd.f32 0.0, %v1692
      %v1694 = vpop.f32.mrf.mxu0
      %v1695 = vadd.f32 0.0, %v1694
      %1696 = vmatmul.bf16.gmra.mxu0 %v1595
      %v1697 = vpop.f32.mrf.mxu0
      %v1698 = vadd.f32 0.0, %v1697
      %v1699 = vpop.f32.mrf.mxu0
      %v1700 = vadd.f32 0.0, %v1699
      %1701 = vmatmul.bf16.gmra.mxu0 %v1596
      %v1702 = vpop.f32.mrf.mxu0
      %v1703 = vadd.f32 0.0, %v1702
      %v1704 = vpop.f32.mrf.mxu0
      %v1705 = vadd.f32 0.0, %v1704
      %1706 = vmatmul.bf16.gmra.mxu0 %v1597
      %v1707 = vpop.f32.mrf.mxu0
      %v1708 = vadd.f32 0.0, %v1707
      %v1709 = vpop.f32.mrf.mxu0
      %v1710 = vadd.f32 0.0, %v1709
      %1711 = vmatmul.bf16.gmra.mxu0 %v1598
      %v1712 = vpop.f32.mrf.mxu0
      %v1713 = vadd.f32 0.0, %v1712
      %v1714 = vpop.f32.mrf.mxu0
      %v1715 = vadd.f32 0.0, %v1714
      %1716 = vmatmul.bf16.gmra.mxu0 %v1599
      %v1717 = vpop.f32.mrf.mxu0
      %v1718 = vadd.f32 0.0, %v1717
      %v1719 = vpop.f32.mrf.mxu0
      %v1720 = vadd.f32 0.0, %v1719
      %1721 = vmatmul.bf16.gmra.mxu0 %v1600
      %v1722 = vpop.f32.mrf.mxu0
      %v1723 = vadd.f32 0.0, %v1722
      %v1724 = vpop.f32.mrf.mxu0
      %v1725 = vadd.f32 0.0, %v1724
      %1726 = vmatmul.bf16.gmra.mxu0 %v1601
      %v1727 = vpop.f32.mrf.mxu0
      %v1728 = vadd.f32 0.0, %v1727
      %v1729 = vpop.f32.mrf.mxu0
      %v1730 = vadd.f32 0.0, %v1729
      %1731 = vmatmul.bf16.gmra.mxu0 %v1602
      %v1732 = vpop.f32.mrf.mxu0
      %v1733 = vadd.f32 0.0, %v1732
      %v1734 = vpop.f32.mrf.mxu0
      %v1735 = vadd.f32 0.0, %v1734
      %1736 = vmatmul.bf16.gmra.mxu0 %v1603
      %v1737 = vpop.f32.mrf.mxu0
      %v1738 = vadd.f32 0.0, %v1737
      %v1739 = vpop.f32.mrf.mxu0
      %v1740 = vadd.f32 0.0, %v1739
      %1741 = vmatmul.bf16.gmra.mxu0 %v1604
      %v1742 = vpop.f32.mrf.mxu0
      %v1743 = vadd.f32 0.0, %v1742
      %v1744 = vpop.f32.mrf.mxu0
      %v1745 = vadd.f32 0.0, %v1744
      %1746 = vmatmul.bf16.gmra.mxu0 %v1605
      %v1747 = vpop.f32.mrf.mxu0
      %v1748 = vadd.f32 0.0, %v1747
      %v1749 = vpop.f32.mrf.mxu0
      %v1750 = vadd.f32 0.0, %v1749
      %1751 = vmatmul.bf16.gmra.mxu0 %v1606
      %v1752 = vpop.f32.mrf.mxu0
      %v1753 = vadd.f32 0.0, %v1752
      %v1754 = vpop.f32.mrf.mxu0
      %v1755 = vadd.f32 0.0, %v1754
      %1756 = vmatmul.bf16.gmra.mxu0 %v1607
      %v1757 = vpop.f32.mrf.mxu0
      %v1758 = vadd.f32 0.0, %v1757
      %v1759 = vpop.f32.mrf.mxu0
      %v1760 = vadd.f32 0.0, %v1759
      %1761 = vdwg.mxu0
      %v1762 = vadd.f32 %v1528, %v1683
      %v1763 = vadd.f32 %v1529, %v1685
      %v1764 = vadd.f32 %v1530, %v1688
      %v1765 = vadd.f32 %v1531, %v1690
      %v1766 = vadd.f32 %v1532, %v1693
      %v1767 = vadd.f32 %v1533, %v1695
      %v1768 = vadd.f32 %v1534, %v1698
      %v1769 = vadd.f32 %v1535, %v1700
      %v1770 = vadd.f32 %v1536, %v1703
      %v1771 = vadd.f32 %v1537, %v1705
      %v1772 = vadd.f32 %v1538, %v1708
      %v1773 = vadd.f32 %v1539, %v1710
      %v1774 = vadd.f32 %v1540, %v1713
      %v1775 = vadd.f32 %v1541, %v1715
      %v1776 = vadd.f32 %v1542, %v1718
      %v1777 = vadd.f32 %v1543, %v1720
      %v1778 = vadd.f32 %v1544, %v1723
      %v1779 = vadd.f32 %v1545, %v1725
      %v1780 = vadd.f32 %v1546, %v1728
      %v1781 = vadd.f32 %v1547, %v1730
      %v1782 = vadd.f32 %v1548, %v1733
      %v1783 = vadd.f32 %v1549, %v1735
      %v1784 = vadd.f32 %v1550, %v1738
      %v1785 = vadd.f32 %v1551, %v1740
      %v1786 = vadd.f32 %v1552, %v1743
      %v1787 = vadd.f32 %v1553, %v1745
      %v1788 = vadd.f32 %v1554, %v1748
      %v1789 = vadd.f32 %v1555, %v1750
      %v1790 = vadd.f32 %v1556, %v1753
      %v1791 = vadd.f32 %v1557, %v1755
      %v1792 = vadd.f32 %v1558, %v1758
      %v1793 = vadd.f32 %v1559, %v1760
      %v1794 = vld [vmem:[%s210 + $0x23] sm:$0xff]
      %v1795 = vld [vmem:[%s210 + $0x2b] sm:$0xff]
      %v1796 = vld [vmem:[%s210 + $0x33] sm:$0xff]
      %v1797 = vld [vmem:[%s210 + $0x3b] sm:$0xff]
      %v1798 = vld [vmem:[%s210 + $0x43] sm:$0xff]
      %v1799 = vld [vmem:[%s210 + $0x4b] sm:$0xff]
      %v1800 = vld [vmem:[%s210 + $0x53] sm:$0xff]
      %v1801 = vld [vmem:[%s210 + $0x5b] sm:$0xff]
      %v1802 = vld [vmem:[%s210 + $0x63] sm:$0xff]
      %v1803 = vld [vmem:[%s210 + $0x6b] sm:$0xff]
      %v1804 = vld [vmem:[%s210 + $0x73] sm:$0xff]
      %v1805 = vld [vmem:[%s210 + $0x7b] sm:$0xff]
      %v1806 = vld [vmem:[%s210 + $0x83] sm:$0xff]
      %v1807 = vld [vmem:[%s210 + $0x8b] sm:$0xff]
      %v1808 = vld [vmem:[%s210 + $0x93] sm:$0xff]
      %v1809 = vld [vmem:[%s210 + $0x9b] sm:$0xff]
      %v1810 = vld [vmem:[%s210 + $0xa3] sm:$0xff]
      %v1811 = vld [vmem:[%s210 + $0xab] sm:$0xff]
      %v1812 = vld [vmem:[%s210 + $0xb3] sm:$0xff]
      %v1813 = vld [vmem:[%s210 + $0xbb] sm:$0xff]
      %v1814 = vld [vmem:[%s210 + $0xc3] sm:$0xff]
      %v1815 = vld [vmem:[%s210 + $0xcb] sm:$0xff]
      %v1816 = vld [vmem:[%s210 + $0xd3] sm:$0xff]
      %v1817 = vld [vmem:[%s210 + $0xdb] sm:$0xff]
      %v1818 = vld [vmem:[%s210 + $0xe3] sm:$0xff]
      %v1819 = vld [vmem:[%s210 + $0xeb] sm:$0xff]
      %v1820 = vld [vmem:[%s210 + $0xf3] sm:$0xff]
      %v1821 = vld [vmem:[%s210 + $0xfb] sm:$0xff]
      %v1822 = vld [vmem:[%s210 + $0x103] sm:$0xff]
      %v1823 = vld [vmem:[%s210 + $0x10b] sm:$0xff]
      %v1824 = vld [vmem:[%s210 + $0x113] sm:$0xff]
      %v1825 = vld [vmem:[%s210 + $0x11b] sm:$0xff]
      %v1826 = vpack.c.bf16 %v1795, %v1794
      %v1827 = vpack.c.bf16 %v1797, %v1796
      %v1828 = vpack.c.bf16 %v1799, %v1798
      %v1829 = vpack.c.bf16 %v1801, %v1800
      %v1830 = vpack.c.bf16 %v1803, %v1802
      %v1831 = vpack.c.bf16 %v1805, %v1804
      %v1832 = vpack.c.bf16 %v1807, %v1806
      %v1833 = vpack.c.bf16 %v1809, %v1808
      %v1834 = vpack.c.bf16 %v1811, %v1810
      %v1835 = vpack.c.bf16 %v1813, %v1812
      %v1836 = vpack.c.bf16 %v1815, %v1814
      %v1837 = vpack.c.bf16 %v1817, %v1816
      %v1838 = vpack.c.bf16 %v1819, %v1818
      %v1839 = vpack.c.bf16 %v1821, %v1820
      %v1840 = vpack.c.bf16 %v1823, %v1822
      %v1841 = vpack.c.bf16 %v1825, %v1824
      %s1842 = scalar_lea.vmem %s1, 448
      %v1843 = vld [vmem:[%s1842] sm:$0xf]
      %v1844 = vld [vmem:[%s1842 + $0x4] sm:$0xf]
      %v1845 = vld [vmem:[%s1842 + $0x8] sm:$0xf]
      %v1846 = vld [vmem:[%s1842 + $0xc] sm:$0xf]
      %v1847 = vld [vmem:[%s1842 + $0x10] sm:$0xf]
      %v1848 = vld [vmem:[%s1842 + $0x14] sm:$0xf]
      %v1849 = vld [vmem:[%s1842 + $0x18] sm:$0xf]
      %v1850 = vld [vmem:[%s1842 + $0x1c] sm:$0xf]
      %v1851 = vld [vmem:[%s1842 + $0x20] sm:$0xf]
      %v1852 = vld [vmem:[%s1842 + $0x24] sm:$0xf]
      %v1853 = vld [vmem:[%s1842 + $0x28] sm:$0xf]
      %v1854 = vld [vmem:[%s1842 + $0x2c] sm:$0xf]
      %v1855 = vld [vmem:[%s1842 + $0x30] sm:$0xf]
      %v1856 = vld [vmem:[%s1842 + $0x34] sm:$0xf]
      %v1857 = vld [vmem:[%s1842 + $0x38] sm:$0xf]
      %v1858 = vld [vmem:[%s1842 + $0x3c] sm:$0xf]
      %v1875 = vunpack.c.l.b16 %v1843
      %v1876 = vunpack.c.l.b16 %v1844
      %v1877 = vunpack.c.l.b16 %v1845
      %v1878 = vunpack.c.l.b16 %v1846
      %v1879 = vunpack.c.l.b16 %v1847
      %v1880 = vunpack.c.l.b16 %v1848
      %v1881 = vunpack.c.l.b16 %v1849
      %v1882 = vunpack.c.l.b16 %v1850
      %v1883 = vunpack.c.l.b16 %v1851
      %v1884 = vunpack.c.l.b16 %v1852
      %v1885 = vunpack.c.l.b16 %v1853
      %v1886 = vunpack.c.l.b16 %v1854
      %v1887 = vunpack.c.l.b16 %v1855
      %v1888 = vunpack.c.l.b16 %v1856
      %v1889 = vunpack.c.l.b16 %v1857
      %v1890 = vunpack.c.l.b16 %v1858
      %v1891 = vpack.c.b16 %v1876, %v1875
      %v1892 = vpack.c.b16 %v1878, %v1877
      %v1893 = vpack.c.b16 %v1880, %v1879
      %v1894 = vpack.c.b16 %v1882, %v1881
      %v1895 = vpack.c.b16 %v1884, %v1883
      %v1896 = vpack.c.b16 %v1886, %v1885
      %v1897 = vpack.c.b16 %v1888, %v1887
      %v1898 = vpack.c.b16 %v1890, %v1889
      %1907 = vmatpush.bf16.msra.mxu0 %v1898
      %1908 = vmatpush.bf16.msra.mxu0 %v1897
      %1909 = vmatpush.bf16.msra.mxu0 %v1896
      %1910 = vmatpush.bf16.msra.mxu0 %v1895
      %1911 = vmatpush.bf16.msra.mxu0 %v1894
      %1912 = vmatpush.bf16.msra.mxu0 %v1893
      %1913 = vmatpush.bf16.msra.mxu0 %v1892
      %1914 = vmatpush.bf16.msra.mxu0 %v1891
      %1915 = vmatmul.bf16.gmra.mxu0 %v1826
      %v1916 = vpop.f32.mrf.mxu0
      %v1917 = vadd.f32 0.0, %v1916
      %v1918 = vpop.f32.mrf.mxu0
      %v1919 = vadd.f32 0.0, %v1918
      %1920 = vmatmul.bf16.gmra.mxu0 %v1827
      %v1921 = vpop.f32.mrf.mxu0
      %v1922 = vadd.f32 0.0, %v1921
      %v1923 = vpop.f32.mrf.mxu0
      %v1924 = vadd.f32 0.0, %v1923
      %1925 = vmatmul.bf16.gmra.mxu0 %v1828
      %v1926 = vpop.f32.mrf.mxu0
      %v1927 = vadd.f32 0.0, %v1926
      %v1928 = vpop.f32.mrf.mxu0
      %v1929 = vadd.f32 0.0, %v1928
      %1930 = vmatmul.bf16.gmra.mxu0 %v1829
      %v1931 = vpop.f32.mrf.mxu0
      %v1932 = vadd.f32 0.0, %v1931
      %v1933 = vpop.f32.mrf.mxu0
      %v1934 = vadd.f32 0.0, %v1933
      %1935 = vmatmul.bf16.gmra.mxu0 %v1830
      %v1936 = vpop.f32.mrf.mxu0
      %v1937 = vadd.f32 0.0, %v1936
      %v1938 = vpop.f32.mrf.mxu0
      %v1939 = vadd.f32 0.0, %v1938
      %1940 = vmatmul.bf16.gmra.mxu0 %v1831
      %v1941 = vpop.f32.mrf.mxu0
      %v1942 = vadd.f32 0.0, %v1941
      %v1943 = vpop.f32.mrf.mxu0
      %v1944 = vadd.f32 0.0, %v1943
      %1945 = vmatmul.bf16.gmra.mxu0 %v1832
      %v1946 = vpop.f32.mrf.mxu0
      %v1947 = vadd.f32 0.0, %v1946
      %v1948 = vpop.f32.mrf.mxu0
      %v1949 = vadd.f32 0.0, %v1948
      %1950 = vmatmul.bf16.gmra.mxu0 %v1833
      %v1951 = vpop.f32.mrf.mxu0
      %v1952 = vadd.f32 0.0, %v1951
      %v1953 = vpop.f32.mrf.mxu0
      %v1954 = vadd.f32 0.0, %v1953
      %1955 = vmatmul.bf16.gmra.mxu0 %v1834
      %v1956 = vpop.f32.mrf.mxu0
      %v1957 = vadd.f32 0.0, %v1956
      %v1958 = vpop.f32.mrf.mxu0
      %v1959 = vadd.f32 0.0, %v1958
      %1960 = vmatmul.bf16.gmra.mxu0 %v1835
      %v1961 = vpop.f32.mrf.mxu0
      %v1962 = vadd.f32 0.0, %v1961
      %v1963 = vpop.f32.mrf.mxu0
      %v1964 = vadd.f32 0.0, %v1963
      %1965 = vmatmul.bf16.gmra.mxu0 %v1836
      %v1966 = vpop.f32.mrf.mxu0
      %v1967 = vadd.f32 0.0, %v1966
      %v1968 = vpop.f32.mrf.mxu0
      %v1969 = vadd.f32 0.0, %v1968
      %1970 = vmatmul.bf16.gmra.mxu0 %v1837
      %v1971 = vpop.f32.mrf.mxu0
      %v1972 = vadd.f32 0.0, %v1971
      %v1973 = vpop.f32.mrf.mxu0
      %v1974 = vadd.f32 0.0, %v1973
      %1975 = vmatmul.bf16.gmra.mxu0 %v1838
      %v1976 = vpop.f32.mrf.mxu0
      %v1977 = vadd.f32 0.0, %v1976
      %v1978 = vpop.f32.mrf.mxu0
      %v1979 = vadd.f32 0.0, %v1978
      %1980 = vmatmul.bf16.gmra.mxu0 %v1839
      %v1981 = vpop.f32.mrf.mxu0
      %v1982 = vadd.f32 0.0, %v1981
      %v1983 = vpop.f32.mrf.mxu0
      %v1984 = vadd.f32 0.0, %v1983
      %1985 = vmatmul.bf16.gmra.mxu0 %v1840
      %v1986 = vpop.f32.mrf.mxu0
      %v1987 = vadd.f32 0.0, %v1986
      %v1988 = vpop.f32.mrf.mxu0
      %v1989 = vadd.f32 0.0, %v1988
      %1990 = vmatmul.bf16.gmra.mxu0 %v1841
      %v1991 = vpop.f32.mrf.mxu0
      %v1992 = vadd.f32 0.0, %v1991
      %v1993 = vpop.f32.mrf.mxu0
      %v1994 = vadd.f32 0.0, %v1993
      %1995 = vdwg.mxu0
      %v1996 = vadd.f32 %v1762, %v1917
      %v1997 = vadd.f32 %v1763, %v1919
      %v1998 = vadd.f32 %v1764, %v1922
      %v1999 = vadd.f32 %v1765, %v1924
      %v2000 = vadd.f32 %v1766, %v1927
      %v2001 = vadd.f32 %v1767, %v1929
      %v2002 = vadd.f32 %v1768, %v1932
      %v2003 = vadd.f32 %v1769, %v1934
      %v2004 = vadd.f32 %v1770, %v1937
      %v2005 = vadd.f32 %v1771, %v1939
      %v2006 = vadd.f32 %v1772, %v1942
      %v2007 = vadd.f32 %v1773, %v1944
      %v2008 = vadd.f32 %v1774, %v1947
      %v2009 = vadd.f32 %v1775, %v1949
      %v2010 = vadd.f32 %v1776, %v1952
      %v2011 = vadd.f32 %v1777, %v1954
      %v2012 = vadd.f32 %v1778, %v1957
      %v2013 = vadd.f32 %v1779, %v1959
      %v2014 = vadd.f32 %v1780, %v1962
      %v2015 = vadd.f32 %v1781, %v1964
      %v2016 = vadd.f32 %v1782, %v1967
      %v2017 = vadd.f32 %v1783, %v1969
      %v2018 = vadd.f32 %v1784, %v1972
      %v2019 = vadd.f32 %v1785, %v1974
      %v2020 = vadd.f32 %v1786, %v1977
      %v2021 = vadd.f32 %v1787, %v1979
      %v2022 = vadd.f32 %v1788, %v1982
      %v2023 = vadd.f32 %v1789, %v1984
      %v2024 = vadd.f32 %v1790, %v1987
      %v2025 = vadd.f32 %v1791, %v1989
      %v2026 = vadd.f32 %v1792, %v1992
      %v2027 = vadd.f32 %v1793, %v1994
      %v2028 = vld [vmem:[%s210 + $0x24] sm:$0xff]
      %v2029 = vld [vmem:[%s210 + $0x2c] sm:$0xff]
      %v2030 = vld [vmem:[%s210 + $0x34] sm:$0xff]
      %v2031 = vld [vmem:[%s210 + $0x3c] sm:$0xff]
      %v2032 = vld [vmem:[%s210 + $0x44] sm:$0xff]
      %v2033 = vld [vmem:[%s210 + $0x4c] sm:$0xff]
      %v2034 = vld [vmem:[%s210 + $0x54] sm:$0xff]
      %v2035 = vld [vmem:[%s210 + $0x5c] sm:$0xff]
      %v2036 = vld [vmem:[%s210 + $0x64] sm:$0xff]
      %v2037 = vld [vmem:[%s210 + $0x6c] sm:$0xff]
      %v2038 = vld [vmem:[%s210 + $0x74] sm:$0xff]
      %v2039 = vld [vmem:[%s210 + $0x7c] sm:$0xff]
      %v2040 = vld [vmem:[%s210 + $0x84] sm:$0xff]
      %v2041 = vld [vmem:[%s210 + $0x8c] sm:$0xff]
      %v2042 = vld [vmem:[%s210 + $0x94] sm:$0xff]
      %v2043 = vld [vmem:[%s210 + $0x9c] sm:$0xff]
      %v2044 = vld [vmem:[%s210 + $0xa4] sm:$0xff]
      %v2045 = vld [vmem:[%s210 + $0xac] sm:$0xff]
      %v2046 = vld [vmem:[%s210 + $0xb4] sm:$0xff]
      %v2047 = vld [vmem:[%s210 + $0xbc] sm:$0xff]
      %v2048 = vld [vmem:[%s210 + $0xc4] sm:$0xff]
      %v2049 = vld [vmem:[%s210 + $0xcc] sm:$0xff]
      %v2050 = vld [vmem:[%s210 + $0xd4] sm:$0xff]
      %v2051 = vld [vmem:[%s210 + $0xdc] sm:$0xff]
      %v2052 = vld [vmem:[%s210 + $0xe4] sm:$0xff]
      %v2053 = vld [vmem:[%s210 + $0xec] sm:$0xff]
      %v2054 = vld [vmem:[%s210 + $0xf4] sm:$0xff]
      %v2055 = vld [vmem:[%s210 + $0xfc] sm:$0xff]
      %v2056 = vld [vmem:[%s210 + $0x104] sm:$0xff]
      %v2057 = vld [vmem:[%s210 + $0x10c] sm:$0xff]
      %v2058 = vld [vmem:[%s210 + $0x114] sm:$0xff]
      %v2059 = vld [vmem:[%s210 + $0x11c] sm:$0xff]
      %v2060 = vpack.c.bf16 %v2029, %v2028
      %v2061 = vpack.c.bf16 %v2031, %v2030
      %v2062 = vpack.c.bf16 %v2033, %v2032
      %v2063 = vpack.c.bf16 %v2035, %v2034
      %v2064 = vpack.c.bf16 %v2037, %v2036
      %v2065 = vpack.c.bf16 %v2039, %v2038
      %v2066 = vpack.c.bf16 %v2041, %v2040
      %v2067 = vpack.c.bf16 %v2043, %v2042
      %v2068 = vpack.c.bf16 %v2045, %v2044
      %v2069 = vpack.c.bf16 %v2047, %v2046
      %v2070 = vpack.c.bf16 %v2049, %v2048
      %v2071 = vpack.c.bf16 %v2051, %v2050
      %v2072 = vpack.c.bf16 %v2053, %v2052
      %v2073 = vpack.c.bf16 %v2055, %v2054
      %v2074 = vpack.c.bf16 %v2057, %v2056
      %v2075 = vpack.c.bf16 %v2059, %v2058
      %s2076 = scalar_lea.vmem %s1, 512
      %v2077 = vld [vmem:[%s2076] sm:$0xf]
      %v2078 = vld [vmem:[%s2076 + $0x4] sm:$0xf]
      %v2079 = vld [vmem:[%s2076 + $0x8] sm:$0xf]
      %v2080 = vld [vmem:[%s2076 + $0xc] sm:$0xf]
      %v2081 = vld [vmem:[%s2076 + $0x10] sm:$0xf]
      %v2082 = vld [vmem:[%s2076 + $0x14] sm:$0xf]
      %v2083 = vld [vmem:[%s2076 + $0x18] sm:$0xf]
      %v2084 = vld [vmem:[%s2076 + $0x1c] sm:$0xf]
      %v2085 = vld [vmem:[%s2076 + $0x20] sm:$0xf]
      %v2086 = vld [vmem:[%s2076 + $0x24] sm:$0xf]
      %v2087 = vld [vmem:[%s2076 + $0x28] sm:$0xf]
      %v2088 = vld [vmem:[%s2076 + $0x2c] sm:$0xf]
      %v2089 = vld [vmem:[%s2076 + $0x30] sm:$0xf]
      %v2090 = vld [vmem:[%s2076 + $0x34] sm:$0xf]
      %v2091 = vld [vmem:[%s2076 + $0x38] sm:$0xf]
      %v2092 = vld [vmem:[%s2076 + $0x3c] sm:$0xf]
      %v2109 = vunpack.c.l.b16 %v2077
      %v2110 = vunpack.c.l.b16 %v2078
      %v2111 = vunpack.c.l.b16 %v2079
      %v2112 = vunpack.c.l.b16 %v2080
      %v2113 = vunpack.c.l.b16 %v2081
      %v2114 = vunpack.c.l.b16 %v2082
      %v2115 = vunpack.c.l.b16 %v2083
      %v2116 = vunpack.c.l.b16 %v2084
      %v2117 = vunpack.c.l.b16 %v2085
      %v2118 = vunpack.c.l.b16 %v2086
      %v2119 = vunpack.c.l.b16 %v2087
      %v2120 = vunpack.c.l.b16 %v2088
      %v2121 = vunpack.c.l.b16 %v2089
      %v2122 = vunpack.c.l.b16 %v2090
      %v2123 = vunpack.c.l.b16 %v2091
      %v2124 = vunpack.c.l.b16 %v2092
      %v2125 = vpack.c.b16 %v2110, %v2109
      %v2126 = vpack.c.b16 %v2112, %v2111
      %v2127 = vpack.c.b16 %v2114, %v2113
      %v2128 = vpack.c.b16 %v2116, %v2115
      %v2129 = vpack.c.b16 %v2118, %v2117
      %v2130 = vpack.c.b16 %v2120, %v2119
      %v2131 = vpack.c.b16 %v2122, %v2121
      %v2132 = vpack.c.b16 %v2124, %v2123
      %2141 = vmatpush.bf16.msra.mxu0 %v2132
      %2142 = vmatpush.bf16.msra.mxu0 %v2131
      %2143 = vmatpush.bf16.msra.mxu0 %v2130
      %2144 = vmatpush.bf16.msra.mxu0 %v2129
      %2145 = vmatpush.bf16.msra.mxu0 %v2128
      %2146 = vmatpush.bf16.msra.mxu0 %v2127
      %2147 = vmatpush.bf16.msra.mxu0 %v2126
      %2148 = vmatpush.bf16.msra.mxu0 %v2125
      %2149 = vmatmul.bf16.gmra.mxu0 %v2060
      %v2150 = vpop.f32.mrf.mxu0
      %v2151 = vadd.f32 0.0, %v2150
      %v2152 = vpop.f32.mrf.mxu0
      %v2153 = vadd.f32 0.0, %v2152
      %2154 = vmatmul.bf16.gmra.mxu0 %v2061
      %v2155 = vpop.f32.mrf.mxu0
      %v2156 = vadd.f32 0.0, %v2155
      %v2157 = vpop.f32.mrf.mxu0
      %v2158 = vadd.f32 0.0, %v2157
      %2159 = vmatmul.bf16.gmra.mxu0 %v2062
      %v2160 = vpop.f32.mrf.mxu0
      %v2161 = vadd.f32 0.0, %v2160
      %v2162 = vpop.f32.mrf.mxu0
      %v2163 = vadd.f32 0.0, %v2162
      %2164 = vmatmul.bf16.gmra.mxu0 %v2063
      %v2165 = vpop.f32.mrf.mxu0
      %v2166 = vadd.f32 0.0, %v2165
      %v2167 = vpop.f32.mrf.mxu0
      %v2168 = vadd.f32 0.0, %v2167
      %2169 = vmatmul.bf16.gmra.mxu0 %v2064
      %v2170 = vpop.f32.mrf.mxu0
      %v2171 = vadd.f32 0.0, %v2170
      %v2172 = vpop.f32.mrf.mxu0
      %v2173 = vadd.f32 0.0, %v2172
      %2174 = vmatmul.bf16.gmra.mxu0 %v2065
      %v2175 = vpop.f32.mrf.mxu0
      %v2176 = vadd.f32 0.0, %v2175
      %v2177 = vpop.f32.mrf.mxu0
      %v2178 = vadd.f32 0.0, %v2177
      %2179 = vmatmul.bf16.gmra.mxu0 %v2066
      %v2180 = vpop.f32.mrf.mxu0
      %v2181 = vadd.f32 0.0, %v2180
      %v2182 = vpop.f32.mrf.mxu0
      %v2183 = vadd.f32 0.0, %v2182
      %2184 = vmatmul.bf16.gmra.mxu0 %v2067
      %v2185 = vpop.f32.mrf.mxu0
      %v2186 = vadd.f32 0.0, %v2185
      %v2187 = vpop.f32.mrf.mxu0
      %v2188 = vadd.f32 0.0, %v2187
      %2189 = vmatmul.bf16.gmra.mxu0 %v2068
      %v2190 = vpop.f32.mrf.mxu0
      %v2191 = vadd.f32 0.0, %v2190
      %v2192 = vpop.f32.mrf.mxu0
      %v2193 = vadd.f32 0.0, %v2192
      %2194 = vmatmul.bf16.gmra.mxu0 %v2069
      %v2195 = vpop.f32.mrf.mxu0
      %v2196 = vadd.f32 0.0, %v2195
      %v2197 = vpop.f32.mrf.mxu0
      %v2198 = vadd.f32 0.0, %v2197
      %2199 = vmatmul.bf16.gmra.mxu0 %v2070
      %v2200 = vpop.f32.mrf.mxu0
      %v2201 = vadd.f32 0.0, %v2200
      %v2202 = vpop.f32.mrf.mxu0
      %v2203 = vadd.f32 0.0, %v2202
      %2204 = vmatmul.bf16.gmra.mxu0 %v2071
      %v2205 = vpop.f32.mrf.mxu0
      %v2206 = vadd.f32 0.0, %v2205
      %v2207 = vpop.f32.mrf.mxu0
      %v2208 = vadd.f32 0.0, %v2207
      %2209 = vmatmul.bf16.gmra.mxu0 %v2072
      %v2210 = vpop.f32.mrf.mxu0
      %v2211 = vadd.f32 0.0, %v2210
      %v2212 = vpop.f32.mrf.mxu0
      %v2213 = vadd.f32 0.0, %v2212
      %2214 = vmatmul.bf16.gmra.mxu0 %v2073
      %v2215 = vpop.f32.mrf.mxu0
      %v2216 = vadd.f32 0.0, %v2215
      %v2217 = vpop.f32.mrf.mxu0
      %v2218 = vadd.f32 0.0, %v2217
      %2219 = vmatmul.bf16.gmra.mxu0 %v2074
      %v2220 = vpop.f32.mrf.mxu0
      %v2221 = vadd.f32 0.0, %v2220
      %v2222 = vpop.f32.mrf.mxu0
      %v2223 = vadd.f32 0.0, %v2222
      %2224 = vmatmul.bf16.gmra.mxu0 %v2075
      %v2225 = vpop.f32.mrf.mxu0
      %v2226 = vadd.f32 0.0, %v2225
      %v2227 = vpop.f32.mrf.mxu0
      %v2228 = vadd.f32 0.0, %v2227
      %2229 = vdwg.mxu0
      %v2230 = vadd.f32 %v1996, %v2151
      %v2231 = vadd.f32 %v1997, %v2153
      %v2232 = vadd.f32 %v1998, %v2156
      %v2233 = vadd.f32 %v1999, %v2158
      %v2234 = vadd.f32 %v2000, %v2161
      %v2235 = vadd.f32 %v2001, %v2163
      %v2236 = vadd.f32 %v2002, %v2166
      %v2237 = vadd.f32 %v2003, %v2168
      %v2238 = vadd.f32 %v2004, %v2171
      %v2239 = vadd.f32 %v2005, %v2173
      %v2240 = vadd.f32 %v2006, %v2176
      %v2241 = vadd.f32 %v2007, %v2178
      %v2242 = vadd.f32 %v2008, %v2181
      %v2243 = vadd.f32 %v2009, %v2183
      %v2244 = vadd.f32 %v2010, %v2186
      %v2245 = vadd.f32 %v2011, %v2188
      %v2246 = vadd.f32 %v2012, %v2191
      %v2247 = vadd.f32 %v2013, %v2193
      %v2248 = vadd.f32 %v2014, %v2196
      %v2249 = vadd.f32 %v2015, %v2198
      %v2250 = vadd.f32 %v2016, %v2201
      %v2251 = vadd.f32 %v2017, %v2203
      %v2252 = vadd.f32 %v2018, %v2206
      %v2253 = vadd.f32 %v2019, %v2208
      %v2254 = vadd.f32 %v2020, %v2211
      %v2255 = vadd.f32 %v2021, %v2213
      %v2256 = vadd.f32 %v2022, %v2216
      %v2257 = vadd.f32 %v2023, %v2218
      %v2258 = vadd.f32 %v2024, %v2221
      %v2259 = vadd.f32 %v2025, %v2223
      %v2260 = vadd.f32 %v2026, %v2226
      %v2261 = vadd.f32 %v2027, %v2228
      %v2262 = vld [vmem:[%s2] sm:$0x1]
      %v2264 = vperm.slane %v2262, 0
      %v2266 = vmul.f32 %v2230, %v2264
      %v2267 = vmul.f32 %v2231, %v2264
      %v2268 = vmul.f32 %v2232, %v2264
      %v2269 = vmul.f32 %v2233, %v2264
      %v2270 = vmul.f32 %v2234, %v2264
      %v2271 = vmul.f32 %v2235, %v2264
      %v2272 = vmul.f32 %v2236, %v2264
      %v2273 = vmul.f32 %v2237, %v2264
      %v2274 = vmul.f32 %v2238, %v2264
      %v2275 = vmul.f32 %v2239, %v2264
      %v2276 = vmul.f32 %v2240, %v2264
      %v2277 = vmul.f32 %v2241, %v2264
      %v2278 = vmul.f32 %v2242, %v2264
      %v2279 = vmul.f32 %v2243, %v2264
      %v2280 = vmul.f32 %v2244, %v2264
      %v2281 = vmul.f32 %v2245, %v2264
      %v2282 = vmul.f32 %v2246, %v2264
      %v2283 = vmul.f32 %v2247, %v2264
      %v2284 = vmul.f32 %v2248, %v2264
      %v2285 = vmul.f32 %v2249, %v2264
      %v2286 = vmul.f32 %v2250, %v2264
      %v2287 = vmul.f32 %v2251, %v2264
      %v2288 = vmul.f32 %v2252, %v2264
      %v2289 = vmul.f32 %v2253, %v2264
      %v2290 = vmul.f32 %v2254, %v2264
      %v2291 = vmul.f32 %v2255, %v2264
      %v2292 = vmul.f32 %v2256, %v2264
      %v2293 = vmul.f32 %v2257, %v2264
      %v2294 = vmul.f32 %v2258, %v2264
      %v2295 = vmul.f32 %v2259, %v2264
      %v2296 = vmul.f32 %v2260, %v2264
      %v2297 = vmul.f32 %v2261, %v2264
      %v2298 = vld [vmem:[%s3] sm:$0x1]
      %v2300 = vperm.slane %v2298, 0
      %v2302 = vadd.f32 %v2266, %v2300
      %v2303 = vadd.f32 %v2267, %v2300
      %v2304 = vadd.f32 %v2268, %v2300
      %v2305 = vadd.f32 %v2269, %v2300
      %v2306 = vadd.f32 %v2270, %v2300
      %v2307 = vadd.f32 %v2271, %v2300
      %v2308 = vadd.f32 %v2272, %v2300
      %v2309 = vadd.f32 %v2273, %v2300
      %v2310 = vadd.f32 %v2274, %v2300
      %v2311 = vadd.f32 %v2275, %v2300
      %v2312 = vadd.f32 %v2276, %v2300
      %v2313 = vadd.f32 %v2277, %v2300
      %v2314 = vadd.f32 %v2278, %v2300
      %v2315 = vadd.f32 %v2279, %v2300
      %v2316 = vadd.f32 %v2280, %v2300
      %v2317 = vadd.f32 %v2281, %v2300
      %v2318 = vadd.f32 %v2282, %v2300
      %v2319 = vadd.f32 %v2283, %v2300
      %v2320 = vadd.f32 %v2284, %v2300
      %v2321 = vadd.f32 %v2285, %v2300
      %v2322 = vadd.f32 %v2286, %v2300
      %v2323 = vadd.f32 %v2287, %v2300
      %v2324 = vadd.f32 %v2288, %v2300
      %v2325 = vadd.f32 %v2289, %v2300
      %v2326 = vadd.f32 %v2290, %v2300
      %v2327 = vadd.f32 %v2291, %v2300
      %v2328 = vadd.f32 %v2292, %v2300
      %v2329 = vadd.f32 %v2293, %v2300
      %v2330 = vadd.f32 %v2294, %v2300
      %v2331 = vadd.f32 %v2295, %v2300
      %v2332 = vadd.f32 %v2296, %v2300
      %v2333 = vadd.f32 %v2297, %v2300
      %v2334 = vmax.f32 %v2302, 0.0
      %v2335 = vmax.f32 %v2303, 0.0
      %v2336 = vmax.f32 %v2304, 0.0
      %v2337 = vmax.f32 %v2305, 0.0
      %v2338 = vmax.f32 %v2306, 0.0
      %v2339 = vmax.f32 %v2307, 0.0
      %v2340 = vmax.f32 %v2308, 0.0
      %v2341 = vmax.f32 %v2309, 0.0
      %v2342 = vmax.f32 %v2310, 0.0
      %v2343 = vmax.f32 %v2311, 0.0
      %v2344 = vmax.f32 %v2312, 0.0
      %v2345 = vmax.f32 %v2313, 0.0
      %v2346 = vmax.f32 %v2314, 0.0
      %v2347 = vmax.f32 %v2315, 0.0
      %v2348 = vmax.f32 %v2316, 0.0
      %v2349 = vmax.f32 %v2317, 0.0
      %v2350 = vmax.f32 %v2318, 0.0
      %v2351 = vmax.f32 %v2319, 0.0
      %v2352 = vmax.f32 %v2320, 0.0
      %v2353 = vmax.f32 %v2321, 0.0
      %v2354 = vmax.f32 %v2322, 0.0
      %v2355 = vmax.f32 %v2323, 0.0
      %v2356 = vmax.f32 %v2324, 0.0
      %v2357 = vmax.f32 %v2325, 0.0
      %v2358 = vmax.f32 %v2326, 0.0
      %v2359 = vmax.f32 %v2327, 0.0
      %v2360 = vmax.f32 %v2328, 0.0
      %v2361 = vmax.f32 %v2329, 0.0
      %v2362 = vmax.f32 %v2330, 0.0
      %v2363 = vmax.f32 %v2331, 0.0
      %v2364 = vmax.f32 %v2332, 0.0
      %v2365 = vmax.f32 %v2333, 0.0
      %2366 = vst [vmem:[%s219] sm:$0xff] %v2334
      %2367 = vst [vmem:[%s219 + $0x8] sm:$0xff] %v2335
      %2368 = vst [vmem:[%s219 + $0x10] sm:$0xff] %v2336
      %2369 = vst [vmem:[%s219 + $0x18] sm:$0xff] %v2337
      %2370 = vst [vmem:[%s219 + $0x20] sm:$0xff] %v2338
      %2371 = vst [vmem:[%s219 + $0x28] sm:$0xff] %v2339
      %2372 = vst [vmem:[%s219 + $0x30] sm:$0xff] %v2340
      %2373 = vst [vmem:[%s219 + $0x38] sm:$0xff] %v2341
      %2374 = vst [vmem:[%s219 + $0x40] sm:$0xff] %v2342
      %2375 = vst [vmem:[%s219 + $0x48] sm:$0xff] %v2343
      %2376 = vst [vmem:[%s219 + $0x50] sm:$0xff] %v2344
      %2377 = vst [vmem:[%s219 + $0x58] sm:$0xff] %v2345
      %2378 = vst [vmem:[%s219 + $0x60] sm:$0xff] %v2346
      %2379 = vst [vmem:[%s219 + $0x68] sm:$0xff] %v2347
      %2380 = vst [vmem:[%s219 + $0x70] sm:$0xff] %v2348
      %2381 = vst [vmem:[%s219 + $0x78] sm:$0xff] %v2349
      %2382 = vst [vmem:[%s219 + $0x80] sm:$0xff] %v2350
      %2383 = vst [vmem:[%s219 + $0x88] sm:$0xff] %v2351
      %2384 = vst [vmem:[%s219 + $0x90] sm:$0xff] %v2352
      %2385 = vst [vmem:[%s219 + $0x98] sm:$0xff] %v2353
      %2386 = vst [vmem:[%s219 + $0xa0] sm:$0xff] %v2354
      %2387 = vst [vmem:[%s219 + $0xa8] sm:$0xff] %v2355
      %2388 = vst [vmem:[%s219 + $0xb0] sm:$0xff] %v2356
      %2389 = vst [vmem:[%s219 + $0xb8] sm:$0xff] %v2357
      %2390 = vst [vmem:[%s219 + $0xc0] sm:$0xff] %v2358
      %2391 = vst [vmem:[%s219 + $0xc8] sm:$0xff] %v2359
      %2392 = vst [vmem:[%s219 + $0xd0] sm:$0xff] %v2360
      %2393 = vst [vmem:[%s219 + $0xd8] sm:$0xff] %v2361
      %2394 = vst [vmem:[%s219 + $0xe0] sm:$0xff] %v2362
      %2395 = vst [vmem:[%s219 + $0xe8] sm:$0xff] %v2363
      %2396 = vst [vmem:[%s219 + $0xf0] sm:$0xff] %v2364
      %2397 = vst [vmem:[%s219 + $0xf8] sm:$0xff] %v2365
      %s2398 = smul.u32 32, %s20
      %p2399 = scmp.lt.s32.totalorder %s19, 1
      %s2400 = scalar_select %p2399, %s19, 1
      %p2401 = scmp.lt.s32.totalorder %s2398, 31
      %s2402 = scalar_select %p2401, %s2398, 31
      %s2403 = smul.addr %s2400, 32
      %s2404 = sadd.s32 %s2402, %s2403
      %s2405 = smul.addr %s2404, 8
      %s2406 = scalar_lea.vmem %s4, %s2405
      // Predicated region
      $region37: #{facenet_forward.9} parent=35 // pred_check
        %p2407 = pneg %p136
      $region38: #{facenet_forward.9} parent=35 // pred_check_branch
        %2409 = sbr.rel (%p2407) target = $region40
      $region39: #{facenet_forward.9} parent=35 // pred_region
        %s2410 = smul.u32 32, %s20
      $region40: #{facenet_forward.9} parent=35 // pred_fallthru
        _
    $region36: #{facenet_forward.9} parent=5 // pred_fallthru
      _
    %p2411 = scmp.le.s32.totalorder 2, %s10
    // Predicated region
    $region41: #{facenet_forward.9} parent=5 // pred_check
      %p2412 = pneg %p2411
    $region42: #{facenet_forward.9} parent=5 // pred_check_branch
      %2414 = sbr.rel (%p2412) target = $region44
    $region43: #{facenet_forward.9} parent=5 // pred_region
      %s2415 = ssub.s32 %s10, 2
      // Predicated region
      $region45: #{facenet_forward.9} parent=43 // pred_check
        %p2416 = pneg %p142
      $region46: #{facenet_forward.9} parent=43 // pred_check_branch
        %2418 = sbr.rel (%p2416) target = $region48
      $region47: #{facenet_forward.9} parent=43 // pred_region
        %s2419 = smul.u32 32, %s22
        %p2420 = scmp.lt.s32.totalorder %s21, 1
        %s2421 = scalar_select %p2420, %s21, 1
        %p2422 = scmp.lt.s32.totalorder %s2419, 31
        %s2423 = scalar_select %p2422, %s2419, 31
        %s2424 = smul.addr %s2421, 32
        %s2425 = sadd.s32 %s2423, %s2424
        %s2426 = smul.addr %s2425, 8
        %s2427 = scalar_lea.vmem %s4, %s2426
      $region48: #{facenet_forward.9} parent=43 // pred_fallthru
        _
    $region44: #{facenet_forward.9} parent=5 // pred_fallthru
      _
  $region6: #{facenet_forward.9} parent=0 // loop_footer
    %s14 = sadd.s32 1, %s10
  $region7: #{facenet_forward.9} parent=0 // loop_footer_branch
    %9 = sbr.rel target = $region3
  $region8: #{facenet_forward.9} parent=0 // loop_exit
    _

// kernel: facenet_forward.11
$region0: #{facenet_forward.11}
  #allocation0 [shape = 'u32[]', space=smem, size = 0x4, offset = 0x4, fixed_abs, tag = 'smem constant byte address 0x4 - core index']
  #allocation1 [shape = 'u32[72,128]{1,0:T(1,128)}', space=vmem, size = 0x9000, scoped, tag = 'internal scratch']
  %s0 = inlined_call_operand.vmem [shape: f32[2,4,72,128], index: 0, kind: input, shape index: {}]
  %s1 = inlined_call_operand.vmem [shape: f32[2,56,128], index: 1, kind: output, shape index: {}]
  %s2 = sld [smem:[#allocation0]]
  $region37: #{facenet_forward.11} parent=0
    _
  %s4 = ssub.s32 1, %s2
  %s5 = scalar_select 0, %s4, %s2
  loop: start=0, step=1, limit=4
  $region2: #{facenet_forward.11} parent=0 // loop_pre_header
    _
  $region3: #{facenet_forward.11} parent=0 // loop_header
    %s7 = sphi 0, %s11
    %p8 = scmp.ge.s32.totalorder %s7, 4
    %s14 = sphi 0, %s26
    %s15 = sphi 0, %s22
    %s16 = sphi 0, %s14
    %s17 = sphi 0, %s15
    %s18 = sphi 0, %s16
    %s19 = sphi 0, %s17
    %s29 = sphi 0, %s31
    %s32 = sphi 0, %s29
    %s33 = sphi 0, %s32
    %s49 = sphi 0, %s33
    %s57 = sphi 0, %s59
    %s60 = sphi 0, %s57
    %s61 = sphi 0, %s60
    %s77 = sphi 0, %s61
  $region4: #{facenet_forward.11} parent=0 // loop_header_branch
    %10 = sbr.rel (%p8) target = $region8
  $region5: #{facenet_forward.11} parent=0 // loop_body
    %s12 = ssub.s32 %s7, 1
    %s13 = ssub.s32 %s7, 2
    %s20 = sadd.s32 1, %s15
    %p21 = scmp.ge.s32.totalorder %s20, 1
    %s22 = scalar_select %p21, 0, %s20
    %s23 = sadd.s32 1, %s14
    %s24 = scalar_select %p21, %s23, %s14
    %p25 = scmp.ge.s32.totalorder %s24, 2
    %s26 = scalar_select %p25, 0, %s24
    %s27 = ssub.s32 %s14, %s26
    %p28 = scmp.eq.s32.totalorder %s27, 0
    %s30 = sadd.s32 %s29, 1
    %s31 = scalar_select %p28, %s29, %s30
    %p34 = pneg %p28
    %p35 = scmp.eq.s32.totalorder %s7, 1
    %p36 = por %p34, %p35
    %p37 = scmp.ne.s32.totalorder %s29, %s32
    %p38 = scmp.eq.s32.totalorder %s7, 0
    %p39 = por %p37, %p38
    %p40 = scmp.ne.s32.totalorder %s29, %s32
    %p41 = scmp.eq.s32.totalorder %s12, 1
    %p42 = por %p40, %p41
    %p43 = scmp.ne.s32.totalorder %s32, %s33
    %p44 = scmp.eq.s32.totalorder %s12, 0
    %p45 = por %p43, %p44
    %p46 = scmp.ne.s32.totalorder %s32, %s33
    %p47 = scmp.eq.s32.totalorder %s13, 1
    %p48 = por %p46, %p47
    %p50 = scmp.ne.s32.totalorder %s33, %s49
    %p51 = scmp.eq.s32.totalorder %s13, 0
    %p52 = por %p50, %p51
    %s53 = ssub.s32 %s14, %s26
    %s54 = ssub.s32 %s15, %s22
    %s55 = sor.u32 %s53, %s54
    %p56 = scmp.eq.s32.totalorder %s55, 0
    %s58 = sadd.s32 %s57, 1
    %s59 = scalar_select %p56, %s57, %s58
    %p62 = pneg %p56
    %p63 = scmp.eq.s32.totalorder %s7, 1
    %p64 = por %p62, %p63
    %p65 = scmp.ne.s32.totalorder %s57, %s60
    %p66 = scmp.eq.s32.totalorder %s7, 0
    %p67 = por %p65, %p66
    %p68 = scmp.ne.s32.totalorder %s57, %s60
    %p69 = scmp.eq.s32.totalorder %s12, 1
    %p70 = por %p68, %p69
    %p71 = scmp.ne.s32.totalorder %s60, %s61
    %p72 = scmp.eq.s32.totalorder %s12, 0
    %p73 = por %p71, %p72
    %p74 = scmp.ne.s32.totalorder %s60, %s61
    %p75 = scmp.eq.s32.totalorder %s13, 1
    %p76 = por %p74, %p75
    %p78 = scmp.ne.s32.totalorder %s61, %s77
    %p79 = scmp.eq.s32.totalorder %s13, 0
    %p80 = por %p78, %p79
    %p81 = scmp.le.s32.totalorder 1, %s7
    %p82 = scmp.lt.s32.totalorder %s7, 3
    %p83 = pnand %p81, %p82
    %p84 = pneg %p83
    // Predicated region
    $region9: #{facenet_forward.11} parent=5 // pred_check
      _
    $region10: #{facenet_forward.11} parent=5 // pred_check_branch
      %86 = sbr.rel (%p83) target = $region12
    $region11: #{facenet_forward.11} parent=5 // pred_region
      %s87 = ssub.s32 %s7, 1
    $region12: #{facenet_forward.11} parent=5 // pred_fallthru
      _
    %p88 = scmp.lt.s32.totalorder %s7, 2
    // Predicated region
    $region13: #{facenet_forward.11} parent=5 // pred_check
      %p89 = pneg %p88
    $region14: #{facenet_forward.11} parent=5 // pred_check_branch
      %91 = sbr.rel (%p89) target = $region16
    $region15: #{facenet_forward.11} parent=5 // pred_region
      // Predicated region
      $region17: #{facenet_forward.11} parent=15 // pred_check
        %p92 = pneg %p39
      $region18: #{facenet_forward.11} parent=15 // pred_check_branch
        %94 = sbr.rel (%p92) target = $region20
      $region19: #{facenet_forward.11} parent=15 // pred_region
        %p95 = scmp.lt.s32.totalorder %s14, 1
        %s96 = scalar_select %p95, %s14, 1
        %s97 = smul.addr %s96, 36
        %s98 = smul.addr %s97, 8
        %s99 = scalar_lea.vmem %s0, %s98
      $region20: #{facenet_forward.11} parent=15 // pred_fallthru
        _
    $region16: #{facenet_forward.11} parent=5 // pred_fallthru
      _
    %p100 = scmp.le.s32.totalorder 1, %s7
    %p101 = scmp.lt.s32.totalorder %s7, 3
    %p102 = pnand %p100, %p101
    %p103 = pneg %p102
    // Predicated region
    $region21: #{facenet_forward.11} parent=5 // pred_check
      _
    $region22: #{facenet_forward.11} parent=5 // pred_check_branch
      %105 = sbr.rel (%p102) target = $region24
    $region23: #{facenet_forward.11} parent=5 // pred_region
      %s106 = ssub.s32 %s7, 1
      %p107 = scmp.lt.s32.totalorder %s16, 1
      %s108 = scalar_select %p107, %s16, 1
      %s109 = smul.addr %s108, 36
      %s110 = smul.addr %s109, 8
      %s111 = scalar_lea.vmem %s0, %s110
      %p112 = pneg %p45
      %p113 = pneg %p42
      %p114 = pneg %p73
      %p115 = pneg %p70
      %s116 = smul.u32 7, %s17
      %p117 = scmp.lt.s32.totalorder %s16, 1
      %s118 = scalar_select %p117, %s16, 1
      %p119 = scmp.lt.s32.totalorder %s116, 6
      %s120 = scalar_select %p119, %s116, 6
      %s121 = smul.addr %s118, 7
      %s122 = sadd.s32 %s120, %s121
      %s123 = smul.addr %s122, 8
      %s124 = scalar_lea.vmem %s1, %s123
      %p125 = scmp.lt.s32.totalorder %s16, 1
      %s126 = scalar_select %p125, %s16, 1
      %s127 = smul.addr %s126, 36
      %s128 = smul.addr %s127, 8
      %s129 = scalar_lea.vmem %s0, %s128
      %s130 = smul.u32 7, %s17
      %p131 = scmp.lt.s32.totalorder %s16, 1
      %s132 = scalar_select %p131, %s16, 1
      %p133 = scmp.lt.s32.totalorder %s130, 6
      %s134 = scalar_select %p133, %s130, 6
      %s135 = smul.addr %s132, 7
      %s136 = sadd.s32 %s134, %s135
      %s137 = smul.addr %s136, 8
      %s138 = scalar_lea.vmem %s1, %s137
      %s139 = smul.u32 7, %s17
      %v140 = vld [vmem:[%s129] sm:$0xff]
      %v141 = vld [vmem:[%s129 + $0x8] sm:$0xff]
      %v142 = vld [vmem:[%s129 + $0x10] sm:$0xff]
      %v143 = vld [vmem:[%s129 + $0x18] sm:$0xff]
      %v144 = vld [vmem:[%s129 + $0x20] sm:$0xff]
      %v145 = vld [vmem:[%s129 + $0x28] sm:$0xff]
      %v146 = vld [vmem:[%s129 + $0x30] sm:$0xff]
      %s147 = scalar_lea.vmem %s129, 72
      %v148 = vld [vmem:[%s147] sm:$0xff]
      %v149 = vld [vmem:[%s147 + $0x8] sm:$0xff]
      %v150 = vld [vmem:[%s147 + $0x10] sm:$0xff]
      %v151 = vld [vmem:[%s147 + $0x18] sm:$0xff]
      %v152 = vld [vmem:[%s147 + $0x20] sm:$0xff]
      %v153 = vld [vmem:[%s147 + $0x28] sm:$0xff]
      %v154 = vld [vmem:[%s147 + $0x30] sm:$0xff]
      %v155 = vmax.f32 %v140, %v148
      %v156 = vmax.f32 %v141, %v149
      %v157 = vmax.f32 %v142, %v150
      %v158 = vmax.f32 %v143, %v151
      %v159 = vmax.f32 %v144, %v152
      %v160 = vmax.f32 %v145, %v153
      %v161 = vmax.f32 %v146, %v154
      %v162 = vld [vmem:[%s129 + $0x1] sm:$0xff]
      %v163 = vld [vmem:[%s129 + $0x9] sm:$0xff]
      %v164 = vld [vmem:[%s129 + $0x11] sm:$0xff]
      %v165 = vld [vmem:[%s129 + $0x19] sm:$0xff]
      %v166 = vld [vmem:[%s129 + $0x21] sm:$0xff]
      %v167 = vld [vmem:[%s129 + $0x29] sm:$0xff]
      %v168 = vld [vmem:[%s129 + $0x31] sm:$0xff]
      %v169 = vmax.f32 %v155, %v162
      %v170 = vmax.f32 %v156, %v163
      %v171 = vmax.f32 %v157, %v164
      %v172 = vmax.f32 %v158, %v165
      %v173 = vmax.f32 %v159, %v166
      %v174 = vmax.f32 %v160, %v167
      %v175 = vmax.f32 %v161, %v168
      %s176 = scalar_lea.vmem %s129, 144
      %v177 = vld [vmem:[%s176] sm:$0xff]
      %v178 = vld [vmem:[%s176 + $0x8] sm:$0xff]
      %v179 = vld [vmem:[%s176 + $0x10] sm:$0xff]
      %v180 = vld [vmem:[%s176 + $0x18] sm:$0xff]
      %v181 = vld [vmem:[%s176 + $0x20] sm:$0xff]
      %v182 = vld [vmem:[%s176 + $0x28] sm:$0xff]
      %v183 = vld [vmem:[%s176 + $0x30] sm:$0xff]
      %v184 = vmax.f32 %v169, %v177
      %v185 = vmax.f32 %v170, %v178
      %v186 = vmax.f32 %v171, %v179
      %v187 = vmax.f32 %v172, %v180
      %v188 = vmax.f32 %v173, %v181
      %v189 = vmax.f32 %v174, %v182
      %v190 = vmax.f32 %v175, %v183
      %s191 = scalar_lea.vmem %s129, 216
      %v192 = vld [vmem:[%s191] sm:$0xff]
      %v193 = vld [vmem:[%s191 + $0x8] sm:$0xff]
      %v194 = vld [vmem:[%s191 + $0x10] sm:$0xff]
      %v195 = vld [vmem:[%s191 + $0x18] sm:$0xff]
      %v196 = vld [vmem:[%s191 + $0x20] sm:$0xff]
      %v197 = vld [vmem:[%s191 + $0x28] sm:$0xff]
      %v198 = vld [vmem:[%s191 + $0x30] sm:$0xff]
      %v199 = vmax.f32 %v184, %v192
      %v200 = vmax.f32 %v185, %v193
      %v201 = vmax.f32 %v186, %v194
      %v202 = vmax.f32 %v187, %v195
      %v203 = vmax.f32 %v188, %v196
      %v204 = vmax.f32 %v189, %v197
      %v205 = vmax.f32 %v190, %v198
      %v206 = vld [vmem:[%s176 + $0x1] sm:$0xff]
      %v207 = vld [vmem:[%s176 + $0x9] sm:$0xff]
      %v208 = vld [vmem:[%s176 + $0x11] sm:$0xff]
      %v209 = vld [vmem:[%s176 + $0x19] sm:$0xff]
      %v210 = vld [vmem:[%s176 + $0x21] sm:$0xff]
      %v211 = vld [vmem:[%s176 + $0x29] sm:$0xff]
      %v212 = vld [vmem:[%s176 + $0x31] sm:$0xff]
      %v213 = vmax.f32 %v199, %v206
      %v214 = vmax.f32 %v200, %v207
      %v215 = vmax.f32 %v201, %v208
      %v216 = vmax.f32 %v202, %v209
      %v217 = vmax.f32 %v203, %v210
      %v218 = vmax.f32 %v204, %v211
      %v219 = vmax.f32 %v205, %v212
      %v220 = vld [vmem:[%s129 + $0x38] sm:$0xff]
      %v221 = vmax.f32 %v213, %v141
      %v222 = vmax.f32 %v214, %v142
      %v223 = vmax.f32 %v215, %v143
      %v224 = vmax.f32 %v216, %v144
      %v225 = vmax.f32 %v217, %v145
      %v226 = vmax.f32 %v218, %v146
      %v227 = vmax.f32 %v219, %v220
      %v228 = vld [vmem:[%s147 + $0x38] sm:$0xff]
      %v229 = vmax.f32 %v221, %v149
      %v230 = vmax.f32 %v222, %v150
      %v231 = vmax.f32 %v223, %v151
      %v232 = vmax.f32 %v224, %v152
      %v233 = vmax.f32 %v225, %v153
      %v234 = vmax.f32 %v226, %v154
      %v235 = vmax.f32 %v227, %v228
      %v236 = vld [vmem:[%s129 + $0x39] sm:$0xff]
      %v237 = vmax.f32 %v229, %v163
      %v238 = vmax.f32 %v230, %v164
      %v239 = vmax.f32 %v231, %v165
      %v240 = vmax.f32 %v232, %v166
      %v241 = vmax.f32 %v233, %v167
      %v242 = vmax.f32 %v234, %v168
      %v243 = vmax.f32 %v235, %v236
      %244 = vst [vmem:[%s138] sm:$0xff] %v237
      %245 = vst [vmem:[%s138 + $0x8] sm:$0xff] %v238
      %246 = vst [vmem:[%s138 + $0x10] sm:$0xff] %v239
      %247 = vst [vmem:[%s138 + $0x18] sm:$0xff] %v240
      %248 = vst [vmem:[%s138 + $0x20] sm:$0xff] %v241
      %249 = vst [vmem:[%s138 + $0x28] sm:$0xff] %v242
      %250 = vst [vmem:[%s138 + $0x30] sm:$0xff] %v243
      %s251 = smul.u32 7, %s17
      %p252 = scmp.lt.s32.totalorder %s16, 1
      %s253 = scalar_select %p252, %s16, 1
      %p254 = scmp.lt.s32.totalorder %s251, 6
      %s255 = scalar_select %p254, %s251, 6
      %s256 = smul.addr %s253, 7
      %s257 = sadd.s32 %s255, %s256
      %s258 = smul.addr %s257, 8
      %s259 = scalar_lea.vmem %s1, %s258
      // Predicated region
      $region25: #{facenet_forward.11} parent=23 // pred_check
        %p260 = pneg %p70
      $region26: #{facenet_forward.11} parent=23 // pred_check_branch
        %262 = sbr.rel (%p260) target = $region28
      $region27: #{facenet_forward.11} parent=23 // pred_region
        %s263 = smul.u32 7, %s17
      $region28: #{facenet_forward.11} parent=23 // pred_fallthru
        _
    $region24: #{facenet_forward.11} parent=5 // pred_fallthru
      _
    %p264 = scmp.le.s32.totalorder 2, %s7
    // Predicated region
    $region29: #{facenet_forward.11} parent=5 // pred_check
      %p265 = pneg %p264
    $region30: #{facenet_forward.11} parent=5 // pred_check_branch
      %267 = sbr.rel (%p265) target = $region32
    $region31: #{facenet_forward.11} parent=5 // pred_region
      %s268 = ssub.s32 %s7, 2
      // Predicated region
      $region33: #{facenet_forward.11} parent=31 // pred_check
        %p269 = pneg %p76
      $region34: #{facenet_forward.11} parent=31 // pred_check_branch
        %271 = sbr.rel (%p269) target = $region36
      $region35: #{facenet_forward.11} parent=31 // pred_region
        %s272 = smul.u32 7, %s19
        %p273 = scmp.lt.s32.totalorder %s18, 1
        %s274 = scalar_select %p273, %s18, 1
        %p275 = scmp.lt.s32.totalorder %s272, 6
        %s276 = scalar_select %p275, %s272, 6
        %s277 = smul.addr %s274, 7
        %s278 = sadd.s32 %s276, %s277
        %s279 = smul.addr %s278, 8
        %s280 = scalar_lea.vmem %s1, %s279
      $region36: #{facenet_forward.11} parent=31 // pred_fallthru
        _
    $region32: #{facenet_forward.11} parent=5 // pred_fallthru
      _
  $region6: #{facenet_forward.11} parent=0 // loop_footer
    %s11 = sadd.s32 1, %s7
  $region7: #{facenet_forward.11} parent=0 // loop_footer_branch
    %6 = sbr.rel target = $region3
  $region8: #{facenet_forward.11} parent=0 // loop_exit
    _

// kernel: facenet_forward.12
$region0: #{facenet_forward.12}
  #allocation0 [shape = 'u32[]', space=smem, size = 0x4, offset = 0x4, fixed_abs, tag = 'smem constant byte address 0x4 - core index']
  #allocation1 [shape = 'u32[72,128]{1,0:T(1,128)}', space=vmem, size = 0x9000, scoped, tag = 'internal scratch']
  %s0 = inlined_call_operand.vmem [shape: f32[2,1,56,128], index: 0, kind: input, shape index: {}]
  %s1 = inlined_call_operand.vmem [shape: bf16[1,128,128], index: 1, kind: input, shape index: {}]
  %s2 = inlined_call_operand.vmem [shape: f32[1,128], index: 2, kind: input, shape index: {}]
  %s3 = inlined_call_operand.vmem [shape: f32[1,128], index: 3, kind: input, shape index: {}]
  %s4 = inlined_call_operand.vmem [shape: f32[2,56,128], index: 4, kind: output, shape index: {}]
  %s5 = sld [smem:[#allocation0]]
  $region49: #{facenet_forward.12} parent=0
    _
  %s7 = ssub.s32 1, %s5
  %s8 = scalar_select 0, %s7, %s5
  loop: start=0, step=1, limit=4
  $region2: #{facenet_forward.12} parent=0 // loop_pre_header
    _
  $region3: #{facenet_forward.12} parent=0 // loop_header
    %s10 = sphi 0, %s14
    %p11 = scmp.ge.s32.totalorder %s10, 4
    %s17 = sphi 0, %s29
    %s18 = sphi 0, %s25
    %s19 = sphi 0, %s17
    %s20 = sphi 0, %s18
    %s21 = sphi 0, %s19
    %s22 = sphi 0, %s20
    %s32 = sphi 0, %s34
    %s35 = sphi 0, %s32
    %s36 = sphi 0, %s35
    %s52 = sphi 0, %s36
    %s56 = sphi 0, %s56
    %s58 = sphi 0, %s56
    %s59 = sphi 0, %s58
    %s73 = sphi 0, %s59
    %s77 = sphi 0, %s77
    %s79 = sphi 0, %s77
    %s80 = sphi 0, %s79
    %s94 = sphi 0, %s80
    %s98 = sphi 0, %s98
    %s100 = sphi 0, %s98
    %s101 = sphi 0, %s100
    %s115 = sphi 0, %s101
    %s123 = sphi 0, %s125
    %s126 = sphi 0, %s123
    %s127 = sphi 0, %s126
    %s143 = sphi 0, %s127
  $region4: #{facenet_forward.12} parent=0 // loop_header_branch
    %13 = sbr.rel (%p11) target = $region8
  $region5: #{facenet_forward.12} parent=0 // loop_body
    %s15 = ssub.s32 %s10, 1
    %s16 = ssub.s32 %s10, 2
    %s23 = sadd.s32 1, %s18
    %p24 = scmp.ge.s32.totalorder %s23, 1
    %s25 = scalar_select %p24, 0, %s23
    %s26 = sadd.s32 1, %s17
    %s27 = scalar_select %p24, %s26, %s17
    %p28 = scmp.ge.s32.totalorder %s27, 2
    %s29 = scalar_select %p28, 0, %s27
    %s30 = ssub.s32 %s17, %s29
    %p31 = scmp.eq.s32.totalorder %s30, 0
    %s33 = sadd.s32 %s32, 1
    %s34 = scalar_select %p31, %s32, %s33
    %p37 = pneg %p31
    %p38 = scmp.eq.s32.totalorder %s10, 1
    %p39 = por %p37, %p38
    %p40 = scmp.ne.s32.totalorder %s32, %s35
    %p41 = scmp.eq.s32.totalorder %s10, 0
    %p42 = por %p40, %p41
    %p43 = scmp.ne.s32.totalorder %s32, %s35
    %p44 = scmp.eq.s32.totalorder %s15, 1
    %p45 = por %p43, %p44
    %p46 = scmp.ne.s32.totalorder %s35, %s36
    %p47 = scmp.eq.s32.totalorder %s15, 0
    %p48 = por %p46, %p47
    %p49 = scmp.ne.s32.totalorder %s35, %s36
    %p50 = scmp.eq.s32.totalorder %s16, 1
    %p51 = por %p49, %p50
    %p53 = scmp.ne.s32.totalorder %s36, %s52
    %p54 = scmp.eq.s32.totalorder %s16, 0
    %p55 = por %p53, %p54
    %s57 = sadd.s32 %s56, 1
    %p60 = scmp.eq.s32.totalorder %s10, 1
    %p61 = scmp.ne.s32.totalorder %s56, %s58
    %p62 = scmp.eq.s32.totalorder %s10, 0
    %p63 = por %p61, %p62
    %p64 = scmp.ne.s32.totalorder %s56, %s58
    %p65 = scmp.eq.s32.totalorder %s15, 1
    %p66 = por %p64, %p65
    %p67 = scmp.ne.s32.totalorder %s58, %s59
    %p68 = scmp.eq.s32.totalorder %s15, 0
    %p69 = por %p67, %p68
    %p70 = scmp.ne.s32.totalorder %s58, %s59
    %p71 = scmp.eq.s32.totalorder %s16, 1
    %p72 = por %p70, %p71
    %p74 = scmp.ne.s32.totalorder %s59, %s73
    %p75 = scmp.eq.s32.totalorder %s16, 0
    %p76 = por %p74, %p75
    %s78 = sadd.s32 %s77, 1
    %p81 = scmp.eq.s32.totalorder %s10, 1
    %p82 = scmp.ne.s32.totalorder %s77, %s79
    %p83 = scmp.eq.s32.totalorder %s10, 0
    %p84 = por %p82, %p83
    %p85 = scmp.ne.s32.totalorder %s77, %s79
    %p86 = scmp.eq.s32.totalorder %s15, 1
    %p87 = por %p85, %p86
    %p88 = scmp.ne.s32.totalorder %s79, %s80
    %p89 = scmp.eq.s32.totalorder %s15, 0
    %p90 = por %p88, %p89
    %p91 = scmp.ne.s32.totalorder %s79, %s80
    %p92 = scmp.eq.s32.totalorder %s16, 1
    %p93 = por %p91, %p92
    %p95 = scmp.ne.s32.totalorder %s80, %s94
    %p96 = scmp.eq.s32.totalorder %s16, 0
    %p97 = por %p95, %p96
    %s99 = sadd.s32 %s98, 1
    %p102 = scmp.eq.s32.totalorder %s10, 1
    %p103 = scmp.ne.s32.totalorder %s98, %s100
    %p104 = scmp.eq.s32.totalorder %s10, 0
    %p105 = por %p103, %p104
    %p106 = scmp.ne.s32.totalorder %s98, %s100
    %p107 = scmp.eq.s32.totalorder %s15, 1
    %p108 = por %p106, %p107
    %p109 = scmp.ne.s32.totalorder %s100, %s101
    %p110 = scmp.eq.s32.totalorder %s15, 0
    %p111 = por %p109, %p110
    %p112 = scmp.ne.s32.totalorder %s100, %s101
    %p113 = scmp.eq.s32.totalorder %s16, 1
    %p114 = por %p112, %p113
    %p116 = scmp.ne.s32.totalorder %s101, %s115
    %p117 = scmp.eq.s32.totalorder %s16, 0
    %p118 = por %p116, %p117
    %s119 = ssub.s32 %s17, %s29
    %s120 = ssub.s32 %s18, %s25
    %s121 = sor.u32 %s119, %s120
    %p122 = scmp.eq.s32.totalorder %s121, 0
    %s124 = sadd.s32 %s123, 1
    %s125 = scalar_select %p122, %s123, %s124
    %p128 = pneg %p122
    %p129 = scmp.eq.s32.totalorder %s10, 1
    %p130 = por %p128, %p129
    %p131 = scmp.ne.s32.totalorder %s123, %s126
    %p132 = scmp.eq.s32.totalorder %s10, 0
    %p133 = por %p131, %p132
    %p134 = scmp.ne.s32.totalorder %s123, %s126
    %p135 = scmp.eq.s32.totalorder %s15, 1
    %p136 = por %p134, %p135
    %p137 = scmp.ne.s32.totalorder %s126, %s127
    %p138 = scmp.eq.s32.totalorder %s15, 0
    %p139 = por %p137, %p138
    %p140 = scmp.ne.s32.totalorder %s126, %s127
    %p141 = scmp.eq.s32.totalorder %s16, 1
    %p142 = por %p140, %p141
    %p144 = scmp.ne.s32.totalorder %s127, %s143
    %p145 = scmp.eq.s32.totalorder %s16, 0
    %p146 = por %p144, %p145
    %p147 = scmp.le.s32.totalorder 1, %s10
    %p148 = scmp.lt.s32.totalorder %s10, 3
    %p149 = pnand %p147, %p148
    %p150 = pneg %p149
    // Predicated region
    $region9: #{facenet_forward.12} parent=5 // pred_check
      _
    $region10: #{facenet_forward.12} parent=5 // pred_check_branch
      %152 = sbr.rel (%p149) target = $region12
    $region11: #{facenet_forward.12} parent=5 // pred_region
      %s153 = ssub.s32 %s10, 1
      // Predicated region
      $region13: #{facenet_forward.12} parent=11 // pred_check
        %p154 = pneg %p69
      $region14: #{facenet_forward.12} parent=11 // pred_check_branch
        %156 = sbr.rel (%p154) target = $region16
      $region15: #{facenet_forward.12} parent=11 // pred_region
        _
      $region16: #{facenet_forward.12} parent=11 // pred_fallthru
        _
      // Predicated region
      $region17: #{facenet_forward.12} parent=11 // pred_check
        %p157 = pneg %p90
      $region18: #{facenet_forward.12} parent=11 // pred_check_branch
        %159 = sbr.rel (%p157) target = $region20
      $region19: #{facenet_forward.12} parent=11 // pred_region
        _
      $region20: #{facenet_forward.12} parent=11 // pred_fallthru
        _
      // Predicated region
      $region21: #{facenet_forward.12} parent=11 // pred_check
        %p160 = pneg %p111
      $region22: #{facenet_forward.12} parent=11 // pred_check_branch
        %162 = sbr.rel (%p160) target = $region24
      $region23: #{facenet_forward.12} parent=11 // pred_region
        _
      $region24: #{facenet_forward.12} parent=11 // pred_fallthru
        _
    $region12: #{facenet_forward.12} parent=5 // pred_fallthru
      _
    %p163 = scmp.lt.s32.totalorder %s10, 2
    // Predicated region
    $region25: #{facenet_forward.12} parent=5 // pred_check
      %p164 = pneg %p163
    $region26: #{facenet_forward.12} parent=5 // pred_check_branch
      %166 = sbr.rel (%p164) target = $region28
    $region27: #{facenet_forward.12} parent=5 // pred_region
      // Predicated region
      $region29: #{facenet_forward.12} parent=27 // pred_check
        %p167 = pneg %p42
      $region30: #{facenet_forward.12} parent=27 // pred_check_branch
        %169 = sbr.rel (%p167) target = $region32
      $region31: #{facenet_forward.12} parent=27 // pred_region
        %p170 = scmp.lt.s32.totalorder %s17, 1
        %s171 = scalar_select %p170, %s17, 1
        %s172 = smul.addr %s171, 7
        %s173 = smul.addr %s172, 8
        %s174 = scalar_lea.vmem %s0, %s173
      $region32: #{facenet_forward.12} parent=27 // pred_fallthru
        _
    $region28: #{facenet_forward.12} parent=5 // pred_fallthru
      _
    %p175 = scmp.le.s32.totalorder 1, %s10
    %p176 = scmp.lt.s32.totalorder %s10, 3
    %p177 = pnand %p175, %p176
    %p178 = pneg %p177
    // Predicated region
    $region33: #{facenet_forward.12} parent=5 // pred_check
      _
    $region34: #{facenet_forward.12} parent=5 // pred_check_branch
      %180 = sbr.rel (%p177) target = $region36
    $region35: #{facenet_forward.12} parent=5 // pred_region
      %s181 = ssub.s32 %s10, 1
      %p182 = scmp.lt.s32.totalorder %s19, 1
      %s183 = scalar_select %p182, %s19, 1
      %s184 = smul.addr %s183, 7
      %s185 = smul.addr %s184, 8
      %s186 = scalar_lea.vmem %s0, %s185
      %p187 = pneg %p48
      %p188 = pneg %p45
      %p189 = pneg %p69
      %p190 = pneg %p66
      %p191 = pneg %p90
      %p192 = pneg %p87
      %p193 = pneg %p111
      %p194 = pneg %p108
      %p195 = pneg %p139
      %p196 = pneg %p136
      %s197 = smul.u32 7, %s20
      %p198 = scmp.lt.s32.totalorder %s19, 1
      %s199 = scalar_select %p198, %s19, 1
      %p200 = scmp.lt.s32.totalorder %s197, 6
      %s201 = scalar_select %p200, %s197, 6
      %s202 = smul.addr %s199, 7
      %s203 = sadd.s32 %s201, %s202
      %s204 = smul.addr %s203, 8
      %s205 = scalar_lea.vmem %s4, %s204
      %p206 = scmp.lt.s32.totalorder %s19, 1
      %s207 = scalar_select %p206, %s19, 1
      %s208 = smul.addr %s207, 7
      %s209 = smul.addr %s208, 8
      %s210 = scalar_lea.vmem %s0, %s209
      %s211 = smul.u32 7, %s20
      %p212 = scmp.lt.s32.totalorder %s19, 1
      %s213 = scalar_select %p212, %s19, 1
      %p214 = scmp.lt.s32.totalorder %s211, 6
      %s215 = scalar_select %p214, %s211, 6
      %s216 = smul.addr %s213, 7
      %s217 = sadd.s32 %s215, %s216
      %s218 = smul.addr %s217, 8
      %s219 = scalar_lea.vmem %s4, %s218
      %s220 = smul.u32 7, %s20
      %v221 = vld [vmem:[%s210] sm:$0xff]
      %v222 = vld [vmem:[%s210 + $0x8] sm:$0xff]
      %v223 = vld [vmem:[%s210 + $0x10] sm:$0xff]
      %v224 = vld [vmem:[%s210 + $0x18] sm:$0xff]
      %v225 = vld [vmem:[%s210 + $0x20] sm:$0xff]
      %v226 = vld [vmem:[%s210 + $0x28] sm:$0xff]
      %v227 = vld [vmem:[%s210 + $0x30] sm:$0xff]
      %v228 = vpack.c.bf16 %v222, %v221
      %v229 = vpack.c.bf16 %v224, %v223
      %v230 = vpack.c.bf16 %v226, %v225
      %v231 = vpack.c.bf16 %v227, %v227
      %v232 = vld [vmem:[%s1] sm:$0xf]
      %v233 = vld [vmem:[%s1 + $0x4] sm:$0xf]
      %v234 = vld [vmem:[%s1 + $0x8] sm:$0xf]
      %v235 = vld [vmem:[%s1 + $0xc] sm:$0xf]
      %v236 = vld [vmem:[%s1 + $0x10] sm:$0xf]
      %v237 = vld [vmem:[%s1 + $0x14] sm:$0xf]
      %v238 = vld [vmem:[%s1 + $0x18] sm:$0xf]
      %v239 = vld [vmem:[%s1 + $0x1c] sm:$0xf]
      %v240 = vld [vmem:[%s1 + $0x20] sm:$0xf]
      %v241 = vld [vmem:[%s1 + $0x24] sm:$0xf]
      %v242 = vld [vmem:[%s1 + $0x28] sm:$0xf]
      %v243 = vld [vmem:[%s1 + $0x2c] sm:$0xf]
      %v244 = vld [vmem:[%s1 + $0x30] sm:$0xf]
      %v245 = vld [vmem:[%s1 + $0x34] sm:$0xf]
      %v246 = vld [vmem:[%s1 + $0x38] sm:$0xf]
      %v247 = vld [vmem:[%s1 + $0x3c] sm:$0xf]
      %v264 = vunpack.c.l.b16 %v232
      %v265 = vunpack.c.l.b16 %v233
      %v266 = vunpack.c.l.b16 %v234
      %v267 = vunpack.c.l.b16 %v235
      %v268 = vunpack.c.l.b16 %v236
      %v269 = vunpack.c.l.b16 %v237
      %v270 = vunpack.c.l.b16 %v238
      %v271 = vunpack.c.l.b16 %v239
      %v272 = vunpack.c.l.b16 %v240
      %v273 = vunpack.c.l.b16 %v241
      %v274 = vunpack.c.l.b16 %v242
      %v275 = vunpack.c.l.b16 %v243
      %v276 = vunpack.c.l.b16 %v244
      %v277 = vunpack.c.l.b16 %v245
      %v278 = vunpack.c.l.b16 %v246
      %v279 = vunpack.c.l.b16 %v247
      %v280 = vpack.c.b16 %v265, %v264
      %v281 = vpack.c.b16 %v267, %v266
      %v282 = vpack.c.b16 %v269, %v268
      %v283 = vpack.c.b16 %v271, %v270
      %v284 = vpack.c.b16 %v273, %v272
      %v285 = vpack.c.b16 %v275, %v274
      %v286 = vpack.c.b16 %v277, %v276
      %v287 = vpack.c.b16 %v279, %v278
      %296 = vmatpush.bf16.msra.mxu0 %v287
      %297 = vmatpush.bf16.msra.mxu0 %v286
      %298 = vmatpush.bf16.msra.mxu0 %v285
      %299 = vmatpush.bf16.msra.mxu0 %v284
      %300 = vmatpush.bf16.msra.mxu0 %v283
      %301 = vmatpush.bf16.msra.mxu0 %v282
      %302 = vmatpush.bf16.msra.mxu0 %v281
      %303 = vmatpush.bf16.msra.mxu0 %v280
      %304 = vmatmul.bf16.gmra.mxu0 %v228
      %v305 = vpop.f32.mrf.mxu0
      %v306 = vadd.f32 0.0, %v305
      %v307 = vpop.f32.mrf.mxu0
      %v308 = vadd.f32 0.0, %v307
      %309 = vmatmul.bf16.gmra.mxu0 %v229
      %v310 = vpop.f32.mrf.mxu0
      %v311 = vadd.f32 0.0, %v310
      %v312 = vpop.f32.mrf.mxu0
      %v313 = vadd.f32 0.0, %v312
      %314 = vmatmul.bf16.gmra.mxu0 %v230
      %v315 = vpop.f32.mrf.mxu0
      %v316 = vadd.f32 0.0, %v315
      %v317 = vpop.f32.mrf.mxu0
      %v318 = vadd.f32 0.0, %v317
      %319 = vmatmul.bf16.gmra.mxu0 %v231
      %v320 = vpop.f32.mrf.mxu0
      %v321 = vadd.f32 0.0, %v320
      %v322 = vpop.f32.mrf.mxu0
      %323 = vdwg.mxu0
      %v324 = vld [vmem:[%s2] sm:$0x1]
      %v326 = vperm.slane %v324, 0
      %v328 = vmul.f32 %v306, %v326
      %v329 = vmul.f32 %v308, %v326
      %v330 = vmul.f32 %v311, %v326
      %v331 = vmul.f32 %v313, %v326
      %v332 = vmul.f32 %v316, %v326
      %v333 = vmul.f32 %v318, %v326
      %v334 = vmul.f32 %v321, %v326
      %v335 = vld [vmem:[%s3] sm:$0x1]
      %v337 = vperm.slane %v335, 0
      %v339 = vadd.f32 %v328, %v337
      %v340 = vadd.f32 %v329, %v337
      %v341 = vadd.f32 %v330, %v337
      %v342 = vadd.f32 %v331, %v337
      %v343 = vadd.f32 %v332, %v337
      %v344 = vadd.f32 %v333, %v337
      %v345 = vadd.f32 %v334, %v337
      %v346 = vmax.f32 %v339, 0.0
      %v347 = vmax.f32 %v340, 0.0
      %v348 = vmax.f32 %v341, 0.0
      %v349 = vmax.f32 %v342, 0.0
      %v350 = vmax.f32 %v343, 0.0
      %v351 = vmax.f32 %v344, 0.0
      %v352 = vmax.f32 %v345, 0.0
      %353 = vst [vmem:[%s219] sm:$0xff] %v346
      %354 = vst [vmem:[%s219 + $0x8] sm:$0xff] %v347
      %355 = vst [vmem:[%s219 + $0x10] sm:$0xff] %v348
      %356 = vst [vmem:[%s219 + $0x18] sm:$0xff] %v349
      %357 = vst [vmem:[%s219 + $0x20] sm:$0xff] %v350
      %358 = vst [vmem:[%s219 + $0x28] sm:$0xff] %v351
      %359 = vst [vmem:[%s219 + $0x30] sm:$0xff] %v352
      %s360 = smul.u32 7, %s20
      %p361 = scmp.lt.s32.totalorder %s19, 1
      %s362 = scalar_select %p361, %s19, 1
      %p363 = scmp.lt.s32.totalorder %s360, 6
      %s364 = scalar_select %p363, %s360, 6
      %s365 = smul.addr %s362, 7
      %s366 = sadd.s32 %s364, %s365
      %s367 = smul.addr %s366, 8
      %s368 = scalar_lea.vmem %s4, %s367
      // Predicated region
      $region37: #{facenet_forward.12} parent=35 // pred_check
        %p369 = pneg %p136
      $region38: #{facenet_forward.12} parent=35 // pred_check_branch
        %371 = sbr.rel (%p369) target = $region40
      $region39: #{facenet_forward.12} parent=35 // pred_region
        %s372 = smul.u32 7, %s20
      $region40: #{facenet_forward.12} parent=35 // pred_fallthru
        _
    $region36: #{facenet_forward.12} parent=5 // pred_fallthru
      _
    %p373 = scmp.le.s32.totalorder 2, %s10
    // Predicated region
    $region41: #{facenet_forward.12} parent=5 // pred_check
      %p374 = pneg %p373
    $region42: #{facenet_forward.12} parent=5 // pred_check_branch
      %376 = sbr.rel (%p374) target = $region44
    $region43: #{facenet_forward.12} parent=5 // pred_region
      %s377 = ssub.s32 %s10, 2
      // Predicated region
      $region45: #{facenet_forward.12} parent=43 // pred_check
        %p378 = pneg %p142
      $region46: #{facenet_forward.12} parent=43 // pred_check_branch
        %380 = sbr.rel (%p378) target = $region48
      $region47: #{facenet_forward.12} parent=43 // pred_region
        %s381 = smul.u32 7, %s22
        %p382 = scmp.lt.s32.totalorder %s21, 1
        %s383 = scalar_select %p382, %s21, 1
        %p384 = scmp.lt.s32.totalorder %s381, 6
        %s385 = scalar_select %p384, %s381, 6
        %s386 = smul.addr %s383, 7
        %s387 = sadd.s32 %s385, %s386
        %s388 = smul.addr %s387, 8
        %s389 = scalar_lea.vmem %s4, %s388
      $region48: #{facenet_forward.12} parent=43 // pred_fallthru
        _
    $region44: #{facenet_forward.12} parent=5 // pred_fallthru
      _
  $region6: #{facenet_forward.12} parent=0 // loop_footer
    %s14 = sadd.s32 1, %s10
  $region7: #{facenet_forward.12} parent=0 // loop_footer_branch
    %9 = sbr.rel target = $region3
  $region8: #{facenet_forward.12} parent=0 // loop_exit
    _

// kernel: facenet_forward.15
$region0: #{facenet_forward.15}
  #allocation0 [shape = 'u32[]', space=smem, size = 0x4, offset = 0x4, fixed_abs, tag = 'smem constant byte address 0x4 - core index']
  #allocation1 [shape = 'u32[72,128]{1,0:T(1,128)}', space=vmem, size = 0x9000, scoped, tag = 'internal scratch']
  #allocation2 [shape = 'f32[1,1]{1,0:T(1,128)S(1)}', space=vmem, size = 0x200, scoped, tag = 'scoped memory for facenet_forward.15']
  %s0 = inlined_call_operand.vmem [shape: f32[2,4,128], index: 0, kind: input, shape index: {}]
  %s1 = inlined_call_operand.vmem [shape: bf16[128,512], index: 1, kind: input, shape index: {}]
  %s2 = inlined_call_operand.vmem [shape: f32[1,512], index: 2, kind: input, shape index: {}]
  %s3 = inlined_call_operand.vmem [shape: f32[1,512], index: 3, kind: input, shape index: {}]
  %s4 = inlined_call_operand.vmem [shape: bf16[512,128], index: 4, kind: input, shape index: {}]
  %s5 = inlined_call_operand.vmem [shape: f32[1,128], index: 5, kind: input, shape index: {}]
  %s6 = inlined_call_operand.vmem [shape: f32[1,128], index: 6, kind: input, shape index: {}]
  %s7 = inlined_call_operand.vmem [shape: f32[128,10], index: 7, kind: input, shape index: {}]
  %s8 = inlined_call_operand.vmem [shape: f32[1,10], index: 8, kind: input, shape index: {}]
  %s9 = inlined_call_operand.vmem [shape: f32[1,10], index: 9, kind: input, shape index: {}]
  %s10 = inlined_call_operand.vmem [shape: f32[10,1], index: 10, kind: input, shape index: {}]
  %s11 = inlined_call_operand.<no memory space> [shape: f32[1,1], index: 11, kind: input, shape index: {}]
  %s12 = inlined_call_operand.vmem [shape: f32[2,1], index: 12, kind: output, shape index: {}]
  %s13 = sld [smem:[#allocation0]]
  $region58: #{facenet_forward.15} parent=0
    _
  %s15 = ssub.s32 1, %s13
  %s16 = scalar_select 0, %s15, %s13
  %v17 = vstv %s11
  %18 = vst [vmem:[#allocation2] sm:$0x1] %v17
  // Predicated region
  $region2: #{facenet_forward.15} parent=0 // pred_check
    _
  $region3: #{facenet_forward.15} parent=0 // pred_check_branch
    %20 = sbr.rel (0) target = $region5
  $region4: #{facenet_forward.15} parent=0 // pred_region
    _
  $region5: #{facenet_forward.15} parent=0 // pred_fallthru
    _
  // Predicated region
  $region6: #{facenet_forward.15} parent=0 // pred_check
    _
  $region7: #{facenet_forward.15} parent=0 // pred_check_branch
    %22 = sbr.rel (0) target = $region9
  $region8: #{facenet_forward.15} parent=0 // pred_region
    _
  $region9: #{facenet_forward.15} parent=0 // pred_fallthru
    _
  // Predicated region
  $region10: #{facenet_forward.15} parent=0 // pred_check
    _
  $region11: #{facenet_forward.15} parent=0 // pred_check_branch
    %24 = sbr.rel (0) target = $region13
  $region12: #{facenet_forward.15} parent=0 // pred_region
    _
  $region13: #{facenet_forward.15} parent=0 // pred_fallthru
    _
  // Predicated region
  $region14: #{facenet_forward.15} parent=0 // pred_check
    _
  $region15: #{facenet_forward.15} parent=0 // pred_check_branch
    %26 = sbr.rel (0) target = $region17
  $region16: #{facenet_forward.15} parent=0 // pred_region
    _
  $region17: #{facenet_forward.15} parent=0 // pred_fallthru
    _
  // Predicated region
  $region18: #{facenet_forward.15} parent=0 // pred_check
    _
  $region19: #{facenet_forward.15} parent=0 // pred_check_branch
    %28 = sbr.rel (0) target = $region21
  $region20: #{facenet_forward.15} parent=0 // pred_region
    _
  $region21: #{facenet_forward.15} parent=0 // pred_fallthru
    _
  // Predicated region
  $region22: #{facenet_forward.15} parent=0 // pred_check
    _
  $region23: #{facenet_forward.15} parent=0 // pred_check_branch
    %30 = sbr.rel (0) target = $region25
  $region24: #{facenet_forward.15} parent=0 // pred_region
    _
  $region25: #{facenet_forward.15} parent=0 // pred_fallthru
    _
  // Predicated region
  $region26: #{facenet_forward.15} parent=0 // pred_check
    _
  $region27: #{facenet_forward.15} parent=0 // pred_check_branch
    %32 = sbr.rel (0) target = $region29
  $region28: #{facenet_forward.15} parent=0 // pred_region
    _
  $region29: #{facenet_forward.15} parent=0 // pred_fallthru
    _
  // Predicated region
  $region30: #{facenet_forward.15} parent=0 // pred_check
    _
  $region31: #{facenet_forward.15} parent=0 // pred_check_branch
    %34 = sbr.rel (0) target = $region33
  $region32: #{facenet_forward.15} parent=0 // pred_region
    _
  $region33: #{facenet_forward.15} parent=0 // pred_fallthru
    _
  // Predicated region
  $region34: #{facenet_forward.15} parent=0 // pred_check
    _
  $region35: #{facenet_forward.15} parent=0 // pred_check_branch
    %36 = sbr.rel (0) target = $region37
  $region36: #{facenet_forward.15} parent=0 // pred_region
    _
  $region37: #{facenet_forward.15} parent=0 // pred_fallthru
    _
  // Predicated region
  $region38: #{facenet_forward.15} parent=0 // pred_check
    _
  $region39: #{facenet_forward.15} parent=0 // pred_check_branch
    %38 = sbr.rel (0) target = $region41
  $region40: #{facenet_forward.15} parent=0 // pred_region
    _
  $region41: #{facenet_forward.15} parent=0 // pred_fallthru
    _
  // Predicated region
  $region42: #{facenet_forward.15} parent=0 // pred_check
    _
  $region43: #{facenet_forward.15} parent=0 // pred_check_branch
    %40 = sbr.rel (0) target = $region45
  $region44: #{facenet_forward.15} parent=0 // pred_region
    _
  $region45: #{facenet_forward.15} parent=0 // pred_fallthru
    _
  // Predicated region
  $region46: #{facenet_forward.15} parent=0 // pred_check
    _
  $region47: #{facenet_forward.15} parent=0 // pred_check_branch
    %42 = sbr.rel (0) target = $region49
  $region48: #{facenet_forward.15} parent=0 // pred_region
    _
  $region49: #{facenet_forward.15} parent=0 // pred_fallthru
    _
  %v43 = vld [vmem:[%s0] sm:$0xf]
  %v44 = vld [vmem:[%s0 + $0x4] sm:$0xf]
  %vm45 = vcmask 1043456
  %v46 = vsel %vm45, %v43, 0.0
  %v47 = vrot.slane %v46, 4
  %v48 = vadd.f32 %v46, %v47
  %v49 = vrot.slane %v48, 2
  %v50 = vadd.f32 %v48, %v49
  %v51 = vrot.slane %v50, 1
  %v52 = vadd.f32 %v50, %v51
  %v53 = vsel %vm45, %v44, 0.0
  %v54 = vrot.slane %v53, 4
  %v55 = vadd.f32 %v53, %v54
  %v56 = vrot.slane %v55, 2
  %v57 = vadd.f32 %v55, %v56
  %v58 = vrot.slane %v57, 1
  %v59 = vadd.f32 %v57, %v58
  %v60 = vrcp.pop 4.0
  %v61 = vmul.f32 4.0, %v60
  %v62 = vsub.f32 1.0, %v61
  %v63 = vmul.f32 %v60, %v62
  %v64 = vadd.f32 %v60, %v63
  %vm65 = vweird.f32 %v60
  %v66 = vsel %vm65, %v60, %v64
  %v67 = vmul.f32 %v52, %v66
  %v68 = vmul.f32 %v59, %v66
  %v69 = vpack.c.bf16 %v67, %v67
  %v70 = vpack.c.bf16 %v68, %v68
  %v71 = vld [vmem:[%s1] sm:$0xff]
  %v72 = vld [vmem:[%s1 + $0x8] sm:$0xff]
  %v73 = vld [vmem:[%s1 + $0x10] sm:$0xff]
  %v74 = vld [vmem:[%s1 + $0x18] sm:$0xff]
  %v75 = vld [vmem:[%s1 + $0x20] sm:$0xff]
  %v76 = vld [vmem:[%s1 + $0x28] sm:$0xff]
  %v77 = vld [vmem:[%s1 + $0x30] sm:$0xff]
  %v78 = vld [vmem:[%s1 + $0x38] sm:$0xff]
  %v79 = vld [vmem:[%s1 + $0x40] sm:$0xff]
  %v80 = vld [vmem:[%s1 + $0x48] sm:$0xff]
  %v81 = vld [vmem:[%s1 + $0x50] sm:$0xff]
  %v82 = vld [vmem:[%s1 + $0x58] sm:$0xff]
  %v83 = vld [vmem:[%s1 + $0x60] sm:$0xff]
  %v84 = vld [vmem:[%s1 + $0x68] sm:$0xff]
  %v85 = vld [vmem:[%s1 + $0x70] sm:$0xff]
  %v86 = vld [vmem:[%s1 + $0x78] sm:$0xff]
  %v87 = vld [vmem:[%s1 + $0x80] sm:$0xff]
  %v88 = vld [vmem:[%s1 + $0x88] sm:$0xff]
  %v89 = vld [vmem:[%s1 + $0x90] sm:$0xff]
  %v90 = vld [vmem:[%s1 + $0x98] sm:$0xff]
  %v91 = vld [vmem:[%s1 + $0xa0] sm:$0xff]
  %v92 = vld [vmem:[%s1 + $0xa8] sm:$0xff]
  %v93 = vld [vmem:[%s1 + $0xb0] sm:$0xff]
  %v94 = vld [vmem:[%s1 + $0xb8] sm:$0xff]
  %v95 = vld [vmem:[%s1 + $0xc0] sm:$0xff]
  %v96 = vld [vmem:[%s1 + $0xc8] sm:$0xff]
  %v97 = vld [vmem:[%s1 + $0xd0] sm:$0xff]
  %v98 = vld [vmem:[%s1 + $0xd8] sm:$0xff]
  %v99 = vld [vmem:[%s1 + $0xe0] sm:$0xff]
  %v100 = vld [vmem:[%s1 + $0xe8] sm:$0xff]
  %v101 = vld [vmem:[%s1 + $0xf0] sm:$0xff]
  %v102 = vld [vmem:[%s1 + $0xf8] sm:$0xff]
  %v105 = vunpack.c.l.b16 %v69
  %v106 = vunpack.c.l.b16 %v70
  %vm107 = vcmask 1041409
  %v108 = vsel %vm107, %v106, %v105
  %v109 = vpack.c.b16 %v108, %v108
  %v143 = vunpack.c.l.b16 %v71
  %v144 = vunpack.c.h.b16 %v71
  %v145 = vunpack.c.l.b16 %v72
  %v146 = vunpack.c.h.b16 %v72
  %v147 = vunpack.c.l.b16 %v73
  %v148 = vunpack.c.h.b16 %v73
  %v149 = vunpack.c.l.b16 %v74
  %v150 = vunpack.c.h.b16 %v74
  %v151 = vunpack.c.l.b16 %v75
  %v152 = vunpack.c.h.b16 %v75
  %v153 = vunpack.c.l.b16 %v76
  %v154 = vunpack.c.h.b16 %v76
  %v155 = vunpack.c.l.b16 %v77
  %v156 = vunpack.c.h.b16 %v77
  %v157 = vunpack.c.l.b16 %v78
  %v158 = vunpack.c.h.b16 %v78
  %v159 = vunpack.c.l.b16 %v79
  %v160 = vunpack.c.h.b16 %v79
  %v161 = vunpack.c.l.b16 %v80
  %v162 = vunpack.c.h.b16 %v80
  %v163 = vunpack.c.l.b16 %v81
  %v164 = vunpack.c.h.b16 %v81
  %v165 = vunpack.c.l.b16 %v82
  %v166 = vunpack.c.h.b16 %v82
  %v167 = vunpack.c.l.b16 %v83
  %v168 = vunpack.c.h.b16 %v83
  %v169 = vunpack.c.l.b16 %v84
  %v170 = vunpack.c.h.b16 %v84
  %v171 = vunpack.c.l.b16 %v85
  %v172 = vunpack.c.h.b16 %v85
  %v173 = vunpack.c.l.b16 %v86
  %v174 = vunpack.c.h.b16 %v86
  %v175 = vunpack.c.l.b16 %v87
  %v176 = vunpack.c.h.b16 %v87
  %v177 = vunpack.c.l.b16 %v88
  %v178 = vunpack.c.h.b16 %v88
  %v179 = vunpack.c.l.b16 %v89
  %v180 = vunpack.c.h.b16 %v89
  %v181 = vunpack.c.l.b16 %v90
  %v182 = vunpack.c.h.b16 %v90
  %v183 = vunpack.c.l.b16 %v91
  %v184 = vunpack.c.h.b16 %v91
  %v185 = vunpack.c.l.b16 %v92
  %v186 = vunpack.c.h.b16 %v92
  %v187 = vunpack.c.l.b16 %v93
  %v188 = vunpack.c.h.b16 %v93
  %v189 = vunpack.c.l.b16 %v94
  %v190 = vunpack.c.h.b16 %v94
  %v191 = vunpack.c.l.b16 %v95
  %v192 = vunpack.c.h.b16 %v95
  %v193 = vunpack.c.l.b16 %v96
  %v194 = vunpack.c.h.b16 %v96
  %v195 = vunpack.c.l.b16 %v97
  %v196 = vunpack.c.h.b16 %v97
  %v197 = vunpack.c.l.b16 %v98
  %v198 = vunpack.c.h.b16 %v98
  %v199 = vunpack.c.l.b16 %v99
  %v200 = vunpack.c.h.b16 %v99
  %v201 = vunpack.c.l.b16 %v100
  %v202 = vunpack.c.h.b16 %v100
  %v203 = vunpack.c.l.b16 %v101
  %v204 = vunpack.c.h.b16 %v101
  %v205 = vunpack.c.l.b16 %v102
  %v206 = vunpack.c.h.b16 %v102
  %v207 = vpack.c.b16 %v147, %v143
  %v208 = vpack.c.b16 %v148, %v144
  %v209 = vpack.c.b16 %v149, %v145
  %v210 = vpack.c.b16 %v150, %v146
  %v211 = vpack.c.b16 %v155, %v151
  %v212 = vpack.c.b16 %v156, %v152
  %v213 = vpack.c.b16 %v157, %v153
  %v214 = vpack.c.b16 %v158, %v154
  %v215 = vpack.c.b16 %v163, %v159
  %v216 = vpack.c.b16 %v164, %v160
  %v217 = vpack.c.b16 %v165, %v161
  %v218 = vpack.c.b16 %v166, %v162
  %v219 = vpack.c.b16 %v171, %v167
  %v220 = vpack.c.b16 %v172, %v168
  %v221 = vpack.c.b16 %v173, %v169
  %v222 = vpack.c.b16 %v174, %v170
  %v223 = vpack.c.b16 %v179, %v175
  %v224 = vpack.c.b16 %v180, %v176
  %v225 = vpack.c.b16 %v181, %v177
  %v226 = vpack.c.b16 %v182, %v178
  %v227 = vpack.c.b16 %v187, %v183
  %v228 = vpack.c.b16 %v188, %v184
  %v229 = vpack.c.b16 %v189, %v185
  %v230 = vpack.c.b16 %v190, %v186
  %v231 = vpack.c.b16 %v195, %v191
  %v232 = vpack.c.b16 %v196, %v192
  %v233 = vpack.c.b16 %v197, %v193
  %v234 = vpack.c.b16 %v198, %v194
  %v235 = vpack.c.b16 %v203, %v199
  %v236 = vpack.c.b16 %v204, %v200
  %v237 = vpack.c.b16 %v205, %v201
  %v238 = vpack.c.b16 %v206, %v202
  %271 = vmatpush.bf16.msra.mxu0 %v235
  %272 = vmatpush.bf16.msra.mxu0 %v231
  %273 = vmatpush.bf16.msra.mxu0 %v227
  %274 = vmatpush.bf16.msra.mxu0 %v223
  %275 = vmatpush.bf16.msra.mxu0 %v219
  %276 = vmatpush.bf16.msra.mxu0 %v215
  %277 = vmatpush.bf16.msra.mxu0 %v211
  %278 = vmatpush.bf16.msra.mxu0 %v207
  %279 = vmatmul.bf16.gmra.mxu0 %v109
  %v280 = vpop.f32.mrf.mxu0
  %v281 = vadd.f32 0.0, %v280
  %v282 = vpop.f32.mrf.mxu0
  %283 = vdwg.mxu0
  %284 = vmatpush.bf16.msra.mxu0 %v236
  %285 = vmatpush.bf16.msra.mxu0 %v232
  %286 = vmatpush.bf16.msra.mxu0 %v228
  %287 = vmatpush.bf16.msra.mxu0 %v224
  %288 = vmatpush.bf16.msra.mxu0 %v220
  %289 = vmatpush.bf16.msra.mxu0 %v216
  %290 = vmatpush.bf16.msra.mxu0 %v212
  %291 = vmatpush.bf16.msra.mxu0 %v208
  %292 = vmatmul.bf16.gmra.mxu0 %v109
  %v293 = vpop.f32.mrf.mxu0
  %v294 = vadd.f32 0.0, %v293
  %v295 = vpop.f32.mrf.mxu0
  %296 = vdwg.mxu0
  %297 = vmatpush.bf16.msra.mxu0 %v237
  %298 = vmatpush.bf16.msra.mxu0 %v233
  %299 = vmatpush.bf16.msra.mxu0 %v229
  %300 = vmatpush.bf16.msra.mxu0 %v225
  %301 = vmatpush.bf16.msra.mxu0 %v221
  %302 = vmatpush.bf16.msra.mxu0 %v217
  %303 = vmatpush.bf16.msra.mxu0 %v213
  %304 = vmatpush.bf16.msra.mxu0 %v209
  %305 = vmatmul.bf16.gmra.mxu0 %v109
  %v306 = vpop.f32.mrf.mxu0
  %v307 = vadd.f32 0.0, %v306
  %v308 = vpop.f32.mrf.mxu0
  %309 = vdwg.mxu0
  %310 = vmatpush.bf16.msra.mxu0 %v238
  %311 = vmatpush.bf16.msra.mxu0 %v234
  %312 = vmatpush.bf16.msra.mxu0 %v230
  %313 = vmatpush.bf16.msra.mxu0 %v226
  %314 = vmatpush.bf16.msra.mxu0 %v222
  %315 = vmatpush.bf16.msra.mxu0 %v218
  %316 = vmatpush.bf16.msra.mxu0 %v214
  %317 = vmatpush.bf16.msra.mxu0 %v210
  %318 = vmatmul.bf16.gmra.mxu0 %v109
  %v319 = vpop.f32.mrf.mxu0
  %v320 = vadd.f32 0.0, %v319
  %v321 = vpop.f32.mrf.mxu0
  %322 = vdwg.mxu0
  %v323 = vld [vmem:[%s2] sm:$0xf]
  %v325 = vperm.slane %v323, 0
  %v326 = vperm.slane %v323, 1
  %v327 = vperm.slane %v323, 2
  %v328 = vperm.slane %v323, 3
  %v333 = vmul.f32 %v281, %v325
  %v334 = vmul.f32 %v294, %v326
  %v335 = vmul.f32 %v307, %v327
  %v336 = vmul.f32 %v320, %v328
  %v337 = vld [vmem:[%s3] sm:$0xf]
  %v339 = vperm.slane %v337, 0
  %v340 = vperm.slane %v337, 1
  %v341 = vperm.slane %v337, 2
  %v342 = vperm.slane %v337, 3
  %v347 = vadd.f32 %v333, %v339
  %v348 = vadd.f32 %v334, %v340
  %v349 = vadd.f32 %v335, %v341
  %v350 = vadd.f32 %v336, %v342
  %v351 = vpack.c.bf16 %v347, %v347
  %v352 = vpack.c.bf16 %v348, %v348
  %v353 = vpack.c.bf16 %v349, %v349
  %v354 = vpack.c.bf16 %v350, %v350
  %v355 = vld [vmem:[%s4] sm:$0xf]
  %v356 = vld [vmem:[%s4 + $0x4] sm:$0xf]
  %v357 = vld [vmem:[%s4 + $0x8] sm:$0xf]
  %v358 = vld [vmem:[%s4 + $0xc] sm:$0xf]
  %v359 = vld [vmem:[%s4 + $0x10] sm:$0xf]
  %v360 = vld [vmem:[%s4 + $0x14] sm:$0xf]
  %v361 = vld [vmem:[%s4 + $0x18] sm:$0xf]
  %v362 = vld [vmem:[%s4 + $0x1c] sm:$0xf]
  %v363 = vld [vmem:[%s4 + $0x20] sm:$0xf]
  %v364 = vld [vmem:[%s4 + $0x24] sm:$0xf]
  %v365 = vld [vmem:[%s4 + $0x28] sm:$0xf]
  %v366 = vld [vmem:[%s4 + $0x2c] sm:$0xf]
  %v367 = vld [vmem:[%s4 + $0x30] sm:$0xf]
  %v368 = vld [vmem:[%s4 + $0x34] sm:$0xf]
  %v369 = vld [vmem:[%s4 + $0x38] sm:$0xf]
  %v370 = vld [vmem:[%s4 + $0x3c] sm:$0xf]
  %v371 = vld [vmem:[%s4 + $0x40] sm:$0xf]
  %v372 = vld [vmem:[%s4 + $0x44] sm:$0xf]
  %v373 = vld [vmem:[%s4 + $0x48] sm:$0xf]
  %v374 = vld [vmem:[%s4 + $0x4c] sm:$0xf]
  %v375 = vld [vmem:[%s4 + $0x50] sm:$0xf]
  %v376 = vld [vmem:[%s4 + $0x54] sm:$0xf]
  %v377 = vld [vmem:[%s4 + $0x58] sm:$0xf]
  %v378 = vld [vmem:[%s4 + $0x5c] sm:$0xf]
  %v379 = vld [vmem:[%s4 + $0x60] sm:$0xf]
  %v380 = vld [vmem:[%s4 + $0x64] sm:$0xf]
  %v381 = vld [vmem:[%s4 + $0x68] sm:$0xf]
  %v382 = vld [vmem:[%s4 + $0x6c] sm:$0xf]
  %v383 = vld [vmem:[%s4 + $0x70] sm:$0xf]
  %v384 = vld [vmem:[%s4 + $0x74] sm:$0xf]
  %v385 = vld [vmem:[%s4 + $0x78] sm:$0xf]
  %v386 = vld [vmem:[%s4 + $0x7c] sm:$0xf]
  %v387 = vld [vmem:[%s4 + $0x80] sm:$0xf]
  %v388 = vld [vmem:[%s4 + $0x84] sm:$0xf]
  %v389 = vld [vmem:[%s4 + $0x88] sm:$0xf]
  %v390 = vld [vmem:[%s4 + $0x8c] sm:$0xf]
  %v391 = vld [vmem:[%s4 + $0x90] sm:$0xf]
  %v392 = vld [vmem:[%s4 + $0x94] sm:$0xf]
  %v393 = vld [vmem:[%s4 + $0x98] sm:$0xf]
  %v394 = vld [vmem:[%s4 + $0x9c] sm:$0xf]
  %v395 = vld [vmem:[%s4 + $0xa0] sm:$0xf]
  %v396 = vld [vmem:[%s4 + $0xa4] sm:$0xf]
  %v397 = vld [vmem:[%s4 + $0xa8] sm:$0xf]
  %v398 = vld [vmem:[%s4 + $0xac] sm:$0xf]
  %v399 = vld [vmem:[%s4 + $0xb0] sm:$0xf]
  %v400 = vld [vmem:[%s4 + $0xb4] sm:$0xf]
  %v401 = vld [vmem:[%s4 + $0xb8] sm:$0xf]
  %v402 = vld [vmem:[%s4 + $0xbc] sm:$0xf]
  %v403 = vld [vmem:[%s4 + $0xc0] sm:$0xf]
  %v404 = vld [vmem:[%s4 + $0xc4] sm:$0xf]
  %v405 = vld [vmem:[%s4 + $0xc8] sm:$0xf]
  %v406 = vld [vmem:[%s4 + $0xcc] sm:$0xf]
  %v407 = vld [vmem:[%s4 + $0xd0] sm:$0xf]
  %v408 = vld [vmem:[%s4 + $0xd4] sm:$0xf]
  %v409 = vld [vmem:[%s4 + $0xd8] sm:$0xf]
  %v410 = vld [vmem:[%s4 + $0xdc] sm:$0xf]
  %v411 = vld [vmem:[%s4 + $0xe0] sm:$0xf]
  %v412 = vld [vmem:[%s4 + $0xe4] sm:$0xf]
  %v413 = vld [vmem:[%s4 + $0xe8] sm:$0xf]
  %v414 = vld [vmem:[%s4 + $0xec] sm:$0xf]
  %v415 = vld [vmem:[%s4 + $0xf0] sm:$0xf]
  %v416 = vld [vmem:[%s4 + $0xf4] sm:$0xf]
  %v417 = vld [vmem:[%s4 + $0xf8] sm:$0xf]
  %v418 = vld [vmem:[%s4 + $0xfc] sm:$0xf]
  %v483 = vunpack.c.l.b16 %v355
  %v484 = vunpack.c.l.b16 %v356
  %v485 = vunpack.c.l.b16 %v357
  %v486 = vunpack.c.l.b16 %v358
  %v487 = vunpack.c.l.b16 %v359
  %v488 = vunpack.c.l.b16 %v360
  %v489 = vunpack.c.l.b16 %v361
  %v490 = vunpack.c.l.b16 %v362
  %v491 = vunpack.c.l.b16 %v363
  %v492 = vunpack.c.l.b16 %v364
  %v493 = vunpack.c.l.b16 %v365
  %v494 = vunpack.c.l.b16 %v366
  %v495 = vunpack.c.l.b16 %v367
  %v496 = vunpack.c.l.b16 %v368
  %v497 = vunpack.c.l.b16 %v369
  %v498 = vunpack.c.l.b16 %v370
  %v499 = vunpack.c.l.b16 %v371
  %v500 = vunpack.c.l.b16 %v372
  %v501 = vunpack.c.l.b16 %v373
  %v502 = vunpack.c.l.b16 %v374
  %v503 = vunpack.c.l.b16 %v375
  %v504 = vunpack.c.l.b16 %v376
  %v505 = vunpack.c.l.b16 %v377
  %v506 = vunpack.c.l.b16 %v378
  %v507 = vunpack.c.l.b16 %v379
  %v508 = vunpack.c.l.b16 %v380
  %v509 = vunpack.c.l.b16 %v381
  %v510 = vunpack.c.l.b16 %v382
  %v511 = vunpack.c.l.b16 %v383
  %v512 = vunpack.c.l.b16 %v384
  %v513 = vunpack.c.l.b16 %v385
  %v514 = vunpack.c.l.b16 %v386
  %v515 = vunpack.c.l.b16 %v387
  %v516 = vunpack.c.l.b16 %v388
  %v517 = vunpack.c.l.b16 %v389
  %v518 = vunpack.c.l.b16 %v390
  %v519 = vunpack.c.l.b16 %v391
  %v520 = vunpack.c.l.b16 %v392
  %v521 = vunpack.c.l.b16 %v393
  %v522 = vunpack.c.l.b16 %v394
  %v523 = vunpack.c.l.b16 %v395
  %v524 = vunpack.c.l.b16 %v396
  %v525 = vunpack.c.l.b16 %v397
  %v526 = vunpack.c.l.b16 %v398
  %v527 = vunpack.c.l.b16 %v399
  %v528 = vunpack.c.l.b16 %v400
  %v529 = vunpack.c.l.b16 %v401
  %v530 = vunpack.c.l.b16 %v402
  %v531 = vunpack.c.l.b16 %v403
  %v532 = vunpack.c.l.b16 %v404
  %v533 = vunpack.c.l.b16 %v405
  %v534 = vunpack.c.l.b16 %v406
  %v535 = vunpack.c.l.b16 %v407
  %v536 = vunpack.c.l.b16 %v408
  %v537 = vunpack.c.l.b16 %v409
  %v538 = vunpack.c.l.b16 %v410
  %v539 = vunpack.c.l.b16 %v411
  %v540 = vunpack.c.l.b16 %v412
  %v541 = vunpack.c.l.b16 %v413
  %v542 = vunpack.c.l.b16 %v414
  %v543 = vunpack.c.l.b16 %v415
  %v544 = vunpack.c.l.b16 %v416
  %v545 = vunpack.c.l.b16 %v417
  %v546 = vunpack.c.l.b16 %v418
  %v547 = vpack.c.b16 %v484, %v483
  %v548 = vpack.c.b16 %v486, %v485
  %v549 = vpack.c.b16 %v488, %v487
  %v550 = vpack.c.b16 %v490, %v489
  %v551 = vpack.c.b16 %v492, %v491
  %v552 = vpack.c.b16 %v494, %v493
  %v553 = vpack.c.b16 %v496, %v495
  %v554 = vpack.c.b16 %v498, %v497
  %v555 = vpack.c.b16 %v500, %v499
  %v556 = vpack.c.b16 %v502, %v501
  %v557 = vpack.c.b16 %v504, %v503
  %v558 = vpack.c.b16 %v506, %v505
  %v559 = vpack.c.b16 %v508, %v507
  %v560 = vpack.c.b16 %v510, %v509
  %v561 = vpack.c.b16 %v512, %v511
  %v562 = vpack.c.b16 %v514, %v513
  %v563 = vpack.c.b16 %v516, %v515
  %v564 = vpack.c.b16 %v518, %v517
  %v565 = vpack.c.b16 %v520, %v519
  %v566 = vpack.c.b16 %v522, %v521
  %v567 = vpack.c.b16 %v524, %v523
  %v568 = vpack.c.b16 %v526, %v525
  %v569 = vpack.c.b16 %v528, %v527
  %v570 = vpack.c.b16 %v530, %v529
  %v571 = vpack.c.b16 %v532, %v531
  %v572 = vpack.c.b16 %v534, %v533
  %v573 = vpack.c.b16 %v536, %v535
  %v574 = vpack.c.b16 %v538, %v537
  %v575 = vpack.c.b16 %v540, %v539
  %v576 = vpack.c.b16 %v542, %v541
  %v577 = vpack.c.b16 %v544, %v543
  %v578 = vpack.c.b16 %v546, %v545
  %611 = vmatpush.bf16.msra.mxu0 %v554
  %612 = vmatpush.bf16.msra.mxu0 %v553
  %613 = vmatpush.bf16.msra.mxu0 %v552
  %614 = vmatpush.bf16.msra.mxu0 %v551
  %615 = vmatpush.bf16.msra.mxu0 %v550
  %616 = vmatpush.bf16.msra.mxu0 %v549
  %617 = vmatpush.bf16.msra.mxu0 %v548
  %618 = vmatpush.bf16.msra.mxu0 %v547
  %619 = vmatmul.bf16.gmra.mxu0 %v351
  %v620 = vpop.f32.mrf.mxu0
  %v621 = vadd.f32 0.0, %v620
  %v622 = vpop.f32.mrf.mxu0
  %623 = vdwg.mxu0
  %624 = vmatpush.bf16.msra.mxu0 %v562
  %625 = vmatpush.bf16.msra.mxu0 %v561
  %626 = vmatpush.bf16.msra.mxu0 %v560
  %627 = vmatpush.bf16.msra.mxu0 %v559
  %628 = vmatpush.bf16.msra.mxu0 %v558
  %629 = vmatpush.bf16.msra.mxu0 %v557
  %630 = vmatpush.bf16.msra.mxu0 %v556
  %631 = vmatpush.bf16.msra.mxu0 %v555
  %632 = vmatmul.bf16.gmra.mxu0 %v352
  %v633 = vpop.f32.mrf.mxu0
  %v634 = vadd.f32 %v621, %v633
  %v635 = vpop.f32.mrf.mxu0
  %636 = vdwg.mxu0
  %637 = vmatpush.bf16.msra.mxu0 %v570
  %638 = vmatpush.bf16.msra.mxu0 %v569
  %639 = vmatpush.bf16.msra.mxu0 %v568
  %640 = vmatpush.bf16.msra.mxu0 %v567
  %641 = vmatpush.bf16.msra.mxu0 %v566
  %642 = vmatpush.bf16.msra.mxu0 %v565
  %643 = vmatpush.bf16.msra.mxu0 %v564
  %644 = vmatpush.bf16.msra.mxu0 %v563
  %645 = vmatmul.bf16.gmra.mxu0 %v353
  %v646 = vpop.f32.mrf.mxu0
  %v647 = vadd.f32 %v634, %v646
  %v648 = vpop.f32.mrf.mxu0
  %649 = vdwg.mxu0
  %650 = vmatpush.bf16.msra.mxu0 %v578
  %651 = vmatpush.bf16.msra.mxu0 %v577
  %652 = vmatpush.bf16.msra.mxu0 %v576
  %653 = vmatpush.bf16.msra.mxu0 %v575
  %654 = vmatpush.bf16.msra.mxu0 %v574
  %655 = vmatpush.bf16.msra.mxu0 %v573
  %656 = vmatpush.bf16.msra.mxu0 %v572
  %657 = vmatpush.bf16.msra.mxu0 %v571
  %658 = vmatmul.bf16.gmra.mxu0 %v354
  %v659 = vpop.f32.mrf.mxu0
  %v660 = vadd.f32 %v647, %v659
  %v661 = vpop.f32.mrf.mxu0
  %662 = vdwg.mxu0
  %v663 = vld [vmem:[%s5] sm:$0x1]
  %v665 = vperm.slane %v663, 0
  %v667 = vmul.f32 %v660, %v665
  %v668 = vld [vmem:[%s6] sm:$0x1]
  %v670 = vperm.slane %v668, 0
  %v672 = vadd.f32 %v667, %v670
  %v673 = vmax.f32 %v672, 0.0
  %v674 = vld [vmem:[%s7] sm:$0xff]
  %v675 = vld [vmem:[%s7 + $0x8] sm:$0xff]
  %v676 = vld [vmem:[%s7 + $0x10] sm:$0xff]
  %v677 = vld [vmem:[%s7 + $0x18] sm:$0xff]
  %v678 = vld [vmem:[%s7 + $0x20] sm:$0xff]
  %v679 = vld [vmem:[%s7 + $0x28] sm:$0xff]
  %v680 = vld [vmem:[%s7 + $0x30] sm:$0xff]
  %v681 = vld [vmem:[%s7 + $0x38] sm:$0xff]
  %v682 = vld [vmem:[%s7 + $0x40] sm:$0xff]
  %v683 = vld [vmem:[%s7 + $0x48] sm:$0xff]
  %v684 = vld [vmem:[%s7 + $0x50] sm:$0xff]
  %v685 = vld [vmem:[%s7 + $0x58] sm:$0xff]
  %v686 = vld [vmem:[%s7 + $0x60] sm:$0xff]
  %v687 = vld [vmem:[%s7 + $0x68] sm:$0xff]
  %v688 = vld [vmem:[%s7 + $0x70] sm:$0xff]
  %v689 = vld [vmem:[%s7 + $0x78] sm:$0xff]
  %690 = vmatpush.msra.mxu0 %v689
  %691 = vmatpush.msra.mxu0 %v688
  %692 = vmatpush.msra.mxu0 %v687
  %693 = vmatpush.msra.mxu0 %v686
  %694 = vmatpush.msra.mxu0 %v685
  %695 = vmatpush.msra.mxu0 %v684
  %696 = vmatpush.msra.mxu0 %v683
  %697 = vmatpush.msra.mxu0 %v682
  %698 = vmatpush.msra.mxu0 %v681
  %699 = vmatpush.msra.mxu0 %v680
  %700 = vmatpush.msra.mxu0 %v679
  %701 = vmatpush.msra.mxu0 %v678
  %702 = vmatpush.msra.mxu0 %v677
  %703 = vmatpush.msra.mxu0 %v676
  %704 = vmatpush.msra.mxu0 %v675
  %705 = vmatpush.msra.mxu0 %v674
  %706 = vmatmul.f32.gmra.mxu0 %v673
  %v707 = vpop.f32.mrf.mxu0
  %v708 = vadd.f32 0.0, %v707
  %709 = vdwg.mxu0
  %v710 = vld [vmem:[%s8] sm:$0x1]
  %v712 = vperm.slane %v710, 0
  %v714 = vmul.f32 %v708, %v712
  %v715 = vld [vmem:[%s9] sm:$0x1]
  %v717 = vperm.slane %v715, 0
  %v719 = vadd.f32 %v714, %v717
  %v720 = vmax.f32 %v719, 0.0
  %v721 = vld [vmem:[%s10] sm:$0xff]
  %v722 = vld [vmem:[%s10 + $0x8] sm:$0x3]
  %v723 = vld [vmem:[#allocation2] sm:$0x1]
  %v725 = vperm.slane %v723, 0
  %vm727 = vcmask 80896
  %v729 = vsel %vm727, %v720, 0
  %vm731 = vcmask 1041408
  %v733 = vsel %vm731, %v722, 0
  %735 = vmatpush.msra.mxu0 0.0
  %736 = vmatpush.msra.mxu0 0.0
  %737 = vmatpush.msra.mxu0 0.0
  %738 = vmatpush.msra.mxu0 0.0
  %739 = vmatpush.msra.mxu0 0.0
  %740 = vmatpush.msra.mxu0 0.0
  %741 = vmatpush.msra.mxu0 0.0
  %742 = vmatpush.msra.mxu0 0.0
  %743 = vmatpush.msra.mxu0 0.0
  %744 = vmatpush.msra.mxu0 0.0
  %745 = vmatpush.msra.mxu0 0.0
  %746 = vmatpush.msra.mxu0 0.0
  %747 = vmatpush.msra.mxu0 0.0
  %748 = vmatpush.msra.mxu0 0.0
  %749 = vmatpush.msra.mxu0 %v733
  %750 = vmatpush.msra.mxu0 %v721
  %751 = vmatmul.f32.gmra.mxu0 %v729
  %v752 = vpop.f32.mrf.mxu0
  %v753 = vadd.f32 %v725, %v752
  %754 = vdwg.mxu0
  %vm755 = vcmask 1024
  %756 = vst.msk [vmem:[%s12] sm:$0x3] %vm755, %v753
  // Predicated region
  $region50: #{facenet_forward.15} parent=0 // pred_check
    _
  $region51: #{facenet_forward.15} parent=0 // pred_check_branch
    %758 = sbr.rel (0) target = $region53
  $region52: #{facenet_forward.15} parent=0 // pred_region
    _
  $region53: #{facenet_forward.15} parent=0 // pred_fallthru
    _
  // Predicated region
  $region54: #{facenet_forward.15} parent=0 // pred_check
    _
  $region55: #{facenet_forward.15} parent=0 // pred_check_branch
    %760 = sbr.rel (0) target = $region57
  $region56: #{facenet_forward.15} parent=0 // pred_region
    _
  $region57: #{facenet_forward.15} parent=0 // pred_fallthru
    _

// kernel: facenet_forward.13
$region0: #{facenet_forward.13}
  #allocation0 [shape = 'u32[]', space=smem, size = 0x4, offset = 0x4, fixed_abs, tag = 'smem constant byte address 0x4 - core index']
  #allocation1 [shape = 'u32[72,128]{1,0:T(1,128)}', space=vmem, size = 0x9000, scoped, tag = 'internal scratch']
  %s0 = inlined_call_operand.vmem [shape: f32[2,1,56,128], index: 0, kind: input, shape index: {}]
  %s1 = inlined_call_operand.vmem [shape: bf16[9,128,128], index: 1, kind: input, shape index: {}]
  %s2 = inlined_call_operand.vmem [shape: f32[1,128], index: 2, kind: input, shape index: {}]
  %s3 = inlined_call_operand.vmem [shape: f32[1,128], index: 3, kind: input, shape index: {}]
  %s4 = inlined_call_operand.vmem [shape: f32[2,40,128], index: 4, kind: output, shape index: {}]
  %s5 = sld [smem:[#allocation0]]
  $region49: #{facenet_forward.13} parent=0
    _
  %s7 = ssub.s32 1, %s5
  %s8 = scalar_select 0, %s7, %s5
  loop: start=0, step=1, limit=4
  $region2: #{facenet_forward.13} parent=0 // loop_pre_header
    _
  $region3: #{facenet_forward.13} parent=0 // loop_header
    %s10 = sphi 0, %s14
    %p11 = scmp.ge.s32.totalorder %s10, 4
    %s17 = sphi 0, %s29
    %s18 = sphi 0, %s25
    %s19 = sphi 0, %s17
    %s20 = sphi 0, %s18
    %s21 = sphi 0, %s19
    %s22 = sphi 0, %s20
    %s32 = sphi 0, %s34
    %s35 = sphi 0, %s32
    %s36 = sphi 0, %s35
    %s52 = sphi 0, %s36
    %s56 = sphi 0, %s56
    %s58 = sphi 0, %s56
    %s59 = sphi 0, %s58
    %s73 = sphi 0, %s59
    %s77 = sphi 0, %s77
    %s79 = sphi 0, %s77
    %s80 = sphi 0, %s79
    %s94 = sphi 0, %s80
    %s98 = sphi 0, %s98
    %s100 = sphi 0, %s98
    %s101 = sphi 0, %s100
    %s115 = sphi 0, %s101
    %s123 = sphi 0, %s125
    %s126 = sphi 0, %s123
    %s127 = sphi 0, %s126
    %s143 = sphi 0, %s127
  $region4: #{facenet_forward.13} parent=0 // loop_header_branch
    %13 = sbr.rel (%p11) target = $region8
  $region5: #{facenet_forward.13} parent=0 // loop_body
    %s15 = ssub.s32 %s10, 1
    %s16 = ssub.s32 %s10, 2
    %s23 = sadd.s32 1, %s18
    %p24 = scmp.ge.s32.totalorder %s23, 1
    %s25 = scalar_select %p24, 0, %s23
    %s26 = sadd.s32 1, %s17
    %s27 = scalar_select %p24, %s26, %s17
    %p28 = scmp.ge.s32.totalorder %s27, 2
    %s29 = scalar_select %p28, 0, %s27
    %s30 = ssub.s32 %s17, %s29
    %p31 = scmp.eq.s32.totalorder %s30, 0
    %s33 = sadd.s32 %s32, 1
    %s34 = scalar_select %p31, %s32, %s33
    %p37 = pneg %p31
    %p38 = scmp.eq.s32.totalorder %s10, 1
    %p39 = por %p37, %p38
    %p40 = scmp.ne.s32.totalorder %s32, %s35
    %p41 = scmp.eq.s32.totalorder %s10, 0
    %p42 = por %p40, %p41
    %p43 = scmp.ne.s32.totalorder %s32, %s35
    %p44 = scmp.eq.s32.totalorder %s15, 1
    %p45 = por %p43, %p44
    %p46 = scmp.ne.s32.totalorder %s35, %s36
    %p47 = scmp.eq.s32.totalorder %s15, 0
    %p48 = por %p46, %p47
    %p49 = scmp.ne.s32.totalorder %s35, %s36
    %p50 = scmp.eq.s32.totalorder %s16, 1
    %p51 = por %p49, %p50
    %p53 = scmp.ne.s32.totalorder %s36, %s52
    %p54 = scmp.eq.s32.totalorder %s16, 0
    %p55 = por %p53, %p54
    %s57 = sadd.s32 %s56, 1
    %p60 = scmp.eq.s32.totalorder %s10, 1
    %p61 = scmp.ne.s32.totalorder %s56, %s58
    %p62 = scmp.eq.s32.totalorder %s10, 0
    %p63 = por %p61, %p62
    %p64 = scmp.ne.s32.totalorder %s56, %s58
    %p65 = scmp.eq.s32.totalorder %s15, 1
    %p66 = por %p64, %p65
    %p67 = scmp.ne.s32.totalorder %s58, %s59
    %p68 = scmp.eq.s32.totalorder %s15, 0
    %p69 = por %p67, %p68
    %p70 = scmp.ne.s32.totalorder %s58, %s59
    %p71 = scmp.eq.s32.totalorder %s16, 1
    %p72 = por %p70, %p71
    %p74 = scmp.ne.s32.totalorder %s59, %s73
    %p75 = scmp.eq.s32.totalorder %s16, 0
    %p76 = por %p74, %p75
    %s78 = sadd.s32 %s77, 1
    %p81 = scmp.eq.s32.totalorder %s10, 1
    %p82 = scmp.ne.s32.totalorder %s77, %s79
    %p83 = scmp.eq.s32.totalorder %s10, 0
    %p84 = por %p82, %p83
    %p85 = scmp.ne.s32.totalorder %s77, %s79
    %p86 = scmp.eq.s32.totalorder %s15, 1
    %p87 = por %p85, %p86
    %p88 = scmp.ne.s32.totalorder %s79, %s80
    %p89 = scmp.eq.s32.totalorder %s15, 0
    %p90 = por %p88, %p89
    %p91 = scmp.ne.s32.totalorder %s79, %s80
    %p92 = scmp.eq.s32.totalorder %s16, 1
    %p93 = por %p91, %p92
    %p95 = scmp.ne.s32.totalorder %s80, %s94
    %p96 = scmp.eq.s32.totalorder %s16, 0
    %p97 = por %p95, %p96
    %s99 = sadd.s32 %s98, 1
    %p102 = scmp.eq.s32.totalorder %s10, 1
    %p103 = scmp.ne.s32.totalorder %s98, %s100
    %p104 = scmp.eq.s32.totalorder %s10, 0
    %p105 = por %p103, %p104
    %p106 = scmp.ne.s32.totalorder %s98, %s100
    %p107 = scmp.eq.s32.totalorder %s15, 1
    %p108 = por %p106, %p107
    %p109 = scmp.ne.s32.totalorder %s100, %s101
    %p110 = scmp.eq.s32.totalorder %s15, 0
    %p111 = por %p109, %p110
    %p112 = scmp.ne.s32.totalorder %s100, %s101
    %p113 = scmp.eq.s32.totalorder %s16, 1
    %p114 = por %p112, %p113
    %p116 = scmp.ne.s32.totalorder %s101, %s115
    %p117 = scmp.eq.s32.totalorder %s16, 0
    %p118 = por %p116, %p117
    %s119 = ssub.s32 %s17, %s29
    %s120 = ssub.s32 %s18, %s25
    %s121 = sor.u32 %s119, %s120
    %p122 = scmp.eq.s32.totalorder %s121, 0
    %s124 = sadd.s32 %s123, 1
    %s125 = scalar_select %p122, %s123, %s124
    %p128 = pneg %p122
    %p129 = scmp.eq.s32.totalorder %s10, 1
    %p130 = por %p128, %p129
    %p131 = scmp.ne.s32.totalorder %s123, %s126
    %p132 = scmp.eq.s32.totalorder %s10, 0
    %p133 = por %p131, %p132
    %p134 = scmp.ne.s32.totalorder %s123, %s126
    %p135 = scmp.eq.s32.totalorder %s15, 1
    %p136 = por %p134, %p135
    %p137 = scmp.ne.s32.totalorder %s126, %s127
    %p138 = scmp.eq.s32.totalorder %s15, 0
    %p139 = por %p137, %p138
    %p140 = scmp.ne.s32.totalorder %s126, %s127
    %p141 = scmp.eq.s32.totalorder %s16, 1
    %p142 = por %p140, %p141
    %p144 = scmp.ne.s32.totalorder %s127, %s143
    %p145 = scmp.eq.s32.totalorder %s16, 0
    %p146 = por %p144, %p145
    %p147 = scmp.le.s32.totalorder 1, %s10
    %p148 = scmp.lt.s32.totalorder %s10, 3
    %p149 = pnand %p147, %p148
    %p150 = pneg %p149
    // Predicated region
    $region9: #{facenet_forward.13} parent=5 // pred_check
      _
    $region10: #{facenet_forward.13} parent=5 // pred_check_branch
      %152 = sbr.rel (%p149) target = $region12
    $region11: #{facenet_forward.13} parent=5 // pred_region
      %s153 = ssub.s32 %s10, 1
      // Predicated region
      $region13: #{facenet_forward.13} parent=11 // pred_check
        %p154 = pneg %p69
      $region14: #{facenet_forward.13} parent=11 // pred_check_branch
        %156 = sbr.rel (%p154) target = $region16
      $region15: #{facenet_forward.13} parent=11 // pred_region
        _
      $region16: #{facenet_forward.13} parent=11 // pred_fallthru
        _
      // Predicated region
      $region17: #{facenet_forward.13} parent=11 // pred_check
        %p157 = pneg %p90
      $region18: #{facenet_forward.13} parent=11 // pred_check_branch
        %159 = sbr.rel (%p157) target = $region20
      $region19: #{facenet_forward.13} parent=11 // pred_region
        _
      $region20: #{facenet_forward.13} parent=11 // pred_fallthru
        _
      // Predicated region
      $region21: #{facenet_forward.13} parent=11 // pred_check
        %p160 = pneg %p111
      $region22: #{facenet_forward.13} parent=11 // pred_check_branch
        %162 = sbr.rel (%p160) target = $region24
      $region23: #{facenet_forward.13} parent=11 // pred_region
        _
      $region24: #{facenet_forward.13} parent=11 // pred_fallthru
        _
    $region12: #{facenet_forward.13} parent=5 // pred_fallthru
      _
    %p163 = scmp.lt.s32.totalorder %s10, 2
    // Predicated region
    $region25: #{facenet_forward.13} parent=5 // pred_check
      %p164 = pneg %p163
    $region26: #{facenet_forward.13} parent=5 // pred_check_branch
      %166 = sbr.rel (%p164) target = $region28
    $region27: #{facenet_forward.13} parent=5 // pred_region
      // Predicated region
      $region29: #{facenet_forward.13} parent=27 // pred_check
        %p167 = pneg %p42
      $region30: #{facenet_forward.13} parent=27 // pred_check_branch
        %169 = sbr.rel (%p167) target = $region32
      $region31: #{facenet_forward.13} parent=27 // pred_region
        %p170 = scmp.lt.s32.totalorder %s17, 1
        %s171 = scalar_select %p170, %s17, 1
        %s172 = smul.addr %s171, 7
        %s173 = smul.addr %s172, 8
        %s174 = scalar_lea.vmem %s0, %s173
      $region32: #{facenet_forward.13} parent=27 // pred_fallthru
        _
    $region28: #{facenet_forward.13} parent=5 // pred_fallthru
      _
    %p175 = scmp.le.s32.totalorder 1, %s10
    %p176 = scmp.lt.s32.totalorder %s10, 3
    %p177 = pnand %p175, %p176
    %p178 = pneg %p177
    // Predicated region
    $region33: #{facenet_forward.13} parent=5 // pred_check
      _
    $region34: #{facenet_forward.13} parent=5 // pred_check_branch
      %180 = sbr.rel (%p177) target = $region36
    $region35: #{facenet_forward.13} parent=5 // pred_region
      %s181 = ssub.s32 %s10, 1
      %p182 = scmp.lt.s32.totalorder %s19, 1
      %s183 = scalar_select %p182, %s19, 1
      %s184 = smul.addr %s183, 7
      %s185 = smul.addr %s184, 8
      %s186 = scalar_lea.vmem %s0, %s185
      %p187 = pneg %p48
      %p188 = pneg %p45
      %p189 = pneg %p69
      %p190 = pneg %p66
      %p191 = pneg %p90
      %p192 = pneg %p87
      %p193 = pneg %p111
      %p194 = pneg %p108
      %p195 = pneg %p139
      %p196 = pneg %p136
      %s197 = smul.u32 5, %s20
      %p198 = scmp.lt.s32.totalorder %s19, 1
      %s199 = scalar_select %p198, %s19, 1
      %p200 = scmp.lt.s32.totalorder %s197, 4
      %s201 = scalar_select %p200, %s197, 4
      %s202 = smul.addr %s199, 5
      %s203 = sadd.s32 %s201, %s202
      %s204 = smul.addr %s203, 8
      %s205 = scalar_lea.vmem %s4, %s204
      %p206 = scmp.lt.s32.totalorder %s19, 1
      %s207 = scalar_select %p206, %s19, 1
      %s208 = smul.addr %s207, 7
      %s209 = smul.addr %s208, 8
      %s210 = scalar_lea.vmem %s0, %s209
      %s211 = smul.u32 5, %s20
      %p212 = scmp.lt.s32.totalorder %s19, 1
      %s213 = scalar_select %p212, %s19, 1
      %p214 = scmp.lt.s32.totalorder %s211, 4
      %s215 = scalar_select %p214, %s211, 4
      %s216 = smul.addr %s213, 5
      %s217 = sadd.s32 %s215, %s216
      %s218 = smul.addr %s217, 8
      %s219 = scalar_lea.vmem %s4, %s218
      %s220 = smul.u32 5, %s20
      %v221 = vld [vmem:[%s210] sm:$0xff]
      %v222 = vld [vmem:[%s210 + $0x8] sm:$0xff]
      %v223 = vld [vmem:[%s210 + $0x10] sm:$0xff]
      %v224 = vld [vmem:[%s210 + $0x18] sm:$0xff]
      %v225 = vld [vmem:[%s210 + $0x20] sm:$0xff]
      %v226 = vpack.c.bf16 %v222, %v221
      %v227 = vpack.c.bf16 %v224, %v223
      %v228 = vpack.c.bf16 %v225, %v225
      %v229 = vld [vmem:[%s1] sm:$0xf]
      %v230 = vld [vmem:[%s1 + $0x4] sm:$0xf]
      %v231 = vld [vmem:[%s1 + $0x8] sm:$0xf]
      %v232 = vld [vmem:[%s1 + $0xc] sm:$0xf]
      %v233 = vld [vmem:[%s1 + $0x10] sm:$0xf]
      %v234 = vld [vmem:[%s1 + $0x14] sm:$0xf]
      %v235 = vld [vmem:[%s1 + $0x18] sm:$0xf]
      %v236 = vld [vmem:[%s1 + $0x1c] sm:$0xf]
      %v237 = vld [vmem:[%s1 + $0x20] sm:$0xf]
      %v238 = vld [vmem:[%s1 + $0x24] sm:$0xf]
      %v239 = vld [vmem:[%s1 + $0x28] sm:$0xf]
      %v240 = vld [vmem:[%s1 + $0x2c] sm:$0xf]
      %v241 = vld [vmem:[%s1 + $0x30] sm:$0xf]
      %v242 = vld [vmem:[%s1 + $0x34] sm:$0xf]
      %v243 = vld [vmem:[%s1 + $0x38] sm:$0xf]
      %v244 = vld [vmem:[%s1 + $0x3c] sm:$0xf]
      %v245 = vld [vmem:[%s210 + $0x1] sm:$0xff]
      %v246 = vld [vmem:[%s210 + $0x9] sm:$0xff]
      %v247 = vld [vmem:[%s210 + $0x11] sm:$0xff]
      %v248 = vld [vmem:[%s210 + $0x19] sm:$0xff]
      %v249 = vld [vmem:[%s210 + $0x21] sm:$0xff]
      %v250 = vpack.c.bf16 %v246, %v245
      %v251 = vpack.c.bf16 %v248, %v247
      %v252 = vpack.c.bf16 %v249, %v249
      %s253 = scalar_lea.vmem %s1, 64
      %v254 = vld [vmem:[%s253] sm:$0xf]
      %v255 = vld [vmem:[%s253 + $0x4] sm:$0xf]
      %v256 = vld [vmem:[%s253 + $0x8] sm:$0xf]
      %v257 = vld [vmem:[%s253 + $0xc] sm:$0xf]
      %v258 = vld [vmem:[%s253 + $0x10] sm:$0xf]
      %v259 = vld [vmem:[%s253 + $0x14] sm:$0xf]
      %v260 = vld [vmem:[%s253 + $0x18] sm:$0xf]
      %v261 = vld [vmem:[%s253 + $0x1c] sm:$0xf]
      %v262 = vld [vmem:[%s253 + $0x20] sm:$0xf]
      %v263 = vld [vmem:[%s253 + $0x24] sm:$0xf]
      %v264 = vld [vmem:[%s253 + $0x28] sm:$0xf]
      %v265 = vld [vmem:[%s253 + $0x2c] sm:$0xf]
      %v266 = vld [vmem:[%s253 + $0x30] sm:$0xf]
      %v267 = vld [vmem:[%s253 + $0x34] sm:$0xf]
      %v268 = vld [vmem:[%s253 + $0x38] sm:$0xf]
      %v269 = vld [vmem:[%s253 + $0x3c] sm:$0xf]
      %v286 = vunpack.c.l.b16 %v254
      %v287 = vunpack.c.l.b16 %v255
      %v288 = vunpack.c.l.b16 %v256
      %v289 = vunpack.c.l.b16 %v257
      %v290 = vunpack.c.l.b16 %v258
      %v291 = vunpack.c.l.b16 %v259
      %v292 = vunpack.c.l.b16 %v260
      %v293 = vunpack.c.l.b16 %v261
      %v294 = vunpack.c.l.b16 %v262
      %v295 = vunpack.c.l.b16 %v263
      %v296 = vunpack.c.l.b16 %v264
      %v297 = vunpack.c.l.b16 %v265
      %v298 = vunpack.c.l.b16 %v266
      %v299 = vunpack.c.l.b16 %v267
      %v300 = vunpack.c.l.b16 %v268
      %v301 = vunpack.c.l.b16 %v269
      %v302 = vpack.c.b16 %v287, %v286
      %v303 = vpack.c.b16 %v289, %v288
      %v304 = vpack.c.b16 %v291, %v290
      %v305 = vpack.c.b16 %v293, %v292
      %v306 = vpack.c.b16 %v295, %v294
      %v307 = vpack.c.b16 %v297, %v296
      %v308 = vpack.c.b16 %v299, %v298
      %v309 = vpack.c.b16 %v301, %v300
      %318 = vmatpush.bf16.msra.mxu0 %v309
      %319 = vmatpush.bf16.msra.mxu0 %v308
      %320 = vmatpush.bf16.msra.mxu0 %v307
      %321 = vmatpush.bf16.msra.mxu0 %v306
      %322 = vmatpush.bf16.msra.mxu0 %v305
      %323 = vmatpush.bf16.msra.mxu0 %v304
      %324 = vmatpush.bf16.msra.mxu0 %v303
      %325 = vmatpush.bf16.msra.mxu0 %v302
      %326 = vmatmul.bf16.gmra.mxu0 %v250
      %v327 = vpop.f32.mrf.mxu0
      %v328 = vadd.f32 0.0, %v327
      %v329 = vpop.f32.mrf.mxu0
      %v330 = vadd.f32 0.0, %v329
      %331 = vmatmul.bf16.gmra.mxu0 %v251
      %v332 = vpop.f32.mrf.mxu0
      %v333 = vadd.f32 0.0, %v332
      %v334 = vpop.f32.mrf.mxu0
      %v335 = vadd.f32 0.0, %v334
      %336 = vmatmul.bf16.gmra.mxu0 %v252
      %v337 = vpop.f32.mrf.mxu0
      %v338 = vadd.f32 0.0, %v337
      %v339 = vpop.f32.mrf.mxu0
      %340 = vdwg.mxu0
      %v357 = vunpack.c.l.b16 %v229
      %v358 = vunpack.c.l.b16 %v230
      %v359 = vunpack.c.l.b16 %v231
      %v360 = vunpack.c.l.b16 %v232
      %v361 = vunpack.c.l.b16 %v233
      %v362 = vunpack.c.l.b16 %v234
      %v363 = vunpack.c.l.b16 %v235
      %v364 = vunpack.c.l.b16 %v236
      %v365 = vunpack.c.l.b16 %v237
      %v366 = vunpack.c.l.b16 %v238
      %v367 = vunpack.c.l.b16 %v239
      %v368 = vunpack.c.l.b16 %v240
      %v369 = vunpack.c.l.b16 %v241
      %v370 = vunpack.c.l.b16 %v242
      %v371 = vunpack.c.l.b16 %v243
      %v372 = vunpack.c.l.b16 %v244
      %v373 = vpack.c.b16 %v358, %v357
      %v374 = vpack.c.b16 %v360, %v359
      %v375 = vpack.c.b16 %v362, %v361
      %v376 = vpack.c.b16 %v364, %v363
      %v377 = vpack.c.b16 %v366, %v365
      %v378 = vpack.c.b16 %v368, %v367
      %v379 = vpack.c.b16 %v370, %v369
      %v380 = vpack.c.b16 %v372, %v371
      %389 = vmatpush.bf16.msra.mxu0 %v380
      %390 = vmatpush.bf16.msra.mxu0 %v379
      %391 = vmatpush.bf16.msra.mxu0 %v378
      %392 = vmatpush.bf16.msra.mxu0 %v377
      %393 = vmatpush.bf16.msra.mxu0 %v376
      %394 = vmatpush.bf16.msra.mxu0 %v375
      %395 = vmatpush.bf16.msra.mxu0 %v374
      %396 = vmatpush.bf16.msra.mxu0 %v373
      %397 = vmatmul.bf16.gmra.mxu0 %v226
      %v398 = vpop.f32.mrf.mxu0
      %v399 = vadd.f32 %v328, %v398
      %v400 = vpop.f32.mrf.mxu0
      %v401 = vadd.f32 %v330, %v400
      %402 = vmatmul.bf16.gmra.mxu0 %v227
      %v403 = vpop.f32.mrf.mxu0
      %v404 = vadd.f32 %v333, %v403
      %v405 = vpop.f32.mrf.mxu0
      %v406 = vadd.f32 %v335, %v405
      %407 = vmatmul.bf16.gmra.mxu0 %v228
      %v408 = vpop.f32.mrf.mxu0
      %v409 = vadd.f32 %v338, %v408
      %v410 = vpop.f32.mrf.mxu0
      %411 = vdwg.mxu0
      %v412 = vld [vmem:[%s210 + $0x2] sm:$0xff]
      %v413 = vld [vmem:[%s210 + $0xa] sm:$0xff]
      %v414 = vld [vmem:[%s210 + $0x12] sm:$0xff]
      %v415 = vld [vmem:[%s210 + $0x1a] sm:$0xff]
      %v416 = vld [vmem:[%s210 + $0x22] sm:$0xff]
      %v417 = vpack.c.bf16 %v413, %v412
      %v418 = vpack.c.bf16 %v415, %v414
      %v419 = vpack.c.bf16 %v416, %v416
      %s420 = scalar_lea.vmem %s1, 128
      %v421 = vld [vmem:[%s420] sm:$0xf]
      %v422 = vld [vmem:[%s420 + $0x4] sm:$0xf]
      %v423 = vld [vmem:[%s420 + $0x8] sm:$0xf]
      %v424 = vld [vmem:[%s420 + $0xc] sm:$0xf]
      %v425 = vld [vmem:[%s420 + $0x10] sm:$0xf]
      %v426 = vld [vmem:[%s420 + $0x14] sm:$0xf]
      %v427 = vld [vmem:[%s420 + $0x18] sm:$0xf]
      %v428 = vld [vmem:[%s420 + $0x1c] sm:$0xf]
      %v429 = vld [vmem:[%s420 + $0x20] sm:$0xf]
      %v430 = vld [vmem:[%s420 + $0x24] sm:$0xf]
      %v431 = vld [vmem:[%s420 + $0x28] sm:$0xf]
      %v432 = vld [vmem:[%s420 + $0x2c] sm:$0xf]
      %v433 = vld [vmem:[%s420 + $0x30] sm:$0xf]
      %v434 = vld [vmem:[%s420 + $0x34] sm:$0xf]
      %v435 = vld [vmem:[%s420 + $0x38] sm:$0xf]
      %v436 = vld [vmem:[%s420 + $0x3c] sm:$0xf]
      %v453 = vunpack.c.l.b16 %v421
      %v454 = vunpack.c.l.b16 %v422
      %v455 = vunpack.c.l.b16 %v423
      %v456 = vunpack.c.l.b16 %v424
      %v457 = vunpack.c.l.b16 %v425
      %v458 = vunpack.c.l.b16 %v426
      %v459 = vunpack.c.l.b16 %v427
      %v460 = vunpack.c.l.b16 %v428
      %v461 = vunpack.c.l.b16 %v429
      %v462 = vunpack.c.l.b16 %v430
      %v463 = vunpack.c.l.b16 %v431
      %v464 = vunpack.c.l.b16 %v432
      %v465 = vunpack.c.l.b16 %v433
      %v466 = vunpack.c.l.b16 %v434
      %v467 = vunpack.c.l.b16 %v435
      %v468 = vunpack.c.l.b16 %v436
      %v469 = vpack.c.b16 %v454, %v453
      %v470 = vpack.c.b16 %v456, %v455
      %v471 = vpack.c.b16 %v458, %v457
      %v472 = vpack.c.b16 %v460, %v459
      %v473 = vpack.c.b16 %v462, %v461
      %v474 = vpack.c.b16 %v464, %v463
      %v475 = vpack.c.b16 %v466, %v465
      %v476 = vpack.c.b16 %v468, %v467
      %485 = vmatpush.bf16.msra.mxu0 %v476
      %486 = vmatpush.bf16.msra.mxu0 %v475
      %487 = vmatpush.bf16.msra.mxu0 %v474
      %488 = vmatpush.bf16.msra.mxu0 %v473
      %489 = vmatpush.bf16.msra.mxu0 %v472
      %490 = vmatpush.bf16.msra.mxu0 %v471
      %491 = vmatpush.bf16.msra.mxu0 %v470
      %492 = vmatpush.bf16.msra.mxu0 %v469
      %493 = vmatmul.bf16.gmra.mxu0 %v417
      %v494 = vpop.f32.mrf.mxu0
      %v495 = vadd.f32 0.0, %v494
      %v496 = vpop.f32.mrf.mxu0
      %v497 = vadd.f32 0.0, %v496
      %498 = vmatmul.bf16.gmra.mxu0 %v418
      %v499 = vpop.f32.mrf.mxu0
      %v500 = vadd.f32 0.0, %v499
      %v501 = vpop.f32.mrf.mxu0
      %v502 = vadd.f32 0.0, %v501
      %503 = vmatmul.bf16.gmra.mxu0 %v419
      %v504 = vpop.f32.mrf.mxu0
      %v505 = vadd.f32 0.0, %v504
      %v506 = vpop.f32.mrf.mxu0
      %507 = vdwg.mxu0
      %v508 = vadd.f32 %v399, %v495
      %v509 = vadd.f32 %v401, %v497
      %v510 = vadd.f32 %v404, %v500
      %v511 = vadd.f32 %v406, %v502
      %v512 = vadd.f32 %v409, %v505
      %v513 = vld [vmem:[%s210 + $0x7] sm:$0xff]
      %v514 = vld [vmem:[%s210 + $0xf] sm:$0xff]
      %v515 = vld [vmem:[%s210 + $0x17] sm:$0xff]
      %v516 = vld [vmem:[%s210 + $0x1f] sm:$0xff]
      %v517 = vld [vmem:[%s210 + $0x27] sm:$0xff]
      %v518 = vpack.c.bf16 %v514, %v513
      %v519 = vpack.c.bf16 %v516, %v515
      %v520 = vpack.c.bf16 %v517, %v517
      %s521 = scalar_lea.vmem %s1, 192
      %v522 = vld [vmem:[%s521] sm:$0xf]
      %v523 = vld [vmem:[%s521 + $0x4] sm:$0xf]
      %v524 = vld [vmem:[%s521 + $0x8] sm:$0xf]
      %v525 = vld [vmem:[%s521 + $0xc] sm:$0xf]
      %v526 = vld [vmem:[%s521 + $0x10] sm:$0xf]
      %v527 = vld [vmem:[%s521 + $0x14] sm:$0xf]
      %v528 = vld [vmem:[%s521 + $0x18] sm:$0xf]
      %v529 = vld [vmem:[%s521 + $0x1c] sm:$0xf]
      %v530 = vld [vmem:[%s521 + $0x20] sm:$0xf]
      %v531 = vld [vmem:[%s521 + $0x24] sm:$0xf]
      %v532 = vld [vmem:[%s521 + $0x28] sm:$0xf]
      %v533 = vld [vmem:[%s521 + $0x2c] sm:$0xf]
      %v534 = vld [vmem:[%s521 + $0x30] sm:$0xf]
      %v535 = vld [vmem:[%s521 + $0x34] sm:$0xf]
      %v536 = vld [vmem:[%s521 + $0x38] sm:$0xf]
      %v537 = vld [vmem:[%s521 + $0x3c] sm:$0xf]
      %v554 = vunpack.c.l.b16 %v522
      %v555 = vunpack.c.l.b16 %v523
      %v556 = vunpack.c.l.b16 %v524
      %v557 = vunpack.c.l.b16 %v525
      %v558 = vunpack.c.l.b16 %v526
      %v559 = vunpack.c.l.b16 %v527
      %v560 = vunpack.c.l.b16 %v528
      %v561 = vunpack.c.l.b16 %v529
      %v562 = vunpack.c.l.b16 %v530
      %v563 = vunpack.c.l.b16 %v531
      %v564 = vunpack.c.l.b16 %v532
      %v565 = vunpack.c.l.b16 %v533
      %v566 = vunpack.c.l.b16 %v534
      %v567 = vunpack.c.l.b16 %v535
      %v568 = vunpack.c.l.b16 %v536
      %v569 = vunpack.c.l.b16 %v537
      %v570 = vpack.c.b16 %v555, %v554
      %v571 = vpack.c.b16 %v557, %v556
      %v572 = vpack.c.b16 %v559, %v558
      %v573 = vpack.c.b16 %v561, %v560
      %v574 = vpack.c.b16 %v563, %v562
      %v575 = vpack.c.b16 %v565, %v564
      %v576 = vpack.c.b16 %v567, %v566
      %v577 = vpack.c.b16 %v569, %v568
      %586 = vmatpush.bf16.msra.mxu0 %v577
      %587 = vmatpush.bf16.msra.mxu0 %v576
      %588 = vmatpush.bf16.msra.mxu0 %v575
      %589 = vmatpush.bf16.msra.mxu0 %v574
      %590 = vmatpush.bf16.msra.mxu0 %v573
      %591 = vmatpush.bf16.msra.mxu0 %v572
      %592 = vmatpush.bf16.msra.mxu0 %v571
      %593 = vmatpush.bf16.msra.mxu0 %v570
      %594 = vmatmul.bf16.gmra.mxu0 %v518
      %v595 = vpop.f32.mrf.mxu0
      %v596 = vadd.f32 0.0, %v595
      %v597 = vpop.f32.mrf.mxu0
      %v598 = vadd.f32 0.0, %v597
      %599 = vmatmul.bf16.gmra.mxu0 %v519
      %v600 = vpop.f32.mrf.mxu0
      %v601 = vadd.f32 0.0, %v600
      %v602 = vpop.f32.mrf.mxu0
      %v603 = vadd.f32 0.0, %v602
      %604 = vmatmul.bf16.gmra.mxu0 %v520
      %v605 = vpop.f32.mrf.mxu0
      %v606 = vadd.f32 0.0, %v605
      %v607 = vpop.f32.mrf.mxu0
      %608 = vdwg.mxu0
      %v609 = vadd.f32 %v508, %v596
      %v610 = vadd.f32 %v509, %v598
      %v611 = vadd.f32 %v510, %v601
      %v612 = vadd.f32 %v511, %v603
      %v613 = vadd.f32 %v512, %v606
      %v614 = vld [vmem:[%s210 + $0x8] sm:$0xff]
      %v615 = vld [vmem:[%s210 + $0x10] sm:$0xff]
      %v616 = vld [vmem:[%s210 + $0x18] sm:$0xff]
      %v617 = vld [vmem:[%s210 + $0x20] sm:$0xff]
      %v618 = vld [vmem:[%s210 + $0x28] sm:$0xff]
      %v619 = vpack.c.bf16 %v615, %v614
      %v620 = vpack.c.bf16 %v617, %v616
      %v621 = vpack.c.bf16 %v618, %v618
      %s622 = scalar_lea.vmem %s1, 256
      %v623 = vld [vmem:[%s622] sm:$0xf]
      %v624 = vld [vmem:[%s622 + $0x4] sm:$0xf]
      %v625 = vld [vmem:[%s622 + $0x8] sm:$0xf]
      %v626 = vld [vmem:[%s622 + $0xc] sm:$0xf]
      %v627 = vld [vmem:[%s622 + $0x10] sm:$0xf]
      %v628 = vld [vmem:[%s622 + $0x14] sm:$0xf]
      %v629 = vld [vmem:[%s622 + $0x18] sm:$0xf]
      %v630 = vld [vmem:[%s622 + $0x1c] sm:$0xf]
      %v631 = vld [vmem:[%s622 + $0x20] sm:$0xf]
      %v632 = vld [vmem:[%s622 + $0x24] sm:$0xf]
      %v633 = vld [vmem:[%s622 + $0x28] sm:$0xf]
      %v634 = vld [vmem:[%s622 + $0x2c] sm:$0xf]
      %v635 = vld [vmem:[%s622 + $0x30] sm:$0xf]
      %v636 = vld [vmem:[%s622 + $0x34] sm:$0xf]
      %v637 = vld [vmem:[%s622 + $0x38] sm:$0xf]
      %v638 = vld [vmem:[%s622 + $0x3c] sm:$0xf]
      %v655 = vunpack.c.l.b16 %v623
      %v656 = vunpack.c.l.b16 %v624
      %v657 = vunpack.c.l.b16 %v625
      %v658 = vunpack.c.l.b16 %v626
      %v659 = vunpack.c.l.b16 %v627
      %v660 = vunpack.c.l.b16 %v628
      %v661 = vunpack.c.l.b16 %v629
      %v662 = vunpack.c.l.b16 %v630
      %v663 = vunpack.c.l.b16 %v631
      %v664 = vunpack.c.l.b16 %v632
      %v665 = vunpack.c.l.b16 %v633
      %v666 = vunpack.c.l.b16 %v634
      %v667 = vunpack.c.l.b16 %v635
      %v668 = vunpack.c.l.b16 %v636
      %v669 = vunpack.c.l.b16 %v637
      %v670 = vunpack.c.l.b16 %v638
      %v671 = vpack.c.b16 %v656, %v655
      %v672 = vpack.c.b16 %v658, %v657
      %v673 = vpack.c.b16 %v660, %v659
      %v674 = vpack.c.b16 %v662, %v661
      %v675 = vpack.c.b16 %v664, %v663
      %v676 = vpack.c.b16 %v666, %v665
      %v677 = vpack.c.b16 %v668, %v667
      %v678 = vpack.c.b16 %v670, %v669
      %687 = vmatpush.bf16.msra.mxu0 %v678
      %688 = vmatpush.bf16.msra.mxu0 %v677
      %689 = vmatpush.bf16.msra.mxu0 %v676
      %690 = vmatpush.bf16.msra.mxu0 %v675
      %691 = vmatpush.bf16.msra.mxu0 %v674
      %692 = vmatpush.bf16.msra.mxu0 %v673
      %693 = vmatpush.bf16.msra.mxu0 %v672
      %694 = vmatpush.bf16.msra.mxu0 %v671
      %695 = vmatmul.bf16.gmra.mxu0 %v619
      %v696 = vpop.f32.mrf.mxu0
      %v697 = vadd.f32 0.0, %v696
      %v698 = vpop.f32.mrf.mxu0
      %v699 = vadd.f32 0.0, %v698
      %700 = vmatmul.bf16.gmra.mxu0 %v620
      %v701 = vpop.f32.mrf.mxu0
      %v702 = vadd.f32 0.0, %v701
      %v703 = vpop.f32.mrf.mxu0
      %v704 = vadd.f32 0.0, %v703
      %705 = vmatmul.bf16.gmra.mxu0 %v621
      %v706 = vpop.f32.mrf.mxu0
      %v707 = vadd.f32 0.0, %v706
      %v708 = vpop.f32.mrf.mxu0
      %709 = vdwg.mxu0
      %v710 = vadd.f32 %v609, %v697
      %v711 = vadd.f32 %v610, %v699
      %v712 = vadd.f32 %v611, %v702
      %v713 = vadd.f32 %v612, %v704
      %v714 = vadd.f32 %v613, %v707
      %v715 = vld [vmem:[%s210 + $0x9] sm:$0xff]
      %v716 = vld [vmem:[%s210 + $0x11] sm:$0xff]
      %v717 = vld [vmem:[%s210 + $0x19] sm:$0xff]
      %v718 = vld [vmem:[%s210 + $0x21] sm:$0xff]
      %v719 = vld [vmem:[%s210 + $0x29] sm:$0xff]
      %v720 = vpack.c.bf16 %v716, %v715
      %v721 = vpack.c.bf16 %v718, %v717
      %v722 = vpack.c.bf16 %v719, %v719
      %s723 = scalar_lea.vmem %s1, 320
      %v724 = vld [vmem:[%s723] sm:$0xf]
      %v725 = vld [vmem:[%s723 + $0x4] sm:$0xf]
      %v726 = vld [vmem:[%s723 + $0x8] sm:$0xf]
      %v727 = vld [vmem:[%s723 + $0xc] sm:$0xf]
      %v728 = vld [vmem:[%s723 + $0x10] sm:$0xf]
      %v729 = vld [vmem:[%s723 + $0x14] sm:$0xf]
      %v730 = vld [vmem:[%s723 + $0x18] sm:$0xf]
      %v731 = vld [vmem:[%s723 + $0x1c] sm:$0xf]
      %v732 = vld [vmem:[%s723 + $0x20] sm:$0xf]
      %v733 = vld [vmem:[%s723 + $0x24] sm:$0xf]
      %v734 = vld [vmem:[%s723 + $0x28] sm:$0xf]
      %v735 = vld [vmem:[%s723 + $0x2c] sm:$0xf]
      %v736 = vld [vmem:[%s723 + $0x30] sm:$0xf]
      %v737 = vld [vmem:[%s723 + $0x34] sm:$0xf]
      %v738 = vld [vmem:[%s723 + $0x38] sm:$0xf]
      %v739 = vld [vmem:[%s723 + $0x3c] sm:$0xf]
      %v756 = vunpack.c.l.b16 %v724
      %v757 = vunpack.c.l.b16 %v725
      %v758 = vunpack.c.l.b16 %v726
      %v759 = vunpack.c.l.b16 %v727
      %v760 = vunpack.c.l.b16 %v728
      %v761 = vunpack.c.l.b16 %v729
      %v762 = vunpack.c.l.b16 %v730
      %v763 = vunpack.c.l.b16 %v731
      %v764 = vunpack.c.l.b16 %v732
      %v765 = vunpack.c.l.b16 %v733
      %v766 = vunpack.c.l.b16 %v734
      %v767 = vunpack.c.l.b16 %v735
      %v768 = vunpack.c.l.b16 %v736
      %v769 = vunpack.c.l.b16 %v737
      %v770 = vunpack.c.l.b16 %v738
      %v771 = vunpack.c.l.b16 %v739
      %v772 = vpack.c.b16 %v757, %v756
      %v773 = vpack.c.b16 %v759, %v758
      %v774 = vpack.c.b16 %v761, %v760
      %v775 = vpack.c.b16 %v763, %v762
      %v776 = vpack.c.b16 %v765, %v764
      %v777 = vpack.c.b16 %v767, %v766
      %v778 = vpack.c.b16 %v769, %v768
      %v779 = vpack.c.b16 %v771, %v770
      %788 = vmatpush.bf16.msra.mxu0 %v779
      %789 = vmatpush.bf16.msra.mxu0 %v778
      %790 = vmatpush.bf16.msra.mxu0 %v777
      %791 = vmatpush.bf16.msra.mxu0 %v776
      %792 = vmatpush.bf16.msra.mxu0 %v775
      %793 = vmatpush.bf16.msra.mxu0 %v774
      %794 = vmatpush.bf16.msra.mxu0 %v773
      %795 = vmatpush.bf16.msra.mxu0 %v772
      %796 = vmatmul.bf16.gmra.mxu0 %v720
      %v797 = vpop.f32.mrf.mxu0
      %v798 = vadd.f32 0.0, %v797
      %v799 = vpop.f32.mrf.mxu0
      %v800 = vadd.f32 0.0, %v799
      %801 = vmatmul.bf16.gmra.mxu0 %v721
      %v802 = vpop.f32.mrf.mxu0
      %v803 = vadd.f32 0.0, %v802
      %v804 = vpop.f32.mrf.mxu0
      %v805 = vadd.f32 0.0, %v804
      %806 = vmatmul.bf16.gmra.mxu0 %v722
      %v807 = vpop.f32.mrf.mxu0
      %v808 = vadd.f32 0.0, %v807
      %v809 = vpop.f32.mrf.mxu0
      %810 = vdwg.mxu0
      %v811 = vadd.f32 %v710, %v798
      %v812 = vadd.f32 %v711, %v800
      %v813 = vadd.f32 %v712, %v803
      %v814 = vadd.f32 %v713, %v805
      %v815 = vadd.f32 %v714, %v808
      %v816 = vld [vmem:[%s210 + $0xe] sm:$0xff]
      %v817 = vld [vmem:[%s210 + $0x16] sm:$0xff]
      %v818 = vld [vmem:[%s210 + $0x1e] sm:$0xff]
      %v819 = vld [vmem:[%s210 + $0x26] sm:$0xff]
      %v820 = vld [vmem:[%s210 + $0x2e] sm:$0xff]
      %v821 = vpack.c.bf16 %v817, %v816
      %v822 = vpack.c.bf16 %v819, %v818
      %v823 = vpack.c.bf16 %v820, %v820
      %s824 = scalar_lea.vmem %s1, 384
      %v825 = vld [vmem:[%s824] sm:$0xf]
      %v826 = vld [vmem:[%s824 + $0x4] sm:$0xf]
      %v827 = vld [vmem:[%s824 + $0x8] sm:$0xf]
      %v828 = vld [vmem:[%s824 + $0xc] sm:$0xf]
      %v829 = vld [vmem:[%s824 + $0x10] sm:$0xf]
      %v830 = vld [vmem:[%s824 + $0x14] sm:$0xf]
      %v831 = vld [vmem:[%s824 + $0x18] sm:$0xf]
      %v832 = vld [vmem:[%s824 + $0x1c] sm:$0xf]
      %v833 = vld [vmem:[%s824 + $0x20] sm:$0xf]
      %v834 = vld [vmem:[%s824 + $0x24] sm:$0xf]
      %v835 = vld [vmem:[%s824 + $0x28] sm:$0xf]
      %v836 = vld [vmem:[%s824 + $0x2c] sm:$0xf]
      %v837 = vld [vmem:[%s824 + $0x30] sm:$0xf]
      %v838 = vld [vmem:[%s824 + $0x34] sm:$0xf]
      %v839 = vld [vmem:[%s824 + $0x38] sm:$0xf]
      %v840 = vld [vmem:[%s824 + $0x3c] sm:$0xf]
      %v857 = vunpack.c.l.b16 %v825
      %v858 = vunpack.c.l.b16 %v826
      %v859 = vunpack.c.l.b16 %v827
      %v860 = vunpack.c.l.b16 %v828
      %v861 = vunpack.c.l.b16 %v829
      %v862 = vunpack.c.l.b16 %v830
      %v863 = vunpack.c.l.b16 %v831
      %v864 = vunpack.c.l.b16 %v832
      %v865 = vunpack.c.l.b16 %v833
      %v866 = vunpack.c.l.b16 %v834
      %v867 = vunpack.c.l.b16 %v835
      %v868 = vunpack.c.l.b16 %v836
      %v869 = vunpack.c.l.b16 %v837
      %v870 = vunpack.c.l.b16 %v838
      %v871 = vunpack.c.l.b16 %v839
      %v872 = vunpack.c.l.b16 %v840
      %v873 = vpack.c.b16 %v858, %v857
      %v874 = vpack.c.b16 %v860, %v859
      %v875 = vpack.c.b16 %v862, %v861
      %v876 = vpack.c.b16 %v864, %v863
      %v877 = vpack.c.b16 %v866, %v865
      %v878 = vpack.c.b16 %v868, %v867
      %v879 = vpack.c.b16 %v870, %v869
      %v880 = vpack.c.b16 %v872, %v871
      %889 = vmatpush.bf16.msra.mxu0 %v880
      %890 = vmatpush.bf16.msra.mxu0 %v879
      %891 = vmatpush.bf16.msra.mxu0 %v878
      %892 = vmatpush.bf16.msra.mxu0 %v877
      %893 = vmatpush.bf16.msra.mxu0 %v876
      %894 = vmatpush.bf16.msra.mxu0 %v875
      %895 = vmatpush.bf16.msra.mxu0 %v874
      %896 = vmatpush.bf16.msra.mxu0 %v873
      %897 = vmatmul.bf16.gmra.mxu0 %v821
      %v898 = vpop.f32.mrf.mxu0
      %v899 = vadd.f32 0.0, %v898
      %v900 = vpop.f32.mrf.mxu0
      %v901 = vadd.f32 0.0, %v900
      %902 = vmatmul.bf16.gmra.mxu0 %v822
      %v903 = vpop.f32.mrf.mxu0
      %v904 = vadd.f32 0.0, %v903
      %v905 = vpop.f32.mrf.mxu0
      %v906 = vadd.f32 0.0, %v905
      %907 = vmatmul.bf16.gmra.mxu0 %v823
      %v908 = vpop.f32.mrf.mxu0
      %v909 = vadd.f32 0.0, %v908
      %v910 = vpop.f32.mrf.mxu0
      %911 = vdwg.mxu0
      %v912 = vadd.f32 %v811, %v899
      %v913 = vadd.f32 %v812, %v901
      %v914 = vadd.f32 %v813, %v904
      %v915 = vadd.f32 %v814, %v906
      %v916 = vadd.f32 %v815, %v909
      %v917 = vld [vmem:[%s210 + $0xf] sm:$0xff]
      %v918 = vld [vmem:[%s210 + $0x17] sm:$0xff]
      %v919 = vld [vmem:[%s210 + $0x1f] sm:$0xff]
      %v920 = vld [vmem:[%s210 + $0x27] sm:$0xff]
      %v921 = vld [vmem:[%s210 + $0x2f] sm:$0xff]
      %v922 = vpack.c.bf16 %v918, %v917
      %v923 = vpack.c.bf16 %v920, %v919
      %v924 = vpack.c.bf16 %v921, %v921
      %s925 = scalar_lea.vmem %s1, 448
      %v926 = vld [vmem:[%s925] sm:$0xf]
      %v927 = vld [vmem:[%s925 + $0x4] sm:$0xf]
      %v928 = vld [vmem:[%s925 + $0x8] sm:$0xf]
      %v929 = vld [vmem:[%s925 + $0xc] sm:$0xf]
      %v930 = vld [vmem:[%s925 + $0x10] sm:$0xf]
      %v931 = vld [vmem:[%s925 + $0x14] sm:$0xf]
      %v932 = vld [vmem:[%s925 + $0x18] sm:$0xf]
      %v933 = vld [vmem:[%s925 + $0x1c] sm:$0xf]
      %v934 = vld [vmem:[%s925 + $0x20] sm:$0xf]
      %v935 = vld [vmem:[%s925 + $0x24] sm:$0xf]
      %v936 = vld [vmem:[%s925 + $0x28] sm:$0xf]
      %v937 = vld [vmem:[%s925 + $0x2c] sm:$0xf]
      %v938 = vld [vmem:[%s925 + $0x30] sm:$0xf]
      %v939 = vld [vmem:[%s925 + $0x34] sm:$0xf]
      %v940 = vld [vmem:[%s925 + $0x38] sm:$0xf]
      %v941 = vld [vmem:[%s925 + $0x3c] sm:$0xf]
      %v958 = vunpack.c.l.b16 %v926
      %v959 = vunpack.c.l.b16 %v927
      %v960 = vunpack.c.l.b16 %v928
      %v961 = vunpack.c.l.b16 %v929
      %v962 = vunpack.c.l.b16 %v930
      %v963 = vunpack.c.l.b16 %v931
      %v964 = vunpack.c.l.b16 %v932
      %v965 = vunpack.c.l.b16 %v933
      %v966 = vunpack.c.l.b16 %v934
      %v967 = vunpack.c.l.b16 %v935
      %v968 = vunpack.c.l.b16 %v936
      %v969 = vunpack.c.l.b16 %v937
      %v970 = vunpack.c.l.b16 %v938
      %v971 = vunpack.c.l.b16 %v939
      %v972 = vunpack.c.l.b16 %v940
      %v973 = vunpack.c.l.b16 %v941
      %v974 = vpack.c.b16 %v959, %v958
      %v975 = vpack.c.b16 %v961, %v960
      %v976 = vpack.c.b16 %v963, %v962
      %v977 = vpack.c.b16 %v965, %v964
      %v978 = vpack.c.b16 %v967, %v966
      %v979 = vpack.c.b16 %v969, %v968
      %v980 = vpack.c.b16 %v971, %v970
      %v981 = vpack.c.b16 %v973, %v972
      %990 = vmatpush.bf16.msra.mxu0 %v981
      %991 = vmatpush.bf16.msra.mxu0 %v980
      %992 = vmatpush.bf16.msra.mxu0 %v979
      %993 = vmatpush.bf16.msra.mxu0 %v978
      %994 = vmatpush.bf16.msra.mxu0 %v977
      %995 = vmatpush.bf16.msra.mxu0 %v976
      %996 = vmatpush.bf16.msra.mxu0 %v975
      %997 = vmatpush.bf16.msra.mxu0 %v974
      %998 = vmatmul.bf16.gmra.mxu0 %v922
      %v999 = vpop.f32.mrf.mxu0
      %v1000 = vadd.f32 0.0, %v999
      %v1001 = vpop.f32.mrf.mxu0
      %v1002 = vadd.f32 0.0, %v1001
      %1003 = vmatmul.bf16.gmra.mxu0 %v923
      %v1004 = vpop.f32.mrf.mxu0
      %v1005 = vadd.f32 0.0, %v1004
      %v1006 = vpop.f32.mrf.mxu0
      %v1007 = vadd.f32 0.0, %v1006
      %1008 = vmatmul.bf16.gmra.mxu0 %v924
      %v1009 = vpop.f32.mrf.mxu0
      %v1010 = vadd.f32 0.0, %v1009
      %v1011 = vpop.f32.mrf.mxu0
      %1012 = vdwg.mxu0
      %v1013 = vadd.f32 %v912, %v1000
      %v1014 = vadd.f32 %v913, %v1002
      %v1015 = vadd.f32 %v914, %v1005
      %v1016 = vadd.f32 %v915, %v1007
      %v1017 = vadd.f32 %v916, %v1010
      %v1018 = vld [vmem:[%s210 + $0x10] sm:$0xff]
      %v1019 = vld [vmem:[%s210 + $0x18] sm:$0xff]
      %v1020 = vld [vmem:[%s210 + $0x20] sm:$0xff]
      %v1021 = vld [vmem:[%s210 + $0x28] sm:$0xff]
      %v1022 = vld [vmem:[%s210 + $0x30] sm:$0xff]
      %v1023 = vpack.c.bf16 %v1019, %v1018
      %v1024 = vpack.c.bf16 %v1021, %v1020
      %v1025 = vpack.c.bf16 %v1022, %v1022
      %s1026 = scalar_lea.vmem %s1, 512
      %v1027 = vld [vmem:[%s1026] sm:$0xf]
      %v1028 = vld [vmem:[%s1026 + $0x4] sm:$0xf]
      %v1029 = vld [vmem:[%s1026 + $0x8] sm:$0xf]
      %v1030 = vld [vmem:[%s1026 + $0xc] sm:$0xf]
      %v1031 = vld [vmem:[%s1026 + $0x10] sm:$0xf]
      %v1032 = vld [vmem:[%s1026 + $0x14] sm:$0xf]
      %v1033 = vld [vmem:[%s1026 + $0x18] sm:$0xf]
      %v1034 = vld [vmem:[%s1026 + $0x1c] sm:$0xf]
      %v1035 = vld [vmem:[%s1026 + $0x20] sm:$0xf]
      %v1036 = vld [vmem:[%s1026 + $0x24] sm:$0xf]
      %v1037 = vld [vmem:[%s1026 + $0x28] sm:$0xf]
      %v1038 = vld [vmem:[%s1026 + $0x2c] sm:$0xf]
      %v1039 = vld [vmem:[%s1026 + $0x30] sm:$0xf]
      %v1040 = vld [vmem:[%s1026 + $0x34] sm:$0xf]
      %v1041 = vld [vmem:[%s1026 + $0x38] sm:$0xf]
      %v1042 = vld [vmem:[%s1026 + $0x3c] sm:$0xf]
      %v1059 = vunpack.c.l.b16 %v1027
      %v1060 = vunpack.c.l.b16 %v1028
      %v1061 = vunpack.c.l.b16 %v1029
      %v1062 = vunpack.c.l.b16 %v1030
      %v1063 = vunpack.c.l.b16 %v1031
      %v1064 = vunpack.c.l.b16 %v1032
      %v1065 = vunpack.c.l.b16 %v1033
      %v1066 = vunpack.c.l.b16 %v1034
      %v1067 = vunpack.c.l.b16 %v1035
      %v1068 = vunpack.c.l.b16 %v1036
      %v1069 = vunpack.c.l.b16 %v1037
      %v1070 = vunpack.c.l.b16 %v1038
      %v1071 = vunpack.c.l.b16 %v1039
      %v1072 = vunpack.c.l.b16 %v1040
      %v1073 = vunpack.c.l.b16 %v1041
      %v1074 = vunpack.c.l.b16 %v1042
      %v1075 = vpack.c.b16 %v1060, %v1059
      %v1076 = vpack.c.b16 %v1062, %v1061
      %v1077 = vpack.c.b16 %v1064, %v1063
      %v1078 = vpack.c.b16 %v1066, %v1065
      %v1079 = vpack.c.b16 %v1068, %v1067
      %v1080 = vpack.c.b16 %v1070, %v1069
      %v1081 = vpack.c.b16 %v1072, %v1071
      %v1082 = vpack.c.b16 %v1074, %v1073
      %1091 = vmatpush.bf16.msra.mxu0 %v1082
      %1092 = vmatpush.bf16.msra.mxu0 %v1081
      %1093 = vmatpush.bf16.msra.mxu0 %v1080
      %1094 = vmatpush.bf16.msra.mxu0 %v1079
      %1095 = vmatpush.bf16.msra.mxu0 %v1078
      %1096 = vmatpush.bf16.msra.mxu0 %v1077
      %1097 = vmatpush.bf16.msra.mxu0 %v1076
      %1098 = vmatpush.bf16.msra.mxu0 %v1075
      %1099 = vmatmul.bf16.gmra.mxu0 %v1023
      %v1100 = vpop.f32.mrf.mxu0
      %v1101 = vadd.f32 0.0, %v1100
      %v1102 = vpop.f32.mrf.mxu0
      %v1103 = vadd.f32 0.0, %v1102
      %1104 = vmatmul.bf16.gmra.mxu0 %v1024
      %v1105 = vpop.f32.mrf.mxu0
      %v1106 = vadd.f32 0.0, %v1105
      %v1107 = vpop.f32.mrf.mxu0
      %v1108 = vadd.f32 0.0, %v1107
      %1109 = vmatmul.bf16.gmra.mxu0 %v1025
      %v1110 = vpop.f32.mrf.mxu0
      %v1111 = vadd.f32 0.0, %v1110
      %v1112 = vpop.f32.mrf.mxu0
      %1113 = vdwg.mxu0
      %v1114 = vadd.f32 %v1013, %v1101
      %v1115 = vadd.f32 %v1014, %v1103
      %v1116 = vadd.f32 %v1015, %v1106
      %v1117 = vadd.f32 %v1016, %v1108
      %v1118 = vadd.f32 %v1017, %v1111
      %v1119 = vld [vmem:[%s2] sm:$0x1]
      %v1121 = vperm.slane %v1119, 0
      %v1123 = vmul.f32 %v1114, %v1121
      %v1124 = vmul.f32 %v1115, %v1121
      %v1125 = vmul.f32 %v1116, %v1121
      %v1126 = vmul.f32 %v1117, %v1121
      %v1127 = vmul.f32 %v1118, %v1121
      %v1128 = vld [vmem:[%s3] sm:$0x1]
      %v1130 = vperm.slane %v1128, 0
      %v1132 = vadd.f32 %v1123, %v1130
      %v1133 = vadd.f32 %v1124, %v1130
      %v1134 = vadd.f32 %v1125, %v1130
      %v1135 = vadd.f32 %v1126, %v1130
      %v1136 = vadd.f32 %v1127, %v1130
      %v1137 = vmax.f32 %v1132, 0.0
      %v1138 = vmax.f32 %v1133, 0.0
      %v1139 = vmax.f32 %v1134, 0.0
      %v1140 = vmax.f32 %v1135, 0.0
      %v1141 = vmax.f32 %v1136, 0.0
      %1142 = vst [vmem:[%s219] sm:$0xff] %v1137
      %1143 = vst [vmem:[%s219 + $0x8] sm:$0xff] %v1138
      %1144 = vst [vmem:[%s219 + $0x10] sm:$0xff] %v1139
      %1145 = vst [vmem:[%s219 + $0x18] sm:$0xff] %v1140
      %1146 = vst [vmem:[%s219 + $0x20] sm:$0xff] %v1141
      %s1147 = smul.u32 5, %s20
      %p1148 = scmp.lt.s32.totalorder %s19, 1
      %s1149 = scalar_select %p1148, %s19, 1
      %p1150 = scmp.lt.s32.totalorder %s1147, 4
      %s1151 = scalar_select %p1150, %s1147, 4
      %s1152 = smul.addr %s1149, 5
      %s1153 = sadd.s32 %s1151, %s1152
      %s1154 = smul.addr %s1153, 8
      %s1155 = scalar_lea.vmem %s4, %s1154
      // Predicated region
      $region37: #{facenet_forward.13} parent=35 // pred_check
        %p1156 = pneg %p136
      $region38: #{facenet_forward.13} parent=35 // pred_check_branch
        %1158 = sbr.rel (%p1156) target = $region40
      $region39: #{facenet_forward.13} parent=35 // pred_region
        %s1159 = smul.u32 5, %s20
      $region40: #{facenet_forward.13} parent=35 // pred_fallthru
        _
    $region36: #{facenet_forward.13} parent=5 // pred_fallthru
      _
    %p1160 = scmp.le.s32.totalorder 2, %s10
    // Predicated region
    $region41: #{facenet_forward.13} parent=5 // pred_check
      %p1161 = pneg %p1160
    $region42: #{facenet_forward.13} parent=5 // pred_check_branch
      %1163 = sbr.rel (%p1161) target = $region44
    $region43: #{facenet_forward.13} parent=5 // pred_region
      %s1164 = ssub.s32 %s10, 2
      // Predicated region
      $region45: #{facenet_forward.13} parent=43 // pred_check
        %p1165 = pneg %p142
      $region46: #{facenet_forward.13} parent=43 // pred_check_branch
        %1167 = sbr.rel (%p1165) target = $region48
      $region47: #{facenet_forward.13} parent=43 // pred_region
        %s1168 = smul.u32 5, %s22
        %p1169 = scmp.lt.s32.totalorder %s21, 1
        %s1170 = scalar_select %p1169, %s21, 1
        %p1171 = scmp.lt.s32.totalorder %s1168, 4
        %s1172 = scalar_select %p1171, %s1168, 4
        %s1173 = smul.addr %s1170, 5
        %s1174 = sadd.s32 %s1172, %s1173
        %s1175 = smul.addr %s1174, 8
        %s1176 = scalar_lea.vmem %s4, %s1175
      $region48: #{facenet_forward.13} parent=43 // pred_fallthru
        _
    $region44: #{facenet_forward.13} parent=5 // pred_fallthru
      _
  $region6: #{facenet_forward.13} parent=0 // loop_footer
    %s14 = sadd.s32 1, %s10
  $region7: #{facenet_forward.13} parent=0 // loop_footer_branch
    %9 = sbr.rel target = $region3
  $region8: #{facenet_forward.13} parent=0 // loop_exit
    _

// kernel: facenet_forward.14
$region0: #{facenet_forward.14}
  #allocation0 [shape = 'u32[]', space=smem, size = 0x4, offset = 0x4, fixed_abs, tag = 'smem constant byte address 0x4 - core index']
  #allocation1 [shape = 'u32[72,128]{1,0:T(1,128)}', space=vmem, size = 0x9000, scoped, tag = 'internal scratch']
  %s0 = inlined_call_operand.vmem [shape: f32[2,4,16,128], index: 0, kind: input, shape index: {}]
  %s1 = inlined_call_operand.vmem [shape: bf16[9,128,128], index: 1, kind: input, shape index: {}]
  %s2 = inlined_call_operand.vmem [shape: f32[1,128], index: 2, kind: input, shape index: {}]
  %s3 = inlined_call_operand.vmem [shape: f32[1,128], index: 3, kind: input, shape index: {}]
  %s4 = inlined_call_operand.vmem [shape: f32[2,8,128], index: 4, kind: output, shape index: {}]
  %s5 = sld [smem:[#allocation0]]
  $region49: #{facenet_forward.14} parent=0
    _
  %s7 = ssub.s32 1, %s5
  %s8 = scalar_select 0, %s7, %s5
  loop: start=0, step=1, limit=4
  $region2: #{facenet_forward.14} parent=0 // loop_pre_header
    _
  $region3: #{facenet_forward.14} parent=0 // loop_header
    %s10 = sphi 0, %s14
    %p11 = scmp.ge.s32.totalorder %s10, 4
    %s17 = sphi 0, %s29
    %s18 = sphi 0, %s25
    %s19 = sphi 0, %s17
    %s20 = sphi 0, %s18
    %s21 = sphi 0, %s19
    %s22 = sphi 0, %s20
    %s32 = sphi 0, %s34
    %s35 = sphi 0, %s32
    %s36 = sphi 0, %s35
    %s52 = sphi 0, %s36
    %s56 = sphi 0, %s56
    %s58 = sphi 0, %s56
    %s59 = sphi 0, %s58
    %s73 = sphi 0, %s59
    %s77 = sphi 0, %s77
    %s79 = sphi 0, %s77
    %s80 = sphi 0, %s79
    %s94 = sphi 0, %s80
    %s98 = sphi 0, %s98
    %s100 = sphi 0, %s98
    %s101 = sphi 0, %s100
    %s115 = sphi 0, %s101
    %s123 = sphi 0, %s125
    %s126 = sphi 0, %s123
    %s127 = sphi 0, %s126
    %s143 = sphi 0, %s127
  $region4: #{facenet_forward.14} parent=0 // loop_header_branch
    %13 = sbr.rel (%p11) target = $region8
  $region5: #{facenet_forward.14} parent=0 // loop_body
    %s15 = ssub.s32 %s10, 1
    %s16 = ssub.s32 %s10, 2
    %s23 = sadd.s32 1, %s18
    %p24 = scmp.ge.s32.totalorder %s23, 1
    %s25 = scalar_select %p24, 0, %s23
    %s26 = sadd.s32 1, %s17
    %s27 = scalar_select %p24, %s26, %s17
    %p28 = scmp.ge.s32.totalorder %s27, 2
    %s29 = scalar_select %p28, 0, %s27
    %s30 = ssub.s32 %s17, %s29
    %p31 = scmp.eq.s32.totalorder %s30, 0
    %s33 = sadd.s32 %s32, 1
    %s34 = scalar_select %p31, %s32, %s33
    %p37 = pneg %p31
    %p38 = scmp.eq.s32.totalorder %s10, 1
    %p39 = por %p37, %p38
    %p40 = scmp.ne.s32.totalorder %s32, %s35
    %p41 = scmp.eq.s32.totalorder %s10, 0
    %p42 = por %p40, %p41
    %p43 = scmp.ne.s32.totalorder %s32, %s35
    %p44 = scmp.eq.s32.totalorder %s15, 1
    %p45 = por %p43, %p44
    %p46 = scmp.ne.s32.totalorder %s35, %s36
    %p47 = scmp.eq.s32.totalorder %s15, 0
    %p48 = por %p46, %p47
    %p49 = scmp.ne.s32.totalorder %s35, %s36
    %p50 = scmp.eq.s32.totalorder %s16, 1
    %p51 = por %p49, %p50
    %p53 = scmp.ne.s32.totalorder %s36, %s52
    %p54 = scmp.eq.s32.totalorder %s16, 0
    %p55 = por %p53, %p54
    %s57 = sadd.s32 %s56, 1
    %p60 = scmp.eq.s32.totalorder %s10, 1
    %p61 = scmp.ne.s32.totalorder %s56, %s58
    %p62 = scmp.eq.s32.totalorder %s10, 0
    %p63 = por %p61, %p62
    %p64 = scmp.ne.s32.totalorder %s56, %s58
    %p65 = scmp.eq.s32.totalorder %s15, 1
    %p66 = por %p64, %p65
    %p67 = scmp.ne.s32.totalorder %s58, %s59
    %p68 = scmp.eq.s32.totalorder %s15, 0
    %p69 = por %p67, %p68
    %p70 = scmp.ne.s32.totalorder %s58, %s59
    %p71 = scmp.eq.s32.totalorder %s16, 1
    %p72 = por %p70, %p71
    %p74 = scmp.ne.s32.totalorder %s59, %s73
    %p75 = scmp.eq.s32.totalorder %s16, 0
    %p76 = por %p74, %p75
    %s78 = sadd.s32 %s77, 1
    %p81 = scmp.eq.s32.totalorder %s10, 1
    %p82 = scmp.ne.s32.totalorder %s77, %s79
    %p83 = scmp.eq.s32.totalorder %s10, 0
    %p84 = por %p82, %p83
    %p85 = scmp.ne.s32.totalorder %s77, %s79
    %p86 = scmp.eq.s32.totalorder %s15, 1
    %p87 = por %p85, %p86
    %p88 = scmp.ne.s32.totalorder %s79, %s80
    %p89 = scmp.eq.s32.totalorder %s15, 0
    %p90 = por %p88, %p89
    %p91 = scmp.ne.s32.totalorder %s79, %s80
    %p92 = scmp.eq.s32.totalorder %s16, 1
    %p93 = por %p91, %p92
    %p95 = scmp.ne.s32.totalorder %s80, %s94
    %p96 = scmp.eq.s32.totalorder %s16, 0
    %p97 = por %p95, %p96
    %s99 = sadd.s32 %s98, 1
    %p102 = scmp.eq.s32.totalorder %s10, 1
    %p103 = scmp.ne.s32.totalorder %s98, %s100
    %p104 = scmp.eq.s32.totalorder %s10, 0
    %p105 = por %p103, %p104
    %p106 = scmp.ne.s32.totalorder %s98, %s100
    %p107 = scmp.eq.s32.totalorder %s15, 1
    %p108 = por %p106, %p107
    %p109 = scmp.ne.s32.totalorder %s100, %s101
    %p110 = scmp.eq.s32.totalorder %s15, 0
    %p111 = por %p109, %p110
    %p112 = scmp.ne.s32.totalorder %s100, %s101
    %p113 = scmp.eq.s32.totalorder %s16, 1
    %p114 = por %p112, %p113
    %p116 = scmp.ne.s32.totalorder %s101, %s115
    %p117 = scmp.eq.s32.totalorder %s16, 0
    %p118 = por %p116, %p117
    %s119 = ssub.s32 %s17, %s29
    %s120 = ssub.s32 %s18, %s25
    %s121 = sor.u32 %s119, %s120
    %p122 = scmp.eq.s32.totalorder %s121, 0
    %s124 = sadd.s32 %s123, 1
    %s125 = scalar_select %p122, %s123, %s124
    %p128 = pneg %p122
    %p129 = scmp.eq.s32.totalorder %s10, 1
    %p130 = por %p128, %p129
    %p131 = scmp.ne.s32.totalorder %s123, %s126
    %p132 = scmp.eq.s32.totalorder %s10, 0
    %p133 = por %p131, %p132
    %p134 = scmp.ne.s32.totalorder %s123, %s126
    %p135 = scmp.eq.s32.totalorder %s15, 1
    %p136 = por %p134, %p135
    %p137 = scmp.ne.s32.totalorder %s126, %s127
    %p138 = scmp.eq.s32.totalorder %s15, 0
    %p139 = por %p137, %p138
    %p140 = scmp.ne.s32.totalorder %s126, %s127
    %p141 = scmp.eq.s32.totalorder %s16, 1
    %p142 = por %p140, %p141
    %p144 = scmp.ne.s32.totalorder %s127, %s143
    %p145 = scmp.eq.s32.totalorder %s16, 0
    %p146 = por %p144, %p145
    %p147 = scmp.le.s32.totalorder 1, %s10
    %p148 = scmp.lt.s32.totalorder %s10, 3
    %p149 = pnand %p147, %p148
    %p150 = pneg %p149
    // Predicated region
    $region9: #{facenet_forward.14} parent=5 // pred_check
      _
    $region10: #{facenet_forward.14} parent=5 // pred_check_branch
      %152 = sbr.rel (%p149) target = $region12
    $region11: #{facenet_forward.14} parent=5 // pred_region
      %s153 = ssub.s32 %s10, 1
      // Predicated region
      $region13: #{facenet_forward.14} parent=11 // pred_check
        %p154 = pneg %p69
      $region14: #{facenet_forward.14} parent=11 // pred_check_branch
        %156 = sbr.rel (%p154) target = $region16
      $region15: #{facenet_forward.14} parent=11 // pred_region
        _
      $region16: #{facenet_forward.14} parent=11 // pred_fallthru
        _
      // Predicated region
      $region17: #{facenet_forward.14} parent=11 // pred_check
        %p157 = pneg %p90
      $region18: #{facenet_forward.14} parent=11 // pred_check_branch
        %159 = sbr.rel (%p157) target = $region20
      $region19: #{facenet_forward.14} parent=11 // pred_region
        _
      $region20: #{facenet_forward.14} parent=11 // pred_fallthru
        _
      // Predicated region
      $region21: #{facenet_forward.14} parent=11 // pred_check
        %p160 = pneg %p111
      $region22: #{facenet_forward.14} parent=11 // pred_check_branch
        %162 = sbr.rel (%p160) target = $region24
      $region23: #{facenet_forward.14} parent=11 // pred_region
        _
      $region24: #{facenet_forward.14} parent=11 // pred_fallthru
        _
    $region12: #{facenet_forward.14} parent=5 // pred_fallthru
      _
    %p163 = scmp.lt.s32.totalorder %s10, 2
    // Predicated region
    $region25: #{facenet_forward.14} parent=5 // pred_check
      %p164 = pneg %p163
    $region26: #{facenet_forward.14} parent=5 // pred_check_branch
      %166 = sbr.rel (%p164) target = $region28
    $region27: #{facenet_forward.14} parent=5 // pred_region
      // Predicated region
      $region29: #{facenet_forward.14} parent=27 // pred_check
        %p167 = pneg %p42
      $region30: #{facenet_forward.14} parent=27 // pred_check_branch
        %169 = sbr.rel (%p167) target = $region32
      $region31: #{facenet_forward.14} parent=27 // pred_region
        %p170 = scmp.lt.s32.totalorder %s17, 1
        %s171 = scalar_select %p170, %s17, 1
        %s172 = smul.addr %s171, 8
        %s173 = smul.addr %s172, 8
        %s174 = scalar_lea.vmem %s0, %s173
      $region32: #{facenet_forward.14} parent=27 // pred_fallthru
        _
    $region28: #{facenet_forward.14} parent=5 // pred_fallthru
      _
    %p175 = scmp.le.s32.totalorder 1, %s10
    %p176 = scmp.lt.s32.totalorder %s10, 3
    %p177 = pnand %p175, %p176
    %p178 = pneg %p177
    // Predicated region
    $region33: #{facenet_forward.14} parent=5 // pred_check
      _
    $region34: #{facenet_forward.14} parent=5 // pred_check_branch
      %180 = sbr.rel (%p177) target = $region36
    $region35: #{facenet_forward.14} parent=5 // pred_region
      %s181 = ssub.s32 %s10, 1
      %p182 = scmp.lt.s32.totalorder %s19, 1
      %s183 = scalar_select %p182, %s19, 1
      %s184 = smul.addr %s183, 8
      %s185 = smul.addr %s184, 8
      %s186 = scalar_lea.vmem %s0, %s185
      %p187 = pneg %p48
      %p188 = pneg %p45
      %p189 = pneg %p69
      %p190 = pneg %p66
      %p191 = pneg %p90
      %p192 = pneg %p87
      %p193 = pneg %p111
      %p194 = pneg %p108
      %p195 = pneg %p139
      %p196 = pneg %p136
      %p197 = scmp.lt.s32.totalorder %s19, 1
      %s198 = scalar_select %p197, %s19, 1
      %p199 = scmp.lt.s32.totalorder %s20, 0
      %s200 = scalar_select %p199, %s20, 0
      %s201 = sadd.s32 %s200, %s198
      %s202 = smul.addr %s201, 8
      %s203 = scalar_lea.vmem %s4, %s202
      %p204 = scmp.lt.s32.totalorder %s19, 1
      %s205 = scalar_select %p204, %s19, 1
      %s206 = smul.addr %s205, 8
      %s207 = smul.addr %s206, 8
      %s208 = scalar_lea.vmem %s0, %s207
      %p209 = scmp.lt.s32.totalorder %s19, 1
      %s210 = scalar_select %p209, %s19, 1
      %p211 = scmp.lt.s32.totalorder %s20, 0
      %s212 = scalar_select %p211, %s20, 0
      %s213 = sadd.s32 %s212, %s210
      %s214 = smul.addr %s213, 8
      %s215 = scalar_lea.vmem %s4, %s214
      %v216 = vld [vmem:[%s208] sm:$0xff]
      %v217 = vpack.c.bf16 %v216, %v216
      %v218 = vld [vmem:[%s1] sm:$0xf]
      %v219 = vld [vmem:[%s1 + $0x4] sm:$0xf]
      %v220 = vld [vmem:[%s1 + $0x8] sm:$0xf]
      %v221 = vld [vmem:[%s1 + $0xc] sm:$0xf]
      %v222 = vld [vmem:[%s1 + $0x10] sm:$0xf]
      %v223 = vld [vmem:[%s1 + $0x14] sm:$0xf]
      %v224 = vld [vmem:[%s1 + $0x18] sm:$0xf]
      %v225 = vld [vmem:[%s1 + $0x1c] sm:$0xf]
      %v226 = vld [vmem:[%s1 + $0x20] sm:$0xf]
      %v227 = vld [vmem:[%s1 + $0x24] sm:$0xf]
      %v228 = vld [vmem:[%s1 + $0x28] sm:$0xf]
      %v229 = vld [vmem:[%s1 + $0x2c] sm:$0xf]
      %v230 = vld [vmem:[%s1 + $0x30] sm:$0xf]
      %v231 = vld [vmem:[%s1 + $0x34] sm:$0xf]
      %v232 = vld [vmem:[%s1 + $0x38] sm:$0xf]
      %v233 = vld [vmem:[%s1 + $0x3c] sm:$0xf]
      %s234 = scalar_lea.vmem %s208, 16
      %v235 = vld [vmem:[%s234] sm:$0xff]
      %v236 = vpack.c.bf16 %v235, %v235
      %s237 = scalar_lea.vmem %s1, 64
      %v238 = vld [vmem:[%s237] sm:$0xf]
      %v239 = vld [vmem:[%s237 + $0x4] sm:$0xf]
      %v240 = vld [vmem:[%s237 + $0x8] sm:$0xf]
      %v241 = vld [vmem:[%s237 + $0xc] sm:$0xf]
      %v242 = vld [vmem:[%s237 + $0x10] sm:$0xf]
      %v243 = vld [vmem:[%s237 + $0x14] sm:$0xf]
      %v244 = vld [vmem:[%s237 + $0x18] sm:$0xf]
      %v245 = vld [vmem:[%s237 + $0x1c] sm:$0xf]
      %v246 = vld [vmem:[%s237 + $0x20] sm:$0xf]
      %v247 = vld [vmem:[%s237 + $0x24] sm:$0xf]
      %v248 = vld [vmem:[%s237 + $0x28] sm:$0xf]
      %v249 = vld [vmem:[%s237 + $0x2c] sm:$0xf]
      %v250 = vld [vmem:[%s237 + $0x30] sm:$0xf]
      %v251 = vld [vmem:[%s237 + $0x34] sm:$0xf]
      %v252 = vld [vmem:[%s237 + $0x38] sm:$0xf]
      %v253 = vld [vmem:[%s237 + $0x3c] sm:$0xf]
      %v270 = vunpack.c.l.b16 %v238
      %v271 = vunpack.c.l.b16 %v239
      %v272 = vunpack.c.l.b16 %v240
      %v273 = vunpack.c.l.b16 %v241
      %v274 = vunpack.c.l.b16 %v242
      %v275 = vunpack.c.l.b16 %v243
      %v276 = vunpack.c.l.b16 %v244
      %v277 = vunpack.c.l.b16 %v245
      %v278 = vunpack.c.l.b16 %v246
      %v279 = vunpack.c.l.b16 %v247
      %v280 = vunpack.c.l.b16 %v248
      %v281 = vunpack.c.l.b16 %v249
      %v282 = vunpack.c.l.b16 %v250
      %v283 = vunpack.c.l.b16 %v251
      %v284 = vunpack.c.l.b16 %v252
      %v285 = vunpack.c.l.b16 %v253
      %v286 = vpack.c.b16 %v271, %v270
      %v287 = vpack.c.b16 %v273, %v272
      %v288 = vpack.c.b16 %v275, %v274
      %v289 = vpack.c.b16 %v277, %v276
      %v290 = vpack.c.b16 %v279, %v278
      %v291 = vpack.c.b16 %v281, %v280
      %v292 = vpack.c.b16 %v283, %v282
      %v293 = vpack.c.b16 %v285, %v284
      %302 = vmatpush.bf16.msra.mxu0 %v293
      %303 = vmatpush.bf16.msra.mxu0 %v292
      %304 = vmatpush.bf16.msra.mxu0 %v291
      %305 = vmatpush.bf16.msra.mxu0 %v290
      %306 = vmatpush.bf16.msra.mxu0 %v289
      %307 = vmatpush.bf16.msra.mxu0 %v288
      %308 = vmatpush.bf16.msra.mxu0 %v287
      %309 = vmatpush.bf16.msra.mxu0 %v286
      %310 = vmatmul.bf16.gmra.mxu0 %v236
      %v311 = vpop.f32.mrf.mxu0
      %v312 = vadd.f32 0.0, %v311
      %v313 = vpop.f32.mrf.mxu0
      %314 = vdwg.mxu0
      %v331 = vunpack.c.l.b16 %v218
      %v332 = vunpack.c.l.b16 %v219
      %v333 = vunpack.c.l.b16 %v220
      %v334 = vunpack.c.l.b16 %v221
      %v335 = vunpack.c.l.b16 %v222
      %v336 = vunpack.c.l.b16 %v223
      %v337 = vunpack.c.l.b16 %v224
      %v338 = vunpack.c.l.b16 %v225
      %v339 = vunpack.c.l.b16 %v226
      %v340 = vunpack.c.l.b16 %v227
      %v341 = vunpack.c.l.b16 %v228
      %v342 = vunpack.c.l.b16 %v229
      %v343 = vunpack.c.l.b16 %v230
      %v344 = vunpack.c.l.b16 %v231
      %v345 = vunpack.c.l.b16 %v232
      %v346 = vunpack.c.l.b16 %v233
      %v347 = vpack.c.b16 %v332, %v331
      %v348 = vpack.c.b16 %v334, %v333
      %v349 = vpack.c.b16 %v336, %v335
      %v350 = vpack.c.b16 %v338, %v337
      %v351 = vpack.c.b16 %v340, %v339
      %v352 = vpack.c.b16 %v342, %v341
      %v353 = vpack.c.b16 %v344, %v343
      %v354 = vpack.c.b16 %v346, %v345
      %363 = vmatpush.bf16.msra.mxu0 %v354
      %364 = vmatpush.bf16.msra.mxu0 %v353
      %365 = vmatpush.bf16.msra.mxu0 %v352
      %366 = vmatpush.bf16.msra.mxu0 %v351
      %367 = vmatpush.bf16.msra.mxu0 %v350
      %368 = vmatpush.bf16.msra.mxu0 %v349
      %369 = vmatpush.bf16.msra.mxu0 %v348
      %370 = vmatpush.bf16.msra.mxu0 %v347
      %371 = vmatmul.bf16.gmra.mxu0 %v217
      %v372 = vpop.f32.mrf.mxu0
      %v373 = vadd.f32 %v312, %v372
      %v374 = vpop.f32.mrf.mxu0
      %375 = vdwg.mxu0
      %v376 = vld [vmem:[%s208 + $0x1] sm:$0xff]
      %v377 = vpack.c.bf16 %v376, %v376
      %s378 = scalar_lea.vmem %s1, 128
      %v379 = vld [vmem:[%s378] sm:$0xf]
      %v380 = vld [vmem:[%s378 + $0x4] sm:$0xf]
      %v381 = vld [vmem:[%s378 + $0x8] sm:$0xf]
      %v382 = vld [vmem:[%s378 + $0xc] sm:$0xf]
      %v383 = vld [vmem:[%s378 + $0x10] sm:$0xf]
      %v384 = vld [vmem:[%s378 + $0x14] sm:$0xf]
      %v385 = vld [vmem:[%s378 + $0x18] sm:$0xf]
      %v386 = vld [vmem:[%s378 + $0x1c] sm:$0xf]
      %v387 = vld [vmem:[%s378 + $0x20] sm:$0xf]
      %v388 = vld [vmem:[%s378 + $0x24] sm:$0xf]
      %v389 = vld [vmem:[%s378 + $0x28] sm:$0xf]
      %v390 = vld [vmem:[%s378 + $0x2c] sm:$0xf]
      %v391 = vld [vmem:[%s378 + $0x30] sm:$0xf]
      %v392 = vld [vmem:[%s378 + $0x34] sm:$0xf]
      %v393 = vld [vmem:[%s378 + $0x38] sm:$0xf]
      %v394 = vld [vmem:[%s378 + $0x3c] sm:$0xf]
      %v411 = vunpack.c.l.b16 %v379
      %v412 = vunpack.c.l.b16 %v380
      %v413 = vunpack.c.l.b16 %v381
      %v414 = vunpack.c.l.b16 %v382
      %v415 = vunpack.c.l.b16 %v383
      %v416 = vunpack.c.l.b16 %v384
      %v417 = vunpack.c.l.b16 %v385
      %v418 = vunpack.c.l.b16 %v386
      %v419 = vunpack.c.l.b16 %v387
      %v420 = vunpack.c.l.b16 %v388
      %v421 = vunpack.c.l.b16 %v389
      %v422 = vunpack.c.l.b16 %v390
      %v423 = vunpack.c.l.b16 %v391
      %v424 = vunpack.c.l.b16 %v392
      %v425 = vunpack.c.l.b16 %v393
      %v426 = vunpack.c.l.b16 %v394
      %v427 = vpack.c.b16 %v412, %v411
      %v428 = vpack.c.b16 %v414, %v413
      %v429 = vpack.c.b16 %v416, %v415
      %v430 = vpack.c.b16 %v418, %v417
      %v431 = vpack.c.b16 %v420, %v419
      %v432 = vpack.c.b16 %v422, %v421
      %v433 = vpack.c.b16 %v424, %v423
      %v434 = vpack.c.b16 %v426, %v425
      %443 = vmatpush.bf16.msra.mxu0 %v434
      %444 = vmatpush.bf16.msra.mxu0 %v433
      %445 = vmatpush.bf16.msra.mxu0 %v432
      %446 = vmatpush.bf16.msra.mxu0 %v431
      %447 = vmatpush.bf16.msra.mxu0 %v430
      %448 = vmatpush.bf16.msra.mxu0 %v429
      %449 = vmatpush.bf16.msra.mxu0 %v428
      %450 = vmatpush.bf16.msra.mxu0 %v427
      %451 = vmatmul.bf16.gmra.mxu0 %v377
      %v452 = vpop.f32.mrf.mxu0
      %v453 = vadd.f32 0.0, %v452
      %v454 = vpop.f32.mrf.mxu0
      %455 = vdwg.mxu0
      %v456 = vadd.f32 %v373, %v453
      %s457 = scalar_lea.vmem %s208, 32
      %v458 = vld [vmem:[%s457] sm:$0xff]
      %v459 = vpack.c.bf16 %v458, %v458
      %s460 = scalar_lea.vmem %s1, 192
      %v461 = vld [vmem:[%s460] sm:$0xf]
      %v462 = vld [vmem:[%s460 + $0x4] sm:$0xf]
      %v463 = vld [vmem:[%s460 + $0x8] sm:$0xf]
      %v464 = vld [vmem:[%s460 + $0xc] sm:$0xf]
      %v465 = vld [vmem:[%s460 + $0x10] sm:$0xf]
      %v466 = vld [vmem:[%s460 + $0x14] sm:$0xf]
      %v467 = vld [vmem:[%s460 + $0x18] sm:$0xf]
      %v468 = vld [vmem:[%s460 + $0x1c] sm:$0xf]
      %v469 = vld [vmem:[%s460 + $0x20] sm:$0xf]
      %v470 = vld [vmem:[%s460 + $0x24] sm:$0xf]
      %v471 = vld [vmem:[%s460 + $0x28] sm:$0xf]
      %v472 = vld [vmem:[%s460 + $0x2c] sm:$0xf]
      %v473 = vld [vmem:[%s460 + $0x30] sm:$0xf]
      %v474 = vld [vmem:[%s460 + $0x34] sm:$0xf]
      %v475 = vld [vmem:[%s460 + $0x38] sm:$0xf]
      %v476 = vld [vmem:[%s460 + $0x3c] sm:$0xf]
      %v493 = vunpack.c.l.b16 %v461
      %v494 = vunpack.c.l.b16 %v462
      %v495 = vunpack.c.l.b16 %v463
      %v496 = vunpack.c.l.b16 %v464
      %v497 = vunpack.c.l.b16 %v465
      %v498 = vunpack.c.l.b16 %v466
      %v499 = vunpack.c.l.b16 %v467
      %v500 = vunpack.c.l.b16 %v468
      %v501 = vunpack.c.l.b16 %v469
      %v502 = vunpack.c.l.b16 %v470
      %v503 = vunpack.c.l.b16 %v471
      %v504 = vunpack.c.l.b16 %v472
      %v505 = vunpack.c.l.b16 %v473
      %v506 = vunpack.c.l.b16 %v474
      %v507 = vunpack.c.l.b16 %v475
      %v508 = vunpack.c.l.b16 %v476
      %v509 = vpack.c.b16 %v494, %v493
      %v510 = vpack.c.b16 %v496, %v495
      %v511 = vpack.c.b16 %v498, %v497
      %v512 = vpack.c.b16 %v500, %v499
      %v513 = vpack.c.b16 %v502, %v501
      %v514 = vpack.c.b16 %v504, %v503
      %v515 = vpack.c.b16 %v506, %v505
      %v516 = vpack.c.b16 %v508, %v507
      %525 = vmatpush.bf16.msra.mxu0 %v516
      %526 = vmatpush.bf16.msra.mxu0 %v515
      %527 = vmatpush.bf16.msra.mxu0 %v514
      %528 = vmatpush.bf16.msra.mxu0 %v513
      %529 = vmatpush.bf16.msra.mxu0 %v512
      %530 = vmatpush.bf16.msra.mxu0 %v511
      %531 = vmatpush.bf16.msra.mxu0 %v510
      %532 = vmatpush.bf16.msra.mxu0 %v509
      %533 = vmatmul.bf16.gmra.mxu0 %v459
      %v534 = vpop.f32.mrf.mxu0
      %v535 = vadd.f32 0.0, %v534
      %v536 = vpop.f32.mrf.mxu0
      %537 = vdwg.mxu0
      %v538 = vadd.f32 %v456, %v535
      %s539 = scalar_lea.vmem %s208, 48
      %v540 = vld [vmem:[%s539] sm:$0xff]
      %v541 = vpack.c.bf16 %v540, %v540
      %s542 = scalar_lea.vmem %s1, 256
      %v543 = vld [vmem:[%s542] sm:$0xf]
      %v544 = vld [vmem:[%s542 + $0x4] sm:$0xf]
      %v545 = vld [vmem:[%s542 + $0x8] sm:$0xf]
      %v546 = vld [vmem:[%s542 + $0xc] sm:$0xf]
      %v547 = vld [vmem:[%s542 + $0x10] sm:$0xf]
      %v548 = vld [vmem:[%s542 + $0x14] sm:$0xf]
      %v549 = vld [vmem:[%s542 + $0x18] sm:$0xf]
      %v550 = vld [vmem:[%s542 + $0x1c] sm:$0xf]
      %v551 = vld [vmem:[%s542 + $0x20] sm:$0xf]
      %v552 = vld [vmem:[%s542 + $0x24] sm:$0xf]
      %v553 = vld [vmem:[%s542 + $0x28] sm:$0xf]
      %v554 = vld [vmem:[%s542 + $0x2c] sm:$0xf]
      %v555 = vld [vmem:[%s542 + $0x30] sm:$0xf]
      %v556 = vld [vmem:[%s542 + $0x34] sm:$0xf]
      %v557 = vld [vmem:[%s542 + $0x38] sm:$0xf]
      %v558 = vld [vmem:[%s542 + $0x3c] sm:$0xf]
      %v575 = vunpack.c.l.b16 %v543
      %v576 = vunpack.c.l.b16 %v544
      %v577 = vunpack.c.l.b16 %v545
      %v578 = vunpack.c.l.b16 %v546
      %v579 = vunpack.c.l.b16 %v547
      %v580 = vunpack.c.l.b16 %v548
      %v581 = vunpack.c.l.b16 %v549
      %v582 = vunpack.c.l.b16 %v550
      %v583 = vunpack.c.l.b16 %v551
      %v584 = vunpack.c.l.b16 %v552
      %v585 = vunpack.c.l.b16 %v553
      %v586 = vunpack.c.l.b16 %v554
      %v587 = vunpack.c.l.b16 %v555
      %v588 = vunpack.c.l.b16 %v556
      %v589 = vunpack.c.l.b16 %v557
      %v590 = vunpack.c.l.b16 %v558
      %v591 = vpack.c.b16 %v576, %v575
      %v592 = vpack.c.b16 %v578, %v577
      %v593 = vpack.c.b16 %v580, %v579
      %v594 = vpack.c.b16 %v582, %v581
      %v595 = vpack.c.b16 %v584, %v583
      %v596 = vpack.c.b16 %v586, %v585
      %v597 = vpack.c.b16 %v588, %v587
      %v598 = vpack.c.b16 %v590, %v589
      %607 = vmatpush.bf16.msra.mxu0 %v598
      %608 = vmatpush.bf16.msra.mxu0 %v597
      %609 = vmatpush.bf16.msra.mxu0 %v596
      %610 = vmatpush.bf16.msra.mxu0 %v595
      %611 = vmatpush.bf16.msra.mxu0 %v594
      %612 = vmatpush.bf16.msra.mxu0 %v593
      %613 = vmatpush.bf16.msra.mxu0 %v592
      %614 = vmatpush.bf16.msra.mxu0 %v591
      %615 = vmatmul.bf16.gmra.mxu0 %v541
      %v616 = vpop.f32.mrf.mxu0
      %v617 = vadd.f32 0.0, %v616
      %v618 = vpop.f32.mrf.mxu0
      %619 = vdwg.mxu0
      %v620 = vadd.f32 %v538, %v617
      %v621 = vld [vmem:[%s457 + $0x1] sm:$0xff]
      %v622 = vpack.c.bf16 %v621, %v621
      %s623 = scalar_lea.vmem %s1, 320
      %v624 = vld [vmem:[%s623] sm:$0xf]
      %v625 = vld [vmem:[%s623 + $0x4] sm:$0xf]
      %v626 = vld [vmem:[%s623 + $0x8] sm:$0xf]
      %v627 = vld [vmem:[%s623 + $0xc] sm:$0xf]
      %v628 = vld [vmem:[%s623 + $0x10] sm:$0xf]
      %v629 = vld [vmem:[%s623 + $0x14] sm:$0xf]
      %v630 = vld [vmem:[%s623 + $0x18] sm:$0xf]
      %v631 = vld [vmem:[%s623 + $0x1c] sm:$0xf]
      %v632 = vld [vmem:[%s623 + $0x20] sm:$0xf]
      %v633 = vld [vmem:[%s623 + $0x24] sm:$0xf]
      %v634 = vld [vmem:[%s623 + $0x28] sm:$0xf]
      %v635 = vld [vmem:[%s623 + $0x2c] sm:$0xf]
      %v636 = vld [vmem:[%s623 + $0x30] sm:$0xf]
      %v637 = vld [vmem:[%s623 + $0x34] sm:$0xf]
      %v638 = vld [vmem:[%s623 + $0x38] sm:$0xf]
      %v639 = vld [vmem:[%s623 + $0x3c] sm:$0xf]
      %v656 = vunpack.c.l.b16 %v624
      %v657 = vunpack.c.l.b16 %v625
      %v658 = vunpack.c.l.b16 %v626
      %v659 = vunpack.c.l.b16 %v627
      %v660 = vunpack.c.l.b16 %v628
      %v661 = vunpack.c.l.b16 %v629
      %v662 = vunpack.c.l.b16 %v630
      %v663 = vunpack.c.l.b16 %v631
      %v664 = vunpack.c.l.b16 %v632
      %v665 = vunpack.c.l.b16 %v633
      %v666 = vunpack.c.l.b16 %v634
      %v667 = vunpack.c.l.b16 %v635
      %v668 = vunpack.c.l.b16 %v636
      %v669 = vunpack.c.l.b16 %v637
      %v670 = vunpack.c.l.b16 %v638
      %v671 = vunpack.c.l.b16 %v639
      %v672 = vpack.c.b16 %v657, %v656
      %v673 = vpack.c.b16 %v659, %v658
      %v674 = vpack.c.b16 %v661, %v660
      %v675 = vpack.c.b16 %v663, %v662
      %v676 = vpack.c.b16 %v665, %v664
      %v677 = vpack.c.b16 %v667, %v666
      %v678 = vpack.c.b16 %v669, %v668
      %v679 = vpack.c.b16 %v671, %v670
      %688 = vmatpush.bf16.msra.mxu0 %v679
      %689 = vmatpush.bf16.msra.mxu0 %v678
      %690 = vmatpush.bf16.msra.mxu0 %v677
      %691 = vmatpush.bf16.msra.mxu0 %v676
      %692 = vmatpush.bf16.msra.mxu0 %v675
      %693 = vmatpush.bf16.msra.mxu0 %v674
      %694 = vmatpush.bf16.msra.mxu0 %v673
      %695 = vmatpush.bf16.msra.mxu0 %v672
      %696 = vmatmul.bf16.gmra.mxu0 %v622
      %v697 = vpop.f32.mrf.mxu0
      %v698 = vadd.f32 0.0, %v697
      %v699 = vpop.f32.mrf.mxu0
      %700 = vdwg.mxu0
      %v701 = vadd.f32 %v620, %v698
      %v702 = vld [vmem:[%s208 + $0x3] sm:$0xff]
      %v703 = vpack.c.bf16 %v702, %v702
      %s704 = scalar_lea.vmem %s1, 384
      %v705 = vld [vmem:[%s704] sm:$0xf]
      %v706 = vld [vmem:[%s704 + $0x4] sm:$0xf]
      %v707 = vld [vmem:[%s704 + $0x8] sm:$0xf]
      %v708 = vld [vmem:[%s704 + $0xc] sm:$0xf]
      %v709 = vld [vmem:[%s704 + $0x10] sm:$0xf]
      %v710 = vld [vmem:[%s704 + $0x14] sm:$0xf]
      %v711 = vld [vmem:[%s704 + $0x18] sm:$0xf]
      %v712 = vld [vmem:[%s704 + $0x1c] sm:$0xf]
      %v713 = vld [vmem:[%s704 + $0x20] sm:$0xf]
      %v714 = vld [vmem:[%s704 + $0x24] sm:$0xf]
      %v715 = vld [vmem:[%s704 + $0x28] sm:$0xf]
      %v716 = vld [vmem:[%s704 + $0x2c] sm:$0xf]
      %v717 = vld [vmem:[%s704 + $0x30] sm:$0xf]
      %v718 = vld [vmem:[%s704 + $0x34] sm:$0xf]
      %v719 = vld [vmem:[%s704 + $0x38] sm:$0xf]
      %v720 = vld [vmem:[%s704 + $0x3c] sm:$0xf]
      %v737 = vunpack.c.l.b16 %v705
      %v738 = vunpack.c.l.b16 %v706
      %v739 = vunpack.c.l.b16 %v707
      %v740 = vunpack.c.l.b16 %v708
      %v741 = vunpack.c.l.b16 %v709
      %v742 = vunpack.c.l.b16 %v710
      %v743 = vunpack.c.l.b16 %v711
      %v744 = vunpack.c.l.b16 %v712
      %v745 = vunpack.c.l.b16 %v713
      %v746 = vunpack.c.l.b16 %v714
      %v747 = vunpack.c.l.b16 %v715
      %v748 = vunpack.c.l.b16 %v716
      %v749 = vunpack.c.l.b16 %v717
      %v750 = vunpack.c.l.b16 %v718
      %v751 = vunpack.c.l.b16 %v719
      %v752 = vunpack.c.l.b16 %v720
      %v753 = vpack.c.b16 %v738, %v737
      %v754 = vpack.c.b16 %v740, %v739
      %v755 = vpack.c.b16 %v742, %v741
      %v756 = vpack.c.b16 %v744, %v743
      %v757 = vpack.c.b16 %v746, %v745
      %v758 = vpack.c.b16 %v748, %v747
      %v759 = vpack.c.b16 %v750, %v749
      %v760 = vpack.c.b16 %v752, %v751
      %769 = vmatpush.bf16.msra.mxu0 %v760
      %770 = vmatpush.bf16.msra.mxu0 %v759
      %771 = vmatpush.bf16.msra.mxu0 %v758
      %772 = vmatpush.bf16.msra.mxu0 %v757
      %773 = vmatpush.bf16.msra.mxu0 %v756
      %774 = vmatpush.bf16.msra.mxu0 %v755
      %775 = vmatpush.bf16.msra.mxu0 %v754
      %776 = vmatpush.bf16.msra.mxu0 %v753
      %777 = vmatmul.bf16.gmra.mxu0 %v703
      %v778 = vpop.f32.mrf.mxu0
      %v779 = vadd.f32 0.0, %v778
      %v780 = vpop.f32.mrf.mxu0
      %781 = vdwg.mxu0
      %v782 = vadd.f32 %v701, %v779
      %v783 = vld [vmem:[%s234 + $0x3] sm:$0xff]
      %v784 = vpack.c.bf16 %v783, %v783
      %s785 = scalar_lea.vmem %s1, 448
      %v786 = vld [vmem:[%s785] sm:$0xf]
      %v787 = vld [vmem:[%s785 + $0x4] sm:$0xf]
      %v788 = vld [vmem:[%s785 + $0x8] sm:$0xf]
      %v789 = vld [vmem:[%s785 + $0xc] sm:$0xf]
      %v790 = vld [vmem:[%s785 + $0x10] sm:$0xf]
      %v791 = vld [vmem:[%s785 + $0x14] sm:$0xf]
      %v792 = vld [vmem:[%s785 + $0x18] sm:$0xf]
      %v793 = vld [vmem:[%s785 + $0x1c] sm:$0xf]
      %v794 = vld [vmem:[%s785 + $0x20] sm:$0xf]
      %v795 = vld [vmem:[%s785 + $0x24] sm:$0xf]
      %v796 = vld [vmem:[%s785 + $0x28] sm:$0xf]
      %v797 = vld [vmem:[%s785 + $0x2c] sm:$0xf]
      %v798 = vld [vmem:[%s785 + $0x30] sm:$0xf]
      %v799 = vld [vmem:[%s785 + $0x34] sm:$0xf]
      %v800 = vld [vmem:[%s785 + $0x38] sm:$0xf]
      %v801 = vld [vmem:[%s785 + $0x3c] sm:$0xf]
      %v818 = vunpack.c.l.b16 %v786
      %v819 = vunpack.c.l.b16 %v787
      %v820 = vunpack.c.l.b16 %v788
      %v821 = vunpack.c.l.b16 %v789
      %v822 = vunpack.c.l.b16 %v790
      %v823 = vunpack.c.l.b16 %v791
      %v824 = vunpack.c.l.b16 %v792
      %v825 = vunpack.c.l.b16 %v793
      %v826 = vunpack.c.l.b16 %v794
      %v827 = vunpack.c.l.b16 %v795
      %v828 = vunpack.c.l.b16 %v796
      %v829 = vunpack.c.l.b16 %v797
      %v830 = vunpack.c.l.b16 %v798
      %v831 = vunpack.c.l.b16 %v799
      %v832 = vunpack.c.l.b16 %v800
      %v833 = vunpack.c.l.b16 %v801
      %v834 = vpack.c.b16 %v819, %v818
      %v835 = vpack.c.b16 %v821, %v820
      %v836 = vpack.c.b16 %v823, %v822
      %v837 = vpack.c.b16 %v825, %v824
      %v838 = vpack.c.b16 %v827, %v826
      %v839 = vpack.c.b16 %v829, %v828
      %v840 = vpack.c.b16 %v831, %v830
      %v841 = vpack.c.b16 %v833, %v832
      %850 = vmatpush.bf16.msra.mxu0 %v841
      %851 = vmatpush.bf16.msra.mxu0 %v840
      %852 = vmatpush.bf16.msra.mxu0 %v839
      %853 = vmatpush.bf16.msra.mxu0 %v838
      %854 = vmatpush.bf16.msra.mxu0 %v837
      %855 = vmatpush.bf16.msra.mxu0 %v836
      %856 = vmatpush.bf16.msra.mxu0 %v835
      %857 = vmatpush.bf16.msra.mxu0 %v834
      %858 = vmatmul.bf16.gmra.mxu0 %v784
      %v859 = vpop.f32.mrf.mxu0
      %v860 = vadd.f32 0.0, %v859
      %v861 = vpop.f32.mrf.mxu0
      %862 = vdwg.mxu0
      %v863 = vadd.f32 %v782, %v860
      %v864 = vld [vmem:[%s208 + $0x4] sm:$0xff]
      %v865 = vpack.c.bf16 %v864, %v864
      %s866 = scalar_lea.vmem %s1, 512
      %v867 = vld [vmem:[%s866] sm:$0xf]
      %v868 = vld [vmem:[%s866 + $0x4] sm:$0xf]
      %v869 = vld [vmem:[%s866 + $0x8] sm:$0xf]
      %v870 = vld [vmem:[%s866 + $0xc] sm:$0xf]
      %v871 = vld [vmem:[%s866 + $0x10] sm:$0xf]
      %v872 = vld [vmem:[%s866 + $0x14] sm:$0xf]
      %v873 = vld [vmem:[%s866 + $0x18] sm:$0xf]
      %v874 = vld [vmem:[%s866 + $0x1c] sm:$0xf]
      %v875 = vld [vmem:[%s866 + $0x20] sm:$0xf]
      %v876 = vld [vmem:[%s866 + $0x24] sm:$0xf]
      %v877 = vld [vmem:[%s866 + $0x28] sm:$0xf]
      %v878 = vld [vmem:[%s866 + $0x2c] sm:$0xf]
      %v879 = vld [vmem:[%s866 + $0x30] sm:$0xf]
      %v880 = vld [vmem:[%s866 + $0x34] sm:$0xf]
      %v881 = vld [vmem:[%s866 + $0x38] sm:$0xf]
      %v882 = vld [vmem:[%s866 + $0x3c] sm:$0xf]
      %v899 = vunpack.c.l.b16 %v867
      %v900 = vunpack.c.l.b16 %v868
      %v901 = vunpack.c.l.b16 %v869
      %v902 = vunpack.c.l.b16 %v870
      %v903 = vunpack.c.l.b16 %v871
      %v904 = vunpack.c.l.b16 %v872
      %v905 = vunpack.c.l.b16 %v873
      %v906 = vunpack.c.l.b16 %v874
      %v907 = vunpack.c.l.b16 %v875
      %v908 = vunpack.c.l.b16 %v876
      %v909 = vunpack.c.l.b16 %v877
      %v910 = vunpack.c.l.b16 %v878
      %v911 = vunpack.c.l.b16 %v879
      %v912 = vunpack.c.l.b16 %v880
      %v913 = vunpack.c.l.b16 %v881
      %v914 = vunpack.c.l.b16 %v882
      %v915 = vpack.c.b16 %v900, %v899
      %v916 = vpack.c.b16 %v902, %v901
      %v917 = vpack.c.b16 %v904, %v903
      %v918 = vpack.c.b16 %v906, %v905
      %v919 = vpack.c.b16 %v908, %v907
      %v920 = vpack.c.b16 %v910, %v909
      %v921 = vpack.c.b16 %v912, %v911
      %v922 = vpack.c.b16 %v914, %v913
      %931 = vmatpush.bf16.msra.mxu0 %v922
      %932 = vmatpush.bf16.msra.mxu0 %v921
      %933 = vmatpush.bf16.msra.mxu0 %v920
      %934 = vmatpush.bf16.msra.mxu0 %v919
      %935 = vmatpush.bf16.msra.mxu0 %v918
      %936 = vmatpush.bf16.msra.mxu0 %v917
      %937 = vmatpush.bf16.msra.mxu0 %v916
      %938 = vmatpush.bf16.msra.mxu0 %v915
      %939 = vmatmul.bf16.gmra.mxu0 %v865
      %v940 = vpop.f32.mrf.mxu0
      %v941 = vadd.f32 0.0, %v940
      %v942 = vpop.f32.mrf.mxu0
      %943 = vdwg.mxu0
      %v944 = vadd.f32 %v863, %v941
      %v945 = vld [vmem:[%s2] sm:$0x1]
      %v947 = vperm.slane %v945, 0
      %v949 = vmul.f32 %v944, %v947
      %v950 = vld [vmem:[%s3] sm:$0x1]
      %v952 = vperm.slane %v950, 0
      %v954 = vadd.f32 %v949, %v952
      %v955 = vmax.f32 %v954, 0.0
      %956 = vst [vmem:[%s215] sm:$0xff] %v955
      %p957 = scmp.lt.s32.totalorder %s19, 1
      %s958 = scalar_select %p957, %s19, 1
      %p959 = scmp.lt.s32.totalorder %s20, 0
      %s960 = scalar_select %p959, %s20, 0
      %s961 = sadd.s32 %s960, %s958
      %s962 = smul.addr %s961, 8
      %s963 = scalar_lea.vmem %s4, %s962
      // Predicated region
      $region37: #{facenet_forward.14} parent=35 // pred_check
        %p964 = pneg %p136
      $region38: #{facenet_forward.14} parent=35 // pred_check_branch
        %966 = sbr.rel (%p964) target = $region40
      $region39: #{facenet_forward.14} parent=35 // pred_region
        _
      $region40: #{facenet_forward.14} parent=35 // pred_fallthru
        _
    $region36: #{facenet_forward.14} parent=5 // pred_fallthru
      _
    %p967 = scmp.le.s32.totalorder 2, %s10
    // Predicated region
    $region41: #{facenet_forward.14} parent=5 // pred_check
      %p968 = pneg %p967
    $region42: #{facenet_forward.14} parent=5 // pred_check_branch
      %970 = sbr.rel (%p968) target = $region44
    $region43: #{facenet_forward.14} parent=5 // pred_region
      %s971 = ssub.s32 %s10, 2
      // Predicated region
      $region45: #{facenet_forward.14} parent=43 // pred_check
        %p972 = pneg %p142
      $region46: #{facenet_forward.14} parent=43 // pred_check_branch
        %974 = sbr.rel (%p972) target = $region48
      $region47: #{facenet_forward.14} parent=43 // pred_region
        %p975 = scmp.lt.s32.totalorder %s21, 1
        %s976 = scalar_select %p975, %s21, 1
        %p977 = scmp.lt.s32.totalorder %s22, 0
        %s978 = scalar_select %p977, %s22, 0
        %s979 = sadd.s32 %s978, %s976
        %s980 = smul.addr %s979, 8
        %s981 = scalar_lea.vmem %s4, %s980
      $region48: #{facenet_forward.14} parent=43 // pred_fallthru
        _
    $region44: #{facenet_forward.14} parent=5 // pred_fallthru
      _
  $region6: #{facenet_forward.14} parent=0 // loop_footer
    %s14 = sadd.s32 1, %s10
  $region7: #{facenet_forward.14} parent=0 // loop_footer_branch
    %9 = sbr.rel target = $region3
  $region8: #{facenet_forward.14} parent=0 // loop_exit
    _

</llo_original>
